<compile_context>
chip_gen: v7x
topology: tpu7x:2x2x1
jax: 0.10.0
libtpu: 0.0.40
codegen_flags: <defaults>
</compile_context>

<pallas_src>
import functools

import jax
import jax.numpy as jnp
from jax.experimental import pallas as pl
from jax.experimental.pallas import tpu as pltpu


# ----------------------------- in-kernel math helpers -----------------------------

def _gelu_exact(x):
    # nn.GELU() default is the exact (erf-based) GELU.  erf via Abramowitz &
    # Stegun 7.1.26 (|err| < 1.5e-7); the divide goes to the EUP via
    # pl.reciprocal(approx=True).
    a1, a2, a3, a4, a5 = 0.254829592, -0.284496736, 1.421413741, -1.453152027, 1.061405429
    p = 0.3275911
    xs = x * 0.7071067811865476
    sgn = jnp.where(xs >= 0.0, 1.0, -1.0)
    ax = jnp.abs(xs)
    t = pl.reciprocal(1.0 + p * ax, approx=True)
    poly = ((((a5 * t + a4) * t + a3) * t + a2) * t + a1) * t
    erf = sgn * (1.0 - poly * jnp.exp(-ax * ax))
    return 0.5 * x * (1.0 + erf)


def _ln(x, g, b):
    # Row-wise LayerNorm over the last (lane) axis.  PyTorch eps = 1e-5.
    mean = jnp.mean(x, axis=-1, keepdims=True)
    xc = x - mean
    var = jnp.mean(xc * xc, axis=-1, keepdims=True)
    inv = jax.lax.rsqrt(var + 1e-5)
    return xc * inv * g + b


# ----------------------------- fused kernel -----------------------------

def _vit_fused_kernel(
    x_ref, embed_w_ref, embed_b_ref, cls_ref, pos_ref,
    ln1_g_ref, ln1_b_ref, qkv_w_ref, qkv_b_ref,
    out_w_ref, out_b_ref, ln2_g_ref, ln2_b_ref,
    fc1_w_ref, fc1_b_ref, fc2_w_ref, fc2_b_ref,
    cls_ln_g_ref, cls_ln_b_ref, head_w_ref, head_b_ref,
    o_ref,
    seq_scr, qkv_scr, ctx_scr, cls_scr,
    *, B, J, E, num_heads, num_layers):
  S = J + 1
  Dh = E // num_heads
  scale = 1.0 / (Dh ** 0.5)

  # ---- PatchEmbeddingLayer: Linear over flattened heatmaps, cls token, +pos ----
  tok = jnp.dot(x_ref[...], embed_w_ref[...],
                preferred_element_type=jnp.float32) + embed_b_ref[...]   # (B*J, E)
  cls_row = cls_ref[...] + pos_ref[pl.ds(0, 1), :]                       # (1, E)
  pos_tok = pos_ref[pl.ds(1, J), :]                                      # (J, E)
  for b in range(B):
    seq_scr[pl.ds(b * S, 1), :] = cls_row
    seq_scr[pl.ds(b * S + 1, J), :] = tok[b * J:(b + 1) * J, :] + pos_tok

  seq = seq_scr[...]                                                     # (B*S, E)

  # ---- transformer encoder: num_layers fully-unrolled fused layers ----
  for l in range(num_layers):
    # MultiHeadSelfAttentionBlock (pre-LN, batch_first, dropout=0)
    h = _ln(seq, ln1_g_ref[l], ln1_b_ref[l])
    qkv_scr[...] = jnp.dot(h, qkv_w_ref[l],
                           preferred_element_type=jnp.float32) + qkv_b_ref[l]
    for b in range(B):
      r0 = b * S
      for hd in range(num_heads):
        c0 = hd * Dh
        q = qkv_scr[pl.ds(r0, S), pl.ds(c0, Dh)]               # (S, Dh)
        k = qkv_scr[pl.ds(r0, S), pl.ds(E + c0, Dh)]
        v = qkv_scr[pl.ds(r0, S), pl.ds(2 * E + c0, Dh)]
        s = jax.lax.dot_general(q, k, (((1,), (1,)), ((), ())),
                                preferred_element_type=jnp.float32) * scale
        m = jnp.max(s, axis=-1, keepdims=True)
        p = jnp.exp(s - m)
        inv = pl.reciprocal(jnp.sum(p, axis=-1, keepdims=True), approx=True)
        ctx_scr[pl.ds(r0, S), pl.ds(c0, Dh)] = jnp.dot(
            p * inv, v, preferred_element_type=jnp.float32)
    attn_out = jnp.dot(ctx_scr[...], out_w_ref[l],
                       preferred_element_type=jnp.float32) + out_b_ref[l]
    seq = seq + attn_out                                                 # residual

    # MachineLearningPerceptronBlock: LN -> Linear -> GELU -> Linear
    h = _ln(seq, ln2_g_ref[l], ln2_b_ref[l])
    h = jnp.dot(h, fc1_w_ref[l], preferred_element_type=jnp.float32) + fc1_b_ref[l]
    h = _gelu_exact(h)
    h = jnp.dot(h, fc2_w_ref[l], preferred_element_type=jnp.float32) + fc2_b_ref[l]
    seq = seq + h                                                        # residual

  # ---- classifier on the class token: LN -> Linear ----
  seq_scr[...] = seq
  for b in range(B):
    cls_scr[pl.ds(b, 1), :] = seq_scr[pl.ds(b * S, 1), :]
  ct = _ln(cls_scr[...], cls_ln_g_ref[...], cls_ln_b_ref[...])           # (B, E)
  o_ref[...] = (jnp.dot(ct, head_w_ref[...],
                        preferred_element_type=jnp.float32) + head_b_ref[...])


# ----------------------------- wrapper -----------------------------

def vision_transformer_forward(x, params, *, num_heads):
  B, J, T, H, W = x.shape
  F = T * H * W
  E = params["embed_w"].shape[1]
  L = params["qkv_w"].shape[0]
  C = params["head_w"].shape[1]
  S = J + 1

  x2d = x.reshape(B * J, F)   # contiguous view; free in XLA

  inputs = [
      x2d,
      params["embed_w"], params["embed_b"],
      params["cls"], params["pos"],
      params["ln1_g"], params["ln1_b"],
      params["qkv_w"], params["qkv_b"],
      params["out_w"], params["out_b"],
      params["ln2_g"], params["ln2_b"],
      params["fc1_w"], params["fc1_b"],
      params["fc2_w"], params["fc2_b"],
      params["cls_ln_g"], params["cls_ln_b"],
      params["head_w"], params["head_b"],
  ]

  def full_spec(a):
    nd = a.ndim
    return pl.BlockSpec(a.shape, lambda i, _nd=nd: (0,) * _nd)

  kernel = functools.partial(
      _vit_fused_kernel, B=B, J=J, E=E, num_heads=num_heads, num_layers=L)

  return pl.pallas_call(
      kernel,
      out_shape=jax.ShapeDtypeStruct((B, C), jnp.float32),
      grid=(1,),
      in_specs=[full_spec(a) for a in inputs],
      out_specs=pl.BlockSpec((B, C), lambda i: (0, 0)),
      scratch_shapes=[
          pltpu.VMEM((B * S, E), jnp.float32),       # seq (resident tokens)
          pltpu.VMEM((B * S, 3 * E), jnp.float32),   # packed qkv
          pltpu.VMEM((B * S, E), jnp.float32),       # per-head attention context
          pltpu.VMEM((B, E), jnp.float32),           # gathered cls tokens
      ],
      compiler_params=pltpu.CompilerParams(
          dimension_semantics=("arbitrary",)),
  )(*inputs)


# ----------------------------- parameters -----------------------------

def init_params(key, *, flatten_size, embedding_dim, num_of_patches,
                num_layers, mlp_size, num_classes):
  E = embedding_dim
  S = num_of_patches + 1
  keys = jax.random.split(key, 4 + 4 * num_layers)
  ki = iter(keys)

  def dense(k, fan_in, fan_out):
    kw, kb = jax.random.split(k)
    bound = 1.0 / (fan_in ** 0.5)          # nn.Linear default init range
    w = jax.random.uniform(kw, (fan_in, fan_out), jnp.float32, -bound, bound)
    b = jax.random.uniform(kb, (fan_out,), jnp.float32, -bound, bound)
    return w, b

  params = {}
  w, b = dense(next(ki), flatten_size, E)
  params["embed_w"], params["embed_b"] = w, b.reshape(1, E)
  # class token / position embeddings are torch.rand -> uniform [0, 1)
  params["cls"] = jax.random.uniform(next(ki), (1, E), jnp.float32)
  params["pos"] = jax.random.uniform(next(ki), (S, E), jnp.float32)

  qkv_w, qkv_b, out_w, out_b = [], [], [], []
  fc1_w, fc1_b, fc2_w, fc2_b = [], [], [], []
  for _ in range(num_layers):
    w, b = dense(next(ki), E, 3 * E)       # nn.MultiheadAttention in_proj
    qkv_w.append(w); qkv_b.append(b.reshape(1, 3 * E))
    w, b = dense(next(ki), E, E)           # out_proj
    out_w.append(w); out_b.append(b.reshape(1, E))
    w, b = dense(next(ki), E, mlp_size)
    fc1_w.append(w); fc1_b.append(b.reshape(1, mlp_size))
    w, b = dense(next(ki), mlp_size, E)
    fc2_w.append(w); fc2_b.append(b.reshape(1, E))

  params["ln1_g"] = jnp.ones((num_layers, 1, E), jnp.float32)
  params["ln1_b"] = jnp.zeros((num_layers, 1, E), jnp.float32)
  params["qkv_w"] = jnp.stack(qkv_w); params["qkv_b"] = jnp.stack(qkv_b)
  params["out_w"] = jnp.stack(out_w); params["out_b"] = jnp.stack(out_b)
  params["ln2_g"] = jnp.ones((num_layers, 1, E), jnp.float32)
  params["ln2_b"] = jnp.zeros((num_layers, 1, E), jnp.float32)
  params["fc1_w"] = jnp.stack(fc1_w); params["fc1_b"] = jnp.stack(fc1_b)
  params["fc2_w"] = jnp.stack(fc2_w); params["fc2_b"] = jnp.stack(fc2_b)

  params["cls_ln_g"] = jnp.ones((1, E), jnp.float32)
  params["cls_ln_b"] = jnp.zeros((1, E), jnp.float32)
  w, b = dense(next(ki), E, num_classes)
  params["head_w"], params["head_b"] = w, b.reshape(1, num_classes)
  return params


# ----------------------------- driver -----------------------------

if __name__ == "__main__":
  # Small configuration consistent with the module's __init__.
  image_size, patch_size = 16, 4
  num_of_patches = int(image_size ** 2 / patch_size ** 2)        # 16
  heatmap_size = (4, 8, 8)                                       # (T, H, W)
  flatten_size = heatmap_size[0] * heatmap_size[1] * heatmap_size[2]  # 256
  embedding_dim = 32
  num_heads = 4
  num_transformer_layers = 2
  mlp_size = 48
  num_classes = 10
  batch = 2
  num_joints = num_of_patches   # tokens == joints so position_embeddings match

  key = jax.random.PRNGKey(0)
  kx, kp = jax.random.split(key)
  x = jax.random.normal(kx, (batch, num_joints) + heatmap_size, jnp.float32)

  params = init_params(
      kp,
      flatten_size=flatten_size,
      embedding_dim=embedding_dim,
      num_of_patches=num_of_patches,
      num_layers=num_transformer_layers,
      mlp_size=mlp_size,
      num_classes=num_classes,
  )

  fwd = jax.jit(functools.partial(vision_transformer_forward, num_heads=num_heads))
  logits = fwd(x, params)
  jax.block_until_ready(logits)

  assert logits.shape == (batch, num_classes), logits.shape
  assert bool(jnp.all(jnp.isfinite(logits)))
  print("KERNEL_OK")
</pallas_src>

<mosaic_0001>
module attributes {stable_mosaic.version = 11 : i64} {
  func.func @_vit_fused_kernel(%arg0: i32, %arg1: memref<32x256xf32, #tpu.memory_space<vmem>>, %arg2: memref<256x32xf32, #tpu.memory_space<vmem>>, %arg3: memref<1x32xf32, #tpu.memory_space<vmem>>, %arg4: memref<1x32xf32, #tpu.memory_space<vmem>>, %arg5: memref<17x32xf32, #tpu.memory_space<vmem>>, %arg6: memref<2x1x32xf32, #tpu.memory_space<vmem>>, %arg7: memref<2x1x32xf32, #tpu.memory_space<vmem>>, %arg8: memref<2x32x96xf32, #tpu.memory_space<vmem>>, %arg9: memref<2x1x96xf32, #tpu.memory_space<vmem>>, %arg10: memref<2x32x32xf32, #tpu.memory_space<vmem>>, %arg11: memref<2x1x32xf32, #tpu.memory_space<vmem>>, %arg12: memref<2x1x32xf32, #tpu.memory_space<vmem>>, %arg13: memref<2x1x32xf32, #tpu.memory_space<vmem>>, %arg14: memref<2x32x48xf32, #tpu.memory_space<vmem>>, %arg15: memref<2x1x48xf32, #tpu.memory_space<vmem>>, %arg16: memref<2x48x32xf32, #tpu.memory_space<vmem>>, %arg17: memref<2x1x32xf32, #tpu.memory_space<vmem>>, %arg18: memref<1x32xf32, #tpu.memory_space<vmem>>, %arg19: memref<1x32xf32, #tpu.memory_space<vmem>>, %arg20: memref<32x10xf32, #tpu.memory_space<vmem>>, %arg21: memref<1x10xf32, #tpu.memory_space<vmem>>, %arg22: memref<2x10xf32, #tpu.memory_space<vmem>>, %arg23: memref<34x32xf32, #tpu.memory_space<vmem>>, %arg24: memref<34x96xf32, #tpu.memory_space<vmem>>, %arg25: memref<34x32xf32, #tpu.memory_space<vmem>>, %arg26: memref<2x32xf32, #tpu.memory_space<vmem>>) attributes {dimension_semantics = [#tpu.dimension_semantics<arbitrary>], iteration_bounds = array<i64: 1>, scalar_prefetch = 0 : i64, scratch_operands = 4 : i64, tpu.core_type = #tpu.core_type<tc>, window_params = [{pipeline_mode = #tpu.pipeline_mode<synchronous>, transform_indices = @transform_0, window_bounds = array<i64: 32, 256>}, {pipeline_mode = #tpu.pipeline_mode<synchronous>, transform_indices = @transform_1, window_bounds = array<i64: 256, 32>}, {pipeline_mode = #tpu.pipeline_mode<synchronous>, transform_indices = @transform_2, window_bounds = array<i64: 1, 32>}, {pipeline_mode = #tpu.pipeline_mode<synchronous>, transform_indices = @transform_3, window_bounds = array<i64: 1, 32>}, {pipeline_mode = #tpu.pipeline_mode<synchronous>, transform_indices = @transform_4, window_bounds = array<i64: 17, 32>}, {pipeline_mode = #tpu.pipeline_mode<synchronous>, transform_indices = @transform_5, window_bounds = array<i64: 2, 1, 32>}, {pipeline_mode = #tpu.pipeline_mode<synchronous>, transform_indices = @transform_6, window_bounds = array<i64: 2, 1, 32>}, {pipeline_mode = #tpu.pipeline_mode<synchronous>, transform_indices = @transform_7, window_bounds = array<i64: 2, 32, 96>}, {pipeline_mode = #tpu.pipeline_mode<synchronous>, transform_indices = @transform_8, window_bounds = array<i64: 2, 1, 96>}, {pipeline_mode = #tpu.pipeline_mode<synchronous>, transform_indices = @transform_9, window_bounds = array<i64: 2, 32, 32>}, {pipeline_mode = #tpu.pipeline_mode<synchronous>, transform_indices = @transform_10, window_bounds = array<i64: 2, 1, 32>}, {pipeline_mode = #tpu.pipeline_mode<synchronous>, transform_indices = @transform_11, window_bounds = array<i64: 2, 1, 32>}, {pipeline_mode = #tpu.pipeline_mode<synchronous>, transform_indices = @transform_12, window_bounds = array<i64: 2, 1, 32>}, {pipeline_mode = #tpu.pipeline_mode<synchronous>, transform_indices = @transform_13, window_bounds = array<i64: 2, 32, 48>}, {pipeline_mode = #tpu.pipeline_mode<synchronous>, transform_indices = @transform_14, window_bounds = array<i64: 2, 1, 48>}, {pipeline_mode = #tpu.pipeline_mode<synchronous>, transform_indices = @transform_15, window_bounds = array<i64: 2, 48, 32>}, {pipeline_mode = #tpu.pipeline_mode<synchronous>, transform_indices = @transform_16, window_bounds = array<i64: 2, 1, 32>}, {pipeline_mode = #tpu.pipeline_mode<synchronous>, transform_indices = @transform_17, window_bounds = array<i64: 1, 32>}, {pipeline_mode = #tpu.pipeline_mode<synchronous>, transform_indices = @transform_18, window_bounds = array<i64: 1, 32>}, {pipeline_mode = #tpu.pipeline_mode<synchronous>, transform_indices = @transform_19, window_bounds = array<i64: 32, 10>}, {pipeline_mode = #tpu.pipeline_mode<synchronous>, transform_indices = @transform_20, window_bounds = array<i64: 1, 10>}, {pipeline_mode = #tpu.pipeline_mode<synchronous>, transform_indices = @transform_21, window_bounds = array<i64: 2, 10>}]} {
    %c0 = arith.constant 0 : index
    %c0_0 = arith.constant 0 : index
    %0 = vector.load %arg1[%c0, %c0_0] : memref<32x256xf32, #tpu.memory_space<vmem>>, vector<32x256xf32>
    %c0_1 = arith.constant 0 : index
    %c0_2 = arith.constant 0 : index
    %1 = vector.load %arg2[%c0_1, %c0_2] : memref<256x32xf32, #tpu.memory_space<vmem>>, vector<256x32xf32>
    %cst = arith.constant dense<0.000000e+00> : vector<32x32xf32>
    %2 = tpu.matmul %0, %1, %cst {dimension_numbers = #tpu.dot_dimension_numbers<[1], [0], [0], [1], [0, 0, 1, 1], [], []>} : vector<32x256xf32>, vector<256x32xf32>, vector<32x32xf32> -> vector<32x32xf32>
    %c0_3 = arith.constant 0 : index
    %c0_4 = arith.constant 0 : index
    %3 = vector.load %arg3[%c0_3, %c0_4] : memref<1x32xf32, #tpu.memory_space<vmem>>, vector<1x32xf32>
    %4 = vector.broadcast %3 : vector<1x32xf32> to vector<32x32xf32>
    %5 = arith.addf %2, %4 : vector<32x32xf32>
    %c0_5 = arith.constant 0 : index
    %c0_6 = arith.constant 0 : index
    %6 = vector.load %arg4[%c0_5, %c0_6] : memref<1x32xf32, #tpu.memory_space<vmem>>, vector<1x32xf32>
    %c0_7 = arith.constant 0 : index
    %c0_8 = arith.constant 0 : index
    %7 = vector.load %arg5[%c0_7, %c0_8] : memref<17x32xf32, #tpu.memory_space<vmem>>, vector<1x32xf32>
    %8 = arith.addf %6, %7 : vector<1x32xf32>
    %c1 = arith.constant 1 : index
    %c0_9 = arith.constant 0 : index
    %9 = vector.load %arg5[%c1, %c0_9] : memref<17x32xf32, #tpu.memory_space<vmem>>, vector<16x32xf32>
    %c0_10 = arith.constant 0 : index
    %c0_11 = arith.constant 0 : index
    %10 = vector.load %arg23[%c0_10, %c0_11] : memref<34x32xf32, #tpu.memory_space<vmem>>, vector<1x32xf32>
    tpu.vector_store %arg23[%c0_10, %c0_11], %8 {strides = array<i32>} : memref<34x32xf32, #tpu.memory_space<vmem>>, vector<1x32xf32>,
    %11 = vector.extract_strided_slice %5 {offsets = [0, 0], sizes = [16, 32], strides = [1, 1]} : vector<32x32xf32> to vector<16x32xf32>
    %12 = arith.addf %11, %9 : vector<16x32xf32>
    %c1_12 = arith.constant 1 : index
    %c0_13 = arith.constant 0 : index
    %13 = vector.load %arg23[%c1_12, %c0_13] : memref<34x32xf32, #tpu.memory_space<vmem>>, vector<16x32xf32>
    tpu.vector_store %arg23[%c1_12, %c0_13], %12 {strides = array<i32>} : memref<34x32xf32, #tpu.memory_space<vmem>>, vector<16x32xf32>,
    %c17 = arith.constant 17 : index
    %c0_14 = arith.constant 0 : index
    %14 = vector.load %arg23[%c17, %c0_14] : memref<34x32xf32, #tpu.memory_space<vmem>>, vector<1x32xf32>
    tpu.vector_store %arg23[%c17, %c0_14], %8 {strides = array<i32>} : memref<34x32xf32, #tpu.memory_space<vmem>>, vector<1x32xf32>,
    %15 = vector.extract_strided_slice %5 {offsets = [16, 0], sizes = [16, 32], strides = [1, 1]} : vector<32x32xf32> to vector<16x32xf32>
    %16 = arith.addf %15, %9 : vector<16x32xf32>
    %c18 = arith.constant 18 : index
    %c0_15 = arith.constant 0 : index
    %17 = vector.load %arg23[%c18, %c0_15] : memref<34x32xf32, #tpu.memory_space<vmem>>, vector<16x32xf32>
    tpu.vector_store %arg23[%c18, %c0_15], %16 {strides = array<i32>} : memref<34x32xf32, #tpu.memory_space<vmem>>, vector<16x32xf32>,
    %c0_16 = arith.constant 0 : index
    %c0_17 = arith.constant 0 : index
    %18 = vector.load %arg23[%c0_16, %c0_17] : memref<34x32xf32, #tpu.memory_space<vmem>>, vector<34x32xf32>
    %c0_18 = arith.constant 0 : index
    %c0_19 = arith.constant 0 : index
    %c0_20 = arith.constant 0 : index
    %19 = vector.load %arg6[%c0_18, %c0_19, %c0_20] : memref<2x1x32xf32, #tpu.memory_space<vmem>>, vector<1x1x32xf32>
    %20 = vector.shape_cast %19 : vector<1x1x32xf32> to vector<1x32xf32>
    %c0_21 = arith.constant 0 : index
    %c0_22 = arith.constant 0 : index
    %c0_23 = arith.constant 0 : index
    %21 = vector.load %arg7[%c0_21, %c0_22, %c0_23] : memref<2x1x32xf32, #tpu.memory_space<vmem>>, vector<1x1x32xf32>
    %22 = vector.shape_cast %21 : vector<1x1x32xf32> to vector<1x32xf32>
    %cst_24 = arith.constant dense<0.000000e+00> : vector<34xf32>
    %23 = vector.multi_reduction <add>, %18, %cst_24 [1] : vector<34x32xf32> to vector<34xf32>
    %24 = vector.shape_cast %23 : vector<34xf32> to vector<34x1xf32>
    %cst_25 = arith.constant 3.200000e+01 : f32
    %25 = vector.broadcast %cst_25 : f32 to vector<34x1xf32>
    %26 = arith.divf %24, %25 : vector<34x1xf32>
    %27 = vector.broadcast %26 : vector<34x1xf32> to vector<34x32xf32>
    %28 = arith.subf %18, %27 : vector<34x32xf32>
    %29 = arith.mulf %28, %28 : vector<34x32xf32>
    %cst_26 = arith.constant dense<0.000000e+00> : vector<34xf32>
    %30 = vector.multi_reduction <add>, %29, %cst_26 [1] : vector<34x32xf32> to vector<34xf32>
    %31 = vector.shape_cast %30 : vector<34xf32> to vector<34x1xf32>
    %cst_27 = arith.constant 3.200000e+01 : f32
    %32 = vector.broadcast %cst_27 : f32 to vector<34x1xf32>
    %33 = arith.divf %31, %32 : vector<34x1xf32>
    %cst_28 = arith.constant 9.99999974E-6 : f32
    %34 = vector.broadcast %cst_28 : f32 to vector<34x1xf32>
    %35 = arith.addf %33, %34 : vector<34x1xf32>
    %36 = math.rsqrt %35 : vector<34x1xf32>
    %37 = vector.broadcast %36 : vector<34x1xf32> to vector<34x32xf32>
    %38 = arith.mulf %28, %37 : vector<34x32xf32>
    %39 = vector.broadcast %20 : vector<1x32xf32> to vector<34x32xf32>
    %40 = arith.mulf %38, %39 : vector<34x32xf32>
    %41 = vector.broadcast %22 : vector<1x32xf32> to vector<34x32xf32>
    %42 = arith.addf %40, %41 : vector<34x32xf32>
    %c0_29 = arith.constant 0 : index
    %c0_30 = arith.constant 0 : index
    %c0_31 = arith.constant 0 : index
    %43 = vector.load %arg8[%c0_29, %c0_30, %c0_31] : memref<2x32x96xf32, #tpu.memory_space<vmem>>, vector<1x32x96xf32>
    %44 = vector.shape_cast %43 : vector<1x32x96xf32> to vector<32x96xf32>
    %cst_32 = arith.constant dense<0.000000e+00> : vector<34x96xf32>
    %45 = tpu.matmul %42, %44, %cst_32 {dimension_numbers = #tpu.dot_dimension_numbers<[1], [0], [0], [1], [0, 0, 1, 1], [], []>} : vector<34x32xf32>, vector<32x96xf32>, vector<34x96xf32> -> vector<34x96xf32>
    %c0_33 = arith.constant 0 : index
    %c0_34 = arith.constant 0 : index
    %c0_35 = arith.constant 0 : index
    %46 = vector.load %arg9[%c0_33, %c0_34, %c0_35] : memref<2x1x96xf32, #tpu.memory_space<vmem>>, vector<1x1x96xf32>
    %47 = vector.shape_cast %46 : vector<1x1x96xf32> to vector<1x96xf32>
    %48 = vector.broadcast %47 : vector<1x96xf32> to vector<34x96xf32>
    %49 = arith.addf %45, %48 : vector<34x96xf32>
    %c0_36 = arith.constant 0 : index
    %c0_37 = arith.constant 0 : index
    %50 = vector.load %arg24[%c0_36, %c0_37] : memref<34x96xf32, #tpu.memory_space<vmem>>, vector<34x96xf32>
    tpu.vector_store %arg24[%c0_36, %c0_37], %49 {strides = array<i32>} : memref<34x96xf32, #tpu.memory_space<vmem>>, vector<34x96xf32>,
    %c0_38 = arith.constant 0 : index
    %c0_39 = arith.constant 0 : index
    %51 = vector.load %arg24[%c0_38, %c0_39] : memref<34x96xf32, #tpu.memory_space<vmem>>, vector<17x8xf32>
    %c0_40 = arith.constant 0 : index
    %c32 = arith.constant 32 : index
    %52 = vector.load %arg24[%c0_40, %c32] : memref<34x96xf32, #tpu.memory_space<vmem>>, vector<17x8xf32>
    %c0_41 = arith.constant 0 : index
    %c64 = arith.constant 64 : index
    %53 = vector.load %arg24[%c0_41, %c64] : memref<34x96xf32, #tpu.memory_space<vmem>>, vector<17x8xf32>
    %cst_42 = arith.constant dense<0.000000e+00> : vector<17x17xf32>
    %54 = tpu.matmul %51, %52, %cst_42 {dimension_numbers = #tpu.dot_dimension_numbers<[1], [1], [0], [0], [0, 0, 1, 0], [], []>} : vector<17x8xf32>, vector<17x8xf32>, vector<17x17xf32> -> vector<17x17xf32>
    %cst_43 = arith.constant 0.353553385 : f32
    %55 = vector.broadcast %cst_43 : f32 to vector<17x17xf32>
    %56 = arith.mulf %54, %55 : vector<17x17xf32>
    %cst_44 = arith.constant dense<0xFF800000> : vector<17xf32>
    %57 = vector.multi_reduction <maximumf>, %56, %cst_44 [1] : vector<17x17xf32> to vector<17xf32>
    %58 = vector.shape_cast %57 : vector<17xf32> to vector<17x1xf32>
    %59 = vector.broadcast %58 : vector<17x1xf32> to vector<17x17xf32>
    %60 = arith.subf %56, %59 : vector<17x17xf32>
    %61 = math.exp %60 : vector<17x17xf32>
    %cst_45 = arith.constant dense<0.000000e+00> : vector<17xf32>
    %62 = vector.multi_reduction <add>, %61, %cst_45 [1] : vector<17x17xf32> to vector<17xf32>
    %63 = vector.shape_cast %62 : vector<17xf32> to vector<17x1xf32>
    %64 = tpu.reciprocal %63 {approx = true} : vector<17x1xf32> -> vector<17x1xf32>
    %65 = vector.broadcast %64 : vector<17x1xf32> to vector<17x17xf32>
    %66 = arith.mulf %61, %65 : vector<17x17xf32>
    %cst_46 = arith.constant dense<0.000000e+00> : vector<17x8xf32>
    %67 = tpu.matmul %66, %53, %cst_46 {dimension_numbers = #tpu.dot_dimension_numbers<[1], [0], [0], [1], [0, 0, 1, 1], [], []>} : vector<17x17xf32>, vector<17x8xf32>, vector<17x8xf32> -> vector<17x8xf32>
    %c0_47 = arith.constant 0 : index
    %c0_48 = arith.constant 0 : index
    %68 = vector.load %arg25[%c0_47, %c0_48] : memref<34x32xf32, #tpu.memory_space<vmem>>, vector<17x8xf32>
    tpu.vector_store %arg25[%c0_47, %c0_48], %67 {strides = array<i32>} : memref<34x32xf32, #tpu.memory_space<vmem>>, vector<17x8xf32>,
    %c0_49 = arith.constant 0 : index
    %c8 = arith.constant 8 : index
    %69 = vector.load %arg24[%c0_49, %c8] : memref<34x96xf32, #tpu.memory_space<vmem>>, vector<17x8xf32>
    %c0_50 = arith.constant 0 : index
    %c40 = arith.constant 40 : index
    %70 = vector.load %arg24[%c0_50, %c40] : memref<34x96xf32, #tpu.memory_space<vmem>>, vector<17x8xf32>
    %c0_51 = arith.constant 0 : index
    %c72 = arith.constant 72 : index
    %71 = vector.load %arg24[%c0_51, %c72] : memref<34x96xf32, #tpu.memory_space<vmem>>, vector<17x8xf32>
    %cst_52 = arith.constant dense<0.000000e+00> : vector<17x17xf32>
    %72 = tpu.matmul %69, %70, %cst_52 {dimension_numbers = #tpu.dot_dimension_numbers<[1], [1], [0], [0], [0, 0, 1, 0], [], []>} : vector<17x8xf32>, vector<17x8xf32>, vector<17x17xf32> -> vector<17x17xf32>
    %cst_53 = arith.constant 0.353553385 : f32
    %73 = vector.broadcast %cst_53 : f32 to vector<17x17xf32>
    %74 = arith.mulf %72, %73 : vector<17x17xf32>
    %cst_54 = arith.constant dense<0xFF800000> : vector<17xf32>
    %75 = vector.multi_reduction <maximumf>, %74, %cst_54 [1] : vector<17x17xf32> to vector<17xf32>
    %76 = vector.shape_cast %75 : vector<17xf32> to vector<17x1xf32>
    %77 = vector.broadcast %76 : vector<17x1xf32> to vector<17x17xf32>
    %78 = arith.subf %74, %77 : vector<17x17xf32>
    %79 = math.exp %78 : vector<17x17xf32>
    %cst_55 = arith.constant dense<0.000000e+00> : vector<17xf32>
    %80 = vector.multi_reduction <add>, %79, %cst_55 [1] : vector<17x17xf32> to vector<17xf32>
    %81 = vector.shape_cast %80 : vector<17xf32> to vector<17x1xf32>
    %82 = tpu.reciprocal %81 {approx = true} : vector<17x1xf32> -> vector<17x1xf32>
    %83 = vector.broadcast %82 : vector<17x1xf32> to vector<17x17xf32>
    %84 = arith.mulf %79, %83 : vector<17x17xf32>
    %cst_56 = arith.constant dense<0.000000e+00> : vector<17x8xf32>
    %85 = tpu.matmul %84, %71, %cst_56 {dimension_numbers = #tpu.dot_dimension_numbers<[1], [0], [0], [1], [0, 0, 1, 1], [], []>} : vector<17x17xf32>, vector<17x8xf32>, vector<17x8xf32> -> vector<17x8xf32>
    %c0_57 = arith.constant 0 : index
    %c8_58 = arith.constant 8 : index
    %86 = vector.load %arg25[%c0_57, %c8_58] : memref<34x32xf32, #tpu.memory_space<vmem>>, vector<17x8xf32>
    tpu.vector_store %arg25[%c0_57, %c8_58], %85 {strides = array<i32>} : memref<34x32xf32, #tpu.memory_space<vmem>>, vector<17x8xf32>,
    %c0_59 = arith.constant 0 : index
    %c16 = arith.constant 16 : index
    %87 = vector.load %arg24[%c0_59, %c16] : memref<34x96xf32, #tpu.memory_space<vmem>>, vector<17x8xf32>
    %c0_60 = arith.constant 0 : index
    %c48 = arith.constant 48 : index
    %88 = vector.load %arg24[%c0_60, %c48] : memref<34x96xf32, #tpu.memory_space<vmem>>, vector<17x8xf32>
    %c0_61 = arith.constant 0 : index
    %c80 = arith.constant 80 : index
    %89 = vector.load %arg24[%c0_61, %c80] : memref<34x96xf32, #tpu.memory_space<vmem>>, vector<17x8xf32>
    %cst_62 = arith.constant dense<0.000000e+00> : vector<17x17xf32>
    %90 = tpu.matmul %87, %88, %cst_62 {dimension_numbers = #tpu.dot_dimension_numbers<[1], [1], [0], [0], [0, 0, 1, 0], [], []>} : vector<17x8xf32>, vector<17x8xf32>, vector<17x17xf32> -> vector<17x17xf32>
    %cst_63 = arith.constant 0.353553385 : f32
    %91 = vector.broadcast %cst_63 : f32 to vector<17x17xf32>
    %92 = arith.mulf %90, %91 : vector<17x17xf32>
    %cst_64 = arith.constant dense<0xFF800000> : vector<17xf32>
    %93 = vector.multi_reduction <maximumf>, %92, %cst_64 [1] : vector<17x17xf32> to vector<17xf32>
    %94 = vector.shape_cast %93 : vector<17xf32> to vector<17x1xf32>
    %95 = vector.broadcast %94 : vector<17x1xf32> to vector<17x17xf32>
    %96 = arith.subf %92, %95 : vector<17x17xf32>
    %97 = math.exp %96 : vector<17x17xf32>
    %cst_65 = arith.constant dense<0.000000e+00> : vector<17xf32>
    %98 = vector.multi_reduction <add>, %97, %cst_65 [1] : vector<17x17xf32> to vector<17xf32>
    %99 = vector.shape_cast %98 : vector<17xf32> to vector<17x1xf32>
    %100 = tpu.reciprocal %99 {approx = true} : vector<17x1xf32> -> vector<17x1xf32>
    %101 = vector.broadcast %100 : vector<17x1xf32> to vector<17x17xf32>
    %102 = arith.mulf %97, %101 : vector<17x17xf32>
    %cst_66 = arith.constant dense<0.000000e+00> : vector<17x8xf32>
    %103 = tpu.matmul %102, %89, %cst_66 {dimension_numbers = #tpu.dot_dimension_numbers<[1], [0], [0], [1], [0, 0, 1, 1], [], []>} : vector<17x17xf32>, vector<17x8xf32>, vector<17x8xf32> -> vector<17x8xf32>
    %c0_67 = arith.constant 0 : index
    %c16_68 = arith.constant 16 : index
    %104 = vector.load %arg25[%c0_67, %c16_68] : memref<34x32xf32, #tpu.memory_space<vmem>>, vector<17x8xf32>
    tpu.vector_store %arg25[%c0_67, %c16_68], %103 {strides = array<i32>} : memref<34x32xf32, #tpu.memory_space<vmem>>, vector<17x8xf32>,
    %c0_69 = arith.constant 0 : index
    %c24 = arith.constant 24 : index
    %105 = vector.load %arg24[%c0_69, %c24] : memref<34x96xf32, #tpu.memory_space<vmem>>, vector<17x8xf32>
    %c0_70 = arith.constant 0 : index
    %c56 = arith.constant 56 : index
    %106 = vector.load %arg24[%c0_70, %c56] : memref<34x96xf32, #tpu.memory_space<vmem>>, vector<17x8xf32>
    %c0_71 = arith.constant 0 : index
    %c88 = arith.constant 88 : index
    %107 = vector.load %arg24[%c0_71, %c88] : memref<34x96xf32, #tpu.memory_space<vmem>>, vector<17x8xf32>
    %cst_72 = arith.constant dense<0.000000e+00> : vector<17x17xf32>
    %108 = tpu.matmul %105, %106, %cst_72 {dimension_numbers = #tpu.dot_dimension_numbers<[1], [1], [0], [0], [0, 0, 1, 0], [], []>} : vector<17x8xf32>, vector<17x8xf32>, vector<17x17xf32> -> vector<17x17xf32>
    %cst_73 = arith.constant 0.353553385 : f32
    %109 = vector.broadcast %cst_73 : f32 to vector<17x17xf32>
    %110 = arith.mulf %108, %109 : vector<17x17xf32>
    %cst_74 = arith.constant dense<0xFF800000> : vector<17xf32>
    %111 = vector.multi_reduction <maximumf>, %110, %cst_74 [1] : vector<17x17xf32> to vector<17xf32>
    %112 = vector.shape_cast %111 : vector<17xf32> to vector<17x1xf32>
    %113 = vector.broadcast %112 : vector<17x1xf32> to vector<17x17xf32>
    %114 = arith.subf %110, %113 : vector<17x17xf32>
    %115 = math.exp %114 : vector<17x17xf32>
    %cst_75 = arith.constant dense<0.000000e+00> : vector<17xf32>
    %116 = vector.multi_reduction <add>, %115, %cst_75 [1] : vector<17x17xf32> to vector<17xf32>
    %117 = vector.shape_cast %116 : vector<17xf32> to vector<17x1xf32>
    %118 = tpu.reciprocal %117 {approx = true} : vector<17x1xf32> -> vector<17x1xf32>
    %119 = vector.broadcast %118 : vector<17x1xf32> to vector<17x17xf32>
    %120 = arith.mulf %115, %119 : vector<17x17xf32>
    %cst_76 = arith.constant dense<0.000000e+00> : vector<17x8xf32>
    %121 = tpu.matmul %120, %107, %cst_76 {dimension_numbers = #tpu.dot_dimension_numbers<[1], [0], [0], [1], [0, 0, 1, 1], [], []>} : vector<17x17xf32>, vector<17x8xf32>, vector<17x8xf32> -> vector<17x8xf32>
    %c0_77 = arith.constant 0 : index
    %c24_78 = arith.constant 24 : index
    %122 = vector.load %arg25[%c0_77, %c24_78] : memref<34x32xf32, #tpu.memory_space<vmem>>, vector<17x8xf32>
    tpu.vector_store %arg25[%c0_77, %c24_78], %121 {strides = array<i32>} : memref<34x32xf32, #tpu.memory_space<vmem>>, vector<17x8xf32>,
    %c17_79 = arith.constant 17 : index
    %c0_80 = arith.constant 0 : index
    %123 = vector.load %arg24[%c17_79, %c0_80] : memref<34x96xf32, #tpu.memory_space<vmem>>, vector<17x8xf32>
    %c17_81 = arith.constant 17 : index
    %c32_82 = arith.constant 32 : index
    %124 = vector.load %arg24[%c17_81, %c32_82] : memref<34x96xf32, #tpu.memory_space<vmem>>, vector<17x8xf32>
    %c17_83 = arith.constant 17 : index
    %c64_84 = arith.constant 64 : index
    %125 = vector.load %arg24[%c17_83, %c64_84] : memref<34x96xf32, #tpu.memory_space<vmem>>, vector<17x8xf32>
    %cst_85 = arith.constant dense<0.000000e+00> : vector<17x17xf32>
    %126 = tpu.matmul %123, %124, %cst_85 {dimension_numbers = #tpu.dot_dimension_numbers<[1], [1], [0], [0], [0, 0, 1, 0], [], []>} : vector<17x8xf32>, vector<17x8xf32>, vector<17x17xf32> -> vector<17x17xf32>
    %cst_86 = arith.constant 0.353553385 : f32
    %127 = vector.broadcast %cst_86 : f32 to vector<17x17xf32>
    %128 = arith.mulf %126, %127 : vector<17x17xf32>
    %cst_87 = arith.constant dense<0xFF800000> : vector<17xf32>
    %129 = vector.multi_reduction <maximumf>, %128, %cst_87 [1] : vector<17x17xf32> to vector<17xf32>
    %130 = vector.shape_cast %129 : vector<17xf32> to vector<17x1xf32>
    %131 = vector.broadcast %130 : vector<17x1xf32> to vector<17x17xf32>
    %132 = arith.subf %128, %131 : vector<17x17xf32>
    %133 = math.exp %132 : vector<17x17xf32>
    %cst_88 = arith.constant dense<0.000000e+00> : vector<17xf32>
    %134 = vector.multi_reduction <add>, %133, %cst_88 [1] : vector<17x17xf32> to vector<17xf32>
    %135 = vector.shape_cast %134 : vector<17xf32> to vector<17x1xf32>
    %136 = tpu.reciprocal %135 {approx = true} : vector<17x1xf32> -> vector<17x1xf32>
    %137 = vector.broadcast %136 : vector<17x1xf32> to vector<17x17xf32>
    %138 = arith.mulf %133, %137 : vector<17x17xf32>
    %cst_89 = arith.constant dense<0.000000e+00> : vector<17x8xf32>
    %139 = tpu.matmul %138, %125, %cst_89 {dimension_numbers = #tpu.dot_dimension_numbers<[1], [0], [0], [1], [0, 0, 1, 1], [], []>} : vector<17x17xf32>, vector<17x8xf32>, vector<17x8xf32> -> vector<17x8xf32>
    %c17_90 = arith.constant 17 : index
    %c0_91 = arith.constant 0 : index
    %140 = vector.load %arg25[%c17_90, %c0_91] : memref<34x32xf32, #tpu.memory_space<vmem>>, vector<17x8xf32>
    tpu.vector_store %arg25[%c17_90, %c0_91], %139 {strides = array<i32>} : memref<34x32xf32, #tpu.memory_space<vmem>>, vector<17x8xf32>,
    %c17_92 = arith.constant 17 : index
    %c8_93 = arith.constant 8 : index
    %141 = vector.load %arg24[%c17_92, %c8_93] : memref<34x96xf32, #tpu.memory_space<vmem>>, vector<17x8xf32>
    %c17_94 = arith.constant 17 : index
    %c40_95 = arith.constant 40 : index
    %142 = vector.load %arg24[%c17_94, %c40_95] : memref<34x96xf32, #tpu.memory_space<vmem>>, vector<17x8xf32>
    %c17_96 = arith.constant 17 : index
    %c72_97 = arith.constant 72 : index
    %143 = vector.load %arg24[%c17_96, %c72_97] : memref<34x96xf32, #tpu.memory_space<vmem>>, vector<17x8xf32>
    %cst_98 = arith.constant dense<0.000000e+00> : vector<17x17xf32>
    %144 = tpu.matmul %141, %142, %cst_98 {dimension_numbers = #tpu.dot_dimension_numbers<[1], [1], [0], [0], [0, 0, 1, 0], [], []>} : vector<17x8xf32>, vector<17x8xf32>, vector<17x17xf32> -> vector<17x17xf32>
    %cst_99 = arith.constant 0.353553385 : f32
    %145 = vector.broadcast %cst_99 : f32 to vector<17x17xf32>
    %146 = arith.mulf %144, %145 : vector<17x17xf32>
    %cst_100 = arith.constant dense<0xFF800000> : vector<17xf32>
    %147 = vector.multi_reduction <maximumf>, %146, %cst_100 [1] : vector<17x17xf32> to vector<17xf32>
    %148 = vector.shape_cast %147 : vector<17xf32> to vector<17x1xf32>
    %149 = vector.broadcast %148 : vector<17x1xf32> to vector<17x17xf32>
    %150 = arith.subf %146, %149 : vector<17x17xf32>
    %151 = math.exp %150 : vector<17x17xf32>
    %cst_101 = arith.constant dense<0.000000e+00> : vector<17xf32>
    %152 = vector.multi_reduction <add>, %151, %cst_101 [1] : vector<17x17xf32> to vector<17xf32>
    %153 = vector.shape_cast %152 : vector<17xf32> to vector<17x1xf32>
    %154 = tpu.reciprocal %153 {approx = true} : vector<17x1xf32> -> vector<17x1xf32>
    %155 = vector.broadcast %154 : vector<17x1xf32> to vector<17x17xf32>
    %156 = arith.mulf %151, %155 : vector<17x17xf32>
    %cst_102 = arith.constant dense<0.000000e+00> : vector<17x8xf32>
    %157 = tpu.matmul %156, %143, %cst_102 {dimension_numbers = #tpu.dot_dimension_numbers<[1], [0], [0], [1], [0, 0, 1, 1], [], []>} : vector<17x17xf32>, vector<17x8xf32>, vector<17x8xf32> -> vector<17x8xf32>
    %c17_103 = arith.constant 17 : index
    %c8_104 = arith.constant 8 : index
    %158 = vector.load %arg25[%c17_103, %c8_104] : memref<34x32xf32, #tpu.memory_space<vmem>>, vector<17x8xf32>
    tpu.vector_store %arg25[%c17_103, %c8_104], %157 {strides = array<i32>} : memref<34x32xf32, #tpu.memory_space<vmem>>, vector<17x8xf32>,
    %c17_105 = arith.constant 17 : index
    %c16_106 = arith.constant 16 : index
    %159 = vector.load %arg24[%c17_105, %c16_106] : memref<34x96xf32, #tpu.memory_space<vmem>>, vector<17x8xf32>
    %c17_107 = arith.constant 17 : index
    %c48_108 = arith.constant 48 : index
    %160 = vector.load %arg24[%c17_107, %c48_108] : memref<34x96xf32, #tpu.memory_space<vmem>>, vector<17x8xf32>
    %c17_109 = arith.constant 17 : index
    %c80_110 = arith.constant 80 : index
    %161 = vector.load %arg24[%c17_109, %c80_110] : memref<34x96xf32, #tpu.memory_space<vmem>>, vector<17x8xf32>
    %cst_111 = arith.constant dense<0.000000e+00> : vector<17x17xf32>
    %162 = tpu.matmul %159, %160, %cst_111 {dimension_numbers = #tpu.dot_dimension_numbers<[1], [1], [0], [0], [0, 0, 1, 0], [], []>} : vector<17x8xf32>, vector<17x8xf32>, vector<17x17xf32> -> vector<17x17xf32>
    %cst_112 = arith.constant 0.353553385 : f32
    %163 = vector.broadcast %cst_112 : f32 to vector<17x17xf32>
    %164 = arith.mulf %162, %163 : vector<17x17xf32>
    %cst_113 = arith.constant dense<0xFF800000> : vector<17xf32>
    %165 = vector.multi_reduction <maximumf>, %164, %cst_113 [1] : vector<17x17xf32> to vector<17xf32>
    %166 = vector.shape_cast %165 : vector<17xf32> to vector<17x1xf32>
    %167 = vector.broadcast %166 : vector<17x1xf32> to vector<17x17xf32>
    %168 = arith.subf %164, %167 : vector<17x17xf32>
    %169 = math.exp %168 : vector<17x17xf32>
    %cst_114 = arith.constant dense<0.000000e+00> : vector<17xf32>
    %170 = vector.multi_reduction <add>, %169, %cst_114 [1] : vector<17x17xf32> to vector<17xf32>
    %171 = vector.shape_cast %170 : vector<17xf32> to vector<17x1xf32>
    %172 = tpu.reciprocal %171 {approx = true} : vector<17x1xf32> -> vector<17x1xf32>
    %173 = vector.broadcast %172 : vector<17x1xf32> to vector<17x17xf32>
    %174 = arith.mulf %169, %173 : vector<17x17xf32>
    %cst_115 = arith.constant dense<0.000000e+00> : vector<17x8xf32>
    %175 = tpu.matmul %174, %161, %cst_115 {dimension_numbers = #tpu.dot_dimension_numbers<[1], [0], [0], [1], [0, 0, 1, 1], [], []>} : vector<17x17xf32>, vector<17x8xf32>, vector<17x8xf32> -> vector<17x8xf32>
    %c17_116 = arith.constant 17 : index
    %c16_117 = arith.constant 16 : index
    %176 = vector.load %arg25[%c17_116, %c16_117] : memref<34x32xf32, #tpu.memory_space<vmem>>, vector<17x8xf32>
    tpu.vector_store %arg25[%c17_116, %c16_117], %175 {strides = array<i32>} : memref<34x32xf32, #tpu.memory_space<vmem>>, vector<17x8xf32>,
    %c17_118 = arith.constant 17 : index
    %c24_119 = arith.constant 24 : index
    %177 = vector.load %arg24[%c17_118, %c24_119] : memref<34x96xf32, #tpu.memory_space<vmem>>, vector<17x8xf32>
    %c17_120 = arith.constant 17 : index
    %c56_121 = arith.constant 56 : index
    %178 = vector.load %arg24[%c17_120, %c56_121] : memref<34x96xf32, #tpu.memory_space<vmem>>, vector<17x8xf32>
    %c17_122 = arith.constant 17 : index
    %c88_123 = arith.constant 88 : index
    %179 = vector.load %arg24[%c17_122, %c88_123] : memref<34x96xf32, #tpu.memory_space<vmem>>, vector<17x8xf32>
    %cst_124 = arith.constant dense<0.000000e+00> : vector<17x17xf32>
    %180 = tpu.matmul %177, %178, %cst_124 {dimension_numbers = #tpu.dot_dimension_numbers<[1], [1], [0], [0], [0, 0, 1, 0], [], []>} : vector<17x8xf32>, vector<17x8xf32>, vector<17x17xf32> -> vector<17x17xf32>
    %cst_125 = arith.constant 0.353553385 : f32
    %181 = vector.broadcast %cst_125 : f32 to vector<17x17xf32>
    %182 = arith.mulf %180, %181 : vector<17x17xf32>
    %cst_126 = arith.constant dense<0xFF800000> : vector<17xf32>
    %183 = vector.multi_reduction <maximumf>, %182, %cst_126 [1] : vector<17x17xf32> to vector<17xf32>
    %184 = vector.shape_cast %183 : vector<17xf32> to vector<17x1xf32>
    %185 = vector.broadcast %184 : vector<17x1xf32> to vector<17x17xf32>
    %186 = arith.subf %182, %185 : vector<17x17xf32>
    %187 = math.exp %186 : vector<17x17xf32>
    %cst_127 = arith.constant dense<0.000000e+00> : vector<17xf32>
    %188 = vector.multi_reduction <add>, %187, %cst_127 [1] : vector<17x17xf32> to vector<17xf32>
    %189 = vector.shape_cast %188 : vector<17xf32> to vector<17x1xf32>
    %190 = tpu.reciprocal %189 {approx = true} : vector<17x1xf32> -> vector<17x1xf32>
    %191 = vector.broadcast %190 : vector<17x1xf32> to vector<17x17xf32>
    %192 = arith.mulf %187, %191 : vector<17x17xf32>
    %cst_128 = arith.constant dense<0.000000e+00> : vector<17x8xf32>
    %193 = tpu.matmul %192, %179, %cst_128 {dimension_numbers = #tpu.dot_dimension_numbers<[1], [0], [0], [1], [0, 0, 1, 1], [], []>} : vector<17x17xf32>, vector<17x8xf32>, vector<17x8xf32> -> vector<17x8xf32>
    %c17_129 = arith.constant 17 : index
    %c24_130 = arith.constant 24 : index
    %194 = vector.load %arg25[%c17_129, %c24_130] : memref<34x32xf32, #tpu.memory_space<vmem>>, vector<17x8xf32>
    tpu.vector_store %arg25[%c17_129, %c24_130], %193 {strides = array<i32>} : memref<34x32xf32, #tpu.memory_space<vmem>>, vector<17x8xf32>,
    %c0_131 = arith.constant 0 : index
    %c0_132 = arith.constant 0 : index
    %195 = vector.load %arg25[%c0_131, %c0_132] : memref<34x32xf32, #tpu.memory_space<vmem>>, vector<34x32xf32>
    %c0_133 = arith.constant 0 : index
    %c0_134 = arith.constant 0 : index
    %c0_135 = arith.constant 0 : index
    %196 = vector.load %arg10[%c0_133, %c0_134, %c0_135] : memref<2x32x32xf32, #tpu.memory_space<vmem>>, vector<1x32x32xf32>
    %197 = vector.shape_cast %196 : vector<1x32x32xf32> to vector<32x32xf32>
    %cst_136 = arith.constant dense<0.000000e+00> : vector<34x32xf32>
    %198 = tpu.matmul %195, %197, %cst_136 {dimension_numbers = #tpu.dot_dimension_numbers<[1], [0], [0], [1], [0, 0, 1, 1], [], []>} : vector<34x32xf32>, vector<32x32xf32>, vector<34x32xf32> -> vector<34x32xf32>
    %c0_137 = arith.constant 0 : index
    %c0_138 = arith.constant 0 : index
    %c0_139 = arith.constant 0 : index
    %199 = vector.load %arg11[%c0_137, %c0_138, %c0_139] : memref<2x1x32xf32, #tpu.memory_space<vmem>>, vector<1x1x32xf32>
    %200 = vector.shape_cast %199 : vector<1x1x32xf32> to vector<1x32xf32>
    %201 = vector.broadcast %200 : vector<1x32xf32> to vector<34x32xf32>
    %202 = arith.addf %198, %201 : vector<34x32xf32>
    %203 = arith.addf %18, %202 : vector<34x32xf32>
    %c0_140 = arith.constant 0 : index
    %c0_141 = arith.constant 0 : index
    %c0_142 = arith.constant 0 : index
    %204 = vector.load %arg12[%c0_140, %c0_141, %c0_142] : memref<2x1x32xf32, #tpu.memory_space<vmem>>, vector<1x1x32xf32>
    %205 = vector.shape_cast %204 : vector<1x1x32xf32> to vector<1x32xf32>
    %c0_143 = arith.constant 0 : index
    %c0_144 = arith.constant 0 : index
    %c0_145 = arith.constant 0 : index
    %206 = vector.load %arg13[%c0_143, %c0_144, %c0_145] : memref<2x1x32xf32, #tpu.memory_space<vmem>>, vector<1x1x32xf32>
    %207 = vector.shape_cast %206 : vector<1x1x32xf32> to vector<1x32xf32>
    %cst_146 = arith.constant dense<0.000000e+00> : vector<34xf32>
    %208 = vector.multi_reduction <add>, %203, %cst_146 [1] : vector<34x32xf32> to vector<34xf32>
    %209 = vector.shape_cast %208 : vector<34xf32> to vector<34x1xf32>
    %cst_147 = arith.constant 3.200000e+01 : f32
    %210 = vector.broadcast %cst_147 : f32 to vector<34x1xf32>
    %211 = arith.divf %209, %210 : vector<34x1xf32>
    %212 = vector.broadcast %211 : vector<34x1xf32> to vector<34x32xf32>
    %213 = arith.subf %203, %212 : vector<34x32xf32>
    %214 = arith.mulf %213, %213 : vector<34x32xf32>
    %cst_148 = arith.constant dense<0.000000e+00> : vector<34xf32>
    %215 = vector.multi_reduction <add>, %214, %cst_148 [1] : vector<34x32xf32> to vector<34xf32>
    %216 = vector.shape_cast %215 : vector<34xf32> to vector<34x1xf32>
    %cst_149 = arith.constant 3.200000e+01 : f32
    %217 = vector.broadcast %cst_149 : f32 to vector<34x1xf32>
    %218 = arith.divf %216, %217 : vector<34x1xf32>
    %cst_150 = arith.constant 9.99999974E-6 : f32
    %219 = vector.broadcast %cst_150 : f32 to vector<34x1xf32>
    %220 = arith.addf %218, %219 : vector<34x1xf32>
    %221 = math.rsqrt %220 : vector<34x1xf32>
    %222 = vector.broadcast %221 : vector<34x1xf32> to vector<34x32xf32>
    %223 = arith.mulf %213, %222 : vector<34x32xf32>
    %224 = vector.broadcast %205 : vector<1x32xf32> to vector<34x32xf32>
    %225 = arith.mulf %223, %224 : vector<34x32xf32>
    %226 = vector.broadcast %207 : vector<1x32xf32> to vector<34x32xf32>
    %227 = arith.addf %225, %226 : vector<34x32xf32>
    %c0_151 = arith.constant 0 : index
    %c0_152 = arith.constant 0 : index
    %c0_153 = arith.constant 0 : index
    %228 = vector.load %arg14[%c0_151, %c0_152, %c0_153] : memref<2x32x48xf32, #tpu.memory_space<vmem>>, vector<1x32x48xf32>
    %229 = vector.shape_cast %228 : vector<1x32x48xf32> to vector<32x48xf32>
    %cst_154 = arith.constant dense<0.000000e+00> : vector<34x48xf32>
    %230 = tpu.matmul %227, %229, %cst_154 {dimension_numbers = #tpu.dot_dimension_numbers<[1], [0], [0], [1], [0, 0, 1, 1], [], []>} : vector<34x32xf32>, vector<32x48xf32>, vector<34x48xf32> -> vector<34x48xf32>
    %c0_155 = arith.constant 0 : index
    %c0_156 = arith.constant 0 : index
    %c0_157 = arith.constant 0 : index
    %231 = vector.load %arg15[%c0_155, %c0_156, %c0_157] : memref<2x1x48xf32, #tpu.memory_space<vmem>>, vector<1x1x48xf32>
    %232 = vector.shape_cast %231 : vector<1x1x48xf32> to vector<1x48xf32>
    %233 = vector.broadcast %232 : vector<1x48xf32> to vector<34x48xf32>
    %234 = arith.addf %230, %233 : vector<34x48xf32>
    %cst_158 = arith.constant 0.707106769 : f32
    %235 = vector.broadcast %cst_158 : f32 to vector<34x48xf32>
    %236 = arith.mulf %234, %235 : vector<34x48xf32>
    %cst_159 = arith.constant 0.000000e+00 : f32
    %237 = vector.broadcast %cst_159 : f32 to vector<34x48xf32>
    %238 = arith.cmpf oge, %236, %237 : vector<34x48xf32>
    %cst_160 = arith.constant 1.000000e+00 : f32
    %cst_161 = arith.constant -1.000000e+00 : f32
    %239 = vector.broadcast %cst_160 : f32 to vector<34x48xf32>
    %240 = vector.broadcast %cst_161 : f32 to vector<34x48xf32>
    %241 = arith.select %238, %239, %240 : vector<34x48xi1>, vector<34x48xf32>
    %242 = math.absf %236 : vector<34x48xf32>
    %cst_162 = arith.constant 0.327591091 : f32
    %243 = vector.broadcast %cst_162 : f32 to vector<34x48xf32>
    %244 = arith.mulf %243, %242 : vector<34x48xf32>
    %cst_163 = arith.constant 1.000000e+00 : f32
    %245 = vector.broadcast %cst_163 : f32 to vector<34x48xf32>
    %246 = arith.addf %245, %244 : vector<34x48xf32>
    %247 = tpu.reciprocal %246 {approx = true} : vector<34x48xf32> -> vector<34x48xf32>
    %cst_164 = arith.constant 1.06140542 : f32
    %248 = vector.broadcast %cst_164 : f32 to vector<34x48xf32>
    %249 = arith.mulf %248, %247 : vector<34x48xf32>
    %cst_165 = arith.constant -1.45315206 : f32
    %250 = vector.broadcast %cst_165 : f32 to vector<34x48xf32>
    %251 = arith.addf %249, %250 : vector<34x48xf32>
    %252 = arith.mulf %251, %247 : vector<34x48xf32>
    %cst_166 = arith.constant 1.42141378 : f32
    %253 = vector.broadcast %cst_166 : f32 to vector<34x48xf32>
    %254 = arith.addf %252, %253 : vector<34x48xf32>
    %255 = arith.mulf %254, %247 : vector<34x48xf32>
    %cst_167 = arith.constant -0.284496725 : f32
    %256 = vector.broadcast %cst_167 : f32 to vector<34x48xf32>
    %257 = arith.addf %255, %256 : vector<34x48xf32>
    %258 = arith.mulf %257, %247 : vector<34x48xf32>
    %cst_168 = arith.constant 0.254829586 : f32
    %259 = vector.broadcast %cst_168 : f32 to vector<34x48xf32>
    %260 = arith.addf %258, %259 : vector<34x48xf32>
    %261 = arith.mulf %260, %247 : vector<34x48xf32>
    %cst_169 = arith.constant 0.000000e+00 : f32
    %262 = vector.broadcast %cst_169 : f32 to vector<34x48xf32>
    %263 = arith.subf %262, %242 : vector<34x48xf32>
    %264 = arith.mulf %263, %242 : vector<34x48xf32>
    %265 = math.exp %264 : vector<34x48xf32>
    %266 = arith.mulf %261, %265 : vector<34x48xf32>
    %cst_170 = arith.constant 1.000000e+00 : f32
    %267 = vector.broadcast %cst_170 : f32 to vector<34x48xf32>
    %268 = arith.subf %267, %266 : vector<34x48xf32>
    %269 = arith.mulf %241, %268 : vector<34x48xf32>
    %cst_171 = arith.constant 5.000000e-01 : f32
    %270 = vector.broadcast %cst_171 : f32 to vector<34x48xf32>
    %271 = arith.mulf %270, %234 : vector<34x48xf32>
    %cst_172 = arith.constant 1.000000e+00 : f32
    %272 = vector.broadcast %cst_172 : f32 to vector<34x48xf32>
    %273 = arith.addf %272, %269 : vector<34x48xf32>
    %274 = arith.mulf %271, %273 : vector<34x48xf32>
    %c0_173 = arith.constant 0 : index
    %c0_174 = arith.constant 0 : index
    %c0_175 = arith.constant 0 : index
    %275 = vector.load %arg16[%c0_173, %c0_174, %c0_175] : memref<2x48x32xf32, #tpu.memory_space<vmem>>, vector<1x48x32xf32>
    %276 = vector.shape_cast %275 : vector<1x48x32xf32> to vector<48x32xf32>
    %cst_176 = arith.constant dense<0.000000e+00> : vector<34x32xf32>
    %277 = tpu.matmul %274, %276, %cst_176 {dimension_numbers = #tpu.dot_dimension_numbers<[1], [0], [0], [1], [0, 0, 1, 1], [], []>} : vector<34x48xf32>, vector<48x32xf32>, vector<34x32xf32> -> vector<34x32xf32>
    %c0_177 = arith.constant 0 : index
    %c0_178 = arith.constant 0 : index
    %c0_179 = arith.constant 0 : index
    %278 = vector.load %arg17[%c0_177, %c0_178, %c0_179] : memref<2x1x32xf32, #tpu.memory_space<vmem>>, vector<1x1x32xf32>
    %279 = vector.shape_cast %278 : vector<1x1x32xf32> to vector<1x32xf32>
    %280 = vector.broadcast %279 : vector<1x32xf32> to vector<34x32xf32>
    %281 = arith.addf %277, %280 : vector<34x32xf32>
    %282 = arith.addf %203, %281 : vector<34x32xf32>
    %c1_180 = arith.constant 1 : index
    %c0_181 = arith.constant 0 : index
    %c0_182 = arith.constant 0 : index
    %283 = vector.load %arg6[%c1_180, %c0_181, %c0_182] : memref<2x1x32xf32, #tpu.memory_space<vmem>>, vector<1x1x32xf32>
    %284 = vector.shape_cast %283 : vector<1x1x32xf32> to vector<1x32xf32>
    %c1_183 = arith.constant 1 : index
    %c0_184 = arith.constant 0 : index
    %c0_185 = arith.constant 0 : index
    %285 = vector.load %arg7[%c1_183, %c0_184, %c0_185] : memref<2x1x32xf32, #tpu.memory_space<vmem>>, vector<1x1x32xf32>
    %286 = vector.shape_cast %285 : vector<1x1x32xf32> to vector<1x32xf32>
    %cst_186 = arith.constant dense<0.000000e+00> : vector<34xf32>
    %287 = vector.multi_reduction <add>, %282, %cst_186 [1] : vector<34x32xf32> to vector<34xf32>
    %288 = vector.shape_cast %287 : vector<34xf32> to vector<34x1xf32>
    %cst_187 = arith.constant 3.200000e+01 : f32
    %289 = vector.broadcast %cst_187 : f32 to vector<34x1xf32>
    %290 = arith.divf %288, %289 : vector<34x1xf32>
    %291 = vector.broadcast %290 : vector<34x1xf32> to vector<34x32xf32>
    %292 = arith.subf %282, %291 : vector<34x32xf32>
    %293 = arith.mulf %292, %292 : vector<34x32xf32>
    %cst_188 = arith.constant dense<0.000000e+00> : vector<34xf32>
    %294 = vector.multi_reduction <add>, %293, %cst_188 [1] : vector<34x32xf32> to vector<34xf32>
    %295 = vector.shape_cast %294 : vector<34xf32> to vector<34x1xf32>
    %cst_189 = arith.constant 3.200000e+01 : f32
    %296 = vector.broadcast %cst_189 : f32 to vector<34x1xf32>
    %297 = arith.divf %295, %296 : vector<34x1xf32>
    %cst_190 = arith.constant 9.99999974E-6 : f32
    %298 = vector.broadcast %cst_190 : f32 to vector<34x1xf32>
    %299 = arith.addf %297, %298 : vector<34x1xf32>
    %300 = math.rsqrt %299 : vector<34x1xf32>
    %301 = vector.broadcast %300 : vector<34x1xf32> to vector<34x32xf32>
    %302 = arith.mulf %292, %301 : vector<34x32xf32>
    %303 = vector.broadcast %284 : vector<1x32xf32> to vector<34x32xf32>
    %304 = arith.mulf %302, %303 : vector<34x32xf32>
    %305 = vector.broadcast %286 : vector<1x32xf32> to vector<34x32xf32>
    %306 = arith.addf %304, %305 : vector<34x32xf32>
    %c1_191 = arith.constant 1 : index
    %c0_192 = arith.constant 0 : index
    %c0_193 = arith.constant 0 : index
    %307 = vector.load %arg8[%c1_191, %c0_192, %c0_193] : memref<2x32x96xf32, #tpu.memory_space<vmem>>, vector<1x32x96xf32>
    %308 = vector.shape_cast %307 : vector<1x32x96xf32> to vector<32x96xf32>
    %cst_194 = arith.constant dense<0.000000e+00> : vector<34x96xf32>
    %309 = tpu.matmul %306, %308, %cst_194 {dimension_numbers = #tpu.dot_dimension_numbers<[1], [0], [0], [1], [0, 0, 1, 1], [], []>} : vector<34x32xf32>, vector<32x96xf32>, vector<34x96xf32> -> vector<34x96xf32>
    %c1_195 = arith.constant 1 : index
    %c0_196 = arith.constant 0 : index
    %c0_197 = arith.constant 0 : index
    %310 = vector.load %arg9[%c1_195, %c0_196, %c0_197] : memref<2x1x96xf32, #tpu.memory_space<vmem>>, vector<1x1x96xf32>
    %311 = vector.shape_cast %310 : vector<1x1x96xf32> to vector<1x96xf32>
    %312 = vector.broadcast %311 : vector<1x96xf32> to vector<34x96xf32>
    %313 = arith.addf %309, %312 : vector<34x96xf32>
    %c0_198 = arith.constant 0 : index
    %c0_199 = arith.constant 0 : index
    %314 = vector.load %arg24[%c0_198, %c0_199] : memref<34x96xf32, #tpu.memory_space<vmem>>, vector<34x96xf32>
    tpu.vector_store %arg24[%c0_198, %c0_199], %313 {strides = array<i32>} : memref<34x96xf32, #tpu.memory_space<vmem>>, vector<34x96xf32>,
    %c0_200 = arith.constant 0 : index
    %c0_201 = arith.constant 0 : index
    %315 = vector.load %arg24[%c0_200, %c0_201] : memref<34x96xf32, #tpu.memory_space<vmem>>, vector<17x8xf32>
    %c0_202 = arith.constant 0 : index
    %c32_203 = arith.constant 32 : index
    %316 = vector.load %arg24[%c0_202, %c32_203] : memref<34x96xf32, #tpu.memory_space<vmem>>, vector<17x8xf32>
    %c0_204 = arith.constant 0 : index
    %c64_205 = arith.constant 64 : index
    %317 = vector.load %arg24[%c0_204, %c64_205] : memref<34x96xf32, #tpu.memory_space<vmem>>, vector<17x8xf32>
    %cst_206 = arith.constant dense<0.000000e+00> : vector<17x17xf32>
    %318 = tpu.matmul %315, %316, %cst_206 {dimension_numbers = #tpu.dot_dimension_numbers<[1], [1], [0], [0], [0, 0, 1, 0], [], []>} : vector<17x8xf32>, vector<17x8xf32>, vector<17x17xf32> -> vector<17x17xf32>
    %cst_207 = arith.constant 0.353553385 : f32
    %319 = vector.broadcast %cst_207 : f32 to vector<17x17xf32>
    %320 = arith.mulf %318, %319 : vector<17x17xf32>
    %cst_208 = arith.constant dense<0xFF800000> : vector<17xf32>
    %321 = vector.multi_reduction <maximumf>, %320, %cst_208 [1] : vector<17x17xf32> to vector<17xf32>
    %322 = vector.shape_cast %321 : vector<17xf32> to vector<17x1xf32>
    %323 = vector.broadcast %322 : vector<17x1xf32> to vector<17x17xf32>
    %324 = arith.subf %320, %323 : vector<17x17xf32>
    %325 = math.exp %324 : vector<17x17xf32>
    %cst_209 = arith.constant dense<0.000000e+00> : vector<17xf32>
    %326 = vector.multi_reduction <add>, %325, %cst_209 [1] : vector<17x17xf32> to vector<17xf32>
    %327 = vector.shape_cast %326 : vector<17xf32> to vector<17x1xf32>
    %328 = tpu.reciprocal %327 {approx = true} : vector<17x1xf32> -> vector<17x1xf32>
    %329 = vector.broadcast %328 : vector<17x1xf32> to vector<17x17xf32>
    %330 = arith.mulf %325, %329 : vector<17x17xf32>
    %cst_210 = arith.constant dense<0.000000e+00> : vector<17x8xf32>
    %331 = tpu.matmul %330, %317, %cst_210 {dimension_numbers = #tpu.dot_dimension_numbers<[1], [0], [0], [1], [0, 0, 1, 1], [], []>} : vector<17x17xf32>, vector<17x8xf32>, vector<17x8xf32> -> vector<17x8xf32>
    %c0_211 = arith.constant 0 : index
    %c0_212 = arith.constant 0 : index
    %332 = vector.load %arg25[%c0_211, %c0_212] : memref<34x32xf32, #tpu.memory_space<vmem>>, vector<17x8xf32>
    tpu.vector_store %arg25[%c0_211, %c0_212], %331 {strides = array<i32>} : memref<34x32xf32, #tpu.memory_space<vmem>>, vector<17x8xf32>,
    %c0_213 = arith.constant 0 : index
    %c8_214 = arith.constant 8 : index
    %333 = vector.load %arg24[%c0_213, %c8_214] : memref<34x96xf32, #tpu.memory_space<vmem>>, vector<17x8xf32>
    %c0_215 = arith.constant 0 : index
    %c40_216 = arith.constant 40 : index
    %334 = vector.load %arg24[%c0_215, %c40_216] : memref<34x96xf32, #tpu.memory_space<vmem>>, vector<17x8xf32>
    %c0_217 = arith.constant 0 : index
    %c72_218 = arith.constant 72 : index
    %335 = vector.load %arg24[%c0_217, %c72_218] : memref<34x96xf32, #tpu.memory_space<vmem>>, vector<17x8xf32>
    %cst_219 = arith.constant dense<0.000000e+00> : vector<17x17xf32>
    %336 = tpu.matmul %333, %334, %cst_219 {dimension_numbers = #tpu.dot_dimension_numbers<[1], [1], [0], [0], [0, 0, 1, 0], [], []>} : vector<17x8xf32>, vector<17x8xf32>, vector<17x17xf32> -> vector<17x17xf32>
    %cst_220 = arith.constant 0.353553385 : f32
    %337 = vector.broadcast %cst_220 : f32 to vector<17x17xf32>
    %338 = arith.mulf %336, %337 : vector<17x17xf32>
    %cst_221 = arith.constant dense<0xFF800000> : vector<17xf32>
    %339 = vector.multi_reduction <maximumf>, %338, %cst_221 [1] : vector<17x17xf32> to vector<17xf32>
    %340 = vector.shape_cast %339 : vector<17xf32> to vector<17x1xf32>
    %341 = vector.broadcast %340 : vector<17x1xf32> to vector<17x17xf32>
    %342 = arith.subf %338, %341 : vector<17x17xf32>
    %343 = math.exp %342 : vector<17x17xf32>
    %cst_222 = arith.constant dense<0.000000e+00> : vector<17xf32>
    %344 = vector.multi_reduction <add>, %343, %cst_222 [1] : vector<17x17xf32> to vector<17xf32>
    %345 = vector.shape_cast %344 : vector<17xf32> to vector<17x1xf32>
    %346 = tpu.reciprocal %345 {approx = true} : vector<17x1xf32> -> vector<17x1xf32>
    %347 = vector.broadcast %346 : vector<17x1xf32> to vector<17x17xf32>
    %348 = arith.mulf %343, %347 : vector<17x17xf32>
    %cst_223 = arith.constant dense<0.000000e+00> : vector<17x8xf32>
    %349 = tpu.matmul %348, %335, %cst_223 {dimension_numbers = #tpu.dot_dimension_numbers<[1], [0], [0], [1], [0, 0, 1, 1], [], []>} : vector<17x17xf32>, vector<17x8xf32>, vector<17x8xf32> -> vector<17x8xf32>
    %c0_224 = arith.constant 0 : index
    %c8_225 = arith.constant 8 : index
    %350 = vector.load %arg25[%c0_224, %c8_225] : memref<34x32xf32, #tpu.memory_space<vmem>>, vector<17x8xf32>
    tpu.vector_store %arg25[%c0_224, %c8_225], %349 {strides = array<i32>} : memref<34x32xf32, #tpu.memory_space<vmem>>, vector<17x8xf32>,
    %c0_226 = arith.constant 0 : index
    %c16_227 = arith.constant 16 : index
    %351 = vector.load %arg24[%c0_226, %c16_227] : memref<34x96xf32, #tpu.memory_space<vmem>>, vector<17x8xf32>
    %c0_228 = arith.constant 0 : index
    %c48_229 = arith.constant 48 : index
    %352 = vector.load %arg24[%c0_228, %c48_229] : memref<34x96xf32, #tpu.memory_space<vmem>>, vector<17x8xf32>
    %c0_230 = arith.constant 0 : index
    %c80_231 = arith.constant 80 : index
    %353 = vector.load %arg24[%c0_230, %c80_231] : memref<34x96xf32, #tpu.memory_space<vmem>>, vector<17x8xf32>
    %cst_232 = arith.constant dense<0.000000e+00> : vector<17x17xf32>
    %354 = tpu.matmul %351, %352, %cst_232 {dimension_numbers = #tpu.dot_dimension_numbers<[1], [1], [0], [0], [0, 0, 1, 0], [], []>} : vector<17x8xf32>, vector<17x8xf32>, vector<17x17xf32> -> vector<17x17xf32>
    %cst_233 = arith.constant 0.353553385 : f32
    %355 = vector.broadcast %cst_233 : f32 to vector<17x17xf32>
    %356 = arith.mulf %354, %355 : vector<17x17xf32>
    %cst_234 = arith.constant dense<0xFF800000> : vector<17xf32>
    %357 = vector.multi_reduction <maximumf>, %356, %cst_234 [1] : vector<17x17xf32> to vector<17xf32>
    %358 = vector.shape_cast %357 : vector<17xf32> to vector<17x1xf32>
    %359 = vector.broadcast %358 : vector<17x1xf32> to vector<17x17xf32>
    %360 = arith.subf %356, %359 : vector<17x17xf32>
    %361 = math.exp %360 : vector<17x17xf32>
    %cst_235 = arith.constant dense<0.000000e+00> : vector<17xf32>
    %362 = vector.multi_reduction <add>, %361, %cst_235 [1] : vector<17x17xf32> to vector<17xf32>
    %363 = vector.shape_cast %362 : vector<17xf32> to vector<17x1xf32>
    %364 = tpu.reciprocal %363 {approx = true} : vector<17x1xf32> -> vector<17x1xf32>
    %365 = vector.broadcast %364 : vector<17x1xf32> to vector<17x17xf32>
    %366 = arith.mulf %361, %365 : vector<17x17xf32>
    %cst_236 = arith.constant dense<0.000000e+00> : vector<17x8xf32>
    %367 = tpu.matmul %366, %353, %cst_236 {dimension_numbers = #tpu.dot_dimension_numbers<[1], [0], [0], [1], [0, 0, 1, 1], [], []>} : vector<17x17xf32>, vector<17x8xf32>, vector<17x8xf32> -> vector<17x8xf32>
    %c0_237 = arith.constant 0 : index
    %c16_238 = arith.constant 16 : index
    %368 = vector.load %arg25[%c0_237, %c16_238] : memref<34x32xf32, #tpu.memory_space<vmem>>, vector<17x8xf32>
    tpu.vector_store %arg25[%c0_237, %c16_238], %367 {strides = array<i32>} : memref<34x32xf32, #tpu.memory_space<vmem>>, vector<17x8xf32>,
    %c0_239 = arith.constant 0 : index
    %c24_240 = arith.constant 24 : index
    %369 = vector.load %arg24[%c0_239, %c24_240] : memref<34x96xf32, #tpu.memory_space<vmem>>, vector<17x8xf32>
    %c0_241 = arith.constant 0 : index
    %c56_242 = arith.constant 56 : index
    %370 = vector.load %arg24[%c0_241, %c56_242] : memref<34x96xf32, #tpu.memory_space<vmem>>, vector<17x8xf32>
    %c0_243 = arith.constant 0 : index
    %c88_244 = arith.constant 88 : index
    %371 = vector.load %arg24[%c0_243, %c88_244] : memref<34x96xf32, #tpu.memory_space<vmem>>, vector<17x8xf32>
    %cst_245 = arith.constant dense<0.000000e+00> : vector<17x17xf32>
    %372 = tpu.matmul %369, %370, %cst_245 {dimension_numbers = #tpu.dot_dimension_numbers<[1], [1], [0], [0], [0, 0, 1, 0], [], []>} : vector<17x8xf32>, vector<17x8xf32>, vector<17x17xf32> -> vector<17x17xf32>
    %cst_246 = arith.constant 0.353553385 : f32
    %373 = vector.broadcast %cst_246 : f32 to vector<17x17xf32>
    %374 = arith.mulf %372, %373 : vector<17x17xf32>
    %cst_247 = arith.constant dense<0xFF800000> : vector<17xf32>
    %375 = vector.multi_reduction <maximumf>, %374, %cst_247 [1] : vector<17x17xf32> to vector<17xf32>
    %376 = vector.shape_cast %375 : vector<17xf32> to vector<17x1xf32>
    %377 = vector.broadcast %376 : vector<17x1xf32> to vector<17x17xf32>
    %378 = arith.subf %374, %377 : vector<17x17xf32>
    %379 = math.exp %378 : vector<17x17xf32>
    %cst_248 = arith.constant dense<0.000000e+00> : vector<17xf32>
    %380 = vector.multi_reduction <add>, %379, %cst_248 [1] : vector<17x17xf32> to vector<17xf32>
    %381 = vector.shape_cast %380 : vector<17xf32> to vector<17x1xf32>
    %382 = tpu.reciprocal %381 {approx = true} : vector<17x1xf32> -> vector<17x1xf32>
    %383 = vector.broadcast %382 : vector<17x1xf32> to vector<17x17xf32>
    %384 = arith.mulf %379, %383 : vector<17x17xf32>
    %cst_249 = arith.constant dense<0.000000e+00> : vector<17x8xf32>
    %385 = tpu.matmul %384, %371, %cst_249 {dimension_numbers = #tpu.dot_dimension_numbers<[1], [0], [0], [1], [0, 0, 1, 1], [], []>} : vector<17x17xf32>, vector<17x8xf32>, vector<17x8xf32> -> vector<17x8xf32>
    %c0_250 = arith.constant 0 : index
    %c24_251 = arith.constant 24 : index
    %386 = vector.load %arg25[%c0_250, %c24_251] : memref<34x32xf32, #tpu.memory_space<vmem>>, vector<17x8xf32>
    tpu.vector_store %arg25[%c0_250, %c24_251], %385 {strides = array<i32>} : memref<34x32xf32, #tpu.memory_space<vmem>>, vector<17x8xf32>,
    %c17_252 = arith.constant 17 : index
    %c0_253 = arith.constant 0 : index
    %387 = vector.load %arg24[%c17_252, %c0_253] : memref<34x96xf32, #tpu.memory_space<vmem>>, vector<17x8xf32>
    %c17_254 = arith.constant 17 : index
    %c32_255 = arith.constant 32 : index
    %388 = vector.load %arg24[%c17_254, %c32_255] : memref<34x96xf32, #tpu.memory_space<vmem>>, vector<17x8xf32>
    %c17_256 = arith.constant 17 : index
    %c64_257 = arith.constant 64 : index
    %389 = vector.load %arg24[%c17_256, %c64_257] : memref<34x96xf32, #tpu.memory_space<vmem>>, vector<17x8xf32>
    %cst_258 = arith.constant dense<0.000000e+00> : vector<17x17xf32>
    %390 = tpu.matmul %387, %388, %cst_258 {dimension_numbers = #tpu.dot_dimension_numbers<[1], [1], [0], [0], [0, 0, 1, 0], [], []>} : vector<17x8xf32>, vector<17x8xf32>, vector<17x17xf32> -> vector<17x17xf32>
    %cst_259 = arith.constant 0.353553385 : f32
    %391 = vector.broadcast %cst_259 : f32 to vector<17x17xf32>
    %392 = arith.mulf %390, %391 : vector<17x17xf32>
    %cst_260 = arith.constant dense<0xFF800000> : vector<17xf32>
    %393 = vector.multi_reduction <maximumf>, %392, %cst_260 [1] : vector<17x17xf32> to vector<17xf32>
    %394 = vector.shape_cast %393 : vector<17xf32> to vector<17x1xf32>
    %395 = vector.broadcast %394 : vector<17x1xf32> to vector<17x17xf32>
    %396 = arith.subf %392, %395 : vector<17x17xf32>
    %397 = math.exp %396 : vector<17x17xf32>
    %cst_261 = arith.constant dense<0.000000e+00> : vector<17xf32>
    %398 = vector.multi_reduction <add>, %397, %cst_261 [1] : vector<17x17xf32> to vector<17xf32>
    %399 = vector.shape_cast %398 : vector<17xf32> to vector<17x1xf32>
    %400 = tpu.reciprocal %399 {approx = true} : vector<17x1xf32> -> vector<17x1xf32>
    %401 = vector.broadcast %400 : vector<17x1xf32> to vector<17x17xf32>
    %402 = arith.mulf %397, %401 : vector<17x17xf32>
    %cst_262 = arith.constant dense<0.000000e+00> : vector<17x8xf32>
    %403 = tpu.matmul %402, %389, %cst_262 {dimension_numbers = #tpu.dot_dimension_numbers<[1], [0], [0], [1], [0, 0, 1, 1], [], []>} : vector<17x17xf32>, vector<17x8xf32>, vector<17x8xf32> -> vector<17x8xf32>
    %c17_263 = arith.constant 17 : index
    %c0_264 = arith.constant 0 : index
    %404 = vector.load %arg25[%c17_263, %c0_264] : memref<34x32xf32, #tpu.memory_space<vmem>>, vector<17x8xf32>
    tpu.vector_store %arg25[%c17_263, %c0_264], %403 {strides = array<i32>} : memref<34x32xf32, #tpu.memory_space<vmem>>, vector<17x8xf32>,
    %c17_265 = arith.constant 17 : index
    %c8_266 = arith.constant 8 : index
    %405 = vector.load %arg24[%c17_265, %c8_266] : memref<34x96xf32, #tpu.memory_space<vmem>>, vector<17x8xf32>
    %c17_267 = arith.constant 17 : index
    %c40_268 = arith.constant 40 : index
    %406 = vector.load %arg24[%c17_267, %c40_268] : memref<34x96xf32, #tpu.memory_space<vmem>>, vector<17x8xf32>
    %c17_269 = arith.constant 17 : index
    %c72_270 = arith.constant 72 : index
    %407 = vector.load %arg24[%c17_269, %c72_270] : memref<34x96xf32, #tpu.memory_space<vmem>>, vector<17x8xf32>
    %cst_271 = arith.constant dense<0.000000e+00> : vector<17x17xf32>
    %408 = tpu.matmul %405, %406, %cst_271 {dimension_numbers = #tpu.dot_dimension_numbers<[1], [1], [0], [0], [0, 0, 1, 0], [], []>} : vector<17x8xf32>, vector<17x8xf32>, vector<17x17xf32> -> vector<17x17xf32>
    %cst_272 = arith.constant 0.353553385 : f32
    %409 = vector.broadcast %cst_272 : f32 to vector<17x17xf32>
    %410 = arith.mulf %408, %409 : vector<17x17xf32>
    %cst_273 = arith.constant dense<0xFF800000> : vector<17xf32>
    %411 = vector.multi_reduction <maximumf>, %410, %cst_273 [1] : vector<17x17xf32> to vector<17xf32>
    %412 = vector.shape_cast %411 : vector<17xf32> to vector<17x1xf32>
    %413 = vector.broadcast %412 : vector<17x1xf32> to vector<17x17xf32>
    %414 = arith.subf %410, %413 : vector<17x17xf32>
    %415 = math.exp %414 : vector<17x17xf32>
    %cst_274 = arith.constant dense<0.000000e+00> : vector<17xf32>
    %416 = vector.multi_reduction <add>, %415, %cst_274 [1] : vector<17x17xf32> to vector<17xf32>
    %417 = vector.shape_cast %416 : vector<17xf32> to vector<17x1xf32>
    %418 = tpu.reciprocal %417 {approx = true} : vector<17x1xf32> -> vector<17x1xf32>
    %419 = vector.broadcast %418 : vector<17x1xf32> to vector<17x17xf32>
    %420 = arith.mulf %415, %419 : vector<17x17xf32>
    %cst_275 = arith.constant dense<0.000000e+00> : vector<17x8xf32>
    %421 = tpu.matmul %420, %407, %cst_275 {dimension_numbers = #tpu.dot_dimension_numbers<[1], [0], [0], [1], [0, 0, 1, 1], [], []>} : vector<17x17xf32>, vector<17x8xf32>, vector<17x8xf32> -> vector<17x8xf32>
    %c17_276 = arith.constant 17 : index
    %c8_277 = arith.constant 8 : index
    %422 = vector.load %arg25[%c17_276, %c8_277] : memref<34x32xf32, #tpu.memory_space<vmem>>, vector<17x8xf32>
    tpu.vector_store %arg25[%c17_276, %c8_277], %421 {strides = array<i32>} : memref<34x32xf32, #tpu.memory_space<vmem>>, vector<17x8xf32>,
    %c17_278 = arith.constant 17 : index
    %c16_279 = arith.constant 16 : index
    %423 = vector.load %arg24[%c17_278, %c16_279] : memref<34x96xf32, #tpu.memory_space<vmem>>, vector<17x8xf32>
    %c17_280 = arith.constant 17 : index
    %c48_281 = arith.constant 48 : index
    %424 = vector.load %arg24[%c17_280, %c48_281] : memref<34x96xf32, #tpu.memory_space<vmem>>, vector<17x8xf32>
    %c17_282 = arith.constant 17 : index
    %c80_283 = arith.constant 80 : index
    %425 = vector.load %arg24[%c17_282, %c80_283] : memref<34x96xf32, #tpu.memory_space<vmem>>, vector<17x8xf32>
    %cst_284 = arith.constant dense<0.000000e+00> : vector<17x17xf32>
    %426 = tpu.matmul %423, %424, %cst_284 {dimension_numbers = #tpu.dot_dimension_numbers<[1], [1], [0], [0], [0, 0, 1, 0], [], []>} : vector<17x8xf32>, vector<17x8xf32>, vector<17x17xf32> -> vector<17x17xf32>
    %cst_285 = arith.constant 0.353553385 : f32
    %427 = vector.broadcast %cst_285 : f32 to vector<17x17xf32>
    %428 = arith.mulf %426, %427 : vector<17x17xf32>
    %cst_286 = arith.constant dense<0xFF800000> : vector<17xf32>
    %429 = vector.multi_reduction <maximumf>, %428, %cst_286 [1] : vector<17x17xf32> to vector<17xf32>
    %430 = vector.shape_cast %429 : vector<17xf32> to vector<17x1xf32>
    %431 = vector.broadcast %430 : vector<17x1xf32> to vector<17x17xf32>
    %432 = arith.subf %428, %431 : vector<17x17xf32>
    %433 = math.exp %432 : vector<17x17xf32>
    %cst_287 = arith.constant dense<0.000000e+00> : vector<17xf32>
    %434 = vector.multi_reduction <add>, %433, %cst_287 [1] : vector<17x17xf32> to vector<17xf32>
    %435 = vector.shape_cast %434 : vector<17xf32> to vector<17x1xf32>
    %436 = tpu.reciprocal %435 {approx = true} : vector<17x1xf32> -> vector<17x1xf32>
    %437 = vector.broadcast %436 : vector<17x1xf32> to vector<17x17xf32>
    %438 = arith.mulf %433, %437 : vector<17x17xf32>
    %cst_288 = arith.constant dense<0.000000e+00> : vector<17x8xf32>
    %439 = tpu.matmul %438, %425, %cst_288 {dimension_numbers = #tpu.dot_dimension_numbers<[1], [0], [0], [1], [0, 0, 1, 1], [], []>} : vector<17x17xf32>, vector<17x8xf32>, vector<17x8xf32> -> vector<17x8xf32>
    %c17_289 = arith.constant 17 : index
    %c16_290 = arith.constant 16 : index
    %440 = vector.load %arg25[%c17_289, %c16_290] : memref<34x32xf32, #tpu.memory_space<vmem>>, vector<17x8xf32>
    tpu.vector_store %arg25[%c17_289, %c16_290], %439 {strides = array<i32>} : memref<34x32xf32, #tpu.memory_space<vmem>>, vector<17x8xf32>,
    %c17_291 = arith.constant 17 : index
    %c24_292 = arith.constant 24 : index
    %441 = vector.load %arg24[%c17_291, %c24_292] : memref<34x96xf32, #tpu.memory_space<vmem>>, vector<17x8xf32>
    %c17_293 = arith.constant 17 : index
    %c56_294 = arith.constant 56 : index
    %442 = vector.load %arg24[%c17_293, %c56_294] : memref<34x96xf32, #tpu.memory_space<vmem>>, vector<17x8xf32>
    %c17_295 = arith.constant 17 : index
    %c88_296 = arith.constant 88 : index
    %443 = vector.load %arg24[%c17_295, %c88_296] : memref<34x96xf32, #tpu.memory_space<vmem>>, vector<17x8xf32>
    %cst_297 = arith.constant dense<0.000000e+00> : vector<17x17xf32>
    %444 = tpu.matmul %441, %442, %cst_297 {dimension_numbers = #tpu.dot_dimension_numbers<[1], [1], [0], [0], [0, 0, 1, 0], [], []>} : vector<17x8xf32>, vector<17x8xf32>, vector<17x17xf32> -> vector<17x17xf32>
    %cst_298 = arith.constant 0.353553385 : f32
    %445 = vector.broadcast %cst_298 : f32 to vector<17x17xf32>
    %446 = arith.mulf %444, %445 : vector<17x17xf32>
    %cst_299 = arith.constant dense<0xFF800000> : vector<17xf32>
    %447 = vector.multi_reduction <maximumf>, %446, %cst_299 [1] : vector<17x17xf32> to vector<17xf32>
    %448 = vector.shape_cast %447 : vector<17xf32> to vector<17x1xf32>
    %449 = vector.broadcast %448 : vector<17x1xf32> to vector<17x17xf32>
    %450 = arith.subf %446, %449 : vector<17x17xf32>
    %451 = math.exp %450 : vector<17x17xf32>
    %cst_300 = arith.constant dense<0.000000e+00> : vector<17xf32>
    %452 = vector.multi_reduction <add>, %451, %cst_300 [1] : vector<17x17xf32> to vector<17xf32>
    %453 = vector.shape_cast %452 : vector<17xf32> to vector<17x1xf32>
    %454 = tpu.reciprocal %453 {approx = true} : vector<17x1xf32> -> vector<17x1xf32>
    %455 = vector.broadcast %454 : vector<17x1xf32> to vector<17x17xf32>
    %456 = arith.mulf %451, %455 : vector<17x17xf32>
    %cst_301 = arith.constant dense<0.000000e+00> : vector<17x8xf32>
    %457 = tpu.matmul %456, %443, %cst_301 {dimension_numbers = #tpu.dot_dimension_numbers<[1], [0], [0], [1], [0, 0, 1, 1], [], []>} : vector<17x17xf32>, vector<17x8xf32>, vector<17x8xf32> -> vector<17x8xf32>
    %c17_302 = arith.constant 17 : index
    %c24_303 = arith.constant 24 : index
    %458 = vector.load %arg25[%c17_302, %c24_303] : memref<34x32xf32, #tpu.memory_space<vmem>>, vector<17x8xf32>
    tpu.vector_store %arg25[%c17_302, %c24_303], %457 {strides = array<i32>} : memref<34x32xf32, #tpu.memory_space<vmem>>, vector<17x8xf32>,
    %c0_304 = arith.constant 0 : index
    %c0_305 = arith.constant 0 : index
    %459 = vector.load %arg25[%c0_304, %c0_305] : memref<34x32xf32, #tpu.memory_space<vmem>>, vector<34x32xf32>
    %c1_306 = arith.constant 1 : index
    %c0_307 = arith.constant 0 : index
    %c0_308 = arith.constant 0 : index
    %460 = vector.load %arg10[%c1_306, %c0_307, %c0_308] : memref<2x32x32xf32, #tpu.memory_space<vmem>>, vector<1x32x32xf32>
    %461 = vector.shape_cast %460 : vector<1x32x32xf32> to vector<32x32xf32>
    %cst_309 = arith.constant dense<0.000000e+00> : vector<34x32xf32>
    %462 = tpu.matmul %459, %461, %cst_309 {dimension_numbers = #tpu.dot_dimension_numbers<[1], [0], [0], [1], [0, 0, 1, 1], [], []>} : vector<34x32xf32>, vector<32x32xf32>, vector<34x32xf32> -> vector<34x32xf32>
    %c1_310 = arith.constant 1 : index
    %c0_311 = arith.constant 0 : index
    %c0_312 = arith.constant 0 : index
    %463 = vector.load %arg11[%c1_310, %c0_311, %c0_312] : memref<2x1x32xf32, #tpu.memory_space<vmem>>, vector<1x1x32xf32>
    %464 = vector.shape_cast %463 : vector<1x1x32xf32> to vector<1x32xf32>
    %465 = vector.broadcast %464 : vector<1x32xf32> to vector<34x32xf32>
    %466 = arith.addf %462, %465 : vector<34x32xf32>
    %467 = arith.addf %282, %466 : vector<34x32xf32>
    %c1_313 = arith.constant 1 : index
    %c0_314 = arith.constant 0 : index
    %c0_315 = arith.constant 0 : index
    %468 = vector.load %arg12[%c1_313, %c0_314, %c0_315] : memref<2x1x32xf32, #tpu.memory_space<vmem>>, vector<1x1x32xf32>
    %469 = vector.shape_cast %468 : vector<1x1x32xf32> to vector<1x32xf32>
    %c1_316 = arith.constant 1 : index
    %c0_317 = arith.constant 0 : index
    %c0_318 = arith.constant 0 : index
    %470 = vector.load %arg13[%c1_316, %c0_317, %c0_318] : memref<2x1x32xf32, #tpu.memory_space<vmem>>, vector<1x1x32xf32>
    %471 = vector.shape_cast %470 : vector<1x1x32xf32> to vector<1x32xf32>
    %cst_319 = arith.constant dense<0.000000e+00> : vector<34xf32>
    %472 = vector.multi_reduction <add>, %467, %cst_319 [1] : vector<34x32xf32> to vector<34xf32>
    %473 = vector.shape_cast %472 : vector<34xf32> to vector<34x1xf32>
    %cst_320 = arith.constant 3.200000e+01 : f32
    %474 = vector.broadcast %cst_320 : f32 to vector<34x1xf32>
    %475 = arith.divf %473, %474 : vector<34x1xf32>
    %476 = vector.broadcast %475 : vector<34x1xf32> to vector<34x32xf32>
    %477 = arith.subf %467, %476 : vector<34x32xf32>
    %478 = arith.mulf %477, %477 : vector<34x32xf32>
    %cst_321 = arith.constant dense<0.000000e+00> : vector<34xf32>
    %479 = vector.multi_reduction <add>, %478, %cst_321 [1] : vector<34x32xf32> to vector<34xf32>
    %480 = vector.shape_cast %479 : vector<34xf32> to vector<34x1xf32>
    %cst_322 = arith.constant 3.200000e+01 : f32
    %481 = vector.broadcast %cst_322 : f32 to vector<34x1xf32>
    %482 = arith.divf %480, %481 : vector<34x1xf32>
    %cst_323 = arith.constant 9.99999974E-6 : f32
    %483 = vector.broadcast %cst_323 : f32 to vector<34x1xf32>
    %484 = arith.addf %482, %483 : vector<34x1xf32>
    %485 = math.rsqrt %484 : vector<34x1xf32>
    %486 = vector.broadcast %485 : vector<34x1xf32> to vector<34x32xf32>
    %487 = arith.mulf %477, %486 : vector<34x32xf32>
    %488 = vector.broadcast %469 : vector<1x32xf32> to vector<34x32xf32>
    %489 = arith.mulf %487, %488 : vector<34x32xf32>
    %490 = vector.broadcast %471 : vector<1x32xf32> to vector<34x32xf32>
    %491 = arith.addf %489, %490 : vector<34x32xf32>
    %c1_324 = arith.constant 1 : index
    %c0_325 = arith.constant 0 : index
    %c0_326 = arith.constant 0 : index
    %492 = vector.load %arg14[%c1_324, %c0_325, %c0_326] : memref<2x32x48xf32, #tpu.memory_space<vmem>>, vector<1x32x48xf32>
    %493 = vector.shape_cast %492 : vector<1x32x48xf32> to vector<32x48xf32>
    %cst_327 = arith.constant dense<0.000000e+00> : vector<34x48xf32>
    %494 = tpu.matmul %491, %493, %cst_327 {dimension_numbers = #tpu.dot_dimension_numbers<[1], [0], [0], [1], [0, 0, 1, 1], [], []>} : vector<34x32xf32>, vector<32x48xf32>, vector<34x48xf32> -> vector<34x48xf32>
    %c1_328 = arith.constant 1 : index
    %c0_329 = arith.constant 0 : index
    %c0_330 = arith.constant 0 : index
    %495 = vector.load %arg15[%c1_328, %c0_329, %c0_330] : memref<2x1x48xf32, #tpu.memory_space<vmem>>, vector<1x1x48xf32>
    %496 = vector.shape_cast %495 : vector<1x1x48xf32> to vector<1x48xf32>
    %497 = vector.broadcast %496 : vector<1x48xf32> to vector<34x48xf32>
    %498 = arith.addf %494, %497 : vector<34x48xf32>
    %cst_331 = arith.constant 0.707106769 : f32
    %499 = vector.broadcast %cst_331 : f32 to vector<34x48xf32>
    %500 = arith.mulf %498, %499 : vector<34x48xf32>
    %cst_332 = arith.constant 0.000000e+00 : f32
    %501 = vector.broadcast %cst_332 : f32 to vector<34x48xf32>
    %502 = arith.cmpf oge, %500, %501 : vector<34x48xf32>
    %cst_333 = arith.constant 1.000000e+00 : f32
    %cst_334 = arith.constant -1.000000e+00 : f32
    %503 = vector.broadcast %cst_333 : f32 to vector<34x48xf32>
    %504 = vector.broadcast %cst_334 : f32 to vector<34x48xf32>
    %505 = arith.select %502, %503, %504 : vector<34x48xi1>, vector<34x48xf32>
    %506 = math.absf %500 : vector<34x48xf32>
    %cst_335 = arith.constant 0.327591091 : f32
    %507 = vector.broadcast %cst_335 : f32 to vector<34x48xf32>
    %508 = arith.mulf %507, %506 : vector<34x48xf32>
    %cst_336 = arith.constant 1.000000e+00 : f32
    %509 = vector.broadcast %cst_336 : f32 to vector<34x48xf32>
    %510 = arith.addf %509, %508 : vector<34x48xf32>
    %511 = tpu.reciprocal %510 {approx = true} : vector<34x48xf32> -> vector<34x48xf32>
    %cst_337 = arith.constant 1.06140542 : f32
    %512 = vector.broadcast %cst_337 : f32 to vector<34x48xf32>
    %513 = arith.mulf %512, %511 : vector<34x48xf32>
    %cst_338 = arith.constant -1.45315206 : f32
    %514 = vector.broadcast %cst_338 : f32 to vector<34x48xf32>
    %515 = arith.addf %513, %514 : vector<34x48xf32>
    %516 = arith.mulf %515, %511 : vector<34x48xf32>
    %cst_339 = arith.constant 1.42141378 : f32
    %517 = vector.broadcast %cst_339 : f32 to vector<34x48xf32>
    %518 = arith.addf %516, %517 : vector<34x48xf32>
    %519 = arith.mulf %518, %511 : vector<34x48xf32>
    %cst_340 = arith.constant -0.284496725 : f32
    %520 = vector.broadcast %cst_340 : f32 to vector<34x48xf32>
    %521 = arith.addf %519, %520 : vector<34x48xf32>
    %522 = arith.mulf %521, %511 : vector<34x48xf32>
    %cst_341 = arith.constant 0.254829586 : f32
    %523 = vector.broadcast %cst_341 : f32 to vector<34x48xf32>
    %524 = arith.addf %522, %523 : vector<34x48xf32>
    %525 = arith.mulf %524, %511 : vector<34x48xf32>
    %cst_342 = arith.constant 0.000000e+00 : f32
    %526 = vector.broadcast %cst_342 : f32 to vector<34x48xf32>
    %527 = arith.subf %526, %506 : vector<34x48xf32>
    %528 = arith.mulf %527, %506 : vector<34x48xf32>
    %529 = math.exp %528 : vector<34x48xf32>
    %530 = arith.mulf %525, %529 : vector<34x48xf32>
    %cst_343 = arith.constant 1.000000e+00 : f32
    %531 = vector.broadcast %cst_343 : f32 to vector<34x48xf32>
    %532 = arith.subf %531, %530 : vector<34x48xf32>
    %533 = arith.mulf %505, %532 : vector<34x48xf32>
    %cst_344 = arith.constant 5.000000e-01 : f32
    %534 = vector.broadcast %cst_344 : f32 to vector<34x48xf32>
    %535 = arith.mulf %534, %498 : vector<34x48xf32>
    %cst_345 = arith.constant 1.000000e+00 : f32
    %536 = vector.broadcast %cst_345 : f32 to vector<34x48xf32>
    %537 = arith.addf %536, %533 : vector<34x48xf32>
    %538 = arith.mulf %535, %537 : vector<34x48xf32>
    %c1_346 = arith.constant 1 : index
    %c0_347 = arith.constant 0 : index
    %c0_348 = arith.constant 0 : index
    %539 = vector.load %arg16[%c1_346, %c0_347, %c0_348] : memref<2x48x32xf32, #tpu.memory_space<vmem>>, vector<1x48x32xf32>
    %540 = vector.shape_cast %539 : vector<1x48x32xf32> to vector<48x32xf32>
    %cst_349 = arith.constant dense<0.000000e+00> : vector<34x32xf32>
    %541 = tpu.matmul %538, %540, %cst_349 {dimension_numbers = #tpu.dot_dimension_numbers<[1], [0], [0], [1], [0, 0, 1, 1], [], []>} : vector<34x48xf32>, vector<48x32xf32>, vector<34x32xf32> -> vector<34x32xf32>
    %c1_350 = arith.constant 1 : index
    %c0_351 = arith.constant 0 : index
    %c0_352 = arith.constant 0 : index
    %542 = vector.load %arg17[%c1_350, %c0_351, %c0_352] : memref<2x1x32xf32, #tpu.memory_space<vmem>>, vector<1x1x32xf32>
    %543 = vector.shape_cast %542 : vector<1x1x32xf32> to vector<1x32xf32>
    %544 = vector.broadcast %543 : vector<1x32xf32> to vector<34x32xf32>
    %545 = arith.addf %541, %544 : vector<34x32xf32>
    %546 = arith.addf %467, %545 : vector<34x32xf32>
    %c0_353 = arith.constant 0 : index
    %c0_354 = arith.constant 0 : index
    %547 = vector.load %arg23[%c0_353, %c0_354] : memref<34x32xf32, #tpu.memory_space<vmem>>, vector<34x32xf32>
    tpu.vector_store %arg23[%c0_353, %c0_354], %546 {strides = array<i32>} : memref<34x32xf32, #tpu.memory_space<vmem>>, vector<34x32xf32>,
    %c0_355 = arith.constant 0 : index
    %c0_356 = arith.constant 0 : index
    %548 = vector.load %arg23[%c0_355, %c0_356] : memref<34x32xf32, #tpu.memory_space<vmem>>, vector<1x32xf32>
    %c0_357 = arith.constant 0 : index
    %c0_358 = arith.constant 0 : index
    %549 = vector.load %arg26[%c0_357, %c0_358] : memref<2x32xf32, #tpu.memory_space<vmem>>, vector<1x32xf32>
    tpu.vector_store %arg26[%c0_357, %c0_358], %548 {strides = array<i32>} : memref<2x32xf32, #tpu.memory_space<vmem>>, vector<1x32xf32>,
    %c17_359 = arith.constant 17 : index
    %c0_360 = arith.constant 0 : index
    %550 = vector.load %arg23[%c17_359, %c0_360] : memref<34x32xf32, #tpu.memory_space<vmem>>, vector<1x32xf32>
    %c1_361 = arith.constant 1 : index
    %c0_362 = arith.constant 0 : index
    %551 = vector.load %arg26[%c1_361, %c0_362] : memref<2x32xf32, #tpu.memory_space<vmem>>, vector<1x32xf32>
    tpu.vector_store %arg26[%c1_361, %c0_362], %550 {strides = array<i32>} : memref<2x32xf32, #tpu.memory_space<vmem>>, vector<1x32xf32>,
    %c0_363 = arith.constant 0 : index
    %c0_364 = arith.constant 0 : index
    %552 = vector.load %arg26[%c0_363, %c0_364] : memref<2x32xf32, #tpu.memory_space<vmem>>, vector<2x32xf32>
    %c0_365 = arith.constant 0 : index
    %c0_366 = arith.constant 0 : index
    %553 = vector.load %arg18[%c0_365, %c0_366] : memref<1x32xf32, #tpu.memory_space<vmem>>, vector<1x32xf32>
    %c0_367 = arith.constant 0 : index
    %c0_368 = arith.constant 0 : index
    %554 = vector.load %arg19[%c0_367, %c0_368] : memref<1x32xf32, #tpu.memory_space<vmem>>, vector<1x32xf32>
    %cst_369 = arith.constant dense<0.000000e+00> : vector<2xf32>
    %555 = vector.multi_reduction <add>, %552, %cst_369 [1] : vector<2x32xf32> to vector<2xf32>
    %556 = vector.shape_cast %555 : vector<2xf32> to vector<2x1xf32>
    %cst_370 = arith.constant 3.200000e+01 : f32
    %557 = vector.broadcast %cst_370 : f32 to vector<2x1xf32>
    %558 = arith.divf %556, %557 : vector<2x1xf32>
    %559 = vector.broadcast %558 : vector<2x1xf32> to vector<2x32xf32>
    %560 = arith.subf %552, %559 : vector<2x32xf32>
    %561 = arith.mulf %560, %560 : vector<2x32xf32>
    %cst_371 = arith.constant dense<0.000000e+00> : vector<2xf32>
    %562 = vector.multi_reduction <add>, %561, %cst_371 [1] : vector<2x32xf32> to vector<2xf32>
    %563 = vector.shape_cast %562 : vector<2xf32> to vector<2x1xf32>
    %cst_372 = arith.constant 3.200000e+01 : f32
    %564 = vector.broadcast %cst_372 : f32 to vector<2x1xf32>
    %565 = arith.divf %563, %564 : vector<2x1xf32>
    %cst_373 = arith.constant 9.99999974E-6 : f32
    %566 = vector.broadcast %cst_373 : f32 to vector<2x1xf32>
    %567 = arith.addf %565, %566 : vector<2x1xf32>
    %568 = math.rsqrt %567 : vector<2x1xf32>
    %569 = vector.broadcast %568 : vector<2x1xf32> to vector<2x32xf32>
    %570 = arith.mulf %560, %569 : vector<2x32xf32>
    %571 = vector.broadcast %553 : vector<1x32xf32> to vector<2x32xf32>
    %572 = arith.mulf %570, %571 : vector<2x32xf32>
    %573 = vector.broadcast %554 : vector<1x32xf32> to vector<2x32xf32>
    %574 = arith.addf %572, %573 : vector<2x32xf32>
    %c0_374 = arith.constant 0 : index
    %c0_375 = arith.constant 0 : index
    %575 = vector.load %arg20[%c0_374, %c0_375] : memref<32x10xf32, #tpu.memory_space<vmem>>, vector<32x10xf32>
    %cst_376 = arith.constant dense<0.000000e+00> : vector<2x10xf32>
    %576 = tpu.matmul %574, %575, %cst_376 {dimension_numbers = #tpu.dot_dimension_numbers<[1], [0], [0], [1], [0, 0, 1, 1], [], []>} : vector<2x32xf32>, vector<32x10xf32>, vector<2x10xf32> -> vector<2x10xf32>
    %c0_377 = arith.constant 0 : index
    %c0_378 = arith.constant 0 : index
    %577 = vector.load %arg21[%c0_377, %c0_378] : memref<1x10xf32, #tpu.memory_space<vmem>>, vector<1x10xf32>
    %578 = vector.broadcast %577 : vector<1x10xf32> to vector<2x10xf32>
    %579 = arith.addf %576, %578 : vector<2x10xf32>
    %c0_379 = arith.constant 0 : index
    %c0_380 = arith.constant 0 : index
    %580 = vector.load %arg22[%c0_379, %c0_380] : memref<2x10xf32, #tpu.memory_space<vmem>>, vector<2x10xf32>
    tpu.vector_store %arg22[%c0_379, %c0_380], %579 {strides = array<i32>} : memref<2x10xf32, #tpu.memory_space<vmem>>, vector<2x10xf32>,
    return
  }
  func.func @transform_0(%arg0: i32) -> (i32, i32) {
    %c0_i32 = arith.constant 0 : i32
    %c0_i32_0 = arith.constant 0 : i32
    %c0_i32_1 = arith.constant 0 : i32
    return %c0_i32, %c0_i32_0 : i32, i32
  }
  func.func @transform_1(%arg0: i32) -> (i32, i32) {
    %c0_i32 = arith.constant 0 : i32
    %c0_i32_0 = arith.constant 0 : i32
    %c0_i32_1 = arith.constant 0 : i32
    return %c0_i32, %c0_i32_0 : i32, i32
  }
  func.func @transform_2(%arg0: i32) -> (i32, i32) {
    %c0_i32 = arith.constant 0 : i32
    %c0_i32_0 = arith.constant 0 : i32
    %c0_i32_1 = arith.constant 0 : i32
    return %c0_i32, %c0_i32_0 : i32, i32
  }
  func.func @transform_3(%arg0: i32) -> (i32, i32) {
    %c0_i32 = arith.constant 0 : i32
    %c0_i32_0 = arith.constant 0 : i32
    %c0_i32_1 = arith.constant 0 : i32
    return %c0_i32, %c0_i32_0 : i32, i32
  }
  func.func @transform_4(%arg0: i32) -> (i32, i32) {
    %c0_i32 = arith.constant 0 : i32
    %c0_i32_0 = arith.constant 0 : i32
    %c0_i32_1 = arith.constant 0 : i32
    return %c0_i32, %c0_i32_0 : i32, i32
  }
  func.func @transform_5(%arg0: i32) -> (i32, i32, i32) {
    %c0_i32 = arith.constant 0 : i32
    %c0_i32_0 = arith.constant 0 : i32
    %c0_i32_1 = arith.constant 0 : i32
    %c0_i32_2 = arith.constant 0 : i32
    return %c0_i32, %c0_i32_0, %c0_i32_1 : i32, i32, i32
  }
  func.func @transform_6(%arg0: i32) -> (i32, i32, i32) {
    %c0_i32 = arith.constant 0 : i32
    %c0_i32_0 = arith.constant 0 : i32
    %c0_i32_1 = arith.constant 0 : i32
    %c0_i32_2 = arith.constant 0 : i32
    return %c0_i32, %c0_i32_0, %c0_i32_1 : i32, i32, i32
  }
  func.func @transform_7(%arg0: i32) -> (i32, i32, i32) {
    %c0_i32 = arith.constant 0 : i32
    %c0_i32_0 = arith.constant 0 : i32
    %c0_i32_1 = arith.constant 0 : i32
    %c0_i32_2 = arith.constant 0 : i32
    return %c0_i32, %c0_i32_0, %c0_i32_1 : i32, i32, i32
  }
  func.func @transform_8(%arg0: i32) -> (i32, i32, i32) {
    %c0_i32 = arith.constant 0 : i32
    %c0_i32_0 = arith.constant 0 : i32
    %c0_i32_1 = arith.constant 0 : i32
    %c0_i32_2 = arith.constant 0 : i32
    return %c0_i32, %c0_i32_0, %c0_i32_1 : i32, i32, i32
  }
  func.func @transform_9(%arg0: i32) -> (i32, i32, i32) {
    %c0_i32 = arith.constant 0 : i32
    %c0_i32_0 = arith.constant 0 : i32
    %c0_i32_1 = arith.constant 0 : i32
    %c0_i32_2 = arith.constant 0 : i32
    return %c0_i32, %c0_i32_0, %c0_i32_1 : i32, i32, i32
  }
  func.func @transform_10(%arg0: i32) -> (i32, i32, i32) {
    %c0_i32 = arith.constant 0 : i32
    %c0_i32_0 = arith.constant 0 : i32
    %c0_i32_1 = arith.constant 0 : i32
    %c0_i32_2 = arith.constant 0 : i32
    return %c0_i32, %c0_i32_0, %c0_i32_1 : i32, i32, i32
  }
  func.func @transform_11(%arg0: i32) -> (i32, i32, i32) {
    %c0_i32 = arith.constant 0 : i32
    %c0_i32_0 = arith.constant 0 : i32
    %c0_i32_1 = arith.constant 0 : i32
    %c0_i32_2 = arith.constant 0 : i32
    return %c0_i32, %c0_i32_0, %c0_i32_1 : i32, i32, i32
  }
  func.func @transform_12(%arg0: i32) -> (i32, i32, i32) {
    %c0_i32 = arith.constant 0 : i32
    %c0_i32_0 = arith.constant 0 : i32
    %c0_i32_1 = arith.constant 0 : i32
    %c0_i32_2 = arith.constant 0 : i32
    return %c0_i32, %c0_i32_0, %c0_i32_1 : i32, i32, i32
  }
  func.func @transform_13(%arg0: i32) -> (i32, i32, i32) {
    %c0_i32 = arith.constant 0 : i32
    %c0_i32_0 = arith.constant 0 : i32
    %c0_i32_1 = arith.constant 0 : i32
    %c0_i32_2 = arith.constant 0 : i32
    return %c0_i32, %c0_i32_0, %c0_i32_1 : i32, i32, i32
  }
  func.func @transform_14(%arg0: i32) -> (i32, i32, i32) {
    %c0_i32 = arith.constant 0 : i32
    %c0_i32_0 = arith.constant 0 : i32
    %c0_i32_1 = arith.constant 0 : i32
    %c0_i32_2 = arith.constant 0 : i32
    return %c0_i32, %c0_i32_0, %c0_i32_1 : i32, i32, i32
  }
  func.func @transform_15(%arg0: i32) -> (i32, i32, i32) {
    %c0_i32 = arith.constant 0 : i32
    %c0_i32_0 = arith.constant 0 : i32
    %c0_i32_1 = arith.constant 0 : i32
    %c0_i32_2 = arith.constant 0 : i32
    return %c0_i32, %c0_i32_0, %c0_i32_1 : i32, i32, i32
  }
  func.func @transform_16(%arg0: i32) -> (i32, i32, i32) {
    %c0_i32 = arith.constant 0 : i32
    %c0_i32_0 = arith.constant 0 : i32
    %c0_i32_1 = arith.constant 0 : i32
    %c0_i32_2 = arith.constant 0 : i32
    return %c0_i32, %c0_i32_0, %c0_i32_1 : i32, i32, i32
  }
  func.func @transform_17(%arg0: i32) -> (i32, i32) {
    %c0_i32 = arith.constant 0 : i32
    %c0_i32_0 = arith.constant 0 : i32
    %c0_i32_1 = arith.constant 0 : i32
    return %c0_i32, %c0_i32_0 : i32, i32
  }
  func.func @transform_18(%arg0: i32) -> (i32, i32) {
    %c0_i32 = arith.constant 0 : i32
    %c0_i32_0 = arith.constant 0 : i32
    %c0_i32_1 = arith.constant 0 : i32
    return %c0_i32, %c0_i32_0 : i32, i32
  }
  func.func @transform_19(%arg0: i32) -> (i32, i32) {
    %c0_i32 = arith.constant 0 : i32
    %c0_i32_0 = arith.constant 0 : i32
    %c0_i32_1 = arith.constant 0 : i32
    return %c0_i32, %c0_i32_0 : i32, i32
  }
  func.func @transform_20(%arg0: i32) -> (i32, i32) {
    %c0_i32 = arith.constant 0 : i32
    %c0_i32_0 = arith.constant 0 : i32
    %c0_i32_1 = arith.constant 0 : i32
    return %c0_i32, %c0_i32_0 : i32, i32
  }
  func.func @transform_21(%arg0: i32) -> (i32, i32) {
    %c0_i32 = arith.constant 0 : i32
    %c0_i32_0 = arith.constant 0 : i32
    %c0_i32_1 = arith.constant 0 : i32
    return %c0_i32, %c0_i32_0 : i32, i32
  }
}

</mosaic_0001>

<llo_original>
// kernel: vision_transformer_forward.1
$region0: #{vision_transformer_forward.1}
  #allocation0 [shape = 'u32[]', space=smem, size = 0x4, offset = 0x4, fixed_abs, tag = 'smem constant byte address 0x4 - core index']
  #allocation1 [shape = 'u32[144,128]{1,0:T(1,128)}', space=vmem, size = 0x12000, scoped, tag = 'internal scratch']
  #allocation2 [shape = 'f32[34,32]{1,0:T(8,128)}', space=vmem, size = 0x5000, scoped, tag = 'scratch operand']
  #allocation3 [shape = 'f32[34,96]{1,0:T(8,128)}', space=vmem, size = 0x5000, scoped, tag = 'scratch operand']
  #allocation4 [shape = 'f32[34,32]{1,0:T(8,128)}', space=vmem, size = 0x5000, scoped, tag = 'scratch operand']
  #allocation5 [shape = 'f32[2,32]{1,0:T(2,128)}', space=vmem, size = 0x400, scoped, tag = 'scratch operand']
  %s0 = inlined_call_operand.vmem [shape: f32[32,256], index: 0, kind: input, shape index: {}]
  %s1 = inlined_call_operand.vmem [shape: f32[256,32], index: 1, kind: input, shape index: {}]
  %s2 = inlined_call_operand.vmem [shape: f32[1,32], index: 2, kind: input, shape index: {}]
  %s3 = inlined_call_operand.vmem [shape: f32[1,32], index: 3, kind: input, shape index: {}]
  %s4 = inlined_call_operand.vmem [shape: f32[17,32], index: 4, kind: input, shape index: {}]
  %s5 = inlined_call_operand.vmem [shape: f32[2,1,32], index: 5, kind: input, shape index: {}]
  %s6 = inlined_call_operand.vmem [shape: f32[2,1,32], index: 6, kind: input, shape index: {}]
  %s7 = inlined_call_operand.vmem [shape: f32[2,32,96], index: 7, kind: input, shape index: {}]
  %s8 = inlined_call_operand.vmem [shape: f32[2,1,96], index: 8, kind: input, shape index: {}]
  %s9 = inlined_call_operand.vmem [shape: f32[2,32,32], index: 9, kind: input, shape index: {}]
  %s10 = inlined_call_operand.vmem [shape: f32[2,1,32], index: 10, kind: input, shape index: {}]
  %s11 = inlined_call_operand.vmem [shape: f32[2,1,32], index: 11, kind: input, shape index: {}]
  %s12 = inlined_call_operand.vmem [shape: f32[2,1,32], index: 12, kind: input, shape index: {}]
  %s13 = inlined_call_operand.vmem [shape: f32[2,32,48], index: 13, kind: input, shape index: {}]
  %s14 = inlined_call_operand.vmem [shape: f32[2,1,48], index: 14, kind: input, shape index: {}]
  %s15 = inlined_call_operand.vmem [shape: f32[2,48,32], index: 15, kind: input, shape index: {}]
  %s16 = inlined_call_operand.vmem [shape: f32[2,1,32], index: 16, kind: input, shape index: {}]
  %s17 = inlined_call_operand.vmem [shape: f32[1,32], index: 17, kind: input, shape index: {}]
  %s18 = inlined_call_operand.vmem [shape: f32[1,32], index: 18, kind: input, shape index: {}]
  %s19 = inlined_call_operand.vmem [shape: f32[32,10], index: 19, kind: input, shape index: {}]
  %s20 = inlined_call_operand.vmem [shape: f32[1,10], index: 20, kind: input, shape index: {}]
  %s21 = inlined_call_operand.hbm [shape: f32[2,10], index: 21, kind: output, shape index: {}]
  %s22 = sld [smem:[#allocation0]]
  $region94: #{vision_transformer_forward.1} parent=0
    _
  %s24 = ssub.s32 1, %s22
  %s25 = scalar_select 0, %s24, %s22
  $region1: #{vision_transformer_forward.1} parent=0
    #allocation6 [shape = 'u8[1024]{0}', space=vmem, size = 0x400, scoped, tag = 'output window, operand 0, single buffered']
    #allocation7 [shape = 's32[1]{0}', space=sflag, size = 0x4, scoped, tag = 'scoped memory for vision_transformer_forward.1']
    %26 = vsyncpa [#allocation7], 0
    // Predicated region
    $region2: #{vision_transformer_forward.1} parent=1 // pred_check
      _
    $region3: #{vision_transformer_forward.1} parent=1 // pred_check_branch
      %28 = sbr.rel (0) target = $region5
    $region4: #{vision_transformer_forward.1} parent=1 // pred_region
      _
    $region5: #{vision_transformer_forward.1} parent=1 // pred_fallthru
      _
    // Predicated region
    $region6: #{vision_transformer_forward.1} parent=1 // pred_check
      _
    $region7: #{vision_transformer_forward.1} parent=1 // pred_check_branch
      %30 = sbr.rel (0) target = $region9
    $region8: #{vision_transformer_forward.1} parent=1 // pred_region
      _
    $region9: #{vision_transformer_forward.1} parent=1 // pred_fallthru
      _
    // Predicated region
    $region10: #{vision_transformer_forward.1} parent=1 // pred_check
      _
    $region11: #{vision_transformer_forward.1} parent=1 // pred_check_branch
      %32 = sbr.rel (0) target = $region13
    $region12: #{vision_transformer_forward.1} parent=1 // pred_region
      _
    $region13: #{vision_transformer_forward.1} parent=1 // pred_fallthru
      _
    // Predicated region
    $region14: #{vision_transformer_forward.1} parent=1 // pred_check
      _
    $region15: #{vision_transformer_forward.1} parent=1 // pred_check_branch
      %34 = sbr.rel (0) target = $region17
    $region16: #{vision_transformer_forward.1} parent=1 // pred_region
      _
    $region17: #{vision_transformer_forward.1} parent=1 // pred_fallthru
      _
    // Predicated region
    $region18: #{vision_transformer_forward.1} parent=1 // pred_check
      _
    $region19: #{vision_transformer_forward.1} parent=1 // pred_check_branch
      %36 = sbr.rel (0) target = $region21
    $region20: #{vision_transformer_forward.1} parent=1 // pred_region
      _
    $region21: #{vision_transformer_forward.1} parent=1 // pred_fallthru
      _
    // Predicated region
    $region22: #{vision_transformer_forward.1} parent=1 // pred_check
      _
    $region23: #{vision_transformer_forward.1} parent=1 // pred_check_branch
      %38 = sbr.rel (0) target = $region25
    $region24: #{vision_transformer_forward.1} parent=1 // pred_region
      _
    $region25: #{vision_transformer_forward.1} parent=1 // pred_fallthru
      _
    // Predicated region
    $region26: #{vision_transformer_forward.1} parent=1 // pred_check
      _
    $region27: #{vision_transformer_forward.1} parent=1 // pred_check_branch
      %40 = sbr.rel (0) target = $region29
    $region28: #{vision_transformer_forward.1} parent=1 // pred_region
      _
    $region29: #{vision_transformer_forward.1} parent=1 // pred_fallthru
      _
    // Predicated region
    $region30: #{vision_transformer_forward.1} parent=1 // pred_check
      _
    $region31: #{vision_transformer_forward.1} parent=1 // pred_check_branch
      %42 = sbr.rel (0) target = $region33
    $region32: #{vision_transformer_forward.1} parent=1 // pred_region
      _
    $region33: #{vision_transformer_forward.1} parent=1 // pred_fallthru
      _
    // Predicated region
    $region34: #{vision_transformer_forward.1} parent=1 // pred_check
      _
    $region35: #{vision_transformer_forward.1} parent=1 // pred_check_branch
      %44 = sbr.rel (0) target = $region37
    $region36: #{vision_transformer_forward.1} parent=1 // pred_region
      _
    $region37: #{vision_transformer_forward.1} parent=1 // pred_fallthru
      _
    // Predicated region
    $region38: #{vision_transformer_forward.1} parent=1 // pred_check
      _
    $region39: #{vision_transformer_forward.1} parent=1 // pred_check_branch
      %46 = sbr.rel (0) target = $region41
    $region40: #{vision_transformer_forward.1} parent=1 // pred_region
      _
    $region41: #{vision_transformer_forward.1} parent=1 // pred_fallthru
      _
    // Predicated region
    $region42: #{vision_transformer_forward.1} parent=1 // pred_check
      _
    $region43: #{vision_transformer_forward.1} parent=1 // pred_check_branch
      %48 = sbr.rel (0) target = $region45
    $region44: #{vision_transformer_forward.1} parent=1 // pred_region
      _
    $region45: #{vision_transformer_forward.1} parent=1 // pred_fallthru
      _
    // Predicated region
    $region46: #{vision_transformer_forward.1} parent=1 // pred_check
      _
    $region47: #{vision_transformer_forward.1} parent=1 // pred_check_branch
      %50 = sbr.rel (0) target = $region49
    $region48: #{vision_transformer_forward.1} parent=1 // pred_region
      _
    $region49: #{vision_transformer_forward.1} parent=1 // pred_fallthru
      _
    // Predicated region
    $region50: #{vision_transformer_forward.1} parent=1 // pred_check
      _
    $region51: #{vision_transformer_forward.1} parent=1 // pred_check_branch
      %52 = sbr.rel (0) target = $region53
    $region52: #{vision_transformer_forward.1} parent=1 // pred_region
      _
    $region53: #{vision_transformer_forward.1} parent=1 // pred_fallthru
      _
    // Predicated region
    $region54: #{vision_transformer_forward.1} parent=1 // pred_check
      _
    $region55: #{vision_transformer_forward.1} parent=1 // pred_check_branch
      %54 = sbr.rel (0) target = $region57
    $region56: #{vision_transformer_forward.1} parent=1 // pred_region
      _
    $region57: #{vision_transformer_forward.1} parent=1 // pred_fallthru
      _
    // Predicated region
    $region58: #{vision_transformer_forward.1} parent=1 // pred_check
      _
    $region59: #{vision_transformer_forward.1} parent=1 // pred_check_branch
      %56 = sbr.rel (0) target = $region61
    $region60: #{vision_transformer_forward.1} parent=1 // pred_region
      _
    $region61: #{vision_transformer_forward.1} parent=1 // pred_fallthru
      _
    // Predicated region
    $region62: #{vision_transformer_forward.1} parent=1 // pred_check
      _
    $region63: #{vision_transformer_forward.1} parent=1 // pred_check_branch
      %58 = sbr.rel (0) target = $region65
    $region64: #{vision_transformer_forward.1} parent=1 // pred_region
      _
    $region65: #{vision_transformer_forward.1} parent=1 // pred_fallthru
      _
    // Predicated region
    $region66: #{vision_transformer_forward.1} parent=1 // pred_check
      _
    $region67: #{vision_transformer_forward.1} parent=1 // pred_check_branch
      %60 = sbr.rel (0) target = $region69
    $region68: #{vision_transformer_forward.1} parent=1 // pred_region
      _
    $region69: #{vision_transformer_forward.1} parent=1 // pred_fallthru
      _
    // Predicated region
    $region70: #{vision_transformer_forward.1} parent=1 // pred_check
      _
    $region71: #{vision_transformer_forward.1} parent=1 // pred_check_branch
      %62 = sbr.rel (0) target = $region73
    $region72: #{vision_transformer_forward.1} parent=1 // pred_region
      _
    $region73: #{vision_transformer_forward.1} parent=1 // pred_fallthru
      _
    // Predicated region
    $region74: #{vision_transformer_forward.1} parent=1 // pred_check
      _
    $region75: #{vision_transformer_forward.1} parent=1 // pred_check_branch
      %64 = sbr.rel (0) target = $region77
    $region76: #{vision_transformer_forward.1} parent=1 // pred_region
      _
    $region77: #{vision_transformer_forward.1} parent=1 // pred_fallthru
      _
    // Predicated region
    $region78: #{vision_transformer_forward.1} parent=1 // pred_check
      _
    $region79: #{vision_transformer_forward.1} parent=1 // pred_check_branch
      %66 = sbr.rel (0) target = $region81
    $region80: #{vision_transformer_forward.1} parent=1 // pred_region
      _
    $region81: #{vision_transformer_forward.1} parent=1 // pred_fallthru
      _
    // Predicated region
    $region82: #{vision_transformer_forward.1} parent=1 // pred_check
      _
    $region83: #{vision_transformer_forward.1} parent=1 // pred_check_branch
      %68 = sbr.rel (0) target = $region85
    $region84: #{vision_transformer_forward.1} parent=1 // pred_region
      _
    $region85: #{vision_transformer_forward.1} parent=1 // pred_fallthru
      _
    %v69 = vld [vmem:[%s0] sm:$0xff]
    %v70 = vld [vmem:[%s0 + $0x8] sm:$0xff]
    %v71 = vld [vmem:[%s0 + $0x10] sm:$0xff]
    %v72 = vld [vmem:[%s0 + $0x18] sm:$0xff]
    %v73 = vld [vmem:[%s0 + $0x20] sm:$0xff]
    %v74 = vld [vmem:[%s0 + $0x28] sm:$0xff]
    %v75 = vld [vmem:[%s0 + $0x30] sm:$0xff]
    %v76 = vld [vmem:[%s0 + $0x38] sm:$0xff]
    %v77 = vld [vmem:[%s1] sm:$0xff]
    %v78 = vld [vmem:[%s1 + $0x8] sm:$0xff]
    %v79 = vld [vmem:[%s1 + $0x10] sm:$0xff]
    %v80 = vld [vmem:[%s1 + $0x18] sm:$0xff]
    %v81 = vld [vmem:[%s1 + $0x20] sm:$0xff]
    %v82 = vld [vmem:[%s1 + $0x28] sm:$0xff]
    %v83 = vld [vmem:[%s1 + $0x30] sm:$0xff]
    %v84 = vld [vmem:[%s1 + $0x38] sm:$0xff]
    %v85 = vld [vmem:[%s1 + $0x40] sm:$0xff]
    %v86 = vld [vmem:[%s1 + $0x48] sm:$0xff]
    %v87 = vld [vmem:[%s1 + $0x50] sm:$0xff]
    %v88 = vld [vmem:[%s1 + $0x58] sm:$0xff]
    %v89 = vld [vmem:[%s1 + $0x60] sm:$0xff]
    %v90 = vld [vmem:[%s1 + $0x68] sm:$0xff]
    %v91 = vld [vmem:[%s1 + $0x70] sm:$0xff]
    %v92 = vld [vmem:[%s1 + $0x78] sm:$0xff]
    %v93 = vld [vmem:[%s1 + $0x80] sm:$0xff]
    %v94 = vld [vmem:[%s1 + $0x88] sm:$0xff]
    %v95 = vld [vmem:[%s1 + $0x90] sm:$0xff]
    %v96 = vld [vmem:[%s1 + $0x98] sm:$0xff]
    %v97 = vld [vmem:[%s1 + $0xa0] sm:$0xff]
    %v98 = vld [vmem:[%s1 + $0xa8] sm:$0xff]
    %v99 = vld [vmem:[%s1 + $0xb0] sm:$0xff]
    %v100 = vld [vmem:[%s1 + $0xb8] sm:$0xff]
    %v101 = vld [vmem:[%s1 + $0xc0] sm:$0xff]
    %v102 = vld [vmem:[%s1 + $0xc8] sm:$0xff]
    %v103 = vld [vmem:[%s1 + $0xd0] sm:$0xff]
    %v104 = vld [vmem:[%s1 + $0xd8] sm:$0xff]
    %v105 = vld [vmem:[%s1 + $0xe0] sm:$0xff]
    %v106 = vld [vmem:[%s1 + $0xe8] sm:$0xff]
    %v107 = vld [vmem:[%s1 + $0xf0] sm:$0xff]
    %v108 = vld [vmem:[%s1 + $0xf8] sm:$0xff]
    %v109 = vld [vmem:[%s2] sm:$0x1]
    %v111 = vlaneseq
    %v112 = vshrl.u32 %v111, 7
    %v113 = vsub.s32 0, %v112
    %v114 = vrot.slane %v109, %v113
    %116 = vmatprep.subr.mxu0 0.0
    %117 = vmatpush1.msra.mxu0 %v77
    %118 = vmatprep.subr.mxu0 0.0
    %119 = vmatpush1.msra.mxu0 %v78
    %120 = vmatprep.subr.mxu0 0.0
    %121 = vmatpush1.msra.mxu0 %v79
    %122 = vmatprep.subr.mxu0 0.0
    %123 = vmatpush1.msra.mxu0 %v80
    %124 = vmatprep.subr.mxu0 0.0
    %125 = vmatpush1.msra.mxu0 %v81
    %126 = vmatprep.subr.mxu0 0.0
    %127 = vmatpush1.msra.mxu0 %v82
    %128 = vmatprep.subr.mxu0 0.0
    %129 = vmatpush1.msra.mxu0 %v83
    %130 = vmatprep.subr.mxu0 0.0
    %131 = vmatpush1.msra.mxu0 %v84
    %132 = vmatprep.subr.mxu0 0.0
    %133 = vmatpush1.msra.mxu0 %v85
    %134 = vmatprep.subr.mxu0 0.0
    %135 = vmatpush1.msra.mxu0 %v86
    %136 = vmatprep.subr.mxu0 0.0
    %137 = vmatpush1.msra.mxu0 %v87
    %138 = vmatprep.subr.mxu0 0.0
    %139 = vmatpush1.msra.mxu0 %v88
    %140 = vmatprep.subr.mxu0 0.0
    %141 = vmatpush1.msra.mxu0 %v89
    %142 = vmatprep.subr.mxu0 0.0
    %143 = vmatpush1.msra.mxu0 %v90
    %144 = vmatprep.subr.mxu0 0.0
    %145 = vmatpush1.msra.mxu0 %v91
    %146 = vmatprep.subr.mxu0 0.0
    %147 = vmatpush1.msra.mxu0 %v92
    %148 = vmatprep.subr.mxu0 0.0
    %149 = vmatpush1.msra.mxu0 %v93
    %150 = vmatprep.subr.mxu0 0.0
    %151 = vmatpush1.msra.mxu0 %v94
    %152 = vmatprep.subr.mxu0 0.0
    %153 = vmatpush1.msra.mxu0 %v95
    %154 = vmatprep.subr.mxu0 0.0
    %155 = vmatpush1.msra.mxu0 %v96
    %156 = vmatprep.subr.mxu0 0.0
    %157 = vmatpush1.msra.mxu0 %v97
    %158 = vmatprep.subr.mxu0 0.0
    %159 = vmatpush1.msra.mxu0 %v98
    %160 = vmatprep.subr.mxu0 0.0
    %161 = vmatpush1.msra.mxu0 %v99
    %162 = vmatprep.subr.mxu0 0.0
    %163 = vmatpush1.msra.mxu0 %v100
    %164 = vmatprep.subr.mxu0 0.0
    %165 = vmatpush1.msra.mxu0 %v101
    %166 = vmatprep.subr.mxu0 0.0
    %167 = vmatpush1.msra.mxu0 %v102
    %168 = vmatprep.subr.mxu0 0.0
    %169 = vmatpush1.msra.mxu0 %v103
    %170 = vmatprep.subr.mxu0 0.0
    %171 = vmatpush1.msra.mxu0 %v104
    %172 = vmatprep.subr.mxu0 0.0
    %173 = vmatpush1.msra.mxu0 %v105
    %174 = vmatprep.subr.mxu0 0.0
    %175 = vmatpush1.msra.mxu0 %v106
    %176 = vmatprep.subr.mxu0 0.0
    %177 = vmatpush1.msra.mxu0 %v107
    %178 = vmatprep.subr.mxu0 0.0
    %179 = vmatpush1.msra.mxu0 %v108
    %180 = vmatprep.mubr.f32.mxu0 %v70
    %181 = vmatmul.mubr.f32.gmra.mrb[0].mxu0 %v69
    %v182 = vpop.f32.mrb[0].mxu0
    %v183 = vadd.f32 %v114, %v182
    %v184 = vpop.f32.mrb[0].mxu0
    %185 = vmatprep.mubr.f32.mxu0 %v72
    %186 = vmatmul.mubr.f32.gmra.mrb[0].mxu0 %v71
    %v187 = vpop.f32.mrb[0].mxu0
    %v188 = vadd.f32 %v114, %v187
    %v189 = vpop.f32.mrb[0].mxu0
    %190 = vmatprep.mubr.f32.mxu0 %v74
    %191 = vmatmul.mubr.f32.gmra.mrb[0].mxu0 %v73
    %v192 = vpop.f32.mrb[0].mxu0
    %v193 = vadd.f32 %v114, %v192
    %v194 = vpop.f32.mrb[0].mxu0
    %195 = vmatprep.mubr.f32.mxu0 %v76
    %196 = vmatmul.mubr.f32.gmra.mrb[0].mxu0 %v75
    %v197 = vpop.f32.mrb[0].mxu0
    %v198 = vadd.f32 %v114, %v197
    %v199 = vpop.f32.mrb[0].mxu0
    %200 = vdwg.mxu0
    %v201 = vld [vmem:[%s3] sm:$0x1]
    %v202 = vld [vmem:[%s4] sm:$0x1]
    %v203 = vadd.f32 %v201, %v202
    %v204 = vld [vmem:[%s4 + $0x1] sm:$0xff]
    %v205 = vld [vmem:[%s4 + $0x9] sm:$0xff]
    %vm206 = vcmask 253952
    %207 = vst.msk [vmem:[#allocation2] sm:$0x1] %vm206, %v203
    %v208 = vadd.f32 %v183, %v204
    %v209 = vadd.f32 %v188, %v205
    %vm210 = vcmask 261120
    %211 = vst.msk [vmem:[#allocation2 + $0x1] sm:$0xff] %vm210, %v208
    %212 = vst.msk [vmem:[#allocation2 + $0x9] sm:$0xff] %vm210, %v209
    %213 = vst.msk [vmem:[#allocation2 + $0x11] sm:$0x1] %vm206, %v203
    %v214 = vadd.f32 %v193, %v204
    %v215 = vadd.f32 %v198, %v205
    %216 = vst.msk [vmem:[#allocation2 + $0x12] sm:$0xff] %vm210, %v214
    %217 = vst.msk [vmem:[#allocation2 + $0x1a] sm:$0xff] %vm210, %v215
    %v218 = vld [vmem:[#allocation2] sm:$0xff]
    %v219 = vld [vmem:[#allocation2 + $0x8] sm:$0xff]
    %v220 = vld [vmem:[#allocation2 + $0x10] sm:$0xff]
    %v221 = vld [vmem:[#allocation2 + $0x18] sm:$0xff]
    %v222 = vld [vmem:[#allocation2 + $0x20] sm:$0x3]
    %v223 = vld [vmem:[%s5] sm:$0x1]
    %v224 = vld [vmem:[%s6] sm:$0x1]
    %v225 = vsel %vm210, %v218, 0.0
    %226 = vadd.xlane.f32.xlu0 %v225
    %v227 = vpop.xlane.xlu0 %226
    %v228 = vsel %vm210, %v219, 0.0
    %229 = vadd.xlane.f32.xlu0 %v228
    %v230 = vpop.xlane.xlu0 %229
    %v231 = vsel %vm210, %v220, 0.0
    %232 = vadd.xlane.f32.xlu0 %v231
    %v233 = vpop.xlane.xlu0 %232
    %v234 = vsel %vm210, %v221, 0.0
    %235 = vadd.xlane.f32.xlu0 %v234
    %v236 = vpop.xlane.xlu0 %235
    %vm237 = vcmask 254976
    %v238 = vsel %vm237, %v222, 0.0
    %239 = vadd.xlane.f32.xlu0 %v238
    %v240 = vpop.xlane.xlu0 %239
    %v241 = vrcp.pop 32.0
    %v242 = vmul.f32 %v227, %v241
    %v243 = vmul.f32 %v230, %v241
    %v244 = vmul.f32 %v233, %v241
    %v245 = vmul.f32 %v236, %v241
    %v246 = vmul.f32 %v240, %v241
    %v247 = vsub.f32 %v218, %v242
    %v248 = vsub.f32 %v219, %v243
    %v249 = vsub.f32 %v220, %v244
    %v250 = vsub.f32 %v221, %v245
    %v251 = vsub.f32 %v222, %v246
    %v252 = vmul.f32 %v247, %v247
    %v253 = vmul.f32 %v248, %v248
    %v254 = vmul.f32 %v249, %v249
    %v255 = vmul.f32 %v250, %v250
    %v256 = vmul.f32 %v251, %v251
    %v257 = vsel %vm210, %v252, 0.0
    %258 = vadd.xlane.f32.xlu0 %v257
    %v259 = vpop.xlane.xlu0 %258
    %v260 = vsel %vm210, %v253, 0.0
    %261 = vadd.xlane.f32.xlu0 %v260
    %v262 = vpop.xlane.xlu0 %261
    %v263 = vsel %vm210, %v254, 0.0
    %264 = vadd.xlane.f32.xlu0 %v263
    %v265 = vpop.xlane.xlu0 %264
    %v266 = vsel %vm210, %v255, 0.0
    %267 = vadd.xlane.f32.xlu0 %v266
    %v268 = vpop.xlane.xlu0 %267
    %v269 = vsel %vm237, %v256, 0.0
    %270 = vadd.xlane.f32.xlu0 %v269
    %v271 = vpop.xlane.xlu0 %270
    %v272 = vmul.f32 %v259, %v241
    %v273 = vmul.f32 %v262, %v241
    %v274 = vmul.f32 %v265, %v241
    %v275 = vmul.f32 %v268, %v241
    %v276 = vmul.f32 %v271, %v241
    %v277 = vadd.f32 %v272, 1e-05
    %v278 = vadd.f32 %v273, 1e-05
    %v279 = vadd.f32 %v274, 1e-05
    %v280 = vadd.f32 %v275, 1e-05
    %v281 = vadd.f32 %v276, 1e-05
    %v282 = vrsqrt.pop %v277
    %v283 = vrsqrt.pop %v278
    %v284 = vrsqrt.pop %v279
    %v285 = vrsqrt.pop %v280
    %v286 = vrsqrt.pop %v281
    %v287 = vmul.f32 %v247, %v282
    %v288 = vmul.f32 %v248, %v283
    %v289 = vmul.f32 %v249, %v284
    %v290 = vmul.f32 %v250, %v285
    %v291 = vmul.f32 %v251, %v286
    %v293 = vlaneseq
    %v294 = vshrl.u32 %v293, 7
    %v295 = vsub.s32 0, %v294
    %v296 = vrot.slane %v223, %v295
    %v298 = vmul.f32 %v287, %v296
    %v299 = vmul.f32 %v288, %v296
    %v300 = vmul.f32 %v289, %v296
    %v301 = vmul.f32 %v290, %v296
    %v302 = vmul.f32 %v291, %v296
    %v304 = vlaneseq
    %v305 = vshrl.u32 %v304, 7
    %v306 = vsub.s32 0, %v305
    %v307 = vrot.slane %v224, %v306
    %v309 = vadd.f32 %v298, %v307
    %v310 = vadd.f32 %v299, %v307
    %v311 = vadd.f32 %v300, %v307
    %v312 = vadd.f32 %v301, %v307
    %v313 = vadd.f32 %v302, %v307
    %v314 = vld [vmem:[%s7] sm:$0xff]
    %v315 = vld [vmem:[%s7 + $0x8] sm:$0xff]
    %v316 = vld [vmem:[%s7 + $0x10] sm:$0xff]
    %v317 = vld [vmem:[%s7 + $0x18] sm:$0xff]
    %v318 = vld [vmem:[%s8] sm:$0x1]
    %v320 = vlaneseq
    %v321 = vshrl.u32 %v320, 7
    %v322 = vsub.s32 0, %v321
    %v323 = vrot.slane %v318, %v322
    %v326 = vsel %vm210, %v309, 0
    %v329 = vsel %vm210, %v310, 0
    %v332 = vsel %vm210, %v311, 0
    %v335 = vsel %vm210, %v312, 0
    %v338 = vsel %vm210, %v313, 0
    %340 = vmatprep.subr.mxu0 0.0
    %341 = vmatpush1.msra.mxu0 %v314
    %342 = vmatprep.subr.mxu0 0.0
    %343 = vmatpush1.msra.mxu0 %v315
    %344 = vmatprep.subr.mxu0 0.0
    %345 = vmatpush1.msra.mxu0 %v316
    %346 = vmatprep.subr.mxu0 0.0
    %347 = vmatpush1.msra.mxu0 %v317
    %348 = vmatprep.subr.mxu0 0.0
    %349 = vmatpush1.msra.mxu0 0.0
    %350 = vmatprep.subr.mxu0 0.0
    %351 = vmatpush1.msra.mxu0 0.0
    %352 = vmatprep.subr.mxu0 0.0
    %353 = vmatpush1.msra.mxu0 0.0
    %354 = vmatprep.subr.mxu0 0.0
    %355 = vmatpush1.msra.mxu0 0.0
    %356 = vmatprep.subr.mxu0 0.0
    %357 = vmatpush1.msra.mxu0 0.0
    %358 = vmatprep.subr.mxu0 0.0
    %359 = vmatpush1.msra.mxu0 0.0
    %360 = vmatprep.subr.mxu0 0.0
    %361 = vmatpush1.msra.mxu0 0.0
    %362 = vmatprep.subr.mxu0 0.0
    %363 = vmatpush1.msra.mxu0 0.0
    %364 = vmatprep.subr.mxu0 0.0
    %365 = vmatpush1.msra.mxu0 0.0
    %366 = vmatprep.subr.mxu0 0.0
    %367 = vmatpush1.msra.mxu0 0.0
    %368 = vmatprep.subr.mxu0 0.0
    %369 = vmatpush1.msra.mxu0 0.0
    %370 = vmatprep.subr.mxu0 0.0
    %371 = vmatpush1.msra.mxu0 0.0
    %372 = vmatprep.subr.mxu0 0.0
    %373 = vmatpush1.msra.mxu0 0.0
    %374 = vmatprep.subr.mxu0 0.0
    %375 = vmatpush1.msra.mxu0 0.0
    %376 = vmatprep.subr.mxu0 0.0
    %377 = vmatpush1.msra.mxu0 0.0
    %378 = vmatprep.subr.mxu0 0.0
    %379 = vmatpush1.msra.mxu0 0.0
    %380 = vmatprep.subr.mxu0 0.0
    %381 = vmatpush1.msra.mxu0 0.0
    %382 = vmatprep.subr.mxu0 0.0
    %383 = vmatpush1.msra.mxu0 0.0
    %384 = vmatprep.subr.mxu0 0.0
    %385 = vmatpush1.msra.mxu0 0.0
    %386 = vmatprep.subr.mxu0 0.0
    %387 = vmatpush1.msra.mxu0 0.0
    %388 = vmatprep.subr.mxu0 0.0
    %389 = vmatpush1.msra.mxu0 0.0
    %390 = vmatprep.subr.mxu0 0.0
    %391 = vmatpush1.msra.mxu0 0.0
    %392 = vmatprep.subr.mxu0 0.0
    %393 = vmatpush1.msra.mxu0 0.0
    %394 = vmatprep.subr.mxu0 0.0
    %395 = vmatpush1.msra.mxu0 0.0
    %396 = vmatprep.subr.mxu0 0.0
    %397 = vmatpush1.msra.mxu0 0.0
    %398 = vmatprep.subr.mxu0 0.0
    %399 = vmatpush1.msra.mxu0 0.0
    %400 = vmatprep.subr.mxu0 0.0
    %401 = vmatpush1.msra.mxu0 0.0
    %402 = vmatprep.subr.mxu0 0.0
    %403 = vmatpush1.msra.mxu0 0.0
    %404 = vmatprep.mubr.f32.mxu0 0.0
    %405 = vmatmul.mubr.f32.gmra.mrb[0].mxu0 %v326
    %v406 = vpop.f32.mrb[0].mxu0
    %v407 = vadd.f32 %v323, %v406
    %v408 = vpop.f32.mrb[0].mxu0
    %409 = vmatprep.mubr.f32.mxu0 0.0
    %410 = vmatmul.mubr.f32.gmra.mrb[0].mxu0 %v329
    %v411 = vpop.f32.mrb[0].mxu0
    %v412 = vadd.f32 %v323, %v411
    %v413 = vpop.f32.mrb[0].mxu0
    %414 = vmatprep.mubr.f32.mxu0 0.0
    %415 = vmatmul.mubr.f32.gmra.mrb[0].mxu0 %v332
    %v416 = vpop.f32.mrb[0].mxu0
    %v417 = vadd.f32 %v323, %v416
    %v418 = vpop.f32.mrb[0].mxu0
    %419 = vmatprep.mubr.f32.mxu0 0.0
    %420 = vmatmul.mubr.f32.gmra.mrb[0].mxu0 %v335
    %v421 = vpop.f32.mrb[0].mxu0
    %v422 = vadd.f32 %v323, %v421
    %v423 = vpop.f32.mrb[0].mxu0
    %424 = vmatprep.mubr.f32.mxu0 0.0
    %425 = vmatmul.mubr.f32.gmra.mrb[0].mxu0 %v338
    %v426 = vpop.f32.mrb[0].mxu0
    %v427 = vadd.f32 %v323, %v426
    %v428 = vpop.f32.mrb[0].mxu0
    %429 = vdwg.mxu0
    %vm430 = vcmask 785408
    %431 = vst.msk [vmem:[#allocation3] sm:$0xff] %vm430, %v407
    %432 = vst.msk [vmem:[#allocation3 + $0x8] sm:$0xff] %vm430, %v412
    %433 = vst.msk [vmem:[#allocation3 + $0x10] sm:$0xff] %vm430, %v417
    %434 = vst.msk [vmem:[#allocation3 + $0x18] sm:$0xff] %vm430, %v422
    %vm435 = vcmask 779264
    %436 = vst.msk [vmem:[#allocation3 + $0x20] sm:$0x3] %vm435, %v427
    %v437 = vld [vmem:[#allocation3] sm:$0xff]
    %v438 = vld [vmem:[#allocation3 + $0x8] sm:$0xff]
    %v439 = vld [vmem:[#allocation3 + $0x10] sm:$0x1]
    %443 = vrot.lane.b32.xlu0 %v437, 96
    %v444 = vpop.permute.xlu0 %443
    %445 = vrot.lane.b32.xlu0 %v438, 96
    %v446 = vpop.permute.xlu0 %445
    %447 = vrot.lane.b32.xlu0 %v439, 96
    %v448 = vpop.permute.xlu0 %447
    %vm449 = vcmask 64512
    %v450 = vsel %vm449, %v437, 0
    %v452 = vsel %vm449, %v438, 0
    %v454 = vsel %vm449, %v439, 0
    %v456 = vsel %vm449, %v444, 0
    %v458 = vsel %vm449, %v446, 0
    %v460 = vsel %vm449, %v448, 0
    %462 = vmatprep.subr.mxu0 0.0
    %463 = vmatpush1.xpose.msra.mxu0 %v456
    %464 = vmatprep.subr.mxu0 0.0
    %465 = vmatpush1.xpose.msra.mxu0 %v458
    %466 = vmatprep.subr.mxu0 0.0
    %467 = vmatpush1.xpose.msra.mxu0 %v460
    %468 = vmatprep.subr.mxu0 0.0
    %469 = vmatpush1.xpose.msra.mxu0 0.0
    %470 = vmatprep.subr.mxu0 0.0
    %471 = vmatpush1.xpose.msra.mxu0 0.0
    %472 = vmatprep.subr.mxu0 0.0
    %473 = vmatpush1.xpose.msra.mxu0 0.0
    %474 = vmatprep.subr.mxu0 0.0
    %475 = vmatpush1.xpose.msra.mxu0 0.0
    %476 = vmatprep.subr.mxu0 0.0
    %477 = vmatpush1.xpose.msra.mxu0 0.0
    %478 = vmatprep.subr.mxu0 0.0
    %479 = vmatpush1.xpose.msra.mxu0 0.0
    %480 = vmatprep.subr.mxu0 0.0
    %481 = vmatpush1.xpose.msra.mxu0 0.0
    %482 = vmatprep.subr.mxu0 0.0
    %483 = vmatpush1.xpose.msra.mxu0 0.0
    %484 = vmatprep.subr.mxu0 0.0
    %485 = vmatpush1.xpose.msra.mxu0 0.0
    %486 = vmatprep.subr.mxu0 0.0
    %487 = vmatpush1.xpose.msra.mxu0 0.0
    %488 = vmatprep.subr.mxu0 0.0
    %489 = vmatpush1.xpose.msra.mxu0 0.0
    %490 = vmatprep.subr.mxu0 0.0
    %491 = vmatpush1.xpose.msra.mxu0 0.0
    %492 = vmatprep.subr.mxu0 0.0
    %493 = vmatpush1.xpose.msra.mxu0 0.0
    %494 = vmatprep.subr.mxu0 0.0
    %495 = vmatpush1.xpose.msra.mxu0 0.0
    %496 = vmatprep.subr.mxu0 0.0
    %497 = vmatpush1.xpose.msra.mxu0 0.0
    %498 = vmatprep.subr.mxu0 0.0
    %499 = vmatpush1.xpose.msra.mxu0 0.0
    %500 = vmatprep.subr.mxu0 0.0
    %501 = vmatpush1.xpose.msra.mxu0 0.0
    %502 = vmatprep.subr.mxu0 0.0
    %503 = vmatpush1.xpose.msra.mxu0 0.0
    %504 = vmatprep.subr.mxu0 0.0
    %505 = vmatpush1.xpose.msra.mxu0 0.0
    %506 = vmatprep.subr.mxu0 0.0
    %507 = vmatpush1.xpose.msra.mxu0 0.0
    %508 = vmatprep.subr.mxu0 0.0
    %509 = vmatpush1.xpose.msra.mxu0 0.0
    %510 = vmatprep.subr.mxu0 0.0
    %511 = vmatpush1.xpose.msra.mxu0 0.0
    %512 = vmatprep.subr.mxu0 0.0
    %513 = vmatpush1.xpose.msra.mxu0 0.0
    %514 = vmatprep.subr.mxu0 0.0
    %515 = vmatpush1.xpose.msra.mxu0 0.0
    %516 = vmatprep.subr.mxu0 0.0
    %517 = vmatpush1.xpose.msra.mxu0 0.0
    %518 = vmatprep.subr.mxu0 0.0
    %519 = vmatpush1.xpose.msra.mxu0 0.0
    %520 = vmatprep.subr.mxu0 0.0
    %521 = vmatpush1.xpose.msra.mxu0 0.0
    %522 = vmatprep.subr.mxu0 0.0
    %523 = vmatpush1.xpose.msra.mxu0 0.0
    %524 = vmatprep.subr.mxu0 0.0
    %525 = vmatpush1.xpose.msra.mxu0 0.0
    %526 = vmatprep.mubr.f32.mxu0 0.0
    %527 = vmatmul.mubr.f32.gmra.mrb[0].mxu0 %v450
    %v528 = vpop.f32.mrb[0].mxu0
    %v529 = vadd.f32 0.0, %v528
    %v530 = vpop.f32.mrb[0].mxu0
    %531 = vmatprep.mubr.f32.mxu0 0.0
    %532 = vmatmul.mubr.f32.gmra.mrb[0].mxu0 %v452
    %v533 = vpop.f32.mrb[0].mxu0
    %v534 = vadd.f32 0.0, %v533
    %v535 = vpop.f32.mrb[0].mxu0
    %536 = vmatprep.mubr.f32.mxu0 0.0
    %537 = vmatmul.mubr.f32.gmra.mrb[0].mxu0 %v454
    %v538 = vpop.f32.mrb[0].mxu0
    %v539 = vadd.f32 0.0, %v538
    %v540 = vpop.f32.mrb[0].mxu0
    %541 = vdwg.mxu0
    %v542 = vmul.f32 %v529, 0.35355338
    %v543 = vmul.f32 %v534, 0.35355338
    %v544 = vmul.f32 %v539, 0.35355338
    %vm545 = vcmask 138240
    %v546 = vsel %vm545, %v542, -inf
    %547 = vmax.xlane.f32.xlu0 %v546
    %v548 = vpop.xlane.xlu0 %547
    %v549 = vsel %vm545, %v543, -inf
    %550 = vmax.xlane.f32.xlu0 %v549
    %v551 = vpop.xlane.xlu0 %550
    %vm552 = vcmask 131072
    %v553 = vsel %vm552, %v544, -inf
    %554 = vmax.xlane.f32.xlu0 %v553
    %v555 = vpop.xlane.xlu0 %554
    %v556 = vsub.f32 %v542, %v548
    %v557 = vsub.f32 %v543, %v551
    %v558 = vsub.f32 %v544, %v555
    %v559 = vmul.f32 %v556, 1.442695
    %v560 = vpow.pop %v559
    %v561 = vmul.f32 %v557, 1.442695
    %v562 = vpow.pop %v561
    %v563 = vmul.f32 %v558, 1.442695
    %v564 = vpow.pop %v563
    %v565 = vsel %vm545, %v560, 0.0
    %566 = vadd.xlane.f32.xlu0 %v565
    %v567 = vpop.xlane.xlu0 %566
    %v568 = vsel %vm545, %v562, 0.0
    %569 = vadd.xlane.f32.xlu0 %v568
    %v570 = vpop.xlane.xlu0 %569
    %v571 = vsel %vm552, %v564, 0.0
    %572 = vadd.xlane.f32.xlu0 %v571
    %v573 = vpop.xlane.xlu0 %572
    %v574 = vrcp.pop %v567
    %v575 = vrcp.pop %v570
    %v576 = vrcp.pop %v573
    %v577 = vmul.f32 %v560, %v574
    %v578 = vmul.f32 %v562, %v575
    %v579 = vmul.f32 %v564, %v576
    %580 = vrot.lane.b32.xlu0 %v437, 64
    %v581 = vpop.permute.xlu0 %580
    %582 = vrot.lane.b32.xlu0 %v438, 64
    %v583 = vpop.permute.xlu0 %582
    %584 = vrot.lane.b32.xlu0 %v439, 64
    %v585 = vpop.permute.xlu0 %584
    %v589 = vsel %vm545, %v577, 0
    %v592 = vsel %vm545, %v578, 0
    %v595 = vsel %vm545, %v579, 0
    %vm597 = vcmask 1040384
    %v598 = vsel %vm597, %v585, 0
    %600 = vmatprep.subr.mxu0 0.0
    %601 = vmatpush1.msra.mxu0 %v581
    %602 = vmatprep.subr.mxu0 0.0
    %603 = vmatpush1.msra.mxu0 %v583
    %604 = vmatprep.subr.mxu0 0.0
    %605 = vmatpush1.msra.mxu0 %v598
    %606 = vmatprep.subr.mxu0 0.0
    %607 = vmatpush1.msra.mxu0 0.0
    %608 = vmatprep.subr.mxu0 0.0
    %609 = vmatpush1.msra.mxu0 0.0
    %610 = vmatprep.subr.mxu0 0.0
    %611 = vmatpush1.msra.mxu0 0.0
    %612 = vmatprep.subr.mxu0 0.0
    %613 = vmatpush1.msra.mxu0 0.0
    %614 = vmatprep.subr.mxu0 0.0
    %615 = vmatpush1.msra.mxu0 0.0
    %616 = vmatprep.subr.mxu0 0.0
    %617 = vmatpush1.msra.mxu0 0.0
    %618 = vmatprep.subr.mxu0 0.0
    %619 = vmatpush1.msra.mxu0 0.0
    %620 = vmatprep.subr.mxu0 0.0
    %621 = vmatpush1.msra.mxu0 0.0
    %622 = vmatprep.subr.mxu0 0.0
    %623 = vmatpush1.msra.mxu0 0.0
    %624 = vmatprep.subr.mxu0 0.0
    %625 = vmatpush1.msra.mxu0 0.0
    %626 = vmatprep.subr.mxu0 0.0
    %627 = vmatpush1.msra.mxu0 0.0
    %628 = vmatprep.subr.mxu0 0.0
    %629 = vmatpush1.msra.mxu0 0.0
    %630 = vmatprep.subr.mxu0 0.0
    %631 = vmatpush1.msra.mxu0 0.0
    %632 = vmatprep.subr.mxu0 0.0
    %633 = vmatpush1.msra.mxu0 0.0
    %634 = vmatprep.subr.mxu0 0.0
    %635 = vmatpush1.msra.mxu0 0.0
    %636 = vmatprep.subr.mxu0 0.0
    %637 = vmatpush1.msra.mxu0 0.0
    %638 = vmatprep.subr.mxu0 0.0
    %639 = vmatpush1.msra.mxu0 0.0
    %640 = vmatprep.subr.mxu0 0.0
    %641 = vmatpush1.msra.mxu0 0.0
    %642 = vmatprep.subr.mxu0 0.0
    %643 = vmatpush1.msra.mxu0 0.0
    %644 = vmatprep.subr.mxu0 0.0
    %645 = vmatpush1.msra.mxu0 0.0
    %646 = vmatprep.subr.mxu0 0.0
    %647 = vmatpush1.msra.mxu0 0.0
    %648 = vmatprep.subr.mxu0 0.0
    %649 = vmatpush1.msra.mxu0 0.0
    %650 = vmatprep.subr.mxu0 0.0
    %651 = vmatpush1.msra.mxu0 0.0
    %652 = vmatprep.subr.mxu0 0.0
    %653 = vmatpush1.msra.mxu0 0.0
    %654 = vmatprep.subr.mxu0 0.0
    %655 = vmatpush1.msra.mxu0 0.0
    %656 = vmatprep.subr.mxu0 0.0
    %657 = vmatpush1.msra.mxu0 0.0
    %658 = vmatprep.subr.mxu0 0.0
    %659 = vmatpush1.msra.mxu0 0.0
    %660 = vmatprep.subr.mxu0 0.0
    %661 = vmatpush1.msra.mxu0 0.0
    %662 = vmatprep.subr.mxu0 0.0
    %663 = vmatpush1.msra.mxu0 0.0
    %664 = vmatprep.mubr.f32.mxu0 0.0
    %665 = vmatmul.mubr.f32.gmra.mrb[0].mxu0 %v589
    %v666 = vpop.f32.mrb[0].mxu0
    %v667 = vadd.f32 0.0, %v666
    %v668 = vpop.f32.mrb[0].mxu0
    %669 = vmatprep.mubr.f32.mxu0 0.0
    %670 = vmatmul.mubr.f32.gmra.mrb[0].mxu0 %v592
    %v671 = vpop.f32.mrb[0].mxu0
    %v672 = vadd.f32 0.0, %v671
    %v673 = vpop.f32.mrb[0].mxu0
    %674 = vmatprep.mubr.f32.mxu0 0.0
    %675 = vmatmul.mubr.f32.gmra.mrb[0].mxu0 %v595
    %v676 = vpop.f32.mrb[0].mxu0
    %v677 = vadd.f32 0.0, %v676
    %v678 = vpop.f32.mrb[0].mxu0
    %679 = vdwg.mxu0
    %680 = vst.msk [vmem:[#allocation4] sm:$0xff] %vm449, %v667
    %681 = vst.msk [vmem:[#allocation4 + $0x8] sm:$0xff] %vm449, %v672
    %vm682 = vcmask 57344
    %683 = vst.msk [vmem:[#allocation4 + $0x10] sm:$0x1] %vm682, %v677
    %v684 = vld [vmem:[#allocation3] sm:$0xff]
    %v685 = vld [vmem:[#allocation3 + $0x8] sm:$0xff]
    %v686 = vld [vmem:[#allocation3 + $0x10] sm:$0x1]
    %690 = vrot.lane.b32.xlu0 %v684, 120
    %v691 = vpop.permute.xlu0 %690
    %692 = vrot.lane.b32.xlu0 %v685, 120
    %v693 = vpop.permute.xlu0 %692
    %694 = vrot.lane.b32.xlu0 %v686, 120
    %v695 = vpop.permute.xlu0 %694
    %696 = vrot.lane.b32.xlu0 %v684, 88
    %v697 = vpop.permute.xlu0 %696
    %698 = vrot.lane.b32.xlu0 %v685, 88
    %v699 = vpop.permute.xlu0 %698
    %700 = vrot.lane.b32.xlu0 %v686, 88
    %v701 = vpop.permute.xlu0 %700
    %v702 = vsel %vm449, %v691, 0
    %v704 = vsel %vm449, %v693, 0
    %v706 = vsel %vm449, %v695, 0
    %v708 = vsel %vm449, %v697, 0
    %v710 = vsel %vm449, %v699, 0
    %v712 = vsel %vm449, %v701, 0
    %714 = vmatprep.subr.mxu0 0.0
    %715 = vmatpush1.xpose.msra.mxu0 %v708
    %716 = vmatprep.subr.mxu0 0.0
    %717 = vmatpush1.xpose.msra.mxu0 %v710
    %718 = vmatprep.subr.mxu0 0.0
    %719 = vmatpush1.xpose.msra.mxu0 %v712
    %720 = vmatprep.subr.mxu0 0.0
    %721 = vmatpush1.xpose.msra.mxu0 0.0
    %722 = vmatprep.subr.mxu0 0.0
    %723 = vmatpush1.xpose.msra.mxu0 0.0
    %724 = vmatprep.subr.mxu0 0.0
    %725 = vmatpush1.xpose.msra.mxu0 0.0
    %726 = vmatprep.subr.mxu0 0.0
    %727 = vmatpush1.xpose.msra.mxu0 0.0
    %728 = vmatprep.subr.mxu0 0.0
    %729 = vmatpush1.xpose.msra.mxu0 0.0
    %730 = vmatprep.subr.mxu0 0.0
    %731 = vmatpush1.xpose.msra.mxu0 0.0
    %732 = vmatprep.subr.mxu0 0.0
    %733 = vmatpush1.xpose.msra.mxu0 0.0
    %734 = vmatprep.subr.mxu0 0.0
    %735 = vmatpush1.xpose.msra.mxu0 0.0
    %736 = vmatprep.subr.mxu0 0.0
    %737 = vmatpush1.xpose.msra.mxu0 0.0
    %738 = vmatprep.subr.mxu0 0.0
    %739 = vmatpush1.xpose.msra.mxu0 0.0
    %740 = vmatprep.subr.mxu0 0.0
    %741 = vmatpush1.xpose.msra.mxu0 0.0
    %742 = vmatprep.subr.mxu0 0.0
    %743 = vmatpush1.xpose.msra.mxu0 0.0
    %744 = vmatprep.subr.mxu0 0.0
    %745 = vmatpush1.xpose.msra.mxu0 0.0
    %746 = vmatprep.subr.mxu0 0.0
    %747 = vmatpush1.xpose.msra.mxu0 0.0
    %748 = vmatprep.subr.mxu0 0.0
    %749 = vmatpush1.xpose.msra.mxu0 0.0
    %750 = vmatprep.subr.mxu0 0.0
    %751 = vmatpush1.xpose.msra.mxu0 0.0
    %752 = vmatprep.subr.mxu0 0.0
    %753 = vmatpush1.xpose.msra.mxu0 0.0
    %754 = vmatprep.subr.mxu0 0.0
    %755 = vmatpush1.xpose.msra.mxu0 0.0
    %756 = vmatprep.subr.mxu0 0.0
    %757 = vmatpush1.xpose.msra.mxu0 0.0
    %758 = vmatprep.subr.mxu0 0.0
    %759 = vmatpush1.xpose.msra.mxu0 0.0
    %760 = vmatprep.subr.mxu0 0.0
    %761 = vmatpush1.xpose.msra.mxu0 0.0
    %762 = vmatprep.subr.mxu0 0.0
    %763 = vmatpush1.xpose.msra.mxu0 0.0
    %764 = vmatprep.subr.mxu0 0.0
    %765 = vmatpush1.xpose.msra.mxu0 0.0
    %766 = vmatprep.subr.mxu0 0.0
    %767 = vmatpush1.xpose.msra.mxu0 0.0
    %768 = vmatprep.subr.mxu0 0.0
    %769 = vmatpush1.xpose.msra.mxu0 0.0
    %770 = vmatprep.subr.mxu0 0.0
    %771 = vmatpush1.xpose.msra.mxu0 0.0
    %772 = vmatprep.subr.mxu0 0.0
    %773 = vmatpush1.xpose.msra.mxu0 0.0
    %774 = vmatprep.subr.mxu0 0.0
    %775 = vmatpush1.xpose.msra.mxu0 0.0
    %776 = vmatprep.subr.mxu0 0.0
    %777 = vmatpush1.xpose.msra.mxu0 0.0
    %778 = vmatprep.mubr.f32.mxu0 0.0
    %779 = vmatmul.mubr.f32.gmra.mrb[0].mxu0 %v702
    %v780 = vpop.f32.mrb[0].mxu0
    %v781 = vadd.f32 0.0, %v780
    %v782 = vpop.f32.mrb[0].mxu0
    %783 = vmatprep.mubr.f32.mxu0 0.0
    %784 = vmatmul.mubr.f32.gmra.mrb[0].mxu0 %v704
    %v785 = vpop.f32.mrb[0].mxu0
    %v786 = vadd.f32 0.0, %v785
    %v787 = vpop.f32.mrb[0].mxu0
    %788 = vmatprep.mubr.f32.mxu0 0.0
    %789 = vmatmul.mubr.f32.gmra.mrb[0].mxu0 %v706
    %v790 = vpop.f32.mrb[0].mxu0
    %v791 = vadd.f32 0.0, %v790
    %v792 = vpop.f32.mrb[0].mxu0
    %793 = vdwg.mxu0
    %v794 = vmul.f32 %v781, 0.35355338
    %v795 = vmul.f32 %v786, 0.35355338
    %v796 = vmul.f32 %v791, 0.35355338
    %v797 = vsel %vm545, %v794, -inf
    %798 = vmax.xlane.f32.xlu0 %v797
    %v799 = vpop.xlane.xlu0 %798
    %v800 = vsel %vm545, %v795, -inf
    %801 = vmax.xlane.f32.xlu0 %v800
    %v802 = vpop.xlane.xlu0 %801
    %v803 = vsel %vm552, %v796, -inf
    %804 = vmax.xlane.f32.xlu0 %v803
    %v805 = vpop.xlane.xlu0 %804
    %v806 = vsub.f32 %v794, %v799
    %v807 = vsub.f32 %v795, %v802
    %v808 = vsub.f32 %v796, %v805
    %v809 = vmul.f32 %v806, 1.442695
    %v810 = vpow.pop %v809
    %v811 = vmul.f32 %v807, 1.442695
    %v812 = vpow.pop %v811
    %v813 = vmul.f32 %v808, 1.442695
    %v814 = vpow.pop %v813
    %v815 = vsel %vm545, %v810, 0.0
    %816 = vadd.xlane.f32.xlu0 %v815
    %v817 = vpop.xlane.xlu0 %816
    %v818 = vsel %vm545, %v812, 0.0
    %819 = vadd.xlane.f32.xlu0 %v818
    %v820 = vpop.xlane.xlu0 %819
    %v821 = vsel %vm552, %v814, 0.0
    %822 = vadd.xlane.f32.xlu0 %v821
    %v823 = vpop.xlane.xlu0 %822
    %v824 = vrcp.pop %v817
    %v825 = vrcp.pop %v820
    %v826 = vrcp.pop %v823
    %v827 = vmul.f32 %v810, %v824
    %v828 = vmul.f32 %v812, %v825
    %v829 = vmul.f32 %v814, %v826
    %830 = vrot.lane.b32.xlu0 %v684, 56
    %v831 = vpop.permute.xlu0 %830
    %832 = vrot.lane.b32.xlu0 %v685, 56
    %v833 = vpop.permute.xlu0 %832
    %834 = vrot.lane.b32.xlu0 %v686, 56
    %v835 = vpop.permute.xlu0 %834
    %v839 = vsel %vm545, %v827, 0
    %v842 = vsel %vm545, %v828, 0
    %v845 = vsel %vm545, %v829, 0
    %v847 = vsel %vm597, %v835, 0
    %849 = vmatprep.subr.mxu0 0.0
    %850 = vmatpush1.msra.mxu0 %v831
    %851 = vmatprep.subr.mxu0 0.0
    %852 = vmatpush1.msra.mxu0 %v833
    %853 = vmatprep.subr.mxu0 0.0
    %854 = vmatpush1.msra.mxu0 %v847
    %855 = vmatprep.subr.mxu0 0.0
    %856 = vmatpush1.msra.mxu0 0.0
    %857 = vmatprep.subr.mxu0 0.0
    %858 = vmatpush1.msra.mxu0 0.0
    %859 = vmatprep.subr.mxu0 0.0
    %860 = vmatpush1.msra.mxu0 0.0
    %861 = vmatprep.subr.mxu0 0.0
    %862 = vmatpush1.msra.mxu0 0.0
    %863 = vmatprep.subr.mxu0 0.0
    %864 = vmatpush1.msra.mxu0 0.0
    %865 = vmatprep.subr.mxu0 0.0
    %866 = vmatpush1.msra.mxu0 0.0
    %867 = vmatprep.subr.mxu0 0.0
    %868 = vmatpush1.msra.mxu0 0.0
    %869 = vmatprep.subr.mxu0 0.0
    %870 = vmatpush1.msra.mxu0 0.0
    %871 = vmatprep.subr.mxu0 0.0
    %872 = vmatpush1.msra.mxu0 0.0
    %873 = vmatprep.subr.mxu0 0.0
    %874 = vmatpush1.msra.mxu0 0.0
    %875 = vmatprep.subr.mxu0 0.0
    %876 = vmatpush1.msra.mxu0 0.0
    %877 = vmatprep.subr.mxu0 0.0
    %878 = vmatpush1.msra.mxu0 0.0
    %879 = vmatprep.subr.mxu0 0.0
    %880 = vmatpush1.msra.mxu0 0.0
    %881 = vmatprep.subr.mxu0 0.0
    %882 = vmatpush1.msra.mxu0 0.0
    %883 = vmatprep.subr.mxu0 0.0
    %884 = vmatpush1.msra.mxu0 0.0
    %885 = vmatprep.subr.mxu0 0.0
    %886 = vmatpush1.msra.mxu0 0.0
    %887 = vmatprep.subr.mxu0 0.0
    %888 = vmatpush1.msra.mxu0 0.0
    %889 = vmatprep.subr.mxu0 0.0
    %890 = vmatpush1.msra.mxu0 0.0
    %891 = vmatprep.subr.mxu0 0.0
    %892 = vmatpush1.msra.mxu0 0.0
    %893 = vmatprep.subr.mxu0 0.0
    %894 = vmatpush1.msra.mxu0 0.0
    %895 = vmatprep.subr.mxu0 0.0
    %896 = vmatpush1.msra.mxu0 0.0
    %897 = vmatprep.subr.mxu0 0.0
    %898 = vmatpush1.msra.mxu0 0.0
    %899 = vmatprep.subr.mxu0 0.0
    %900 = vmatpush1.msra.mxu0 0.0
    %901 = vmatprep.subr.mxu0 0.0
    %902 = vmatpush1.msra.mxu0 0.0
    %903 = vmatprep.subr.mxu0 0.0
    %904 = vmatpush1.msra.mxu0 0.0
    %905 = vmatprep.subr.mxu0 0.0
    %906 = vmatpush1.msra.mxu0 0.0
    %907 = vmatprep.subr.mxu0 0.0
    %908 = vmatpush1.msra.mxu0 0.0
    %909 = vmatprep.subr.mxu0 0.0
    %910 = vmatpush1.msra.mxu0 0.0
    %911 = vmatprep.subr.mxu0 0.0
    %912 = vmatpush1.msra.mxu0 0.0
    %913 = vmatprep.mubr.f32.mxu0 0.0
    %914 = vmatmul.mubr.f32.gmra.mrb[0].mxu0 %v839
    %v915 = vpop.f32.mrb[0].mxu0
    %v916 = vadd.f32 0.0, %v915
    %v917 = vpop.f32.mrb[0].mxu0
    %918 = vmatprep.mubr.f32.mxu0 0.0
    %919 = vmatmul.mubr.f32.gmra.mrb[0].mxu0 %v842
    %v920 = vpop.f32.mrb[0].mxu0
    %v921 = vadd.f32 0.0, %v920
    %v922 = vpop.f32.mrb[0].mxu0
    %923 = vmatprep.mubr.f32.mxu0 0.0
    %924 = vmatmul.mubr.f32.gmra.mrb[0].mxu0 %v845
    %v925 = vpop.f32.mrb[0].mxu0
    %v926 = vadd.f32 0.0, %v925
    %v927 = vpop.f32.mrb[0].mxu0
    %928 = vdwg.mxu0
    %932 = vrot.lane.b32.xlu0 %v916, 8
    %v933 = vpop.permute.xlu0 %932
    %934 = vrot.lane.b32.xlu0 %v921, 8
    %v935 = vpop.permute.xlu0 %934
    %936 = vrot.lane.b32.xlu0 %v926, 8
    %v937 = vpop.permute.xlu0 %936
    %vm941 = vcmask 130112
    %942 = vst.msk [vmem:[#allocation4] sm:$0xff] %vm941, %v933
    %943 = vst.msk [vmem:[#allocation4 + $0x8] sm:$0xff] %vm941, %v935
    %vm944 = vcmask 122944
    %945 = vst.msk [vmem:[#allocation4 + $0x10] sm:$0x1] %vm944, %v937
    %v946 = vld [vmem:[#allocation3] sm:$0xff]
    %v947 = vld [vmem:[#allocation3 + $0x8] sm:$0xff]
    %v948 = vld [vmem:[#allocation3 + $0x10] sm:$0x1]
    %952 = vrot.lane.b32.xlu0 %v946, 112
    %v953 = vpop.permute.xlu0 %952
    %954 = vrot.lane.b32.xlu0 %v947, 112
    %v955 = vpop.permute.xlu0 %954
    %956 = vrot.lane.b32.xlu0 %v948, 112
    %v957 = vpop.permute.xlu0 %956
    %958 = vrot.lane.b32.xlu0 %v946, 80
    %v959 = vpop.permute.xlu0 %958
    %960 = vrot.lane.b32.xlu0 %v947, 80
    %v961 = vpop.permute.xlu0 %960
    %962 = vrot.lane.b32.xlu0 %v948, 80
    %v963 = vpop.permute.xlu0 %962
    %v964 = vsel %vm449, %v953, 0
    %v966 = vsel %vm449, %v955, 0
    %v968 = vsel %vm449, %v957, 0
    %v970 = vsel %vm449, %v959, 0
    %v972 = vsel %vm449, %v961, 0
    %v974 = vsel %vm449, %v963, 0
    %976 = vmatprep.subr.mxu0 0.0
    %977 = vmatpush1.xpose.msra.mxu0 %v970
    %978 = vmatprep.subr.mxu0 0.0
    %979 = vmatpush1.xpose.msra.mxu0 %v972
    %980 = vmatprep.subr.mxu0 0.0
    %981 = vmatpush1.xpose.msra.mxu0 %v974
    %982 = vmatprep.subr.mxu0 0.0
    %983 = vmatpush1.xpose.msra.mxu0 0.0
    %984 = vmatprep.subr.mxu0 0.0
    %985 = vmatpush1.xpose.msra.mxu0 0.0
    %986 = vmatprep.subr.mxu0 0.0
    %987 = vmatpush1.xpose.msra.mxu0 0.0
    %988 = vmatprep.subr.mxu0 0.0
    %989 = vmatpush1.xpose.msra.mxu0 0.0
    %990 = vmatprep.subr.mxu0 0.0
    %991 = vmatpush1.xpose.msra.mxu0 0.0
    %992 = vmatprep.subr.mxu0 0.0
    %993 = vmatpush1.xpose.msra.mxu0 0.0
    %994 = vmatprep.subr.mxu0 0.0
    %995 = vmatpush1.xpose.msra.mxu0 0.0
    %996 = vmatprep.subr.mxu0 0.0
    %997 = vmatpush1.xpose.msra.mxu0 0.0
    %998 = vmatprep.subr.mxu0 0.0
    %999 = vmatpush1.xpose.msra.mxu0 0.0
    %1000 = vmatprep.subr.mxu0 0.0
    %1001 = vmatpush1.xpose.msra.mxu0 0.0
    %1002 = vmatprep.subr.mxu0 0.0
    %1003 = vmatpush1.xpose.msra.mxu0 0.0
    %1004 = vmatprep.subr.mxu0 0.0
    %1005 = vmatpush1.xpose.msra.mxu0 0.0
    %1006 = vmatprep.subr.mxu0 0.0
    %1007 = vmatpush1.xpose.msra.mxu0 0.0
    %1008 = vmatprep.subr.mxu0 0.0
    %1009 = vmatpush1.xpose.msra.mxu0 0.0
    %1010 = vmatprep.subr.mxu0 0.0
    %1011 = vmatpush1.xpose.msra.mxu0 0.0
    %1012 = vmatprep.subr.mxu0 0.0
    %1013 = vmatpush1.xpose.msra.mxu0 0.0
    %1014 = vmatprep.subr.mxu0 0.0
    %1015 = vmatpush1.xpose.msra.mxu0 0.0
    %1016 = vmatprep.subr.mxu0 0.0
    %1017 = vmatpush1.xpose.msra.mxu0 0.0
    %1018 = vmatprep.subr.mxu0 0.0
    %1019 = vmatpush1.xpose.msra.mxu0 0.0
    %1020 = vmatprep.subr.mxu0 0.0
    %1021 = vmatpush1.xpose.msra.mxu0 0.0
    %1022 = vmatprep.subr.mxu0 0.0
    %1023 = vmatpush1.xpose.msra.mxu0 0.0
    %1024 = vmatprep.subr.mxu0 0.0
    %1025 = vmatpush1.xpose.msra.mxu0 0.0
    %1026 = vmatprep.subr.mxu0 0.0
    %1027 = vmatpush1.xpose.msra.mxu0 0.0
    %1028 = vmatprep.subr.mxu0 0.0
    %1029 = vmatpush1.xpose.msra.mxu0 0.0
    %1030 = vmatprep.subr.mxu0 0.0
    %1031 = vmatpush1.xpose.msra.mxu0 0.0
    %1032 = vmatprep.subr.mxu0 0.0
    %1033 = vmatpush1.xpose.msra.mxu0 0.0
    %1034 = vmatprep.subr.mxu0 0.0
    %1035 = vmatpush1.xpose.msra.mxu0 0.0
    %1036 = vmatprep.subr.mxu0 0.0
    %1037 = vmatpush1.xpose.msra.mxu0 0.0
    %1038 = vmatprep.subr.mxu0 0.0
    %1039 = vmatpush1.xpose.msra.mxu0 0.0
    %1040 = vmatprep.mubr.f32.mxu0 0.0
    %1041 = vmatmul.mubr.f32.gmra.mrb[0].mxu0 %v964
    %v1042 = vpop.f32.mrb[0].mxu0
    %v1043 = vadd.f32 0.0, %v1042
    %v1044 = vpop.f32.mrb[0].mxu0
    %1045 = vmatprep.mubr.f32.mxu0 0.0
    %1046 = vmatmul.mubr.f32.gmra.mrb[0].mxu0 %v966
    %v1047 = vpop.f32.mrb[0].mxu0
    %v1048 = vadd.f32 0.0, %v1047
    %v1049 = vpop.f32.mrb[0].mxu0
    %1050 = vmatprep.mubr.f32.mxu0 0.0
    %1051 = vmatmul.mubr.f32.gmra.mrb[0].mxu0 %v968
    %v1052 = vpop.f32.mrb[0].mxu0
    %v1053 = vadd.f32 0.0, %v1052
    %v1054 = vpop.f32.mrb[0].mxu0
    %1055 = vdwg.mxu0
    %v1056 = vmul.f32 %v1043, 0.35355338
    %v1057 = vmul.f32 %v1048, 0.35355338
    %v1058 = vmul.f32 %v1053, 0.35355338
    %v1059 = vsel %vm545, %v1056, -inf
    %1060 = vmax.xlane.f32.xlu0 %v1059
    %v1061 = vpop.xlane.xlu0 %1060
    %v1062 = vsel %vm545, %v1057, -inf
    %1063 = vmax.xlane.f32.xlu0 %v1062
    %v1064 = vpop.xlane.xlu0 %1063
    %v1065 = vsel %vm552, %v1058, -inf
    %1066 = vmax.xlane.f32.xlu0 %v1065
    %v1067 = vpop.xlane.xlu0 %1066
    %v1068 = vsub.f32 %v1056, %v1061
    %v1069 = vsub.f32 %v1057, %v1064
    %v1070 = vsub.f32 %v1058, %v1067
    %v1071 = vmul.f32 %v1068, 1.442695
    %v1072 = vpow.pop %v1071
    %v1073 = vmul.f32 %v1069, 1.442695
    %v1074 = vpow.pop %v1073
    %v1075 = vmul.f32 %v1070, 1.442695
    %v1076 = vpow.pop %v1075
    %v1077 = vsel %vm545, %v1072, 0.0
    %1078 = vadd.xlane.f32.xlu0 %v1077
    %v1079 = vpop.xlane.xlu0 %1078
    %v1080 = vsel %vm545, %v1074, 0.0
    %1081 = vadd.xlane.f32.xlu0 %v1080
    %v1082 = vpop.xlane.xlu0 %1081
    %v1083 = vsel %vm552, %v1076, 0.0
    %1084 = vadd.xlane.f32.xlu0 %v1083
    %v1085 = vpop.xlane.xlu0 %1084
    %v1086 = vrcp.pop %v1079
    %v1087 = vrcp.pop %v1082
    %v1088 = vrcp.pop %v1085
    %v1089 = vmul.f32 %v1072, %v1086
    %v1090 = vmul.f32 %v1074, %v1087
    %v1091 = vmul.f32 %v1076, %v1088
    %1092 = vrot.lane.b32.xlu0 %v946, 48
    %v1093 = vpop.permute.xlu0 %1092
    %1094 = vrot.lane.b32.xlu0 %v947, 48
    %v1095 = vpop.permute.xlu0 %1094
    %1096 = vrot.lane.b32.xlu0 %v948, 48
    %v1097 = vpop.permute.xlu0 %1096
    %v1101 = vsel %vm545, %v1089, 0
    %v1104 = vsel %vm545, %v1090, 0
    %v1107 = vsel %vm545, %v1091, 0
    %v1109 = vsel %vm597, %v1097, 0
    %1111 = vmatprep.subr.mxu0 0.0
    %1112 = vmatpush1.msra.mxu0 %v1093
    %1113 = vmatprep.subr.mxu0 0.0
    %1114 = vmatpush1.msra.mxu0 %v1095
    %1115 = vmatprep.subr.mxu0 0.0
    %1116 = vmatpush1.msra.mxu0 %v1109
    %1117 = vmatprep.subr.mxu0 0.0
    %1118 = vmatpush1.msra.mxu0 0.0
    %1119 = vmatprep.subr.mxu0 0.0
    %1120 = vmatpush1.msra.mxu0 0.0
    %1121 = vmatprep.subr.mxu0 0.0
    %1122 = vmatpush1.msra.mxu0 0.0
    %1123 = vmatprep.subr.mxu0 0.0
    %1124 = vmatpush1.msra.mxu0 0.0
    %1125 = vmatprep.subr.mxu0 0.0
    %1126 = vmatpush1.msra.mxu0 0.0
    %1127 = vmatprep.subr.mxu0 0.0
    %1128 = vmatpush1.msra.mxu0 0.0
    %1129 = vmatprep.subr.mxu0 0.0
    %1130 = vmatpush1.msra.mxu0 0.0
    %1131 = vmatprep.subr.mxu0 0.0
    %1132 = vmatpush1.msra.mxu0 0.0
    %1133 = vmatprep.subr.mxu0 0.0
    %1134 = vmatpush1.msra.mxu0 0.0
    %1135 = vmatprep.subr.mxu0 0.0
    %1136 = vmatpush1.msra.mxu0 0.0
    %1137 = vmatprep.subr.mxu0 0.0
    %1138 = vmatpush1.msra.mxu0 0.0
    %1139 = vmatprep.subr.mxu0 0.0
    %1140 = vmatpush1.msra.mxu0 0.0
    %1141 = vmatprep.subr.mxu0 0.0
    %1142 = vmatpush1.msra.mxu0 0.0
    %1143 = vmatprep.subr.mxu0 0.0
    %1144 = vmatpush1.msra.mxu0 0.0
    %1145 = vmatprep.subr.mxu0 0.0
    %1146 = vmatpush1.msra.mxu0 0.0
    %1147 = vmatprep.subr.mxu0 0.0
    %1148 = vmatpush1.msra.mxu0 0.0
    %1149 = vmatprep.subr.mxu0 0.0
    %1150 = vmatpush1.msra.mxu0 0.0
    %1151 = vmatprep.subr.mxu0 0.0
    %1152 = vmatpush1.msra.mxu0 0.0
    %1153 = vmatprep.subr.mxu0 0.0
    %1154 = vmatpush1.msra.mxu0 0.0
    %1155 = vmatprep.subr.mxu0 0.0
    %1156 = vmatpush1.msra.mxu0 0.0
    %1157 = vmatprep.subr.mxu0 0.0
    %1158 = vmatpush1.msra.mxu0 0.0
    %1159 = vmatprep.subr.mxu0 0.0
    %1160 = vmatpush1.msra.mxu0 0.0
    %1161 = vmatprep.subr.mxu0 0.0
    %1162 = vmatpush1.msra.mxu0 0.0
    %1163 = vmatprep.subr.mxu0 0.0
    %1164 = vmatpush1.msra.mxu0 0.0
    %1165 = vmatprep.subr.mxu0 0.0
    %1166 = vmatpush1.msra.mxu0 0.0
    %1167 = vmatprep.subr.mxu0 0.0
    %1168 = vmatpush1.msra.mxu0 0.0
    %1169 = vmatprep.subr.mxu0 0.0
    %1170 = vmatpush1.msra.mxu0 0.0
    %1171 = vmatprep.subr.mxu0 0.0
    %1172 = vmatpush1.msra.mxu0 0.0
    %1173 = vmatprep.subr.mxu0 0.0
    %1174 = vmatpush1.msra.mxu0 0.0
    %1175 = vmatprep.mubr.f32.mxu0 0.0
    %1176 = vmatmul.mubr.f32.gmra.mrb[0].mxu0 %v1101
    %v1177 = vpop.f32.mrb[0].mxu0
    %v1178 = vadd.f32 0.0, %v1177
    %v1179 = vpop.f32.mrb[0].mxu0
    %1180 = vmatprep.mubr.f32.mxu0 0.0
    %1181 = vmatmul.mubr.f32.gmra.mrb[0].mxu0 %v1104
    %v1182 = vpop.f32.mrb[0].mxu0
    %v1183 = vadd.f32 0.0, %v1182
    %v1184 = vpop.f32.mrb[0].mxu0
    %1185 = vmatprep.mubr.f32.mxu0 0.0
    %1186 = vmatmul.mubr.f32.gmra.mrb[0].mxu0 %v1107
    %v1187 = vpop.f32.mrb[0].mxu0
    %v1188 = vadd.f32 0.0, %v1187
    %v1189 = vpop.f32.mrb[0].mxu0
    %1190 = vdwg.mxu0
    %1194 = vrot.lane.b32.xlu0 %v1178, 16
    %v1195 = vpop.permute.xlu0 %1194
    %1196 = vrot.lane.b32.xlu0 %v1183, 16
    %v1197 = vpop.permute.xlu0 %1196
    %1198 = vrot.lane.b32.xlu0 %v1188, 16
    %v1199 = vpop.permute.xlu0 %1198
    %vm1203 = vcmask 195712
    %1204 = vst.msk [vmem:[#allocation4] sm:$0xff] %vm1203, %v1195
    %1205 = vst.msk [vmem:[#allocation4 + $0x8] sm:$0xff] %vm1203, %v1197
    %vm1206 = vcmask 188544
    %1207 = vst.msk [vmem:[#allocation4 + $0x10] sm:$0x1] %vm1206, %v1199
    %v1208 = vld [vmem:[#allocation3] sm:$0xff]
    %v1209 = vld [vmem:[#allocation3 + $0x8] sm:$0xff]
    %v1210 = vld [vmem:[#allocation3 + $0x10] sm:$0x1]
    %1214 = vrot.lane.b32.xlu0 %v1208, 104
    %v1215 = vpop.permute.xlu0 %1214
    %1216 = vrot.lane.b32.xlu0 %v1209, 104
    %v1217 = vpop.permute.xlu0 %1216
    %1218 = vrot.lane.b32.xlu0 %v1210, 104
    %v1219 = vpop.permute.xlu0 %1218
    %1220 = vrot.lane.b32.xlu0 %v1208, 72
    %v1221 = vpop.permute.xlu0 %1220
    %1222 = vrot.lane.b32.xlu0 %v1209, 72
    %v1223 = vpop.permute.xlu0 %1222
    %1224 = vrot.lane.b32.xlu0 %v1210, 72
    %v1225 = vpop.permute.xlu0 %1224
    %v1226 = vsel %vm449, %v1215, 0
    %v1228 = vsel %vm449, %v1217, 0
    %v1230 = vsel %vm449, %v1219, 0
    %v1232 = vsel %vm449, %v1221, 0
    %v1234 = vsel %vm449, %v1223, 0
    %v1236 = vsel %vm449, %v1225, 0
    %1238 = vmatprep.subr.mxu0 0.0
    %1239 = vmatpush1.xpose.msra.mxu0 %v1232
    %1240 = vmatprep.subr.mxu0 0.0
    %1241 = vmatpush1.xpose.msra.mxu0 %v1234
    %1242 = vmatprep.subr.mxu0 0.0
    %1243 = vmatpush1.xpose.msra.mxu0 %v1236
    %1244 = vmatprep.subr.mxu0 0.0
    %1245 = vmatpush1.xpose.msra.mxu0 0.0
    %1246 = vmatprep.subr.mxu0 0.0
    %1247 = vmatpush1.xpose.msra.mxu0 0.0
    %1248 = vmatprep.subr.mxu0 0.0
    %1249 = vmatpush1.xpose.msra.mxu0 0.0
    %1250 = vmatprep.subr.mxu0 0.0
    %1251 = vmatpush1.xpose.msra.mxu0 0.0
    %1252 = vmatprep.subr.mxu0 0.0
    %1253 = vmatpush1.xpose.msra.mxu0 0.0
    %1254 = vmatprep.subr.mxu0 0.0
    %1255 = vmatpush1.xpose.msra.mxu0 0.0
    %1256 = vmatprep.subr.mxu0 0.0
    %1257 = vmatpush1.xpose.msra.mxu0 0.0
    %1258 = vmatprep.subr.mxu0 0.0
    %1259 = vmatpush1.xpose.msra.mxu0 0.0
    %1260 = vmatprep.subr.mxu0 0.0
    %1261 = vmatpush1.xpose.msra.mxu0 0.0
    %1262 = vmatprep.subr.mxu0 0.0
    %1263 = vmatpush1.xpose.msra.mxu0 0.0
    %1264 = vmatprep.subr.mxu0 0.0
    %1265 = vmatpush1.xpose.msra.mxu0 0.0
    %1266 = vmatprep.subr.mxu0 0.0
    %1267 = vmatpush1.xpose.msra.mxu0 0.0
    %1268 = vmatprep.subr.mxu0 0.0
    %1269 = vmatpush1.xpose.msra.mxu0 0.0
    %1270 = vmatprep.subr.mxu0 0.0
    %1271 = vmatpush1.xpose.msra.mxu0 0.0
    %1272 = vmatprep.subr.mxu0 0.0
    %1273 = vmatpush1.xpose.msra.mxu0 0.0
    %1274 = vmatprep.subr.mxu0 0.0
    %1275 = vmatpush1.xpose.msra.mxu0 0.0
    %1276 = vmatprep.subr.mxu0 0.0
    %1277 = vmatpush1.xpose.msra.mxu0 0.0
    %1278 = vmatprep.subr.mxu0 0.0
    %1279 = vmatpush1.xpose.msra.mxu0 0.0
    %1280 = vmatprep.subr.mxu0 0.0
    %1281 = vmatpush1.xpose.msra.mxu0 0.0
    %1282 = vmatprep.subr.mxu0 0.0
    %1283 = vmatpush1.xpose.msra.mxu0 0.0
    %1284 = vmatprep.subr.mxu0 0.0
    %1285 = vmatpush1.xpose.msra.mxu0 0.0
    %1286 = vmatprep.subr.mxu0 0.0
    %1287 = vmatpush1.xpose.msra.mxu0 0.0
    %1288 = vmatprep.subr.mxu0 0.0
    %1289 = vmatpush1.xpose.msra.mxu0 0.0
    %1290 = vmatprep.subr.mxu0 0.0
    %1291 = vmatpush1.xpose.msra.mxu0 0.0
    %1292 = vmatprep.subr.mxu0 0.0
    %1293 = vmatpush1.xpose.msra.mxu0 0.0
    %1294 = vmatprep.subr.mxu0 0.0
    %1295 = vmatpush1.xpose.msra.mxu0 0.0
    %1296 = vmatprep.subr.mxu0 0.0
    %1297 = vmatpush1.xpose.msra.mxu0 0.0
    %1298 = vmatprep.subr.mxu0 0.0
    %1299 = vmatpush1.xpose.msra.mxu0 0.0
    %1300 = vmatprep.subr.mxu0 0.0
    %1301 = vmatpush1.xpose.msra.mxu0 0.0
    %1302 = vmatprep.mubr.f32.mxu0 0.0
    %1303 = vmatmul.mubr.f32.gmra.mrb[0].mxu0 %v1226
    %v1304 = vpop.f32.mrb[0].mxu0
    %v1305 = vadd.f32 0.0, %v1304
    %v1306 = vpop.f32.mrb[0].mxu0
    %1307 = vmatprep.mubr.f32.mxu0 0.0
    %1308 = vmatmul.mubr.f32.gmra.mrb[0].mxu0 %v1228
    %v1309 = vpop.f32.mrb[0].mxu0
    %v1310 = vadd.f32 0.0, %v1309
    %v1311 = vpop.f32.mrb[0].mxu0
    %1312 = vmatprep.mubr.f32.mxu0 0.0
    %1313 = vmatmul.mubr.f32.gmra.mrb[0].mxu0 %v1230
    %v1314 = vpop.f32.mrb[0].mxu0
    %v1315 = vadd.f32 0.0, %v1314
    %v1316 = vpop.f32.mrb[0].mxu0
    %1317 = vdwg.mxu0
    %v1318 = vmul.f32 %v1305, 0.35355338
    %v1319 = vmul.f32 %v1310, 0.35355338
    %v1320 = vmul.f32 %v1315, 0.35355338
    %v1321 = vsel %vm545, %v1318, -inf
    %1322 = vmax.xlane.f32.xlu0 %v1321
    %v1323 = vpop.xlane.xlu0 %1322
    %v1324 = vsel %vm545, %v1319, -inf
    %1325 = vmax.xlane.f32.xlu0 %v1324
    %v1326 = vpop.xlane.xlu0 %1325
    %v1327 = vsel %vm552, %v1320, -inf
    %1328 = vmax.xlane.f32.xlu0 %v1327
    %v1329 = vpop.xlane.xlu0 %1328
    %v1330 = vsub.f32 %v1318, %v1323
    %v1331 = vsub.f32 %v1319, %v1326
    %v1332 = vsub.f32 %v1320, %v1329
    %v1333 = vmul.f32 %v1330, 1.442695
    %v1334 = vpow.pop %v1333
    %v1335 = vmul.f32 %v1331, 1.442695
    %v1336 = vpow.pop %v1335
    %v1337 = vmul.f32 %v1332, 1.442695
    %v1338 = vpow.pop %v1337
    %v1339 = vsel %vm545, %v1334, 0.0
    %1340 = vadd.xlane.f32.xlu0 %v1339
    %v1341 = vpop.xlane.xlu0 %1340
    %v1342 = vsel %vm545, %v1336, 0.0
    %1343 = vadd.xlane.f32.xlu0 %v1342
    %v1344 = vpop.xlane.xlu0 %1343
    %v1345 = vsel %vm552, %v1338, 0.0
    %1346 = vadd.xlane.f32.xlu0 %v1345
    %v1347 = vpop.xlane.xlu0 %1346
    %v1348 = vrcp.pop %v1341
    %v1349 = vrcp.pop %v1344
    %v1350 = vrcp.pop %v1347
    %v1351 = vmul.f32 %v1334, %v1348
    %v1352 = vmul.f32 %v1336, %v1349
    %v1353 = vmul.f32 %v1338, %v1350
    %1354 = vrot.lane.b32.xlu0 %v1208, 40
    %v1355 = vpop.permute.xlu0 %1354
    %1356 = vrot.lane.b32.xlu0 %v1209, 40
    %v1357 = vpop.permute.xlu0 %1356
    %1358 = vrot.lane.b32.xlu0 %v1210, 40
    %v1359 = vpop.permute.xlu0 %1358
    %v1363 = vsel %vm545, %v1351, 0
    %v1366 = vsel %vm545, %v1352, 0
    %v1369 = vsel %vm545, %v1353, 0
    %v1371 = vsel %vm597, %v1359, 0
    %1373 = vmatprep.subr.mxu0 0.0
    %1374 = vmatpush1.msra.mxu0 %v1355
    %1375 = vmatprep.subr.mxu0 0.0
    %1376 = vmatpush1.msra.mxu0 %v1357
    %1377 = vmatprep.subr.mxu0 0.0
    %1378 = vmatpush1.msra.mxu0 %v1371
    %1379 = vmatprep.subr.mxu0 0.0
    %1380 = vmatpush1.msra.mxu0 0.0
    %1381 = vmatprep.subr.mxu0 0.0
    %1382 = vmatpush1.msra.mxu0 0.0
    %1383 = vmatprep.subr.mxu0 0.0
    %1384 = vmatpush1.msra.mxu0 0.0
    %1385 = vmatprep.subr.mxu0 0.0
    %1386 = vmatpush1.msra.mxu0 0.0
    %1387 = vmatprep.subr.mxu0 0.0
    %1388 = vmatpush1.msra.mxu0 0.0
    %1389 = vmatprep.subr.mxu0 0.0
    %1390 = vmatpush1.msra.mxu0 0.0
    %1391 = vmatprep.subr.mxu0 0.0
    %1392 = vmatpush1.msra.mxu0 0.0
    %1393 = vmatprep.subr.mxu0 0.0
    %1394 = vmatpush1.msra.mxu0 0.0
    %1395 = vmatprep.subr.mxu0 0.0
    %1396 = vmatpush1.msra.mxu0 0.0
    %1397 = vmatprep.subr.mxu0 0.0
    %1398 = vmatpush1.msra.mxu0 0.0
    %1399 = vmatprep.subr.mxu0 0.0
    %1400 = vmatpush1.msra.mxu0 0.0
    %1401 = vmatprep.subr.mxu0 0.0
    %1402 = vmatpush1.msra.mxu0 0.0
    %1403 = vmatprep.subr.mxu0 0.0
    %1404 = vmatpush1.msra.mxu0 0.0
    %1405 = vmatprep.subr.mxu0 0.0
    %1406 = vmatpush1.msra.mxu0 0.0
    %1407 = vmatprep.subr.mxu0 0.0
    %1408 = vmatpush1.msra.mxu0 0.0
    %1409 = vmatprep.subr.mxu0 0.0
    %1410 = vmatpush1.msra.mxu0 0.0
    %1411 = vmatprep.subr.mxu0 0.0
    %1412 = vmatpush1.msra.mxu0 0.0
    %1413 = vmatprep.subr.mxu0 0.0
    %1414 = vmatpush1.msra.mxu0 0.0
    %1415 = vmatprep.subr.mxu0 0.0
    %1416 = vmatpush1.msra.mxu0 0.0
    %1417 = vmatprep.subr.mxu0 0.0
    %1418 = vmatpush1.msra.mxu0 0.0
    %1419 = vmatprep.subr.mxu0 0.0
    %1420 = vmatpush1.msra.mxu0 0.0
    %1421 = vmatprep.subr.mxu0 0.0
    %1422 = vmatpush1.msra.mxu0 0.0
    %1423 = vmatprep.subr.mxu0 0.0
    %1424 = vmatpush1.msra.mxu0 0.0
    %1425 = vmatprep.subr.mxu0 0.0
    %1426 = vmatpush1.msra.mxu0 0.0
    %1427 = vmatprep.subr.mxu0 0.0
    %1428 = vmatpush1.msra.mxu0 0.0
    %1429 = vmatprep.subr.mxu0 0.0
    %1430 = vmatpush1.msra.mxu0 0.0
    %1431 = vmatprep.subr.mxu0 0.0
    %1432 = vmatpush1.msra.mxu0 0.0
    %1433 = vmatprep.subr.mxu0 0.0
    %1434 = vmatpush1.msra.mxu0 0.0
    %1435 = vmatprep.subr.mxu0 0.0
    %1436 = vmatpush1.msra.mxu0 0.0
    %1437 = vmatprep.mubr.f32.mxu0 0.0
    %1438 = vmatmul.mubr.f32.gmra.mrb[0].mxu0 %v1363
    %v1439 = vpop.f32.mrb[0].mxu0
    %v1440 = vadd.f32 0.0, %v1439
    %v1441 = vpop.f32.mrb[0].mxu0
    %1442 = vmatprep.mubr.f32.mxu0 0.0
    %1443 = vmatmul.mubr.f32.gmra.mrb[0].mxu0 %v1366
    %v1444 = vpop.f32.mrb[0].mxu0
    %v1445 = vadd.f32 0.0, %v1444
    %v1446 = vpop.f32.mrb[0].mxu0
    %1447 = vmatprep.mubr.f32.mxu0 0.0
    %1448 = vmatmul.mubr.f32.gmra.mrb[0].mxu0 %v1369
    %v1449 = vpop.f32.mrb[0].mxu0
    %v1450 = vadd.f32 0.0, %v1449
    %v1451 = vpop.f32.mrb[0].mxu0
    %1452 = vdwg.mxu0
    %1456 = vrot.lane.b32.xlu0 %v1440, 24
    %v1457 = vpop.permute.xlu0 %1456
    %1458 = vrot.lane.b32.xlu0 %v1445, 24
    %v1459 = vpop.permute.xlu0 %1458
    %1460 = vrot.lane.b32.xlu0 %v1450, 24
    %v1461 = vpop.permute.xlu0 %1460
    %vm1465 = vcmask 261312
    %1466 = vst.msk [vmem:[#allocation4] sm:$0xff] %vm1465, %v1457
    %1467 = vst.msk [vmem:[#allocation4 + $0x8] sm:$0xff] %vm1465, %v1459
    %vm1468 = vcmask 254144
    %1469 = vst.msk [vmem:[#allocation4 + $0x10] sm:$0x1] %vm1468, %v1461
    %v1470 = vld [vmem:[#allocation3 + $0x11] sm:$0xff]
    %v1471 = vld [vmem:[#allocation3 + $0x19] sm:$0xff]
    %v1472 = vld [vmem:[#allocation3 + $0x21] sm:$0x1]
    %1476 = vrot.lane.b32.xlu0 %v1470, 96
    %v1477 = vpop.permute.xlu0 %1476
    %1478 = vrot.lane.b32.xlu0 %v1471, 96
    %v1479 = vpop.permute.xlu0 %1478
    %1480 = vrot.lane.b32.xlu0 %v1472, 96
    %v1481 = vpop.permute.xlu0 %1480
    %v1482 = vsel %vm449, %v1470, 0
    %v1484 = vsel %vm449, %v1471, 0
    %v1486 = vsel %vm449, %v1472, 0
    %v1488 = vsel %vm449, %v1477, 0
    %v1490 = vsel %vm449, %v1479, 0
    %v1492 = vsel %vm449, %v1481, 0
    %1494 = vmatprep.subr.mxu0 0.0
    %1495 = vmatpush1.xpose.msra.mxu0 %v1488
    %1496 = vmatprep.subr.mxu0 0.0
    %1497 = vmatpush1.xpose.msra.mxu0 %v1490
    %1498 = vmatprep.subr.mxu0 0.0
    %1499 = vmatpush1.xpose.msra.mxu0 %v1492
    %1500 = vmatprep.subr.mxu0 0.0
    %1501 = vmatpush1.xpose.msra.mxu0 0.0
    %1502 = vmatprep.subr.mxu0 0.0
    %1503 = vmatpush1.xpose.msra.mxu0 0.0
    %1504 = vmatprep.subr.mxu0 0.0
    %1505 = vmatpush1.xpose.msra.mxu0 0.0
    %1506 = vmatprep.subr.mxu0 0.0
    %1507 = vmatpush1.xpose.msra.mxu0 0.0
    %1508 = vmatprep.subr.mxu0 0.0
    %1509 = vmatpush1.xpose.msra.mxu0 0.0
    %1510 = vmatprep.subr.mxu0 0.0
    %1511 = vmatpush1.xpose.msra.mxu0 0.0
    %1512 = vmatprep.subr.mxu0 0.0
    %1513 = vmatpush1.xpose.msra.mxu0 0.0
    %1514 = vmatprep.subr.mxu0 0.0
    %1515 = vmatpush1.xpose.msra.mxu0 0.0
    %1516 = vmatprep.subr.mxu0 0.0
    %1517 = vmatpush1.xpose.msra.mxu0 0.0
    %1518 = vmatprep.subr.mxu0 0.0
    %1519 = vmatpush1.xpose.msra.mxu0 0.0
    %1520 = vmatprep.subr.mxu0 0.0
    %1521 = vmatpush1.xpose.msra.mxu0 0.0
    %1522 = vmatprep.subr.mxu0 0.0
    %1523 = vmatpush1.xpose.msra.mxu0 0.0
    %1524 = vmatprep.subr.mxu0 0.0
    %1525 = vmatpush1.xpose.msra.mxu0 0.0
    %1526 = vmatprep.subr.mxu0 0.0
    %1527 = vmatpush1.xpose.msra.mxu0 0.0
    %1528 = vmatprep.subr.mxu0 0.0
    %1529 = vmatpush1.xpose.msra.mxu0 0.0
    %1530 = vmatprep.subr.mxu0 0.0
    %1531 = vmatpush1.xpose.msra.mxu0 0.0
    %1532 = vmatprep.subr.mxu0 0.0
    %1533 = vmatpush1.xpose.msra.mxu0 0.0
    %1534 = vmatprep.subr.mxu0 0.0
    %1535 = vmatpush1.xpose.msra.mxu0 0.0
    %1536 = vmatprep.subr.mxu0 0.0
    %1537 = vmatpush1.xpose.msra.mxu0 0.0
    %1538 = vmatprep.subr.mxu0 0.0
    %1539 = vmatpush1.xpose.msra.mxu0 0.0
    %1540 = vmatprep.subr.mxu0 0.0
    %1541 = vmatpush1.xpose.msra.mxu0 0.0
    %1542 = vmatprep.subr.mxu0 0.0
    %1543 = vmatpush1.xpose.msra.mxu0 0.0
    %1544 = vmatprep.subr.mxu0 0.0
    %1545 = vmatpush1.xpose.msra.mxu0 0.0
    %1546 = vmatprep.subr.mxu0 0.0
    %1547 = vmatpush1.xpose.msra.mxu0 0.0
    %1548 = vmatprep.subr.mxu0 0.0
    %1549 = vmatpush1.xpose.msra.mxu0 0.0
    %1550 = vmatprep.subr.mxu0 0.0
    %1551 = vmatpush1.xpose.msra.mxu0 0.0
    %1552 = vmatprep.subr.mxu0 0.0
    %1553 = vmatpush1.xpose.msra.mxu0 0.0
    %1554 = vmatprep.subr.mxu0 0.0
    %1555 = vmatpush1.xpose.msra.mxu0 0.0
    %1556 = vmatprep.subr.mxu0 0.0
    %1557 = vmatpush1.xpose.msra.mxu0 0.0
    %1558 = vmatprep.mubr.f32.mxu0 0.0
    %1559 = vmatmul.mubr.f32.gmra.mrb[0].mxu0 %v1482
    %v1560 = vpop.f32.mrb[0].mxu0
    %v1561 = vadd.f32 0.0, %v1560
    %v1562 = vpop.f32.mrb[0].mxu0
    %1563 = vmatprep.mubr.f32.mxu0 0.0
    %1564 = vmatmul.mubr.f32.gmra.mrb[0].mxu0 %v1484
    %v1565 = vpop.f32.mrb[0].mxu0
    %v1566 = vadd.f32 0.0, %v1565
    %v1567 = vpop.f32.mrb[0].mxu0
    %1568 = vmatprep.mubr.f32.mxu0 0.0
    %1569 = vmatmul.mubr.f32.gmra.mrb[0].mxu0 %v1486
    %v1570 = vpop.f32.mrb[0].mxu0
    %v1571 = vadd.f32 0.0, %v1570
    %v1572 = vpop.f32.mrb[0].mxu0
    %1573 = vdwg.mxu0
    %v1574 = vmul.f32 %v1561, 0.35355338
    %v1575 = vmul.f32 %v1566, 0.35355338
    %v1576 = vmul.f32 %v1571, 0.35355338
    %v1577 = vsel %vm545, %v1574, -inf
    %1578 = vmax.xlane.f32.xlu0 %v1577
    %v1579 = vpop.xlane.xlu0 %1578
    %v1580 = vsel %vm545, %v1575, -inf
    %1581 = vmax.xlane.f32.xlu0 %v1580
    %v1582 = vpop.xlane.xlu0 %1581
    %v1583 = vsel %vm552, %v1576, -inf
    %1584 = vmax.xlane.f32.xlu0 %v1583
    %v1585 = vpop.xlane.xlu0 %1584
    %v1586 = vsub.f32 %v1574, %v1579
    %v1587 = vsub.f32 %v1575, %v1582
    %v1588 = vsub.f32 %v1576, %v1585
    %v1589 = vmul.f32 %v1586, 1.442695
    %v1590 = vpow.pop %v1589
    %v1591 = vmul.f32 %v1587, 1.442695
    %v1592 = vpow.pop %v1591
    %v1593 = vmul.f32 %v1588, 1.442695
    %v1594 = vpow.pop %v1593
    %v1595 = vsel %vm545, %v1590, 0.0
    %1596 = vadd.xlane.f32.xlu0 %v1595
    %v1597 = vpop.xlane.xlu0 %1596
    %v1598 = vsel %vm545, %v1592, 0.0
    %1599 = vadd.xlane.f32.xlu0 %v1598
    %v1600 = vpop.xlane.xlu0 %1599
    %v1601 = vsel %vm552, %v1594, 0.0
    %1602 = vadd.xlane.f32.xlu0 %v1601
    %v1603 = vpop.xlane.xlu0 %1602
    %v1604 = vrcp.pop %v1597
    %v1605 = vrcp.pop %v1600
    %v1606 = vrcp.pop %v1603
    %v1607 = vmul.f32 %v1590, %v1604
    %v1608 = vmul.f32 %v1592, %v1605
    %v1609 = vmul.f32 %v1594, %v1606
    %1610 = vrot.lane.b32.xlu0 %v1470, 64
    %v1611 = vpop.permute.xlu0 %1610
    %1612 = vrot.lane.b32.xlu0 %v1471, 64
    %v1613 = vpop.permute.xlu0 %1612
    %1614 = vrot.lane.b32.xlu0 %v1472, 64
    %v1615 = vpop.permute.xlu0 %1614
    %v1619 = vsel %vm545, %v1607, 0
    %v1622 = vsel %vm545, %v1608, 0
    %v1625 = vsel %vm545, %v1609, 0
    %v1627 = vsel %vm597, %v1615, 0
    %1629 = vmatprep.subr.mxu0 0.0
    %1630 = vmatpush1.msra.mxu0 %v1611
    %1631 = vmatprep.subr.mxu0 0.0
    %1632 = vmatpush1.msra.mxu0 %v1613
    %1633 = vmatprep.subr.mxu0 0.0
    %1634 = vmatpush1.msra.mxu0 %v1627
    %1635 = vmatprep.subr.mxu0 0.0
    %1636 = vmatpush1.msra.mxu0 0.0
    %1637 = vmatprep.subr.mxu0 0.0
    %1638 = vmatpush1.msra.mxu0 0.0
    %1639 = vmatprep.subr.mxu0 0.0
    %1640 = vmatpush1.msra.mxu0 0.0
    %1641 = vmatprep.subr.mxu0 0.0
    %1642 = vmatpush1.msra.mxu0 0.0
    %1643 = vmatprep.subr.mxu0 0.0
    %1644 = vmatpush1.msra.mxu0 0.0
    %1645 = vmatprep.subr.mxu0 0.0
    %1646 = vmatpush1.msra.mxu0 0.0
    %1647 = vmatprep.subr.mxu0 0.0
    %1648 = vmatpush1.msra.mxu0 0.0
    %1649 = vmatprep.subr.mxu0 0.0
    %1650 = vmatpush1.msra.mxu0 0.0
    %1651 = vmatprep.subr.mxu0 0.0
    %1652 = vmatpush1.msra.mxu0 0.0
    %1653 = vmatprep.subr.mxu0 0.0
    %1654 = vmatpush1.msra.mxu0 0.0
    %1655 = vmatprep.subr.mxu0 0.0
    %1656 = vmatpush1.msra.mxu0 0.0
    %1657 = vmatprep.subr.mxu0 0.0
    %1658 = vmatpush1.msra.mxu0 0.0
    %1659 = vmatprep.subr.mxu0 0.0
    %1660 = vmatpush1.msra.mxu0 0.0
    %1661 = vmatprep.subr.mxu0 0.0
    %1662 = vmatpush1.msra.mxu0 0.0
    %1663 = vmatprep.subr.mxu0 0.0
    %1664 = vmatpush1.msra.mxu0 0.0
    %1665 = vmatprep.subr.mxu0 0.0
    %1666 = vmatpush1.msra.mxu0 0.0
    %1667 = vmatprep.subr.mxu0 0.0
    %1668 = vmatpush1.msra.mxu0 0.0
    %1669 = vmatprep.subr.mxu0 0.0
    %1670 = vmatpush1.msra.mxu0 0.0
    %1671 = vmatprep.subr.mxu0 0.0
    %1672 = vmatpush1.msra.mxu0 0.0
    %1673 = vmatprep.subr.mxu0 0.0
    %1674 = vmatpush1.msra.mxu0 0.0
    %1675 = vmatprep.subr.mxu0 0.0
    %1676 = vmatpush1.msra.mxu0 0.0
    %1677 = vmatprep.subr.mxu0 0.0
    %1678 = vmatpush1.msra.mxu0 0.0
    %1679 = vmatprep.subr.mxu0 0.0
    %1680 = vmatpush1.msra.mxu0 0.0
    %1681 = vmatprep.subr.mxu0 0.0
    %1682 = vmatpush1.msra.mxu0 0.0
    %1683 = vmatprep.subr.mxu0 0.0
    %1684 = vmatpush1.msra.mxu0 0.0
    %1685 = vmatprep.subr.mxu0 0.0
    %1686 = vmatpush1.msra.mxu0 0.0
    %1687 = vmatprep.subr.mxu0 0.0
    %1688 = vmatpush1.msra.mxu0 0.0
    %1689 = vmatprep.subr.mxu0 0.0
    %1690 = vmatpush1.msra.mxu0 0.0
    %1691 = vmatprep.subr.mxu0 0.0
    %1692 = vmatpush1.msra.mxu0 0.0
    %1693 = vmatprep.mubr.f32.mxu0 0.0
    %1694 = vmatmul.mubr.f32.gmra.mrb[0].mxu0 %v1619
    %v1695 = vpop.f32.mrb[0].mxu0
    %v1696 = vadd.f32 0.0, %v1695
    %v1697 = vpop.f32.mrb[0].mxu0
    %1698 = vmatprep.mubr.f32.mxu0 0.0
    %1699 = vmatmul.mubr.f32.gmra.mrb[0].mxu0 %v1622
    %v1700 = vpop.f32.mrb[0].mxu0
    %v1701 = vadd.f32 0.0, %v1700
    %v1702 = vpop.f32.mrb[0].mxu0
    %1703 = vmatprep.mubr.f32.mxu0 0.0
    %1704 = vmatmul.mubr.f32.gmra.mrb[0].mxu0 %v1625
    %v1705 = vpop.f32.mrb[0].mxu0
    %v1706 = vadd.f32 0.0, %v1705
    %v1707 = vpop.f32.mrb[0].mxu0
    %1708 = vdwg.mxu0
    %1709 = vst.msk [vmem:[#allocation4 + $0x11] sm:$0xff] %vm449, %v1696
    %1710 = vst.msk [vmem:[#allocation4 + $0x19] sm:$0xff] %vm449, %v1701
    %1711 = vst.msk [vmem:[#allocation4 + $0x21] sm:$0x1] %vm682, %v1706
    %v1712 = vld [vmem:[#allocation3 + $0x11] sm:$0xff]
    %v1713 = vld [vmem:[#allocation3 + $0x19] sm:$0xff]
    %v1714 = vld [vmem:[#allocation3 + $0x21] sm:$0x1]
    %1718 = vrot.lane.b32.xlu0 %v1712, 120
    %v1719 = vpop.permute.xlu0 %1718
    %1720 = vrot.lane.b32.xlu0 %v1713, 120
    %v1721 = vpop.permute.xlu0 %1720
    %1722 = vrot.lane.b32.xlu0 %v1714, 120
    %v1723 = vpop.permute.xlu0 %1722
    %1724 = vrot.lane.b32.xlu0 %v1712, 88
    %v1725 = vpop.permute.xlu0 %1724
    %1726 = vrot.lane.b32.xlu0 %v1713, 88
    %v1727 = vpop.permute.xlu0 %1726
    %1728 = vrot.lane.b32.xlu0 %v1714, 88
    %v1729 = vpop.permute.xlu0 %1728
    %v1730 = vsel %vm449, %v1719, 0
    %v1732 = vsel %vm449, %v1721, 0
    %v1734 = vsel %vm449, %v1723, 0
    %v1736 = vsel %vm449, %v1725, 0
    %v1738 = vsel %vm449, %v1727, 0
    %v1740 = vsel %vm449, %v1729, 0
    %1742 = vmatprep.subr.mxu0 0.0
    %1743 = vmatpush1.xpose.msra.mxu0 %v1736
    %1744 = vmatprep.subr.mxu0 0.0
    %1745 = vmatpush1.xpose.msra.mxu0 %v1738
    %1746 = vmatprep.subr.mxu0 0.0
    %1747 = vmatpush1.xpose.msra.mxu0 %v1740
    %1748 = vmatprep.subr.mxu0 0.0
    %1749 = vmatpush1.xpose.msra.mxu0 0.0
    %1750 = vmatprep.subr.mxu0 0.0
    %1751 = vmatpush1.xpose.msra.mxu0 0.0
    %1752 = vmatprep.subr.mxu0 0.0
    %1753 = vmatpush1.xpose.msra.mxu0 0.0
    %1754 = vmatprep.subr.mxu0 0.0
    %1755 = vmatpush1.xpose.msra.mxu0 0.0
    %1756 = vmatprep.subr.mxu0 0.0
    %1757 = vmatpush1.xpose.msra.mxu0 0.0
    %1758 = vmatprep.subr.mxu0 0.0
    %1759 = vmatpush1.xpose.msra.mxu0 0.0
    %1760 = vmatprep.subr.mxu0 0.0
    %1761 = vmatpush1.xpose.msra.mxu0 0.0
    %1762 = vmatprep.subr.mxu0 0.0
    %1763 = vmatpush1.xpose.msra.mxu0 0.0
    %1764 = vmatprep.subr.mxu0 0.0
    %1765 = vmatpush1.xpose.msra.mxu0 0.0
    %1766 = vmatprep.subr.mxu0 0.0
    %1767 = vmatpush1.xpose.msra.mxu0 0.0
    %1768 = vmatprep.subr.mxu0 0.0
    %1769 = vmatpush1.xpose.msra.mxu0 0.0
    %1770 = vmatprep.subr.mxu0 0.0
    %1771 = vmatpush1.xpose.msra.mxu0 0.0
    %1772 = vmatprep.subr.mxu0 0.0
    %1773 = vmatpush1.xpose.msra.mxu0 0.0
    %1774 = vmatprep.subr.mxu0 0.0
    %1775 = vmatpush1.xpose.msra.mxu0 0.0
    %1776 = vmatprep.subr.mxu0 0.0
    %1777 = vmatpush1.xpose.msra.mxu0 0.0
    %1778 = vmatprep.subr.mxu0 0.0
    %1779 = vmatpush1.xpose.msra.mxu0 0.0
    %1780 = vmatprep.subr.mxu0 0.0
    %1781 = vmatpush1.xpose.msra.mxu0 0.0
    %1782 = vmatprep.subr.mxu0 0.0
    %1783 = vmatpush1.xpose.msra.mxu0 0.0
    %1784 = vmatprep.subr.mxu0 0.0
    %1785 = vmatpush1.xpose.msra.mxu0 0.0
    %1786 = vmatprep.subr.mxu0 0.0
    %1787 = vmatpush1.xpose.msra.mxu0 0.0
    %1788 = vmatprep.subr.mxu0 0.0
    %1789 = vmatpush1.xpose.msra.mxu0 0.0
    %1790 = vmatprep.subr.mxu0 0.0
    %1791 = vmatpush1.xpose.msra.mxu0 0.0
    %1792 = vmatprep.subr.mxu0 0.0
    %1793 = vmatpush1.xpose.msra.mxu0 0.0
    %1794 = vmatprep.subr.mxu0 0.0
    %1795 = vmatpush1.xpose.msra.mxu0 0.0
    %1796 = vmatprep.subr.mxu0 0.0
    %1797 = vmatpush1.xpose.msra.mxu0 0.0
    %1798 = vmatprep.subr.mxu0 0.0
    %1799 = vmatpush1.xpose.msra.mxu0 0.0
    %1800 = vmatprep.subr.mxu0 0.0
    %1801 = vmatpush1.xpose.msra.mxu0 0.0
    %1802 = vmatprep.subr.mxu0 0.0
    %1803 = vmatpush1.xpose.msra.mxu0 0.0
    %1804 = vmatprep.subr.mxu0 0.0
    %1805 = vmatpush1.xpose.msra.mxu0 0.0
    %1806 = vmatprep.mubr.f32.mxu0 0.0
    %1807 = vmatmul.mubr.f32.gmra.mrb[0].mxu0 %v1730
    %v1808 = vpop.f32.mrb[0].mxu0
    %v1809 = vadd.f32 0.0, %v1808
    %v1810 = vpop.f32.mrb[0].mxu0
    %1811 = vmatprep.mubr.f32.mxu0 0.0
    %1812 = vmatmul.mubr.f32.gmra.mrb[0].mxu0 %v1732
    %v1813 = vpop.f32.mrb[0].mxu0
    %v1814 = vadd.f32 0.0, %v1813
    %v1815 = vpop.f32.mrb[0].mxu0
    %1816 = vmatprep.mubr.f32.mxu0 0.0
    %1817 = vmatmul.mubr.f32.gmra.mrb[0].mxu0 %v1734
    %v1818 = vpop.f32.mrb[0].mxu0
    %v1819 = vadd.f32 0.0, %v1818
    %v1820 = vpop.f32.mrb[0].mxu0
    %1821 = vdwg.mxu0
    %v1822 = vmul.f32 %v1809, 0.35355338
    %v1823 = vmul.f32 %v1814, 0.35355338
    %v1824 = vmul.f32 %v1819, 0.35355338
    %v1825 = vsel %vm545, %v1822, -inf
    %1826 = vmax.xlane.f32.xlu0 %v1825
    %v1827 = vpop.xlane.xlu0 %1826
    %v1828 = vsel %vm545, %v1823, -inf
    %1829 = vmax.xlane.f32.xlu0 %v1828
    %v1830 = vpop.xlane.xlu0 %1829
    %v1831 = vsel %vm552, %v1824, -inf
    %1832 = vmax.xlane.f32.xlu0 %v1831
    %v1833 = vpop.xlane.xlu0 %1832
    %v1834 = vsub.f32 %v1822, %v1827
    %v1835 = vsub.f32 %v1823, %v1830
    %v1836 = vsub.f32 %v1824, %v1833
    %v1837 = vmul.f32 %v1834, 1.442695
    %v1838 = vpow.pop %v1837
    %v1839 = vmul.f32 %v1835, 1.442695
    %v1840 = vpow.pop %v1839
    %v1841 = vmul.f32 %v1836, 1.442695
    %v1842 = vpow.pop %v1841
    %v1843 = vsel %vm545, %v1838, 0.0
    %1844 = vadd.xlane.f32.xlu0 %v1843
    %v1845 = vpop.xlane.xlu0 %1844
    %v1846 = vsel %vm545, %v1840, 0.0
    %1847 = vadd.xlane.f32.xlu0 %v1846
    %v1848 = vpop.xlane.xlu0 %1847
    %v1849 = vsel %vm552, %v1842, 0.0
    %1850 = vadd.xlane.f32.xlu0 %v1849
    %v1851 = vpop.xlane.xlu0 %1850
    %v1852 = vrcp.pop %v1845
    %v1853 = vrcp.pop %v1848
    %v1854 = vrcp.pop %v1851
    %v1855 = vmul.f32 %v1838, %v1852
    %v1856 = vmul.f32 %v1840, %v1853
    %v1857 = vmul.f32 %v1842, %v1854
    %1858 = vrot.lane.b32.xlu0 %v1712, 56
    %v1859 = vpop.permute.xlu0 %1858
    %1860 = vrot.lane.b32.xlu0 %v1713, 56
    %v1861 = vpop.permute.xlu0 %1860
    %1862 = vrot.lane.b32.xlu0 %v1714, 56
    %v1863 = vpop.permute.xlu0 %1862
    %v1867 = vsel %vm545, %v1855, 0
    %v1870 = vsel %vm545, %v1856, 0
    %v1873 = vsel %vm545, %v1857, 0
    %v1875 = vsel %vm597, %v1863, 0
    %1877 = vmatprep.subr.mxu0 0.0
    %1878 = vmatpush1.msra.mxu0 %v1859
    %1879 = vmatprep.subr.mxu0 0.0
    %1880 = vmatpush1.msra.mxu0 %v1861
    %1881 = vmatprep.subr.mxu0 0.0
    %1882 = vmatpush1.msra.mxu0 %v1875
    %1883 = vmatprep.subr.mxu0 0.0
    %1884 = vmatpush1.msra.mxu0 0.0
    %1885 = vmatprep.subr.mxu0 0.0
    %1886 = vmatpush1.msra.mxu0 0.0
    %1887 = vmatprep.subr.mxu0 0.0
    %1888 = vmatpush1.msra.mxu0 0.0
    %1889 = vmatprep.subr.mxu0 0.0
    %1890 = vmatpush1.msra.mxu0 0.0
    %1891 = vmatprep.subr.mxu0 0.0
    %1892 = vmatpush1.msra.mxu0 0.0
    %1893 = vmatprep.subr.mxu0 0.0
    %1894 = vmatpush1.msra.mxu0 0.0
    %1895 = vmatprep.subr.mxu0 0.0
    %1896 = vmatpush1.msra.mxu0 0.0
    %1897 = vmatprep.subr.mxu0 0.0
    %1898 = vmatpush1.msra.mxu0 0.0
    %1899 = vmatprep.subr.mxu0 0.0
    %1900 = vmatpush1.msra.mxu0 0.0
    %1901 = vmatprep.subr.mxu0 0.0
    %1902 = vmatpush1.msra.mxu0 0.0
    %1903 = vmatprep.subr.mxu0 0.0
    %1904 = vmatpush1.msra.mxu0 0.0
    %1905 = vmatprep.subr.mxu0 0.0
    %1906 = vmatpush1.msra.mxu0 0.0
    %1907 = vmatprep.subr.mxu0 0.0
    %1908 = vmatpush1.msra.mxu0 0.0
    %1909 = vmatprep.subr.mxu0 0.0
    %1910 = vmatpush1.msra.mxu0 0.0
    %1911 = vmatprep.subr.mxu0 0.0
    %1912 = vmatpush1.msra.mxu0 0.0
    %1913 = vmatprep.subr.mxu0 0.0
    %1914 = vmatpush1.msra.mxu0 0.0
    %1915 = vmatprep.subr.mxu0 0.0
    %1916 = vmatpush1.msra.mxu0 0.0
    %1917 = vmatprep.subr.mxu0 0.0
    %1918 = vmatpush1.msra.mxu0 0.0
    %1919 = vmatprep.subr.mxu0 0.0
    %1920 = vmatpush1.msra.mxu0 0.0
    %1921 = vmatprep.subr.mxu0 0.0
    %1922 = vmatpush1.msra.mxu0 0.0
    %1923 = vmatprep.subr.mxu0 0.0
    %1924 = vmatpush1.msra.mxu0 0.0
    %1925 = vmatprep.subr.mxu0 0.0
    %1926 = vmatpush1.msra.mxu0 0.0
    %1927 = vmatprep.subr.mxu0 0.0
    %1928 = vmatpush1.msra.mxu0 0.0
    %1929 = vmatprep.subr.mxu0 0.0
    %1930 = vmatpush1.msra.mxu0 0.0
    %1931 = vmatprep.subr.mxu0 0.0
    %1932 = vmatpush1.msra.mxu0 0.0
    %1933 = vmatprep.subr.mxu0 0.0
    %1934 = vmatpush1.msra.mxu0 0.0
    %1935 = vmatprep.subr.mxu0 0.0
    %1936 = vmatpush1.msra.mxu0 0.0
    %1937 = vmatprep.subr.mxu0 0.0
    %1938 = vmatpush1.msra.mxu0 0.0
    %1939 = vmatprep.subr.mxu0 0.0
    %1940 = vmatpush1.msra.mxu0 0.0
    %1941 = vmatprep.mubr.f32.mxu0 0.0
    %1942 = vmatmul.mubr.f32.gmra.mrb[0].mxu0 %v1867
    %v1943 = vpop.f32.mrb[0].mxu0
    %v1944 = vadd.f32 0.0, %v1943
    %v1945 = vpop.f32.mrb[0].mxu0
    %1946 = vmatprep.mubr.f32.mxu0 0.0
    %1947 = vmatmul.mubr.f32.gmra.mrb[0].mxu0 %v1870
    %v1948 = vpop.f32.mrb[0].mxu0
    %v1949 = vadd.f32 0.0, %v1948
    %v1950 = vpop.f32.mrb[0].mxu0
    %1951 = vmatprep.mubr.f32.mxu0 0.0
    %1952 = vmatmul.mubr.f32.gmra.mrb[0].mxu0 %v1873
    %v1953 = vpop.f32.mrb[0].mxu0
    %v1954 = vadd.f32 0.0, %v1953
    %v1955 = vpop.f32.mrb[0].mxu0
    %1956 = vdwg.mxu0
    %1960 = vrot.lane.b32.xlu0 %v1944, 8
    %v1961 = vpop.permute.xlu0 %1960
    %1962 = vrot.lane.b32.xlu0 %v1949, 8
    %v1963 = vpop.permute.xlu0 %1962
    %1964 = vrot.lane.b32.xlu0 %v1954, 8
    %v1965 = vpop.permute.xlu0 %1964
    %1969 = vst.msk [vmem:[#allocation4 + $0x11] sm:$0xff] %vm941, %v1961
    %1970 = vst.msk [vmem:[#allocation4 + $0x19] sm:$0xff] %vm941, %v1963
    %1971 = vst.msk [vmem:[#allocation4 + $0x21] sm:$0x1] %vm944, %v1965
    %v1972 = vld [vmem:[#allocation3 + $0x11] sm:$0xff]
    %v1973 = vld [vmem:[#allocation3 + $0x19] sm:$0xff]
    %v1974 = vld [vmem:[#allocation3 + $0x21] sm:$0x1]
    %1978 = vrot.lane.b32.xlu0 %v1972, 112
    %v1979 = vpop.permute.xlu0 %1978
    %1980 = vrot.lane.b32.xlu0 %v1973, 112
    %v1981 = vpop.permute.xlu0 %1980
    %1982 = vrot.lane.b32.xlu0 %v1974, 112
    %v1983 = vpop.permute.xlu0 %1982
    %1984 = vrot.lane.b32.xlu0 %v1972, 80
    %v1985 = vpop.permute.xlu0 %1984
    %1986 = vrot.lane.b32.xlu0 %v1973, 80
    %v1987 = vpop.permute.xlu0 %1986
    %1988 = vrot.lane.b32.xlu0 %v1974, 80
    %v1989 = vpop.permute.xlu0 %1988
    %v1990 = vsel %vm449, %v1979, 0
    %v1992 = vsel %vm449, %v1981, 0
    %v1994 = vsel %vm449, %v1983, 0
    %v1996 = vsel %vm449, %v1985, 0
    %v1998 = vsel %vm449, %v1987, 0
    %v2000 = vsel %vm449, %v1989, 0
    %2002 = vmatprep.subr.mxu0 0.0
    %2003 = vmatpush1.xpose.msra.mxu0 %v1996
    %2004 = vmatprep.subr.mxu0 0.0
    %2005 = vmatpush1.xpose.msra.mxu0 %v1998
    %2006 = vmatprep.subr.mxu0 0.0
    %2007 = vmatpush1.xpose.msra.mxu0 %v2000
    %2008 = vmatprep.subr.mxu0 0.0
    %2009 = vmatpush1.xpose.msra.mxu0 0.0
    %2010 = vmatprep.subr.mxu0 0.0
    %2011 = vmatpush1.xpose.msra.mxu0 0.0
    %2012 = vmatprep.subr.mxu0 0.0
    %2013 = vmatpush1.xpose.msra.mxu0 0.0
    %2014 = vmatprep.subr.mxu0 0.0
    %2015 = vmatpush1.xpose.msra.mxu0 0.0
    %2016 = vmatprep.subr.mxu0 0.0
    %2017 = vmatpush1.xpose.msra.mxu0 0.0
    %2018 = vmatprep.subr.mxu0 0.0
    %2019 = vmatpush1.xpose.msra.mxu0 0.0
    %2020 = vmatprep.subr.mxu0 0.0
    %2021 = vmatpush1.xpose.msra.mxu0 0.0
    %2022 = vmatprep.subr.mxu0 0.0
    %2023 = vmatpush1.xpose.msra.mxu0 0.0
    %2024 = vmatprep.subr.mxu0 0.0
    %2025 = vmatpush1.xpose.msra.mxu0 0.0
    %2026 = vmatprep.subr.mxu0 0.0
    %2027 = vmatpush1.xpose.msra.mxu0 0.0
    %2028 = vmatprep.subr.mxu0 0.0
    %2029 = vmatpush1.xpose.msra.mxu0 0.0
    %2030 = vmatprep.subr.mxu0 0.0
    %2031 = vmatpush1.xpose.msra.mxu0 0.0
    %2032 = vmatprep.subr.mxu0 0.0
    %2033 = vmatpush1.xpose.msra.mxu0 0.0
    %2034 = vmatprep.subr.mxu0 0.0
    %2035 = vmatpush1.xpose.msra.mxu0 0.0
    %2036 = vmatprep.subr.mxu0 0.0
    %2037 = vmatpush1.xpose.msra.mxu0 0.0
    %2038 = vmatprep.subr.mxu0 0.0
    %2039 = vmatpush1.xpose.msra.mxu0 0.0
    %2040 = vmatprep.subr.mxu0 0.0
    %2041 = vmatpush1.xpose.msra.mxu0 0.0
    %2042 = vmatprep.subr.mxu0 0.0
    %2043 = vmatpush1.xpose.msra.mxu0 0.0
    %2044 = vmatprep.subr.mxu0 0.0
    %2045 = vmatpush1.xpose.msra.mxu0 0.0
    %2046 = vmatprep.subr.mxu0 0.0
    %2047 = vmatpush1.xpose.msra.mxu0 0.0
    %2048 = vmatprep.subr.mxu0 0.0
    %2049 = vmatpush1.xpose.msra.mxu0 0.0
    %2050 = vmatprep.subr.mxu0 0.0
    %2051 = vmatpush1.xpose.msra.mxu0 0.0
    %2052 = vmatprep.subr.mxu0 0.0
    %2053 = vmatpush1.xpose.msra.mxu0 0.0
    %2054 = vmatprep.subr.mxu0 0.0
    %2055 = vmatpush1.xpose.msra.mxu0 0.0
    %2056 = vmatprep.subr.mxu0 0.0
    %2057 = vmatpush1.xpose.msra.mxu0 0.0
    %2058 = vmatprep.subr.mxu0 0.0
    %2059 = vmatpush1.xpose.msra.mxu0 0.0
    %2060 = vmatprep.subr.mxu0 0.0
    %2061 = vmatpush1.xpose.msra.mxu0 0.0
    %2062 = vmatprep.subr.mxu0 0.0
    %2063 = vmatpush1.xpose.msra.mxu0 0.0
    %2064 = vmatprep.subr.mxu0 0.0
    %2065 = vmatpush1.xpose.msra.mxu0 0.0
    %2066 = vmatprep.mubr.f32.mxu0 0.0
    %2067 = vmatmul.mubr.f32.gmra.mrb[0].mxu0 %v1990
    %v2068 = vpop.f32.mrb[0].mxu0
    %v2069 = vadd.f32 0.0, %v2068
    %v2070 = vpop.f32.mrb[0].mxu0
    %2071 = vmatprep.mubr.f32.mxu0 0.0
    %2072 = vmatmul.mubr.f32.gmra.mrb[0].mxu0 %v1992
    %v2073 = vpop.f32.mrb[0].mxu0
    %v2074 = vadd.f32 0.0, %v2073
    %v2075 = vpop.f32.mrb[0].mxu0
    %2076 = vmatprep.mubr.f32.mxu0 0.0
    %2077 = vmatmul.mubr.f32.gmra.mrb[0].mxu0 %v1994
    %v2078 = vpop.f32.mrb[0].mxu0
    %v2079 = vadd.f32 0.0, %v2078
    %v2080 = vpop.f32.mrb[0].mxu0
    %2081 = vdwg.mxu0
    %v2082 = vmul.f32 %v2069, 0.35355338
    %v2083 = vmul.f32 %v2074, 0.35355338
    %v2084 = vmul.f32 %v2079, 0.35355338
    %v2085 = vsel %vm545, %v2082, -inf
    %2086 = vmax.xlane.f32.xlu0 %v2085
    %v2087 = vpop.xlane.xlu0 %2086
    %v2088 = vsel %vm545, %v2083, -inf
    %2089 = vmax.xlane.f32.xlu0 %v2088
    %v2090 = vpop.xlane.xlu0 %2089
    %v2091 = vsel %vm552, %v2084, -inf
    %2092 = vmax.xlane.f32.xlu0 %v2091
    %v2093 = vpop.xlane.xlu0 %2092
    %v2094 = vsub.f32 %v2082, %v2087
    %v2095 = vsub.f32 %v2083, %v2090
    %v2096 = vsub.f32 %v2084, %v2093
    %v2097 = vmul.f32 %v2094, 1.442695
    %v2098 = vpow.pop %v2097
    %v2099 = vmul.f32 %v2095, 1.442695
    %v2100 = vpow.pop %v2099
    %v2101 = vmul.f32 %v2096, 1.442695
    %v2102 = vpow.pop %v2101
    %v2103 = vsel %vm545, %v2098, 0.0
    %2104 = vadd.xlane.f32.xlu0 %v2103
    %v2105 = vpop.xlane.xlu0 %2104
    %v2106 = vsel %vm545, %v2100, 0.0
    %2107 = vadd.xlane.f32.xlu0 %v2106
    %v2108 = vpop.xlane.xlu0 %2107
    %v2109 = vsel %vm552, %v2102, 0.0
    %2110 = vadd.xlane.f32.xlu0 %v2109
    %v2111 = vpop.xlane.xlu0 %2110
    %v2112 = vrcp.pop %v2105
    %v2113 = vrcp.pop %v2108
    %v2114 = vrcp.pop %v2111
    %v2115 = vmul.f32 %v2098, %v2112
    %v2116 = vmul.f32 %v2100, %v2113
    %v2117 = vmul.f32 %v2102, %v2114
    %2118 = vrot.lane.b32.xlu0 %v1972, 48
    %v2119 = vpop.permute.xlu0 %2118
    %2120 = vrot.lane.b32.xlu0 %v1973, 48
    %v2121 = vpop.permute.xlu0 %2120
    %2122 = vrot.lane.b32.xlu0 %v1974, 48
    %v2123 = vpop.permute.xlu0 %2122
    %v2127 = vsel %vm545, %v2115, 0
    %v2130 = vsel %vm545, %v2116, 0
    %v2133 = vsel %vm545, %v2117, 0
    %v2135 = vsel %vm597, %v2123, 0
    %2137 = vmatprep.subr.mxu0 0.0
    %2138 = vmatpush1.msra.mxu0 %v2119
    %2139 = vmatprep.subr.mxu0 0.0
    %2140 = vmatpush1.msra.mxu0 %v2121
    %2141 = vmatprep.subr.mxu0 0.0
    %2142 = vmatpush1.msra.mxu0 %v2135
    %2143 = vmatprep.subr.mxu0 0.0
    %2144 = vmatpush1.msra.mxu0 0.0
    %2145 = vmatprep.subr.mxu0 0.0
    %2146 = vmatpush1.msra.mxu0 0.0
    %2147 = vmatprep.subr.mxu0 0.0
    %2148 = vmatpush1.msra.mxu0 0.0
    %2149 = vmatprep.subr.mxu0 0.0
    %2150 = vmatpush1.msra.mxu0 0.0
    %2151 = vmatprep.subr.mxu0 0.0
    %2152 = vmatpush1.msra.mxu0 0.0
    %2153 = vmatprep.subr.mxu0 0.0
    %2154 = vmatpush1.msra.mxu0 0.0
    %2155 = vmatprep.subr.mxu0 0.0
    %2156 = vmatpush1.msra.mxu0 0.0
    %2157 = vmatprep.subr.mxu0 0.0
    %2158 = vmatpush1.msra.mxu0 0.0
    %2159 = vmatprep.subr.mxu0 0.0
    %2160 = vmatpush1.msra.mxu0 0.0
    %2161 = vmatprep.subr.mxu0 0.0
    %2162 = vmatpush1.msra.mxu0 0.0
    %2163 = vmatprep.subr.mxu0 0.0
    %2164 = vmatpush1.msra.mxu0 0.0
    %2165 = vmatprep.subr.mxu0 0.0
    %2166 = vmatpush1.msra.mxu0 0.0
    %2167 = vmatprep.subr.mxu0 0.0
    %2168 = vmatpush1.msra.mxu0 0.0
    %2169 = vmatprep.subr.mxu0 0.0
    %2170 = vmatpush1.msra.mxu0 0.0
    %2171 = vmatprep.subr.mxu0 0.0
    %2172 = vmatpush1.msra.mxu0 0.0
    %2173 = vmatprep.subr.mxu0 0.0
    %2174 = vmatpush1.msra.mxu0 0.0
    %2175 = vmatprep.subr.mxu0 0.0
    %2176 = vmatpush1.msra.mxu0 0.0
    %2177 = vmatprep.subr.mxu0 0.0
    %2178 = vmatpush1.msra.mxu0 0.0
    %2179 = vmatprep.subr.mxu0 0.0
    %2180 = vmatpush1.msra.mxu0 0.0
    %2181 = vmatprep.subr.mxu0 0.0
    %2182 = vmatpush1.msra.mxu0 0.0
    %2183 = vmatprep.subr.mxu0 0.0
    %2184 = vmatpush1.msra.mxu0 0.0
    %2185 = vmatprep.subr.mxu0 0.0
    %2186 = vmatpush1.msra.mxu0 0.0
    %2187 = vmatprep.subr.mxu0 0.0
    %2188 = vmatpush1.msra.mxu0 0.0
    %2189 = vmatprep.subr.mxu0 0.0
    %2190 = vmatpush1.msra.mxu0 0.0
    %2191 = vmatprep.subr.mxu0 0.0
    %2192 = vmatpush1.msra.mxu0 0.0
    %2193 = vmatprep.subr.mxu0 0.0
    %2194 = vmatpush1.msra.mxu0 0.0
    %2195 = vmatprep.subr.mxu0 0.0
    %2196 = vmatpush1.msra.mxu0 0.0
    %2197 = vmatprep.subr.mxu0 0.0
    %2198 = vmatpush1.msra.mxu0 0.0
    %2199 = vmatprep.subr.mxu0 0.0
    %2200 = vmatpush1.msra.mxu0 0.0
    %2201 = vmatprep.mubr.f32.mxu0 0.0
    %2202 = vmatmul.mubr.f32.gmra.mrb[0].mxu0 %v2127
    %v2203 = vpop.f32.mrb[0].mxu0
    %v2204 = vadd.f32 0.0, %v2203
    %v2205 = vpop.f32.mrb[0].mxu0
    %2206 = vmatprep.mubr.f32.mxu0 0.0
    %2207 = vmatmul.mubr.f32.gmra.mrb[0].mxu0 %v2130
    %v2208 = vpop.f32.mrb[0].mxu0
    %v2209 = vadd.f32 0.0, %v2208
    %v2210 = vpop.f32.mrb[0].mxu0
    %2211 = vmatprep.mubr.f32.mxu0 0.0
    %2212 = vmatmul.mubr.f32.gmra.mrb[0].mxu0 %v2133
    %v2213 = vpop.f32.mrb[0].mxu0
    %v2214 = vadd.f32 0.0, %v2213
    %v2215 = vpop.f32.mrb[0].mxu0
    %2216 = vdwg.mxu0
    %2220 = vrot.lane.b32.xlu0 %v2204, 16
    %v2221 = vpop.permute.xlu0 %2220
    %2222 = vrot.lane.b32.xlu0 %v2209, 16
    %v2223 = vpop.permute.xlu0 %2222
    %2224 = vrot.lane.b32.xlu0 %v2214, 16
    %v2225 = vpop.permute.xlu0 %2224
    %2229 = vst.msk [vmem:[#allocation4 + $0x11] sm:$0xff] %vm1203, %v2221
    %2230 = vst.msk [vmem:[#allocation4 + $0x19] sm:$0xff] %vm1203, %v2223
    %2231 = vst.msk [vmem:[#allocation4 + $0x21] sm:$0x1] %vm1206, %v2225
    %v2232 = vld [vmem:[#allocation3 + $0x11] sm:$0xff]
    %v2233 = vld [vmem:[#allocation3 + $0x19] sm:$0xff]
    %v2234 = vld [vmem:[#allocation3 + $0x21] sm:$0x1]
    %2238 = vrot.lane.b32.xlu0 %v2232, 104
    %v2239 = vpop.permute.xlu0 %2238
    %2240 = vrot.lane.b32.xlu0 %v2233, 104
    %v2241 = vpop.permute.xlu0 %2240
    %2242 = vrot.lane.b32.xlu0 %v2234, 104
    %v2243 = vpop.permute.xlu0 %2242
    %2244 = vrot.lane.b32.xlu0 %v2232, 72
    %v2245 = vpop.permute.xlu0 %2244
    %2246 = vrot.lane.b32.xlu0 %v2233, 72
    %v2247 = vpop.permute.xlu0 %2246
    %2248 = vrot.lane.b32.xlu0 %v2234, 72
    %v2249 = vpop.permute.xlu0 %2248
    %v2250 = vsel %vm449, %v2239, 0
    %v2252 = vsel %vm449, %v2241, 0
    %v2254 = vsel %vm449, %v2243, 0
    %v2256 = vsel %vm449, %v2245, 0
    %v2258 = vsel %vm449, %v2247, 0
    %v2260 = vsel %vm449, %v2249, 0
    %2262 = vmatprep.subr.mxu0 0.0
    %2263 = vmatpush1.xpose.msra.mxu0 %v2256
    %2264 = vmatprep.subr.mxu0 0.0
    %2265 = vmatpush1.xpose.msra.mxu0 %v2258
    %2266 = vmatprep.subr.mxu0 0.0
    %2267 = vmatpush1.xpose.msra.mxu0 %v2260
    %2268 = vmatprep.subr.mxu0 0.0
    %2269 = vmatpush1.xpose.msra.mxu0 0.0
    %2270 = vmatprep.subr.mxu0 0.0
    %2271 = vmatpush1.xpose.msra.mxu0 0.0
    %2272 = vmatprep.subr.mxu0 0.0
    %2273 = vmatpush1.xpose.msra.mxu0 0.0
    %2274 = vmatprep.subr.mxu0 0.0
    %2275 = vmatpush1.xpose.msra.mxu0 0.0
    %2276 = vmatprep.subr.mxu0 0.0
    %2277 = vmatpush1.xpose.msra.mxu0 0.0
    %2278 = vmatprep.subr.mxu0 0.0
    %2279 = vmatpush1.xpose.msra.mxu0 0.0
    %2280 = vmatprep.subr.mxu0 0.0
    %2281 = vmatpush1.xpose.msra.mxu0 0.0
    %2282 = vmatprep.subr.mxu0 0.0
    %2283 = vmatpush1.xpose.msra.mxu0 0.0
    %2284 = vmatprep.subr.mxu0 0.0
    %2285 = vmatpush1.xpose.msra.mxu0 0.0
    %2286 = vmatprep.subr.mxu0 0.0
    %2287 = vmatpush1.xpose.msra.mxu0 0.0
    %2288 = vmatprep.subr.mxu0 0.0
    %2289 = vmatpush1.xpose.msra.mxu0 0.0
    %2290 = vmatprep.subr.mxu0 0.0
    %2291 = vmatpush1.xpose.msra.mxu0 0.0
    %2292 = vmatprep.subr.mxu0 0.0
    %2293 = vmatpush1.xpose.msra.mxu0 0.0
    %2294 = vmatprep.subr.mxu0 0.0
    %2295 = vmatpush1.xpose.msra.mxu0 0.0
    %2296 = vmatprep.subr.mxu0 0.0
    %2297 = vmatpush1.xpose.msra.mxu0 0.0
    %2298 = vmatprep.subr.mxu0 0.0
    %2299 = vmatpush1.xpose.msra.mxu0 0.0
    %2300 = vmatprep.subr.mxu0 0.0
    %2301 = vmatpush1.xpose.msra.mxu0 0.0
    %2302 = vmatprep.subr.mxu0 0.0
    %2303 = vmatpush1.xpose.msra.mxu0 0.0
    %2304 = vmatprep.subr.mxu0 0.0
    %2305 = vmatpush1.xpose.msra.mxu0 0.0
    %2306 = vmatprep.subr.mxu0 0.0
    %2307 = vmatpush1.xpose.msra.mxu0 0.0
    %2308 = vmatprep.subr.mxu0 0.0
    %2309 = vmatpush1.xpose.msra.mxu0 0.0
    %2310 = vmatprep.subr.mxu0 0.0
    %2311 = vmatpush1.xpose.msra.mxu0 0.0
    %2312 = vmatprep.subr.mxu0 0.0
    %2313 = vmatpush1.xpose.msra.mxu0 0.0
    %2314 = vmatprep.subr.mxu0 0.0
    %2315 = vmatpush1.xpose.msra.mxu0 0.0
    %2316 = vmatprep.subr.mxu0 0.0
    %2317 = vmatpush1.xpose.msra.mxu0 0.0
    %2318 = vmatprep.subr.mxu0 0.0
    %2319 = vmatpush1.xpose.msra.mxu0 0.0
    %2320 = vmatprep.subr.mxu0 0.0
    %2321 = vmatpush1.xpose.msra.mxu0 0.0
    %2322 = vmatprep.subr.mxu0 0.0
    %2323 = vmatpush1.xpose.msra.mxu0 0.0
    %2324 = vmatprep.subr.mxu0 0.0
    %2325 = vmatpush1.xpose.msra.mxu0 0.0
    %2326 = vmatprep.mubr.f32.mxu0 0.0
    %2327 = vmatmul.mubr.f32.gmra.mrb[0].mxu0 %v2250
    %v2328 = vpop.f32.mrb[0].mxu0
    %v2329 = vadd.f32 0.0, %v2328
    %v2330 = vpop.f32.mrb[0].mxu0
    %2331 = vmatprep.mubr.f32.mxu0 0.0
    %2332 = vmatmul.mubr.f32.gmra.mrb[0].mxu0 %v2252
    %v2333 = vpop.f32.mrb[0].mxu0
    %v2334 = vadd.f32 0.0, %v2333
    %v2335 = vpop.f32.mrb[0].mxu0
    %2336 = vmatprep.mubr.f32.mxu0 0.0
    %2337 = vmatmul.mubr.f32.gmra.mrb[0].mxu0 %v2254
    %v2338 = vpop.f32.mrb[0].mxu0
    %v2339 = vadd.f32 0.0, %v2338
    %v2340 = vpop.f32.mrb[0].mxu0
    %2341 = vdwg.mxu0
    %v2342 = vmul.f32 %v2329, 0.35355338
    %v2343 = vmul.f32 %v2334, 0.35355338
    %v2344 = vmul.f32 %v2339, 0.35355338
    %v2345 = vsel %vm545, %v2342, -inf
    %2346 = vmax.xlane.f32.xlu0 %v2345
    %v2347 = vpop.xlane.xlu0 %2346
    %v2348 = vsel %vm545, %v2343, -inf
    %2349 = vmax.xlane.f32.xlu0 %v2348
    %v2350 = vpop.xlane.xlu0 %2349
    %v2351 = vsel %vm552, %v2344, -inf
    %2352 = vmax.xlane.f32.xlu0 %v2351
    %v2353 = vpop.xlane.xlu0 %2352
    %v2354 = vsub.f32 %v2342, %v2347
    %v2355 = vsub.f32 %v2343, %v2350
    %v2356 = vsub.f32 %v2344, %v2353
    %v2357 = vmul.f32 %v2354, 1.442695
    %v2358 = vpow.pop %v2357
    %v2359 = vmul.f32 %v2355, 1.442695
    %v2360 = vpow.pop %v2359
    %v2361 = vmul.f32 %v2356, 1.442695
    %v2362 = vpow.pop %v2361
    %v2363 = vsel %vm545, %v2358, 0.0
    %2364 = vadd.xlane.f32.xlu0 %v2363
    %v2365 = vpop.xlane.xlu0 %2364
    %v2366 = vsel %vm545, %v2360, 0.0
    %2367 = vadd.xlane.f32.xlu0 %v2366
    %v2368 = vpop.xlane.xlu0 %2367
    %v2369 = vsel %vm552, %v2362, 0.0
    %2370 = vadd.xlane.f32.xlu0 %v2369
    %v2371 = vpop.xlane.xlu0 %2370
    %v2372 = vrcp.pop %v2365
    %v2373 = vrcp.pop %v2368
    %v2374 = vrcp.pop %v2371
    %v2375 = vmul.f32 %v2358, %v2372
    %v2376 = vmul.f32 %v2360, %v2373
    %v2377 = vmul.f32 %v2362, %v2374
    %2378 = vrot.lane.b32.xlu0 %v2232, 40
    %v2379 = vpop.permute.xlu0 %2378
    %2380 = vrot.lane.b32.xlu0 %v2233, 40
    %v2381 = vpop.permute.xlu0 %2380
    %2382 = vrot.lane.b32.xlu0 %v2234, 40
    %v2383 = vpop.permute.xlu0 %2382
    %v2387 = vsel %vm545, %v2375, 0
    %v2390 = vsel %vm545, %v2376, 0
    %v2393 = vsel %vm545, %v2377, 0
    %v2395 = vsel %vm597, %v2383, 0
    %2397 = vmatprep.subr.mxu0 0.0
    %2398 = vmatpush1.msra.mxu0 %v2379
    %2399 = vmatprep.subr.mxu0 0.0
    %2400 = vmatpush1.msra.mxu0 %v2381
    %2401 = vmatprep.subr.mxu0 0.0
    %2402 = vmatpush1.msra.mxu0 %v2395
    %2403 = vmatprep.subr.mxu0 0.0
    %2404 = vmatpush1.msra.mxu0 0.0
    %2405 = vmatprep.subr.mxu0 0.0
    %2406 = vmatpush1.msra.mxu0 0.0
    %2407 = vmatprep.subr.mxu0 0.0
    %2408 = vmatpush1.msra.mxu0 0.0
    %2409 = vmatprep.subr.mxu0 0.0
    %2410 = vmatpush1.msra.mxu0 0.0
    %2411 = vmatprep.subr.mxu0 0.0
    %2412 = vmatpush1.msra.mxu0 0.0
    %2413 = vmatprep.subr.mxu0 0.0
    %2414 = vmatpush1.msra.mxu0 0.0
    %2415 = vmatprep.subr.mxu0 0.0
    %2416 = vmatpush1.msra.mxu0 0.0
    %2417 = vmatprep.subr.mxu0 0.0
    %2418 = vmatpush1.msra.mxu0 0.0
    %2419 = vmatprep.subr.mxu0 0.0
    %2420 = vmatpush1.msra.mxu0 0.0
    %2421 = vmatprep.subr.mxu0 0.0
    %2422 = vmatpush1.msra.mxu0 0.0
    %2423 = vmatprep.subr.mxu0 0.0
    %2424 = vmatpush1.msra.mxu0 0.0
    %2425 = vmatprep.subr.mxu0 0.0
    %2426 = vmatpush1.msra.mxu0 0.0
    %2427 = vmatprep.subr.mxu0 0.0
    %2428 = vmatpush1.msra.mxu0 0.0
    %2429 = vmatprep.subr.mxu0 0.0
    %2430 = vmatpush1.msra.mxu0 0.0
    %2431 = vmatprep.subr.mxu0 0.0
    %2432 = vmatpush1.msra.mxu0 0.0
    %2433 = vmatprep.subr.mxu0 0.0
    %2434 = vmatpush1.msra.mxu0 0.0
    %2435 = vmatprep.subr.mxu0 0.0
    %2436 = vmatpush1.msra.mxu0 0.0
    %2437 = vmatprep.subr.mxu0 0.0
    %2438 = vmatpush1.msra.mxu0 0.0
    %2439 = vmatprep.subr.mxu0 0.0
    %2440 = vmatpush1.msra.mxu0 0.0
    %2441 = vmatprep.subr.mxu0 0.0
    %2442 = vmatpush1.msra.mxu0 0.0
    %2443 = vmatprep.subr.mxu0 0.0
    %2444 = vmatpush1.msra.mxu0 0.0
    %2445 = vmatprep.subr.mxu0 0.0
    %2446 = vmatpush1.msra.mxu0 0.0
    %2447 = vmatprep.subr.mxu0 0.0
    %2448 = vmatpush1.msra.mxu0 0.0
    %2449 = vmatprep.subr.mxu0 0.0
    %2450 = vmatpush1.msra.mxu0 0.0
    %2451 = vmatprep.subr.mxu0 0.0
    %2452 = vmatpush1.msra.mxu0 0.0
    %2453 = vmatprep.subr.mxu0 0.0
    %2454 = vmatpush1.msra.mxu0 0.0
    %2455 = vmatprep.subr.mxu0 0.0
    %2456 = vmatpush1.msra.mxu0 0.0
    %2457 = vmatprep.subr.mxu0 0.0
    %2458 = vmatpush1.msra.mxu0 0.0
    %2459 = vmatprep.subr.mxu0 0.0
    %2460 = vmatpush1.msra.mxu0 0.0
    %2461 = vmatprep.mubr.f32.mxu0 0.0
    %2462 = vmatmul.mubr.f32.gmra.mrb[0].mxu0 %v2387
    %v2463 = vpop.f32.mrb[0].mxu0
    %v2464 = vadd.f32 0.0, %v2463
    %v2465 = vpop.f32.mrb[0].mxu0
    %2466 = vmatprep.mubr.f32.mxu0 0.0
    %2467 = vmatmul.mubr.f32.gmra.mrb[0].mxu0 %v2390
    %v2468 = vpop.f32.mrb[0].mxu0
    %v2469 = vadd.f32 0.0, %v2468
    %v2470 = vpop.f32.mrb[0].mxu0
    %2471 = vmatprep.mubr.f32.mxu0 0.0
    %2472 = vmatmul.mubr.f32.gmra.mrb[0].mxu0 %v2393
    %v2473 = vpop.f32.mrb[0].mxu0
    %v2474 = vadd.f32 0.0, %v2473
    %v2475 = vpop.f32.mrb[0].mxu0
    %2476 = vdwg.mxu0
    %2480 = vrot.lane.b32.xlu0 %v2464, 24
    %v2481 = vpop.permute.xlu0 %2480
    %2482 = vrot.lane.b32.xlu0 %v2469, 24
    %v2483 = vpop.permute.xlu0 %2482
    %2484 = vrot.lane.b32.xlu0 %v2474, 24
    %v2485 = vpop.permute.xlu0 %2484
    %2489 = vst.msk [vmem:[#allocation4 + $0x11] sm:$0xff] %vm1465, %v2481
    %2490 = vst.msk [vmem:[#allocation4 + $0x19] sm:$0xff] %vm1465, %v2483
    %2491 = vst.msk [vmem:[#allocation4 + $0x21] sm:$0x1] %vm1468, %v2485
    %v2492 = vld [vmem:[#allocation4] sm:$0xff]
    %v2493 = vld [vmem:[#allocation4 + $0x8] sm:$0xff]
    %v2494 = vld [vmem:[#allocation4 + $0x10] sm:$0xff]
    %v2495 = vld [vmem:[#allocation4 + $0x18] sm:$0xff]
    %v2496 = vld [vmem:[#allocation4 + $0x20] sm:$0x3]
    %v2497 = vld [vmem:[%s9] sm:$0xff]
    %v2498 = vld [vmem:[%s9 + $0x8] sm:$0xff]
    %v2499 = vld [vmem:[%s9 + $0x10] sm:$0xff]
    %v2500 = vld [vmem:[%s9 + $0x18] sm:$0xff]
    %v2501 = vld [vmem:[%s10] sm:$0x1]
    %v2503 = vlaneseq
    %v2504 = vshrl.u32 %v2503, 7
    %v2505 = vsub.s32 0, %v2504
    %v2506 = vrot.slane %v2501, %v2505
    %v2509 = vsel %vm210, %v2492, 0
    %v2512 = vsel %vm210, %v2493, 0
    %v2515 = vsel %vm210, %v2494, 0
    %v2518 = vsel %vm210, %v2495, 0
    %v2521 = vsel %vm210, %v2496, 0
    %2523 = vmatprep.subr.mxu0 0.0
    %2524 = vmatpush1.msra.mxu0 %v2497
    %2525 = vmatprep.subr.mxu0 0.0
    %2526 = vmatpush1.msra.mxu0 %v2498
    %2527 = vmatprep.subr.mxu0 0.0
    %2528 = vmatpush1.msra.mxu0 %v2499
    %2529 = vmatprep.subr.mxu0 0.0
    %2530 = vmatpush1.msra.mxu0 %v2500
    %2531 = vmatprep.subr.mxu0 0.0
    %2532 = vmatpush1.msra.mxu0 0.0
    %2533 = vmatprep.subr.mxu0 0.0
    %2534 = vmatpush1.msra.mxu0 0.0
    %2535 = vmatprep.subr.mxu0 0.0
    %2536 = vmatpush1.msra.mxu0 0.0
    %2537 = vmatprep.subr.mxu0 0.0
    %2538 = vmatpush1.msra.mxu0 0.0
    %2539 = vmatprep.subr.mxu0 0.0
    %2540 = vmatpush1.msra.mxu0 0.0
    %2541 = vmatprep.subr.mxu0 0.0
    %2542 = vmatpush1.msra.mxu0 0.0
    %2543 = vmatprep.subr.mxu0 0.0
    %2544 = vmatpush1.msra.mxu0 0.0
    %2545 = vmatprep.subr.mxu0 0.0
    %2546 = vmatpush1.msra.mxu0 0.0
    %2547 = vmatprep.subr.mxu0 0.0
    %2548 = vmatpush1.msra.mxu0 0.0
    %2549 = vmatprep.subr.mxu0 0.0
    %2550 = vmatpush1.msra.mxu0 0.0
    %2551 = vmatprep.subr.mxu0 0.0
    %2552 = vmatpush1.msra.mxu0 0.0
    %2553 = vmatprep.subr.mxu0 0.0
    %2554 = vmatpush1.msra.mxu0 0.0
    %2555 = vmatprep.subr.mxu0 0.0
    %2556 = vmatpush1.msra.mxu0 0.0
    %2557 = vmatprep.subr.mxu0 0.0
    %2558 = vmatpush1.msra.mxu0 0.0
    %2559 = vmatprep.subr.mxu0 0.0
    %2560 = vmatpush1.msra.mxu0 0.0
    %2561 = vmatprep.subr.mxu0 0.0
    %2562 = vmatpush1.msra.mxu0 0.0
    %2563 = vmatprep.subr.mxu0 0.0
    %2564 = vmatpush1.msra.mxu0 0.0
    %2565 = vmatprep.subr.mxu0 0.0
    %2566 = vmatpush1.msra.mxu0 0.0
    %2567 = vmatprep.subr.mxu0 0.0
    %2568 = vmatpush1.msra.mxu0 0.0
    %2569 = vmatprep.subr.mxu0 0.0
    %2570 = vmatpush1.msra.mxu0 0.0
    %2571 = vmatprep.subr.mxu0 0.0
    %2572 = vmatpush1.msra.mxu0 0.0
    %2573 = vmatprep.subr.mxu0 0.0
    %2574 = vmatpush1.msra.mxu0 0.0
    %2575 = vmatprep.subr.mxu0 0.0
    %2576 = vmatpush1.msra.mxu0 0.0
    %2577 = vmatprep.subr.mxu0 0.0
    %2578 = vmatpush1.msra.mxu0 0.0
    %2579 = vmatprep.subr.mxu0 0.0
    %2580 = vmatpush1.msra.mxu0 0.0
    %2581 = vmatprep.subr.mxu0 0.0
    %2582 = vmatpush1.msra.mxu0 0.0
    %2583 = vmatprep.subr.mxu0 0.0
    %2584 = vmatpush1.msra.mxu0 0.0
    %2585 = vmatprep.subr.mxu0 0.0
    %2586 = vmatpush1.msra.mxu0 0.0
    %2587 = vmatprep.mubr.f32.mxu0 0.0
    %2588 = vmatmul.mubr.f32.gmra.mrb[0].mxu0 %v2509
    %v2589 = vpop.f32.mrb[0].mxu0
    %v2590 = vadd.f32 %v2506, %v2589
    %v2591 = vpop.f32.mrb[0].mxu0
    %2592 = vmatprep.mubr.f32.mxu0 0.0
    %2593 = vmatmul.mubr.f32.gmra.mrb[0].mxu0 %v2512
    %v2594 = vpop.f32.mrb[0].mxu0
    %v2595 = vadd.f32 %v2506, %v2594
    %v2596 = vpop.f32.mrb[0].mxu0
    %2597 = vmatprep.mubr.f32.mxu0 0.0
    %2598 = vmatmul.mubr.f32.gmra.mrb[0].mxu0 %v2515
    %v2599 = vpop.f32.mrb[0].mxu0
    %v2600 = vadd.f32 %v2506, %v2599
    %v2601 = vpop.f32.mrb[0].mxu0
    %2602 = vmatprep.mubr.f32.mxu0 0.0
    %2603 = vmatmul.mubr.f32.gmra.mrb[0].mxu0 %v2518
    %v2604 = vpop.f32.mrb[0].mxu0
    %v2605 = vadd.f32 %v2506, %v2604
    %v2606 = vpop.f32.mrb[0].mxu0
    %2607 = vmatprep.mubr.f32.mxu0 0.0
    %2608 = vmatmul.mubr.f32.gmra.mrb[0].mxu0 %v2521
    %v2609 = vpop.f32.mrb[0].mxu0
    %v2610 = vadd.f32 %v2506, %v2609
    %v2611 = vpop.f32.mrb[0].mxu0
    %2612 = vdwg.mxu0
    %v2613 = vadd.f32 %v218, %v2590
    %v2614 = vadd.f32 %v219, %v2595
    %v2615 = vadd.f32 %v220, %v2600
    %v2616 = vadd.f32 %v221, %v2605
    %v2617 = vadd.f32 %v222, %v2610
    %v2618 = vld [vmem:[%s11] sm:$0x1]
    %v2619 = vld [vmem:[%s12] sm:$0x1]
    %v2620 = vsel %vm210, %v2613, 0.0
    %2621 = vadd.xlane.f32.xlu0 %v2620
    %v2622 = vpop.xlane.xlu0 %2621
    %v2623 = vsel %vm210, %v2614, 0.0
    %2624 = vadd.xlane.f32.xlu0 %v2623
    %v2625 = vpop.xlane.xlu0 %2624
    %v2626 = vsel %vm210, %v2615, 0.0
    %2627 = vadd.xlane.f32.xlu0 %v2626
    %v2628 = vpop.xlane.xlu0 %2627
    %v2629 = vsel %vm210, %v2616, 0.0
    %2630 = vadd.xlane.f32.xlu0 %v2629
    %v2631 = vpop.xlane.xlu0 %2630
    %v2632 = vsel %vm237, %v2617, 0.0
    %2633 = vadd.xlane.f32.xlu0 %v2632
    %v2634 = vpop.xlane.xlu0 %2633
    %v2635 = vmul.f32 %v2622, %v241
    %v2636 = vmul.f32 %v2625, %v241
    %v2637 = vmul.f32 %v2628, %v241
    %v2638 = vmul.f32 %v2631, %v241
    %v2639 = vmul.f32 %v2634, %v241
    %v2640 = vsub.f32 %v2613, %v2635
    %v2641 = vsub.f32 %v2614, %v2636
    %v2642 = vsub.f32 %v2615, %v2637
    %v2643 = vsub.f32 %v2616, %v2638
    %v2644 = vsub.f32 %v2617, %v2639
    %v2645 = vmul.f32 %v2640, %v2640
    %v2646 = vmul.f32 %v2641, %v2641
    %v2647 = vmul.f32 %v2642, %v2642
    %v2648 = vmul.f32 %v2643, %v2643
    %v2649 = vmul.f32 %v2644, %v2644
    %v2650 = vsel %vm210, %v2645, 0.0
    %2651 = vadd.xlane.f32.xlu0 %v2650
    %v2652 = vpop.xlane.xlu0 %2651
    %v2653 = vsel %vm210, %v2646, 0.0
    %2654 = vadd.xlane.f32.xlu0 %v2653
    %v2655 = vpop.xlane.xlu0 %2654
    %v2656 = vsel %vm210, %v2647, 0.0
    %2657 = vadd.xlane.f32.xlu0 %v2656
    %v2658 = vpop.xlane.xlu0 %2657
    %v2659 = vsel %vm210, %v2648, 0.0
    %2660 = vadd.xlane.f32.xlu0 %v2659
    %v2661 = vpop.xlane.xlu0 %2660
    %v2662 = vsel %vm237, %v2649, 0.0
    %2663 = vadd.xlane.f32.xlu0 %v2662
    %v2664 = vpop.xlane.xlu0 %2663
    %v2665 = vmul.f32 %v2652, %v241
    %v2666 = vmul.f32 %v2655, %v241
    %v2667 = vmul.f32 %v2658, %v241
    %v2668 = vmul.f32 %v2661, %v241
    %v2669 = vmul.f32 %v2664, %v241
    %v2670 = vadd.f32 %v2665, 1e-05
    %v2671 = vadd.f32 %v2666, 1e-05
    %v2672 = vadd.f32 %v2667, 1e-05
    %v2673 = vadd.f32 %v2668, 1e-05
    %v2674 = vadd.f32 %v2669, 1e-05
    %v2675 = vrsqrt.pop %v2670
    %v2676 = vrsqrt.pop %v2671
    %v2677 = vrsqrt.pop %v2672
    %v2678 = vrsqrt.pop %v2673
    %v2679 = vrsqrt.pop %v2674
    %v2680 = vmul.f32 %v2640, %v2675
    %v2681 = vmul.f32 %v2641, %v2676
    %v2682 = vmul.f32 %v2642, %v2677
    %v2683 = vmul.f32 %v2643, %v2678
    %v2684 = vmul.f32 %v2644, %v2679
    %v2686 = vlaneseq
    %v2687 = vshrl.u32 %v2686, 7
    %v2688 = vsub.s32 0, %v2687
    %v2689 = vrot.slane %v2618, %v2688
    %v2691 = vmul.f32 %v2680, %v2689
    %v2692 = vmul.f32 %v2681, %v2689
    %v2693 = vmul.f32 %v2682, %v2689
    %v2694 = vmul.f32 %v2683, %v2689
    %v2695 = vmul.f32 %v2684, %v2689
    %v2697 = vlaneseq
    %v2698 = vshrl.u32 %v2697, 7
    %v2699 = vsub.s32 0, %v2698
    %v2700 = vrot.slane %v2619, %v2699
    %v2702 = vadd.f32 %v2691, %v2700
    %v2703 = vadd.f32 %v2692, %v2700
    %v2704 = vadd.f32 %v2693, %v2700
    %v2705 = vadd.f32 %v2694, %v2700
    %v2706 = vadd.f32 %v2695, %v2700
    %v2707 = vld [vmem:[%s13] sm:$0xff]
    %v2708 = vld [vmem:[%s13 + $0x8] sm:$0xff]
    %v2709 = vld [vmem:[%s13 + $0x10] sm:$0xff]
    %v2710 = vld [vmem:[%s13 + $0x18] sm:$0xff]
    %v2711 = vld [vmem:[%s14] sm:$0x1]
    %v2713 = vlaneseq
    %v2714 = vshrl.u32 %v2713, 7
    %v2715 = vsub.s32 0, %v2714
    %v2716 = vrot.slane %v2711, %v2715
    %v2719 = vsel %vm210, %v2702, 0
    %v2722 = vsel %vm210, %v2703, 0
    %v2725 = vsel %vm210, %v2704, 0
    %v2728 = vsel %vm210, %v2705, 0
    %v2731 = vsel %vm210, %v2706, 0
    %2733 = vmatprep.subr.mxu0 0.0
    %2734 = vmatpush1.msra.mxu0 %v2707
    %2735 = vmatprep.subr.mxu0 0.0
    %2736 = vmatpush1.msra.mxu0 %v2708
    %2737 = vmatprep.subr.mxu0 0.0
    %2738 = vmatpush1.msra.mxu0 %v2709
    %2739 = vmatprep.subr.mxu0 0.0
    %2740 = vmatpush1.msra.mxu0 %v2710
    %2741 = vmatprep.subr.mxu0 0.0
    %2742 = vmatpush1.msra.mxu0 0.0
    %2743 = vmatprep.subr.mxu0 0.0
    %2744 = vmatpush1.msra.mxu0 0.0
    %2745 = vmatprep.subr.mxu0 0.0
    %2746 = vmatpush1.msra.mxu0 0.0
    %2747 = vmatprep.subr.mxu0 0.0
    %2748 = vmatpush1.msra.mxu0 0.0
    %2749 = vmatprep.subr.mxu0 0.0
    %2750 = vmatpush1.msra.mxu0 0.0
    %2751 = vmatprep.subr.mxu0 0.0
    %2752 = vmatpush1.msra.mxu0 0.0
    %2753 = vmatprep.subr.mxu0 0.0
    %2754 = vmatpush1.msra.mxu0 0.0
    %2755 = vmatprep.subr.mxu0 0.0
    %2756 = vmatpush1.msra.mxu0 0.0
    %2757 = vmatprep.subr.mxu0 0.0
    %2758 = vmatpush1.msra.mxu0 0.0
    %2759 = vmatprep.subr.mxu0 0.0
    %2760 = vmatpush1.msra.mxu0 0.0
    %2761 = vmatprep.subr.mxu0 0.0
    %2762 = vmatpush1.msra.mxu0 0.0
    %2763 = vmatprep.subr.mxu0 0.0
    %2764 = vmatpush1.msra.mxu0 0.0
    %2765 = vmatprep.subr.mxu0 0.0
    %2766 = vmatpush1.msra.mxu0 0.0
    %2767 = vmatprep.subr.mxu0 0.0
    %2768 = vmatpush1.msra.mxu0 0.0
    %2769 = vmatprep.subr.mxu0 0.0
    %2770 = vmatpush1.msra.mxu0 0.0
    %2771 = vmatprep.subr.mxu0 0.0
    %2772 = vmatpush1.msra.mxu0 0.0
    %2773 = vmatprep.subr.mxu0 0.0
    %2774 = vmatpush1.msra.mxu0 0.0
    %2775 = vmatprep.subr.mxu0 0.0
    %2776 = vmatpush1.msra.mxu0 0.0
    %2777 = vmatprep.subr.mxu0 0.0
    %2778 = vmatpush1.msra.mxu0 0.0
    %2779 = vmatprep.subr.mxu0 0.0
    %2780 = vmatpush1.msra.mxu0 0.0
    %2781 = vmatprep.subr.mxu0 0.0
    %2782 = vmatpush1.msra.mxu0 0.0
    %2783 = vmatprep.subr.mxu0 0.0
    %2784 = vmatpush1.msra.mxu0 0.0
    %2785 = vmatprep.subr.mxu0 0.0
    %2786 = vmatpush1.msra.mxu0 0.0
    %2787 = vmatprep.subr.mxu0 0.0
    %2788 = vmatpush1.msra.mxu0 0.0
    %2789 = vmatprep.subr.mxu0 0.0
    %2790 = vmatpush1.msra.mxu0 0.0
    %2791 = vmatprep.subr.mxu0 0.0
    %2792 = vmatpush1.msra.mxu0 0.0
    %2793 = vmatprep.subr.mxu0 0.0
    %2794 = vmatpush1.msra.mxu0 0.0
    %2795 = vmatprep.subr.mxu0 0.0
    %2796 = vmatpush1.msra.mxu0 0.0
    %2797 = vmatprep.mubr.f32.mxu0 0.0
    %2798 = vmatmul.mubr.f32.gmra.mrb[0].mxu0 %v2719
    %v2799 = vpop.f32.mrb[0].mxu0
    %v2800 = vadd.f32 %v2716, %v2799
    %v2801 = vpop.f32.mrb[0].mxu0
    %2802 = vmatprep.mubr.f32.mxu0 0.0
    %2803 = vmatmul.mubr.f32.gmra.mrb[0].mxu0 %v2722
    %v2804 = vpop.f32.mrb[0].mxu0
    %v2805 = vadd.f32 %v2716, %v2804
    %v2806 = vpop.f32.mrb[0].mxu0
    %2807 = vmatprep.mubr.f32.mxu0 0.0
    %2808 = vmatmul.mubr.f32.gmra.mrb[0].mxu0 %v2725
    %v2809 = vpop.f32.mrb[0].mxu0
    %v2810 = vadd.f32 %v2716, %v2809
    %v2811 = vpop.f32.mrb[0].mxu0
    %2812 = vmatprep.mubr.f32.mxu0 0.0
    %2813 = vmatmul.mubr.f32.gmra.mrb[0].mxu0 %v2728
    %v2814 = vpop.f32.mrb[0].mxu0
    %v2815 = vadd.f32 %v2716, %v2814
    %v2816 = vpop.f32.mrb[0].mxu0
    %2817 = vmatprep.mubr.f32.mxu0 0.0
    %2818 = vmatmul.mubr.f32.gmra.mrb[0].mxu0 %v2731
    %v2819 = vpop.f32.mrb[0].mxu0
    %v2820 = vadd.f32 %v2716, %v2819
    %v2821 = vpop.f32.mrb[0].mxu0
    %2822 = vdwg.mxu0
    %v2823 = vmul.f32 %v2800, 0.70710677
    %v2824 = vmul.f32 %v2805, 0.70710677
    %v2825 = vmul.f32 %v2810, 0.70710677
    %v2826 = vmul.f32 %v2815, 0.70710677
    %v2827 = vmul.f32 %v2820, 0.70710677
    %vm2828 = vcmp.ge.f32.partialorder %v2823, 0.0
    %vm2829 = vcmp.ge.f32.partialorder %v2824, 0.0
    %vm2830 = vcmp.ge.f32.partialorder %v2825, 0.0
    %vm2831 = vcmp.ge.f32.partialorder %v2826, 0.0
    %vm2832 = vcmp.ge.f32.partialorder %v2827, 0.0
    %v2833 = vsel %vm2828, 1.0, -1.0
    %v2834 = vsel %vm2829, 1.0, -1.0
    %v2835 = vsel %vm2830, 1.0, -1.0
    %v2836 = vsel %vm2831, 1.0, -1.0
    %v2837 = vsel %vm2832, 1.0, -1.0
    %v2838 = vand.u32 2147483647, %v2823
    %v2839 = vand.u32 2147483647, %v2824
    %v2840 = vand.u32 2147483647, %v2825
    %v2841 = vand.u32 2147483647, %v2826
    %v2842 = vand.u32 2147483647, %v2827
    %v2843 = vmul.f32 %v2838, 0.3275911
    %v2844 = vmul.f32 %v2839, 0.3275911
    %v2845 = vmul.f32 %v2840, 0.3275911
    %v2846 = vmul.f32 %v2841, 0.3275911
    %v2847 = vmul.f32 %v2842, 0.3275911
    %v2848 = vadd.f32 %v2843, 1.0
    %v2849 = vadd.f32 %v2844, 1.0
    %v2850 = vadd.f32 %v2845, 1.0
    %v2851 = vadd.f32 %v2846, 1.0
    %v2852 = vadd.f32 %v2847, 1.0
    %v2853 = vrcp.pop %v2848
    %v2854 = vrcp.pop %v2849
    %v2855 = vrcp.pop %v2850
    %v2856 = vrcp.pop %v2851
    %v2857 = vrcp.pop %v2852
    %v2858 = vmul.f32 %v2853, 1.0614054
    %v2859 = vmul.f32 %v2854, 1.0614054
    %v2860 = vmul.f32 %v2855, 1.0614054
    %v2861 = vmul.f32 %v2856, 1.0614054
    %v2862 = vmul.f32 %v2857, 1.0614054
    %v2863 = vadd.f32 %v2858, -1.4531521
    %v2864 = vadd.f32 %v2859, -1.4531521
    %v2865 = vadd.f32 %v2860, -1.4531521
    %v2866 = vadd.f32 %v2861, -1.4531521
    %v2867 = vadd.f32 %v2862, -1.4531521
    %v2868 = vmul.f32 %v2863, %v2853
    %v2869 = vmul.f32 %v2864, %v2854
    %v2870 = vmul.f32 %v2865, %v2855
    %v2871 = vmul.f32 %v2866, %v2856
    %v2872 = vmul.f32 %v2867, %v2857
    %v2873 = vadd.f32 %v2868, 1.4214138
    %v2874 = vadd.f32 %v2869, 1.4214138
    %v2875 = vadd.f32 %v2870, 1.4214138
    %v2876 = vadd.f32 %v2871, 1.4214138
    %v2877 = vadd.f32 %v2872, 1.4214138
    %v2878 = vmul.f32 %v2873, %v2853
    %v2879 = vmul.f32 %v2874, %v2854
    %v2880 = vmul.f32 %v2875, %v2855
    %v2881 = vmul.f32 %v2876, %v2856
    %v2882 = vmul.f32 %v2877, %v2857
    %v2883 = vadd.f32 %v2878, -0.28449672
    %v2884 = vadd.f32 %v2879, -0.28449672
    %v2885 = vadd.f32 %v2880, -0.28449672
    %v2886 = vadd.f32 %v2881, -0.28449672
    %v2887 = vadd.f32 %v2882, -0.28449672
    %v2888 = vmul.f32 %v2883, %v2853
    %v2889 = vmul.f32 %v2884, %v2854
    %v2890 = vmul.f32 %v2885, %v2855
    %v2891 = vmul.f32 %v2886, %v2856
    %v2892 = vmul.f32 %v2887, %v2857
    %v2893 = vadd.f32 %v2888, 0.2548296
    %v2894 = vadd.f32 %v2889, 0.2548296
    %v2895 = vadd.f32 %v2890, 0.2548296
    %v2896 = vadd.f32 %v2891, 0.2548296
    %v2897 = vadd.f32 %v2892, 0.2548296
    %v2898 = vmul.f32 %v2893, %v2853
    %v2899 = vmul.f32 %v2894, %v2854
    %v2900 = vmul.f32 %v2895, %v2855
    %v2901 = vmul.f32 %v2896, %v2856
    %v2902 = vmul.f32 %v2897, %v2857
    %v2903 = vsub.f32 0.0, %v2838
    %v2904 = vsub.f32 0.0, %v2839
    %v2905 = vsub.f32 0.0, %v2840
    %v2906 = vsub.f32 0.0, %v2841
    %v2907 = vsub.f32 0.0, %v2842
    %v2908 = vmul.f32 %v2903, %v2838
    %v2909 = vmul.f32 %v2904, %v2839
    %v2910 = vmul.f32 %v2905, %v2840
    %v2911 = vmul.f32 %v2906, %v2841
    %v2912 = vmul.f32 %v2907, %v2842
    %v2913 = vmul.f32 %v2908, 1.442695
    %v2914 = vpow.pop %v2913
    %v2915 = vmul.f32 %v2909, 1.442695
    %v2916 = vpow.pop %v2915
    %v2917 = vmul.f32 %v2910, 1.442695
    %v2918 = vpow.pop %v2917
    %v2919 = vmul.f32 %v2911, 1.442695
    %v2920 = vpow.pop %v2919
    %v2921 = vmul.f32 %v2912, 1.442695
    %v2922 = vpow.pop %v2921
    %v2923 = vmul.f32 %v2898, %v2914
    %v2924 = vmul.f32 %v2899, %v2916
    %v2925 = vmul.f32 %v2900, %v2918
    %v2926 = vmul.f32 %v2901, %v2920
    %v2927 = vmul.f32 %v2902, %v2922
    %v2928 = vsub.f32 1.0, %v2923
    %v2929 = vsub.f32 1.0, %v2924
    %v2930 = vsub.f32 1.0, %v2925
    %v2931 = vsub.f32 1.0, %v2926
    %v2932 = vsub.f32 1.0, %v2927
    %v2933 = vmul.f32 %v2833, %v2928
    %v2934 = vmul.f32 %v2834, %v2929
    %v2935 = vmul.f32 %v2835, %v2930
    %v2936 = vmul.f32 %v2836, %v2931
    %v2937 = vmul.f32 %v2837, %v2932
    %v2938 = vmul.f32 %v2800, 0.5
    %v2939 = vmul.f32 %v2805, 0.5
    %v2940 = vmul.f32 %v2810, 0.5
    %v2941 = vmul.f32 %v2815, 0.5
    %v2942 = vmul.f32 %v2820, 0.5
    %v2943 = vadd.f32 %v2933, 1.0
    %v2944 = vadd.f32 %v2934, 1.0
    %v2945 = vadd.f32 %v2935, 1.0
    %v2946 = vadd.f32 %v2936, 1.0
    %v2947 = vadd.f32 %v2937, 1.0
    %v2948 = vmul.f32 %v2938, %v2943
    %v2949 = vmul.f32 %v2939, %v2944
    %v2950 = vmul.f32 %v2940, %v2945
    %v2951 = vmul.f32 %v2941, %v2946
    %v2952 = vmul.f32 %v2942, %v2947
    %v2953 = vld [vmem:[%s15] sm:$0xff]
    %v2954 = vld [vmem:[%s15 + $0x8] sm:$0xff]
    %v2955 = vld [vmem:[%s15 + $0x10] sm:$0xff]
    %v2956 = vld [vmem:[%s15 + $0x18] sm:$0xff]
    %v2957 = vld [vmem:[%s15 + $0x20] sm:$0xff]
    %v2958 = vld [vmem:[%s15 + $0x28] sm:$0xff]
    %v2959 = vld [vmem:[%s16] sm:$0x1]
    %v2961 = vlaneseq
    %v2962 = vshrl.u32 %v2961, 7
    %v2963 = vsub.s32 0, %v2962
    %v2964 = vrot.slane %v2959, %v2963
    %vm2966 = vcmask 392192
    %v2968 = vsel %vm2966, %v2948, 0
    %v2971 = vsel %vm2966, %v2949, 0
    %v2974 = vsel %vm2966, %v2950, 0
    %v2977 = vsel %vm2966, %v2951, 0
    %v2980 = vsel %vm2966, %v2952, 0
    %2982 = vmatprep.subr.mxu0 0.0
    %2983 = vmatpush1.msra.mxu0 %v2953
    %2984 = vmatprep.subr.mxu0 0.0
    %2985 = vmatpush1.msra.mxu0 %v2954
    %2986 = vmatprep.subr.mxu0 0.0
    %2987 = vmatpush1.msra.mxu0 %v2955
    %2988 = vmatprep.subr.mxu0 0.0
    %2989 = vmatpush1.msra.mxu0 %v2956
    %2990 = vmatprep.subr.mxu0 0.0
    %2991 = vmatpush1.msra.mxu0 %v2957
    %2992 = vmatprep.subr.mxu0 0.0
    %2993 = vmatpush1.msra.mxu0 %v2958
    %2994 = vmatprep.subr.mxu0 0.0
    %2995 = vmatpush1.msra.mxu0 0.0
    %2996 = vmatprep.subr.mxu0 0.0
    %2997 = vmatpush1.msra.mxu0 0.0
    %2998 = vmatprep.subr.mxu0 0.0
    %2999 = vmatpush1.msra.mxu0 0.0
    %3000 = vmatprep.subr.mxu0 0.0
    %3001 = vmatpush1.msra.mxu0 0.0
    %3002 = vmatprep.subr.mxu0 0.0
    %3003 = vmatpush1.msra.mxu0 0.0
    %3004 = vmatprep.subr.mxu0 0.0
    %3005 = vmatpush1.msra.mxu0 0.0
    %3006 = vmatprep.subr.mxu0 0.0
    %3007 = vmatpush1.msra.mxu0 0.0
    %3008 = vmatprep.subr.mxu0 0.0
    %3009 = vmatpush1.msra.mxu0 0.0
    %3010 = vmatprep.subr.mxu0 0.0
    %3011 = vmatpush1.msra.mxu0 0.0
    %3012 = vmatprep.subr.mxu0 0.0
    %3013 = vmatpush1.msra.mxu0 0.0
    %3014 = vmatprep.subr.mxu0 0.0
    %3015 = vmatpush1.msra.mxu0 0.0
    %3016 = vmatprep.subr.mxu0 0.0
    %3017 = vmatpush1.msra.mxu0 0.0
    %3018 = vmatprep.subr.mxu0 0.0
    %3019 = vmatpush1.msra.mxu0 0.0
    %3020 = vmatprep.subr.mxu0 0.0
    %3021 = vmatpush1.msra.mxu0 0.0
    %3022 = vmatprep.subr.mxu0 0.0
    %3023 = vmatpush1.msra.mxu0 0.0
    %3024 = vmatprep.subr.mxu0 0.0
    %3025 = vmatpush1.msra.mxu0 0.0
    %3026 = vmatprep.subr.mxu0 0.0
    %3027 = vmatpush1.msra.mxu0 0.0
    %3028 = vmatprep.subr.mxu0 0.0
    %3029 = vmatpush1.msra.mxu0 0.0
    %3030 = vmatprep.subr.mxu0 0.0
    %3031 = vmatpush1.msra.mxu0 0.0
    %3032 = vmatprep.subr.mxu0 0.0
    %3033 = vmatpush1.msra.mxu0 0.0
    %3034 = vmatprep.subr.mxu0 0.0
    %3035 = vmatpush1.msra.mxu0 0.0
    %3036 = vmatprep.subr.mxu0 0.0
    %3037 = vmatpush1.msra.mxu0 0.0
    %3038 = vmatprep.subr.mxu0 0.0
    %3039 = vmatpush1.msra.mxu0 0.0
    %3040 = vmatprep.subr.mxu0 0.0
    %3041 = vmatpush1.msra.mxu0 0.0
    %3042 = vmatprep.subr.mxu0 0.0
    %3043 = vmatpush1.msra.mxu0 0.0
    %3044 = vmatprep.subr.mxu0 0.0
    %3045 = vmatpush1.msra.mxu0 0.0
    %3046 = vmatprep.mubr.f32.mxu0 0.0
    %3047 = vmatmul.mubr.f32.gmra.mrb[0].mxu0 %v2968
    %v3048 = vpop.f32.mrb[0].mxu0
    %v3049 = vadd.f32 %v2964, %v3048
    %v3050 = vpop.f32.mrb[0].mxu0
    %3051 = vmatprep.mubr.f32.mxu0 0.0
    %3052 = vmatmul.mubr.f32.gmra.mrb[0].mxu0 %v2971
    %v3053 = vpop.f32.mrb[0].mxu0
    %v3054 = vadd.f32 %v2964, %v3053
    %v3055 = vpop.f32.mrb[0].mxu0
    %3056 = vmatprep.mubr.f32.mxu0 0.0
    %3057 = vmatmul.mubr.f32.gmra.mrb[0].mxu0 %v2974
    %v3058 = vpop.f32.mrb[0].mxu0
    %v3059 = vadd.f32 %v2964, %v3058
    %v3060 = vpop.f32.mrb[0].mxu0
    %3061 = vmatprep.mubr.f32.mxu0 0.0
    %3062 = vmatmul.mubr.f32.gmra.mrb[0].mxu0 %v2977
    %v3063 = vpop.f32.mrb[0].mxu0
    %v3064 = vadd.f32 %v2964, %v3063
    %v3065 = vpop.f32.mrb[0].mxu0
    %3066 = vmatprep.mubr.f32.mxu0 0.0
    %3067 = vmatmul.mubr.f32.gmra.mrb[0].mxu0 %v2980
    %v3068 = vpop.f32.mrb[0].mxu0
    %v3069 = vadd.f32 %v2964, %v3068
    %v3070 = vpop.f32.mrb[0].mxu0
    %3071 = vdwg.mxu0
    %v3072 = vadd.f32 %v2613, %v3049
    %v3073 = vadd.f32 %v2614, %v3054
    %v3074 = vadd.f32 %v2615, %v3059
    %v3075 = vadd.f32 %v2616, %v3064
    %v3076 = vadd.f32 %v2617, %v3069
    %s3077 = scalar_lea.vmem %s5, 1
    %v3078 = vld [vmem:[%s3077] sm:$0x1]
    %s3079 = scalar_lea.vmem %s6, 1
    %v3080 = vld [vmem:[%s3079] sm:$0x1]
    %v3081 = vsel %vm210, %v3072, 0.0
    %3082 = vadd.xlane.f32.xlu0 %v3081
    %v3083 = vpop.xlane.xlu0 %3082
    %v3084 = vsel %vm210, %v3073, 0.0
    %3085 = vadd.xlane.f32.xlu0 %v3084
    %v3086 = vpop.xlane.xlu0 %3085
    %v3087 = vsel %vm210, %v3074, 0.0
    %3088 = vadd.xlane.f32.xlu0 %v3087
    %v3089 = vpop.xlane.xlu0 %3088
    %v3090 = vsel %vm210, %v3075, 0.0
    %3091 = vadd.xlane.f32.xlu0 %v3090
    %v3092 = vpop.xlane.xlu0 %3091
    %v3093 = vsel %vm237, %v3076, 0.0
    %3094 = vadd.xlane.f32.xlu0 %v3093
    %v3095 = vpop.xlane.xlu0 %3094
    %v3096 = vmul.f32 %v3083, %v241
    %v3097 = vmul.f32 %v3086, %v241
    %v3098 = vmul.f32 %v3089, %v241
    %v3099 = vmul.f32 %v3092, %v241
    %v3100 = vmul.f32 %v3095, %v241
    %v3101 = vsub.f32 %v3072, %v3096
    %v3102 = vsub.f32 %v3073, %v3097
    %v3103 = vsub.f32 %v3074, %v3098
    %v3104 = vsub.f32 %v3075, %v3099
    %v3105 = vsub.f32 %v3076, %v3100
    %v3106 = vmul.f32 %v3101, %v3101
    %v3107 = vmul.f32 %v3102, %v3102
    %v3108 = vmul.f32 %v3103, %v3103
    %v3109 = vmul.f32 %v3104, %v3104
    %v3110 = vmul.f32 %v3105, %v3105
    %v3111 = vsel %vm210, %v3106, 0.0
    %3112 = vadd.xlane.f32.xlu0 %v3111
    %v3113 = vpop.xlane.xlu0 %3112
    %v3114 = vsel %vm210, %v3107, 0.0
    %3115 = vadd.xlane.f32.xlu0 %v3114
    %v3116 = vpop.xlane.xlu0 %3115
    %v3117 = vsel %vm210, %v3108, 0.0
    %3118 = vadd.xlane.f32.xlu0 %v3117
    %v3119 = vpop.xlane.xlu0 %3118
    %v3120 = vsel %vm210, %v3109, 0.0
    %3121 = vadd.xlane.f32.xlu0 %v3120
    %v3122 = vpop.xlane.xlu0 %3121
    %v3123 = vsel %vm237, %v3110, 0.0
    %3124 = vadd.xlane.f32.xlu0 %v3123
    %v3125 = vpop.xlane.xlu0 %3124
    %v3126 = vmul.f32 %v3113, %v241
    %v3127 = vmul.f32 %v3116, %v241
    %v3128 = vmul.f32 %v3119, %v241
    %v3129 = vmul.f32 %v3122, %v241
    %v3130 = vmul.f32 %v3125, %v241
    %v3131 = vadd.f32 %v3126, 1e-05
    %v3132 = vadd.f32 %v3127, 1e-05
    %v3133 = vadd.f32 %v3128, 1e-05
    %v3134 = vadd.f32 %v3129, 1e-05
    %v3135 = vadd.f32 %v3130, 1e-05
    %v3136 = vrsqrt.pop %v3131
    %v3137 = vrsqrt.pop %v3132
    %v3138 = vrsqrt.pop %v3133
    %v3139 = vrsqrt.pop %v3134
    %v3140 = vrsqrt.pop %v3135
    %v3141 = vmul.f32 %v3101, %v3136
    %v3142 = vmul.f32 %v3102, %v3137
    %v3143 = vmul.f32 %v3103, %v3138
    %v3144 = vmul.f32 %v3104, %v3139
    %v3145 = vmul.f32 %v3105, %v3140
    %v3147 = vlaneseq
    %v3148 = vshrl.u32 %v3147, 7
    %v3149 = vsub.s32 0, %v3148
    %v3150 = vrot.slane %v3078, %v3149
    %v3152 = vmul.f32 %v3141, %v3150
    %v3153 = vmul.f32 %v3142, %v3150
    %v3154 = vmul.f32 %v3143, %v3150
    %v3155 = vmul.f32 %v3144, %v3150
    %v3156 = vmul.f32 %v3145, %v3150
    %v3158 = vlaneseq
    %v3159 = vshrl.u32 %v3158, 7
    %v3160 = vsub.s32 0, %v3159
    %v3161 = vrot.slane %v3080, %v3160
    %v3163 = vadd.f32 %v3152, %v3161
    %v3164 = vadd.f32 %v3153, %v3161
    %v3165 = vadd.f32 %v3154, %v3161
    %v3166 = vadd.f32 %v3155, %v3161
    %v3167 = vadd.f32 %v3156, %v3161
    %s3168 = scalar_lea.vmem %s7, 32
    %v3169 = vld [vmem:[%s3168] sm:$0xff]
    %v3170 = vld [vmem:[%s3168 + $0x8] sm:$0xff]
    %v3171 = vld [vmem:[%s3168 + $0x10] sm:$0xff]
    %v3172 = vld [vmem:[%s3168 + $0x18] sm:$0xff]
    %s3173 = scalar_lea.vmem %s8, 1
    %v3174 = vld [vmem:[%s3173] sm:$0x1]
    %v3176 = vlaneseq
    %v3177 = vshrl.u32 %v3176, 7
    %v3178 = vsub.s32 0, %v3177
    %v3179 = vrot.slane %v3174, %v3178
    %v3182 = vsel %vm210, %v3163, 0
    %v3185 = vsel %vm210, %v3164, 0
    %v3188 = vsel %vm210, %v3165, 0
    %v3191 = vsel %vm210, %v3166, 0
    %v3194 = vsel %vm210, %v3167, 0
    %3196 = vmatprep.subr.mxu0 0.0
    %3197 = vmatpush1.msra.mxu0 %v3169
    %3198 = vmatprep.subr.mxu0 0.0
    %3199 = vmatpush1.msra.mxu0 %v3170
    %3200 = vmatprep.subr.mxu0 0.0
    %3201 = vmatpush1.msra.mxu0 %v3171
    %3202 = vmatprep.subr.mxu0 0.0
    %3203 = vmatpush1.msra.mxu0 %v3172
    %3204 = vmatprep.subr.mxu0 0.0
    %3205 = vmatpush1.msra.mxu0 0.0
    %3206 = vmatprep.subr.mxu0 0.0
    %3207 = vmatpush1.msra.mxu0 0.0
    %3208 = vmatprep.subr.mxu0 0.0
    %3209 = vmatpush1.msra.mxu0 0.0
    %3210 = vmatprep.subr.mxu0 0.0
    %3211 = vmatpush1.msra.mxu0 0.0
    %3212 = vmatprep.subr.mxu0 0.0
    %3213 = vmatpush1.msra.mxu0 0.0
    %3214 = vmatprep.subr.mxu0 0.0
    %3215 = vmatpush1.msra.mxu0 0.0
    %3216 = vmatprep.subr.mxu0 0.0
    %3217 = vmatpush1.msra.mxu0 0.0
    %3218 = vmatprep.subr.mxu0 0.0
    %3219 = vmatpush1.msra.mxu0 0.0
    %3220 = vmatprep.subr.mxu0 0.0
    %3221 = vmatpush1.msra.mxu0 0.0
    %3222 = vmatprep.subr.mxu0 0.0
    %3223 = vmatpush1.msra.mxu0 0.0
    %3224 = vmatprep.subr.mxu0 0.0
    %3225 = vmatpush1.msra.mxu0 0.0
    %3226 = vmatprep.subr.mxu0 0.0
    %3227 = vmatpush1.msra.mxu0 0.0
    %3228 = vmatprep.subr.mxu0 0.0
    %3229 = vmatpush1.msra.mxu0 0.0
    %3230 = vmatprep.subr.mxu0 0.0
    %3231 = vmatpush1.msra.mxu0 0.0
    %3232 = vmatprep.subr.mxu0 0.0
    %3233 = vmatpush1.msra.mxu0 0.0
    %3234 = vmatprep.subr.mxu0 0.0
    %3235 = vmatpush1.msra.mxu0 0.0
    %3236 = vmatprep.subr.mxu0 0.0
    %3237 = vmatpush1.msra.mxu0 0.0
    %3238 = vmatprep.subr.mxu0 0.0
    %3239 = vmatpush1.msra.mxu0 0.0
    %3240 = vmatprep.subr.mxu0 0.0
    %3241 = vmatpush1.msra.mxu0 0.0
    %3242 = vmatprep.subr.mxu0 0.0
    %3243 = vmatpush1.msra.mxu0 0.0
    %3244 = vmatprep.subr.mxu0 0.0
    %3245 = vmatpush1.msra.mxu0 0.0
    %3246 = vmatprep.subr.mxu0 0.0
    %3247 = vmatpush1.msra.mxu0 0.0
    %3248 = vmatprep.subr.mxu0 0.0
    %3249 = vmatpush1.msra.mxu0 0.0
    %3250 = vmatprep.subr.mxu0 0.0
    %3251 = vmatpush1.msra.mxu0 0.0
    %3252 = vmatprep.subr.mxu0 0.0
    %3253 = vmatpush1.msra.mxu0 0.0
    %3254 = vmatprep.subr.mxu0 0.0
    %3255 = vmatpush1.msra.mxu0 0.0
    %3256 = vmatprep.subr.mxu0 0.0
    %3257 = vmatpush1.msra.mxu0 0.0
    %3258 = vmatprep.subr.mxu0 0.0
    %3259 = vmatpush1.msra.mxu0 0.0
    %3260 = vmatprep.mubr.f32.mxu0 0.0
    %3261 = vmatmul.mubr.f32.gmra.mrb[0].mxu0 %v3182
    %v3262 = vpop.f32.mrb[0].mxu0
    %v3263 = vadd.f32 %v3179, %v3262
    %v3264 = vpop.f32.mrb[0].mxu0
    %3265 = vmatprep.mubr.f32.mxu0 0.0
    %3266 = vmatmul.mubr.f32.gmra.mrb[0].mxu0 %v3185
    %v3267 = vpop.f32.mrb[0].mxu0
    %v3268 = vadd.f32 %v3179, %v3267
    %v3269 = vpop.f32.mrb[0].mxu0
    %3270 = vmatprep.mubr.f32.mxu0 0.0
    %3271 = vmatmul.mubr.f32.gmra.mrb[0].mxu0 %v3188
    %v3272 = vpop.f32.mrb[0].mxu0
    %v3273 = vadd.f32 %v3179, %v3272
    %v3274 = vpop.f32.mrb[0].mxu0
    %3275 = vmatprep.mubr.f32.mxu0 0.0
    %3276 = vmatmul.mubr.f32.gmra.mrb[0].mxu0 %v3191
    %v3277 = vpop.f32.mrb[0].mxu0
    %v3278 = vadd.f32 %v3179, %v3277
    %v3279 = vpop.f32.mrb[0].mxu0
    %3280 = vmatprep.mubr.f32.mxu0 0.0
    %3281 = vmatmul.mubr.f32.gmra.mrb[0].mxu0 %v3194
    %v3282 = vpop.f32.mrb[0].mxu0
    %v3283 = vadd.f32 %v3179, %v3282
    %v3284 = vpop.f32.mrb[0].mxu0
    %3285 = vdwg.mxu0
    %3286 = vst.msk [vmem:[#allocation3] sm:$0xff] %vm430, %v3263
    %3287 = vst.msk [vmem:[#allocation3 + $0x8] sm:$0xff] %vm430, %v3268
    %3288 = vst.msk [vmem:[#allocation3 + $0x10] sm:$0xff] %vm430, %v3273
    %3289 = vst.msk [vmem:[#allocation3 + $0x18] sm:$0xff] %vm430, %v3278
    %3290 = vst.msk [vmem:[#allocation3 + $0x20] sm:$0x3] %vm435, %v3283
    %v3291 = vld [vmem:[#allocation3] sm:$0xff]
    %v3292 = vld [vmem:[#allocation3 + $0x8] sm:$0xff]
    %v3293 = vld [vmem:[#allocation3 + $0x10] sm:$0x1]
    %3297 = vrot.lane.b32.xlu0 %v3291, 96
    %v3298 = vpop.permute.xlu0 %3297
    %3299 = vrot.lane.b32.xlu0 %v3292, 96
    %v3300 = vpop.permute.xlu0 %3299
    %3301 = vrot.lane.b32.xlu0 %v3293, 96
    %v3302 = vpop.permute.xlu0 %3301
    %v3303 = vsel %vm449, %v3291, 0
    %v3305 = vsel %vm449, %v3292, 0
    %v3307 = vsel %vm449, %v3293, 0
    %v3309 = vsel %vm449, %v3298, 0
    %v3311 = vsel %vm449, %v3300, 0
    %v3313 = vsel %vm449, %v3302, 0
    %3315 = vmatprep.subr.mxu0 0.0
    %3316 = vmatpush1.xpose.msra.mxu0 %v3309
    %3317 = vmatprep.subr.mxu0 0.0
    %3318 = vmatpush1.xpose.msra.mxu0 %v3311
    %3319 = vmatprep.subr.mxu0 0.0
    %3320 = vmatpush1.xpose.msra.mxu0 %v3313
    %3321 = vmatprep.subr.mxu0 0.0
    %3322 = vmatpush1.xpose.msra.mxu0 0.0
    %3323 = vmatprep.subr.mxu0 0.0
    %3324 = vmatpush1.xpose.msra.mxu0 0.0
    %3325 = vmatprep.subr.mxu0 0.0
    %3326 = vmatpush1.xpose.msra.mxu0 0.0
    %3327 = vmatprep.subr.mxu0 0.0
    %3328 = vmatpush1.xpose.msra.mxu0 0.0
    %3329 = vmatprep.subr.mxu0 0.0
    %3330 = vmatpush1.xpose.msra.mxu0 0.0
    %3331 = vmatprep.subr.mxu0 0.0
    %3332 = vmatpush1.xpose.msra.mxu0 0.0
    %3333 = vmatprep.subr.mxu0 0.0
    %3334 = vmatpush1.xpose.msra.mxu0 0.0
    %3335 = vmatprep.subr.mxu0 0.0
    %3336 = vmatpush1.xpose.msra.mxu0 0.0
    %3337 = vmatprep.subr.mxu0 0.0
    %3338 = vmatpush1.xpose.msra.mxu0 0.0
    %3339 = vmatprep.subr.mxu0 0.0
    %3340 = vmatpush1.xpose.msra.mxu0 0.0
    %3341 = vmatprep.subr.mxu0 0.0
    %3342 = vmatpush1.xpose.msra.mxu0 0.0
    %3343 = vmatprep.subr.mxu0 0.0
    %3344 = vmatpush1.xpose.msra.mxu0 0.0
    %3345 = vmatprep.subr.mxu0 0.0
    %3346 = vmatpush1.xpose.msra.mxu0 0.0
    %3347 = vmatprep.subr.mxu0 0.0
    %3348 = vmatpush1.xpose.msra.mxu0 0.0
    %3349 = vmatprep.subr.mxu0 0.0
    %3350 = vmatpush1.xpose.msra.mxu0 0.0
    %3351 = vmatprep.subr.mxu0 0.0
    %3352 = vmatpush1.xpose.msra.mxu0 0.0
    %3353 = vmatprep.subr.mxu0 0.0
    %3354 = vmatpush1.xpose.msra.mxu0 0.0
    %3355 = vmatprep.subr.mxu0 0.0
    %3356 = vmatpush1.xpose.msra.mxu0 0.0
    %3357 = vmatprep.subr.mxu0 0.0
    %3358 = vmatpush1.xpose.msra.mxu0 0.0
    %3359 = vmatprep.subr.mxu0 0.0
    %3360 = vmatpush1.xpose.msra.mxu0 0.0
    %3361 = vmatprep.subr.mxu0 0.0
    %3362 = vmatpush1.xpose.msra.mxu0 0.0
    %3363 = vmatprep.subr.mxu0 0.0
    %3364 = vmatpush1.xpose.msra.mxu0 0.0
    %3365 = vmatprep.subr.mxu0 0.0
    %3366 = vmatpush1.xpose.msra.mxu0 0.0
    %3367 = vmatprep.subr.mxu0 0.0
    %3368 = vmatpush1.xpose.msra.mxu0 0.0
    %3369 = vmatprep.subr.mxu0 0.0
    %3370 = vmatpush1.xpose.msra.mxu0 0.0
    %3371 = vmatprep.subr.mxu0 0.0
    %3372 = vmatpush1.xpose.msra.mxu0 0.0
    %3373 = vmatprep.subr.mxu0 0.0
    %3374 = vmatpush1.xpose.msra.mxu0 0.0
    %3375 = vmatprep.subr.mxu0 0.0
    %3376 = vmatpush1.xpose.msra.mxu0 0.0
    %3377 = vmatprep.subr.mxu0 0.0
    %3378 = vmatpush1.xpose.msra.mxu0 0.0
    %3379 = vmatprep.mubr.f32.mxu0 0.0
    %3380 = vmatmul.mubr.f32.gmra.mrb[0].mxu0 %v3303
    %v3381 = vpop.f32.mrb[0].mxu0
    %v3382 = vadd.f32 0.0, %v3381
    %v3383 = vpop.f32.mrb[0].mxu0
    %3384 = vmatprep.mubr.f32.mxu0 0.0
    %3385 = vmatmul.mubr.f32.gmra.mrb[0].mxu0 %v3305
    %v3386 = vpop.f32.mrb[0].mxu0
    %v3387 = vadd.f32 0.0, %v3386
    %v3388 = vpop.f32.mrb[0].mxu0
    %3389 = vmatprep.mubr.f32.mxu0 0.0
    %3390 = vmatmul.mubr.f32.gmra.mrb[0].mxu0 %v3307
    %v3391 = vpop.f32.mrb[0].mxu0
    %v3392 = vadd.f32 0.0, %v3391
    %v3393 = vpop.f32.mrb[0].mxu0
    %3394 = vdwg.mxu0
    %v3395 = vmul.f32 %v3382, 0.35355338
    %v3396 = vmul.f32 %v3387, 0.35355338
    %v3397 = vmul.f32 %v3392, 0.35355338
    %v3398 = vsel %vm545, %v3395, -inf
    %3399 = vmax.xlane.f32.xlu0 %v3398
    %v3400 = vpop.xlane.xlu0 %3399
    %v3401 = vsel %vm545, %v3396, -inf
    %3402 = vmax.xlane.f32.xlu0 %v3401
    %v3403 = vpop.xlane.xlu0 %3402
    %v3404 = vsel %vm552, %v3397, -inf
    %3405 = vmax.xlane.f32.xlu0 %v3404
    %v3406 = vpop.xlane.xlu0 %3405
    %v3407 = vsub.f32 %v3395, %v3400
    %v3408 = vsub.f32 %v3396, %v3403
    %v3409 = vsub.f32 %v3397, %v3406
    %v3410 = vmul.f32 %v3407, 1.442695
    %v3411 = vpow.pop %v3410
    %v3412 = vmul.f32 %v3408, 1.442695
    %v3413 = vpow.pop %v3412
    %v3414 = vmul.f32 %v3409, 1.442695
    %v3415 = vpow.pop %v3414
    %v3416 = vsel %vm545, %v3411, 0.0
    %3417 = vadd.xlane.f32.xlu0 %v3416
    %v3418 = vpop.xlane.xlu0 %3417
    %v3419 = vsel %vm545, %v3413, 0.0
    %3420 = vadd.xlane.f32.xlu0 %v3419
    %v3421 = vpop.xlane.xlu0 %3420
    %v3422 = vsel %vm552, %v3415, 0.0
    %3423 = vadd.xlane.f32.xlu0 %v3422
    %v3424 = vpop.xlane.xlu0 %3423
    %v3425 = vrcp.pop %v3418
    %v3426 = vrcp.pop %v3421
    %v3427 = vrcp.pop %v3424
    %v3428 = vmul.f32 %v3411, %v3425
    %v3429 = vmul.f32 %v3413, %v3426
    %v3430 = vmul.f32 %v3415, %v3427
    %3431 = vrot.lane.b32.xlu0 %v3291, 64
    %v3432 = vpop.permute.xlu0 %3431
    %3433 = vrot.lane.b32.xlu0 %v3292, 64
    %v3434 = vpop.permute.xlu0 %3433
    %3435 = vrot.lane.b32.xlu0 %v3293, 64
    %v3436 = vpop.permute.xlu0 %3435
    %v3440 = vsel %vm545, %v3428, 0
    %v3443 = vsel %vm545, %v3429, 0
    %v3446 = vsel %vm545, %v3430, 0
    %v3448 = vsel %vm597, %v3436, 0
    %3450 = vmatprep.subr.mxu0 0.0
    %3451 = vmatpush1.msra.mxu0 %v3432
    %3452 = vmatprep.subr.mxu0 0.0
    %3453 = vmatpush1.msra.mxu0 %v3434
    %3454 = vmatprep.subr.mxu0 0.0
    %3455 = vmatpush1.msra.mxu0 %v3448
    %3456 = vmatprep.subr.mxu0 0.0
    %3457 = vmatpush1.msra.mxu0 0.0
    %3458 = vmatprep.subr.mxu0 0.0
    %3459 = vmatpush1.msra.mxu0 0.0
    %3460 = vmatprep.subr.mxu0 0.0
    %3461 = vmatpush1.msra.mxu0 0.0
    %3462 = vmatprep.subr.mxu0 0.0
    %3463 = vmatpush1.msra.mxu0 0.0
    %3464 = vmatprep.subr.mxu0 0.0
    %3465 = vmatpush1.msra.mxu0 0.0
    %3466 = vmatprep.subr.mxu0 0.0
    %3467 = vmatpush1.msra.mxu0 0.0
    %3468 = vmatprep.subr.mxu0 0.0
    %3469 = vmatpush1.msra.mxu0 0.0
    %3470 = vmatprep.subr.mxu0 0.0
    %3471 = vmatpush1.msra.mxu0 0.0
    %3472 = vmatprep.subr.mxu0 0.0
    %3473 = vmatpush1.msra.mxu0 0.0
    %3474 = vmatprep.subr.mxu0 0.0
    %3475 = vmatpush1.msra.mxu0 0.0
    %3476 = vmatprep.subr.mxu0 0.0
    %3477 = vmatpush1.msra.mxu0 0.0
    %3478 = vmatprep.subr.mxu0 0.0
    %3479 = vmatpush1.msra.mxu0 0.0
    %3480 = vmatprep.subr.mxu0 0.0
    %3481 = vmatpush1.msra.mxu0 0.0
    %3482 = vmatprep.subr.mxu0 0.0
    %3483 = vmatpush1.msra.mxu0 0.0
    %3484 = vmatprep.subr.mxu0 0.0
    %3485 = vmatpush1.msra.mxu0 0.0
    %3486 = vmatprep.subr.mxu0 0.0
    %3487 = vmatpush1.msra.mxu0 0.0
    %3488 = vmatprep.subr.mxu0 0.0
    %3489 = vmatpush1.msra.mxu0 0.0
    %3490 = vmatprep.subr.mxu0 0.0
    %3491 = vmatpush1.msra.mxu0 0.0
    %3492 = vmatprep.subr.mxu0 0.0
    %3493 = vmatpush1.msra.mxu0 0.0
    %3494 = vmatprep.subr.mxu0 0.0
    %3495 = vmatpush1.msra.mxu0 0.0
    %3496 = vmatprep.subr.mxu0 0.0
    %3497 = vmatpush1.msra.mxu0 0.0
    %3498 = vmatprep.subr.mxu0 0.0
    %3499 = vmatpush1.msra.mxu0 0.0
    %3500 = vmatprep.subr.mxu0 0.0
    %3501 = vmatpush1.msra.mxu0 0.0
    %3502 = vmatprep.subr.mxu0 0.0
    %3503 = vmatpush1.msra.mxu0 0.0
    %3504 = vmatprep.subr.mxu0 0.0
    %3505 = vmatpush1.msra.mxu0 0.0
    %3506 = vmatprep.subr.mxu0 0.0
    %3507 = vmatpush1.msra.mxu0 0.0
    %3508 = vmatprep.subr.mxu0 0.0
    %3509 = vmatpush1.msra.mxu0 0.0
    %3510 = vmatprep.subr.mxu0 0.0
    %3511 = vmatpush1.msra.mxu0 0.0
    %3512 = vmatprep.subr.mxu0 0.0
    %3513 = vmatpush1.msra.mxu0 0.0
    %3514 = vmatprep.mubr.f32.mxu0 0.0
    %3515 = vmatmul.mubr.f32.gmra.mrb[0].mxu0 %v3440
    %v3516 = vpop.f32.mrb[0].mxu0
    %v3517 = vadd.f32 0.0, %v3516
    %v3518 = vpop.f32.mrb[0].mxu0
    %3519 = vmatprep.mubr.f32.mxu0 0.0
    %3520 = vmatmul.mubr.f32.gmra.mrb[0].mxu0 %v3443
    %v3521 = vpop.f32.mrb[0].mxu0
    %v3522 = vadd.f32 0.0, %v3521
    %v3523 = vpop.f32.mrb[0].mxu0
    %3524 = vmatprep.mubr.f32.mxu0 0.0
    %3525 = vmatmul.mubr.f32.gmra.mrb[0].mxu0 %v3446
    %v3526 = vpop.f32.mrb[0].mxu0
    %v3527 = vadd.f32 0.0, %v3526
    %v3528 = vpop.f32.mrb[0].mxu0
    %3529 = vdwg.mxu0
    %3530 = vst.msk [vmem:[#allocation4] sm:$0xff] %vm449, %v3517
    %3531 = vst.msk [vmem:[#allocation4 + $0x8] sm:$0xff] %vm449, %v3522
    %3532 = vst.msk [vmem:[#allocation4 + $0x10] sm:$0x1] %vm682, %v3527
    %v3533 = vld [vmem:[#allocation3] sm:$0xff]
    %v3534 = vld [vmem:[#allocation3 + $0x8] sm:$0xff]
    %v3535 = vld [vmem:[#allocation3 + $0x10] sm:$0x1]
    %3539 = vrot.lane.b32.xlu0 %v3533, 120
    %v3540 = vpop.permute.xlu0 %3539
    %3541 = vrot.lane.b32.xlu0 %v3534, 120
    %v3542 = vpop.permute.xlu0 %3541
    %3543 = vrot.lane.b32.xlu0 %v3535, 120
    %v3544 = vpop.permute.xlu0 %3543
    %3545 = vrot.lane.b32.xlu0 %v3533, 88
    %v3546 = vpop.permute.xlu0 %3545
    %3547 = vrot.lane.b32.xlu0 %v3534, 88
    %v3548 = vpop.permute.xlu0 %3547
    %3549 = vrot.lane.b32.xlu0 %v3535, 88
    %v3550 = vpop.permute.xlu0 %3549
    %v3551 = vsel %vm449, %v3540, 0
    %v3553 = vsel %vm449, %v3542, 0
    %v3555 = vsel %vm449, %v3544, 0
    %v3557 = vsel %vm449, %v3546, 0
    %v3559 = vsel %vm449, %v3548, 0
    %v3561 = vsel %vm449, %v3550, 0
    %3563 = vmatprep.subr.mxu0 0.0
    %3564 = vmatpush1.xpose.msra.mxu0 %v3557
    %3565 = vmatprep.subr.mxu0 0.0
    %3566 = vmatpush1.xpose.msra.mxu0 %v3559
    %3567 = vmatprep.subr.mxu0 0.0
    %3568 = vmatpush1.xpose.msra.mxu0 %v3561
    %3569 = vmatprep.subr.mxu0 0.0
    %3570 = vmatpush1.xpose.msra.mxu0 0.0
    %3571 = vmatprep.subr.mxu0 0.0
    %3572 = vmatpush1.xpose.msra.mxu0 0.0
    %3573 = vmatprep.subr.mxu0 0.0
    %3574 = vmatpush1.xpose.msra.mxu0 0.0
    %3575 = vmatprep.subr.mxu0 0.0
    %3576 = vmatpush1.xpose.msra.mxu0 0.0
    %3577 = vmatprep.subr.mxu0 0.0
    %3578 = vmatpush1.xpose.msra.mxu0 0.0
    %3579 = vmatprep.subr.mxu0 0.0
    %3580 = vmatpush1.xpose.msra.mxu0 0.0
    %3581 = vmatprep.subr.mxu0 0.0
    %3582 = vmatpush1.xpose.msra.mxu0 0.0
    %3583 = vmatprep.subr.mxu0 0.0
    %3584 = vmatpush1.xpose.msra.mxu0 0.0
    %3585 = vmatprep.subr.mxu0 0.0
    %3586 = vmatpush1.xpose.msra.mxu0 0.0
    %3587 = vmatprep.subr.mxu0 0.0
    %3588 = vmatpush1.xpose.msra.mxu0 0.0
    %3589 = vmatprep.subr.mxu0 0.0
    %3590 = vmatpush1.xpose.msra.mxu0 0.0
    %3591 = vmatprep.subr.mxu0 0.0
    %3592 = vmatpush1.xpose.msra.mxu0 0.0
    %3593 = vmatprep.subr.mxu0 0.0
    %3594 = vmatpush1.xpose.msra.mxu0 0.0
    %3595 = vmatprep.subr.mxu0 0.0
    %3596 = vmatpush1.xpose.msra.mxu0 0.0
    %3597 = vmatprep.subr.mxu0 0.0
    %3598 = vmatpush1.xpose.msra.mxu0 0.0
    %3599 = vmatprep.subr.mxu0 0.0
    %3600 = vmatpush1.xpose.msra.mxu0 0.0
    %3601 = vmatprep.subr.mxu0 0.0
    %3602 = vmatpush1.xpose.msra.mxu0 0.0
    %3603 = vmatprep.subr.mxu0 0.0
    %3604 = vmatpush1.xpose.msra.mxu0 0.0
    %3605 = vmatprep.subr.mxu0 0.0
    %3606 = vmatpush1.xpose.msra.mxu0 0.0
    %3607 = vmatprep.subr.mxu0 0.0
    %3608 = vmatpush1.xpose.msra.mxu0 0.0
    %3609 = vmatprep.subr.mxu0 0.0
    %3610 = vmatpush1.xpose.msra.mxu0 0.0
    %3611 = vmatprep.subr.mxu0 0.0
    %3612 = vmatpush1.xpose.msra.mxu0 0.0
    %3613 = vmatprep.subr.mxu0 0.0
    %3614 = vmatpush1.xpose.msra.mxu0 0.0
    %3615 = vmatprep.subr.mxu0 0.0
    %3616 = vmatpush1.xpose.msra.mxu0 0.0
    %3617 = vmatprep.subr.mxu0 0.0
    %3618 = vmatpush1.xpose.msra.mxu0 0.0
    %3619 = vmatprep.subr.mxu0 0.0
    %3620 = vmatpush1.xpose.msra.mxu0 0.0
    %3621 = vmatprep.subr.mxu0 0.0
    %3622 = vmatpush1.xpose.msra.mxu0 0.0
    %3623 = vmatprep.subr.mxu0 0.0
    %3624 = vmatpush1.xpose.msra.mxu0 0.0
    %3625 = vmatprep.subr.mxu0 0.0
    %3626 = vmatpush1.xpose.msra.mxu0 0.0
    %3627 = vmatprep.mubr.f32.mxu0 0.0
    %3628 = vmatmul.mubr.f32.gmra.mrb[0].mxu0 %v3551
    %v3629 = vpop.f32.mrb[0].mxu0
    %v3630 = vadd.f32 0.0, %v3629
    %v3631 = vpop.f32.mrb[0].mxu0
    %3632 = vmatprep.mubr.f32.mxu0 0.0
    %3633 = vmatmul.mubr.f32.gmra.mrb[0].mxu0 %v3553
    %v3634 = vpop.f32.mrb[0].mxu0
    %v3635 = vadd.f32 0.0, %v3634
    %v3636 = vpop.f32.mrb[0].mxu0
    %3637 = vmatprep.mubr.f32.mxu0 0.0
    %3638 = vmatmul.mubr.f32.gmra.mrb[0].mxu0 %v3555
    %v3639 = vpop.f32.mrb[0].mxu0
    %v3640 = vadd.f32 0.0, %v3639
    %v3641 = vpop.f32.mrb[0].mxu0
    %3642 = vdwg.mxu0
    %v3643 = vmul.f32 %v3630, 0.35355338
    %v3644 = vmul.f32 %v3635, 0.35355338
    %v3645 = vmul.f32 %v3640, 0.35355338
    %v3646 = vsel %vm545, %v3643, -inf
    %3647 = vmax.xlane.f32.xlu0 %v3646
    %v3648 = vpop.xlane.xlu0 %3647
    %v3649 = vsel %vm545, %v3644, -inf
    %3650 = vmax.xlane.f32.xlu0 %v3649
    %v3651 = vpop.xlane.xlu0 %3650
    %v3652 = vsel %vm552, %v3645, -inf
    %3653 = vmax.xlane.f32.xlu0 %v3652
    %v3654 = vpop.xlane.xlu0 %3653
    %v3655 = vsub.f32 %v3643, %v3648
    %v3656 = vsub.f32 %v3644, %v3651
    %v3657 = vsub.f32 %v3645, %v3654
    %v3658 = vmul.f32 %v3655, 1.442695
    %v3659 = vpow.pop %v3658
    %v3660 = vmul.f32 %v3656, 1.442695
    %v3661 = vpow.pop %v3660
    %v3662 = vmul.f32 %v3657, 1.442695
    %v3663 = vpow.pop %v3662
    %v3664 = vsel %vm545, %v3659, 0.0
    %3665 = vadd.xlane.f32.xlu0 %v3664
    %v3666 = vpop.xlane.xlu0 %3665
    %v3667 = vsel %vm545, %v3661, 0.0
    %3668 = vadd.xlane.f32.xlu0 %v3667
    %v3669 = vpop.xlane.xlu0 %3668
    %v3670 = vsel %vm552, %v3663, 0.0
    %3671 = vadd.xlane.f32.xlu0 %v3670
    %v3672 = vpop.xlane.xlu0 %3671
    %v3673 = vrcp.pop %v3666
    %v3674 = vrcp.pop %v3669
    %v3675 = vrcp.pop %v3672
    %v3676 = vmul.f32 %v3659, %v3673
    %v3677 = vmul.f32 %v3661, %v3674
    %v3678 = vmul.f32 %v3663, %v3675
    %3679 = vrot.lane.b32.xlu0 %v3533, 56
    %v3680 = vpop.permute.xlu0 %3679
    %3681 = vrot.lane.b32.xlu0 %v3534, 56
    %v3682 = vpop.permute.xlu0 %3681
    %3683 = vrot.lane.b32.xlu0 %v3535, 56
    %v3684 = vpop.permute.xlu0 %3683
    %v3688 = vsel %vm545, %v3676, 0
    %v3691 = vsel %vm545, %v3677, 0
    %v3694 = vsel %vm545, %v3678, 0
    %v3696 = vsel %vm597, %v3684, 0
    %3698 = vmatprep.subr.mxu0 0.0
    %3699 = vmatpush1.msra.mxu0 %v3680
    %3700 = vmatprep.subr.mxu0 0.0
    %3701 = vmatpush1.msra.mxu0 %v3682
    %3702 = vmatprep.subr.mxu0 0.0
    %3703 = vmatpush1.msra.mxu0 %v3696
    %3704 = vmatprep.subr.mxu0 0.0
    %3705 = vmatpush1.msra.mxu0 0.0
    %3706 = vmatprep.subr.mxu0 0.0
    %3707 = vmatpush1.msra.mxu0 0.0
    %3708 = vmatprep.subr.mxu0 0.0
    %3709 = vmatpush1.msra.mxu0 0.0
    %3710 = vmatprep.subr.mxu0 0.0
    %3711 = vmatpush1.msra.mxu0 0.0
    %3712 = vmatprep.subr.mxu0 0.0
    %3713 = vmatpush1.msra.mxu0 0.0
    %3714 = vmatprep.subr.mxu0 0.0
    %3715 = vmatpush1.msra.mxu0 0.0
    %3716 = vmatprep.subr.mxu0 0.0
    %3717 = vmatpush1.msra.mxu0 0.0
    %3718 = vmatprep.subr.mxu0 0.0
    %3719 = vmatpush1.msra.mxu0 0.0
    %3720 = vmatprep.subr.mxu0 0.0
    %3721 = vmatpush1.msra.mxu0 0.0
    %3722 = vmatprep.subr.mxu0 0.0
    %3723 = vmatpush1.msra.mxu0 0.0
    %3724 = vmatprep.subr.mxu0 0.0
    %3725 = vmatpush1.msra.mxu0 0.0
    %3726 = vmatprep.subr.mxu0 0.0
    %3727 = vmatpush1.msra.mxu0 0.0
    %3728 = vmatprep.subr.mxu0 0.0
    %3729 = vmatpush1.msra.mxu0 0.0
    %3730 = vmatprep.subr.mxu0 0.0
    %3731 = vmatpush1.msra.mxu0 0.0
    %3732 = vmatprep.subr.mxu0 0.0
    %3733 = vmatpush1.msra.mxu0 0.0
    %3734 = vmatprep.subr.mxu0 0.0
    %3735 = vmatpush1.msra.mxu0 0.0
    %3736 = vmatprep.subr.mxu0 0.0
    %3737 = vmatpush1.msra.mxu0 0.0
    %3738 = vmatprep.subr.mxu0 0.0
    %3739 = vmatpush1.msra.mxu0 0.0
    %3740 = vmatprep.subr.mxu0 0.0
    %3741 = vmatpush1.msra.mxu0 0.0
    %3742 = vmatprep.subr.mxu0 0.0
    %3743 = vmatpush1.msra.mxu0 0.0
    %3744 = vmatprep.subr.mxu0 0.0
    %3745 = vmatpush1.msra.mxu0 0.0
    %3746 = vmatprep.subr.mxu0 0.0
    %3747 = vmatpush1.msra.mxu0 0.0
    %3748 = vmatprep.subr.mxu0 0.0
    %3749 = vmatpush1.msra.mxu0 0.0
    %3750 = vmatprep.subr.mxu0 0.0
    %3751 = vmatpush1.msra.mxu0 0.0
    %3752 = vmatprep.subr.mxu0 0.0
    %3753 = vmatpush1.msra.mxu0 0.0
    %3754 = vmatprep.subr.mxu0 0.0
    %3755 = vmatpush1.msra.mxu0 0.0
    %3756 = vmatprep.subr.mxu0 0.0
    %3757 = vmatpush1.msra.mxu0 0.0
    %3758 = vmatprep.subr.mxu0 0.0
    %3759 = vmatpush1.msra.mxu0 0.0
    %3760 = vmatprep.subr.mxu0 0.0
    %3761 = vmatpush1.msra.mxu0 0.0
    %3762 = vmatprep.mubr.f32.mxu0 0.0
    %3763 = vmatmul.mubr.f32.gmra.mrb[0].mxu0 %v3688
    %v3764 = vpop.f32.mrb[0].mxu0
    %v3765 = vadd.f32 0.0, %v3764
    %v3766 = vpop.f32.mrb[0].mxu0
    %3767 = vmatprep.mubr.f32.mxu0 0.0
    %3768 = vmatmul.mubr.f32.gmra.mrb[0].mxu0 %v3691
    %v3769 = vpop.f32.mrb[0].mxu0
    %v3770 = vadd.f32 0.0, %v3769
    %v3771 = vpop.f32.mrb[0].mxu0
    %3772 = vmatprep.mubr.f32.mxu0 0.0
    %3773 = vmatmul.mubr.f32.gmra.mrb[0].mxu0 %v3694
    %v3774 = vpop.f32.mrb[0].mxu0
    %v3775 = vadd.f32 0.0, %v3774
    %v3776 = vpop.f32.mrb[0].mxu0
    %3777 = vdwg.mxu0
    %3781 = vrot.lane.b32.xlu0 %v3765, 8
    %v3782 = vpop.permute.xlu0 %3781
    %3783 = vrot.lane.b32.xlu0 %v3770, 8
    %v3784 = vpop.permute.xlu0 %3783
    %3785 = vrot.lane.b32.xlu0 %v3775, 8
    %v3786 = vpop.permute.xlu0 %3785
    %3790 = vst.msk [vmem:[#allocation4] sm:$0xff] %vm941, %v3782
    %3791 = vst.msk [vmem:[#allocation4 + $0x8] sm:$0xff] %vm941, %v3784
    %3792 = vst.msk [vmem:[#allocation4 + $0x10] sm:$0x1] %vm944, %v3786
    %v3793 = vld [vmem:[#allocation3] sm:$0xff]
    %v3794 = vld [vmem:[#allocation3 + $0x8] sm:$0xff]
    %v3795 = vld [vmem:[#allocation3 + $0x10] sm:$0x1]
    %3799 = vrot.lane.b32.xlu0 %v3793, 112
    %v3800 = vpop.permute.xlu0 %3799
    %3801 = vrot.lane.b32.xlu0 %v3794, 112
    %v3802 = vpop.permute.xlu0 %3801
    %3803 = vrot.lane.b32.xlu0 %v3795, 112
    %v3804 = vpop.permute.xlu0 %3803
    %3805 = vrot.lane.b32.xlu0 %v3793, 80
    %v3806 = vpop.permute.xlu0 %3805
    %3807 = vrot.lane.b32.xlu0 %v3794, 80
    %v3808 = vpop.permute.xlu0 %3807
    %3809 = vrot.lane.b32.xlu0 %v3795, 80
    %v3810 = vpop.permute.xlu0 %3809
    %v3811 = vsel %vm449, %v3800, 0
    %v3813 = vsel %vm449, %v3802, 0
    %v3815 = vsel %vm449, %v3804, 0
    %v3817 = vsel %vm449, %v3806, 0
    %v3819 = vsel %vm449, %v3808, 0
    %v3821 = vsel %vm449, %v3810, 0
    %3823 = vmatprep.subr.mxu0 0.0
    %3824 = vmatpush1.xpose.msra.mxu0 %v3817
    %3825 = vmatprep.subr.mxu0 0.0
    %3826 = vmatpush1.xpose.msra.mxu0 %v3819
    %3827 = vmatprep.subr.mxu0 0.0
    %3828 = vmatpush1.xpose.msra.mxu0 %v3821
    %3829 = vmatprep.subr.mxu0 0.0
    %3830 = vmatpush1.xpose.msra.mxu0 0.0
    %3831 = vmatprep.subr.mxu0 0.0
    %3832 = vmatpush1.xpose.msra.mxu0 0.0
    %3833 = vmatprep.subr.mxu0 0.0
    %3834 = vmatpush1.xpose.msra.mxu0 0.0
    %3835 = vmatprep.subr.mxu0 0.0
    %3836 = vmatpush1.xpose.msra.mxu0 0.0
    %3837 = vmatprep.subr.mxu0 0.0
    %3838 = vmatpush1.xpose.msra.mxu0 0.0
    %3839 = vmatprep.subr.mxu0 0.0
    %3840 = vmatpush1.xpose.msra.mxu0 0.0
    %3841 = vmatprep.subr.mxu0 0.0
    %3842 = vmatpush1.xpose.msra.mxu0 0.0
    %3843 = vmatprep.subr.mxu0 0.0
    %3844 = vmatpush1.xpose.msra.mxu0 0.0
    %3845 = vmatprep.subr.mxu0 0.0
    %3846 = vmatpush1.xpose.msra.mxu0 0.0
    %3847 = vmatprep.subr.mxu0 0.0
    %3848 = vmatpush1.xpose.msra.mxu0 0.0
    %3849 = vmatprep.subr.mxu0 0.0
    %3850 = vmatpush1.xpose.msra.mxu0 0.0
    %3851 = vmatprep.subr.mxu0 0.0
    %3852 = vmatpush1.xpose.msra.mxu0 0.0
    %3853 = vmatprep.subr.mxu0 0.0
    %3854 = vmatpush1.xpose.msra.mxu0 0.0
    %3855 = vmatprep.subr.mxu0 0.0
    %3856 = vmatpush1.xpose.msra.mxu0 0.0
    %3857 = vmatprep.subr.mxu0 0.0
    %3858 = vmatpush1.xpose.msra.mxu0 0.0
    %3859 = vmatprep.subr.mxu0 0.0
    %3860 = vmatpush1.xpose.msra.mxu0 0.0
    %3861 = vmatprep.subr.mxu0 0.0
    %3862 = vmatpush1.xpose.msra.mxu0 0.0
    %3863 = vmatprep.subr.mxu0 0.0
    %3864 = vmatpush1.xpose.msra.mxu0 0.0
    %3865 = vmatprep.subr.mxu0 0.0
    %3866 = vmatpush1.xpose.msra.mxu0 0.0
    %3867 = vmatprep.subr.mxu0 0.0
    %3868 = vmatpush1.xpose.msra.mxu0 0.0
    %3869 = vmatprep.subr.mxu0 0.0
    %3870 = vmatpush1.xpose.msra.mxu0 0.0
    %3871 = vmatprep.subr.mxu0 0.0
    %3872 = vmatpush1.xpose.msra.mxu0 0.0
    %3873 = vmatprep.subr.mxu0 0.0
    %3874 = vmatpush1.xpose.msra.mxu0 0.0
    %3875 = vmatprep.subr.mxu0 0.0
    %3876 = vmatpush1.xpose.msra.mxu0 0.0
    %3877 = vmatprep.subr.mxu0 0.0
    %3878 = vmatpush1.xpose.msra.mxu0 0.0
    %3879 = vmatprep.subr.mxu0 0.0
    %3880 = vmatpush1.xpose.msra.mxu0 0.0
    %3881 = vmatprep.subr.mxu0 0.0
    %3882 = vmatpush1.xpose.msra.mxu0 0.0
    %3883 = vmatprep.subr.mxu0 0.0
    %3884 = vmatpush1.xpose.msra.mxu0 0.0
    %3885 = vmatprep.subr.mxu0 0.0
    %3886 = vmatpush1.xpose.msra.mxu0 0.0
    %3887 = vmatprep.mubr.f32.mxu0 0.0
    %3888 = vmatmul.mubr.f32.gmra.mrb[0].mxu0 %v3811
    %v3889 = vpop.f32.mrb[0].mxu0
    %v3890 = vadd.f32 0.0, %v3889
    %v3891 = vpop.f32.mrb[0].mxu0
    %3892 = vmatprep.mubr.f32.mxu0 0.0
    %3893 = vmatmul.mubr.f32.gmra.mrb[0].mxu0 %v3813
    %v3894 = vpop.f32.mrb[0].mxu0
    %v3895 = vadd.f32 0.0, %v3894
    %v3896 = vpop.f32.mrb[0].mxu0
    %3897 = vmatprep.mubr.f32.mxu0 0.0
    %3898 = vmatmul.mubr.f32.gmra.mrb[0].mxu0 %v3815
    %v3899 = vpop.f32.mrb[0].mxu0
    %v3900 = vadd.f32 0.0, %v3899
    %v3901 = vpop.f32.mrb[0].mxu0
    %3902 = vdwg.mxu0
    %v3903 = vmul.f32 %v3890, 0.35355338
    %v3904 = vmul.f32 %v3895, 0.35355338
    %v3905 = vmul.f32 %v3900, 0.35355338
    %v3906 = vsel %vm545, %v3903, -inf
    %3907 = vmax.xlane.f32.xlu0 %v3906
    %v3908 = vpop.xlane.xlu0 %3907
    %v3909 = vsel %vm545, %v3904, -inf
    %3910 = vmax.xlane.f32.xlu0 %v3909
    %v3911 = vpop.xlane.xlu0 %3910
    %v3912 = vsel %vm552, %v3905, -inf
    %3913 = vmax.xlane.f32.xlu0 %v3912
    %v3914 = vpop.xlane.xlu0 %3913
    %v3915 = vsub.f32 %v3903, %v3908
    %v3916 = vsub.f32 %v3904, %v3911
    %v3917 = vsub.f32 %v3905, %v3914
    %v3918 = vmul.f32 %v3915, 1.442695
    %v3919 = vpow.pop %v3918
    %v3920 = vmul.f32 %v3916, 1.442695
    %v3921 = vpow.pop %v3920
    %v3922 = vmul.f32 %v3917, 1.442695
    %v3923 = vpow.pop %v3922
    %v3924 = vsel %vm545, %v3919, 0.0
    %3925 = vadd.xlane.f32.xlu0 %v3924
    %v3926 = vpop.xlane.xlu0 %3925
    %v3927 = vsel %vm545, %v3921, 0.0
    %3928 = vadd.xlane.f32.xlu0 %v3927
    %v3929 = vpop.xlane.xlu0 %3928
    %v3930 = vsel %vm552, %v3923, 0.0
    %3931 = vadd.xlane.f32.xlu0 %v3930
    %v3932 = vpop.xlane.xlu0 %3931
    %v3933 = vrcp.pop %v3926
    %v3934 = vrcp.pop %v3929
    %v3935 = vrcp.pop %v3932
    %v3936 = vmul.f32 %v3919, %v3933
    %v3937 = vmul.f32 %v3921, %v3934
    %v3938 = vmul.f32 %v3923, %v3935
    %3939 = vrot.lane.b32.xlu0 %v3793, 48
    %v3940 = vpop.permute.xlu0 %3939
    %3941 = vrot.lane.b32.xlu0 %v3794, 48
    %v3942 = vpop.permute.xlu0 %3941
    %3943 = vrot.lane.b32.xlu0 %v3795, 48
    %v3944 = vpop.permute.xlu0 %3943
    %v3948 = vsel %vm545, %v3936, 0
    %v3951 = vsel %vm545, %v3937, 0
    %v3954 = vsel %vm545, %v3938, 0
    %v3956 = vsel %vm597, %v3944, 0
    %3958 = vmatprep.subr.mxu0 0.0
    %3959 = vmatpush1.msra.mxu0 %v3940
    %3960 = vmatprep.subr.mxu0 0.0
    %3961 = vmatpush1.msra.mxu0 %v3942
    %3962 = vmatprep.subr.mxu0 0.0
    %3963 = vmatpush1.msra.mxu0 %v3956
    %3964 = vmatprep.subr.mxu0 0.0
    %3965 = vmatpush1.msra.mxu0 0.0
    %3966 = vmatprep.subr.mxu0 0.0
    %3967 = vmatpush1.msra.mxu0 0.0
    %3968 = vmatprep.subr.mxu0 0.0
    %3969 = vmatpush1.msra.mxu0 0.0
    %3970 = vmatprep.subr.mxu0 0.0
    %3971 = vmatpush1.msra.mxu0 0.0
    %3972 = vmatprep.subr.mxu0 0.0
    %3973 = vmatpush1.msra.mxu0 0.0
    %3974 = vmatprep.subr.mxu0 0.0
    %3975 = vmatpush1.msra.mxu0 0.0
    %3976 = vmatprep.subr.mxu0 0.0
    %3977 = vmatpush1.msra.mxu0 0.0
    %3978 = vmatprep.subr.mxu0 0.0
    %3979 = vmatpush1.msra.mxu0 0.0
    %3980 = vmatprep.subr.mxu0 0.0
    %3981 = vmatpush1.msra.mxu0 0.0
    %3982 = vmatprep.subr.mxu0 0.0
    %3983 = vmatpush1.msra.mxu0 0.0
    %3984 = vmatprep.subr.mxu0 0.0
    %3985 = vmatpush1.msra.mxu0 0.0
    %3986 = vmatprep.subr.mxu0 0.0
    %3987 = vmatpush1.msra.mxu0 0.0
    %3988 = vmatprep.subr.mxu0 0.0
    %3989 = vmatpush1.msra.mxu0 0.0
    %3990 = vmatprep.subr.mxu0 0.0
    %3991 = vmatpush1.msra.mxu0 0.0
    %3992 = vmatprep.subr.mxu0 0.0
    %3993 = vmatpush1.msra.mxu0 0.0
    %3994 = vmatprep.subr.mxu0 0.0
    %3995 = vmatpush1.msra.mxu0 0.0
    %3996 = vmatprep.subr.mxu0 0.0
    %3997 = vmatpush1.msra.mxu0 0.0
    %3998 = vmatprep.subr.mxu0 0.0
    %3999 = vmatpush1.msra.mxu0 0.0
    %4000 = vmatprep.subr.mxu0 0.0
    %4001 = vmatpush1.msra.mxu0 0.0
    %4002 = vmatprep.subr.mxu0 0.0
    %4003 = vmatpush1.msra.mxu0 0.0
    %4004 = vmatprep.subr.mxu0 0.0
    %4005 = vmatpush1.msra.mxu0 0.0
    %4006 = vmatprep.subr.mxu0 0.0
    %4007 = vmatpush1.msra.mxu0 0.0
    %4008 = vmatprep.subr.mxu0 0.0
    %4009 = vmatpush1.msra.mxu0 0.0
    %4010 = vmatprep.subr.mxu0 0.0
    %4011 = vmatpush1.msra.mxu0 0.0
    %4012 = vmatprep.subr.mxu0 0.0
    %4013 = vmatpush1.msra.mxu0 0.0
    %4014 = vmatprep.subr.mxu0 0.0
    %4015 = vmatpush1.msra.mxu0 0.0
    %4016 = vmatprep.subr.mxu0 0.0
    %4017 = vmatpush1.msra.mxu0 0.0
    %4018 = vmatprep.subr.mxu0 0.0
    %4019 = vmatpush1.msra.mxu0 0.0
    %4020 = vmatprep.subr.mxu0 0.0
    %4021 = vmatpush1.msra.mxu0 0.0
    %4022 = vmatprep.mubr.f32.mxu0 0.0
    %4023 = vmatmul.mubr.f32.gmra.mrb[0].mxu0 %v3948
    %v4024 = vpop.f32.mrb[0].mxu0
    %v4025 = vadd.f32 0.0, %v4024
    %v4026 = vpop.f32.mrb[0].mxu0
    %4027 = vmatprep.mubr.f32.mxu0 0.0
    %4028 = vmatmul.mubr.f32.gmra.mrb[0].mxu0 %v3951
    %v4029 = vpop.f32.mrb[0].mxu0
    %v4030 = vadd.f32 0.0, %v4029
    %v4031 = vpop.f32.mrb[0].mxu0
    %4032 = vmatprep.mubr.f32.mxu0 0.0
    %4033 = vmatmul.mubr.f32.gmra.mrb[0].mxu0 %v3954
    %v4034 = vpop.f32.mrb[0].mxu0
    %v4035 = vadd.f32 0.0, %v4034
    %v4036 = vpop.f32.mrb[0].mxu0
    %4037 = vdwg.mxu0
    %4041 = vrot.lane.b32.xlu0 %v4025, 16
    %v4042 = vpop.permute.xlu0 %4041
    %4043 = vrot.lane.b32.xlu0 %v4030, 16
    %v4044 = vpop.permute.xlu0 %4043
    %4045 = vrot.lane.b32.xlu0 %v4035, 16
    %v4046 = vpop.permute.xlu0 %4045
    %4050 = vst.msk [vmem:[#allocation4] sm:$0xff] %vm1203, %v4042
    %4051 = vst.msk [vmem:[#allocation4 + $0x8] sm:$0xff] %vm1203, %v4044
    %4052 = vst.msk [vmem:[#allocation4 + $0x10] sm:$0x1] %vm1206, %v4046
    %v4053 = vld [vmem:[#allocation3] sm:$0xff]
    %v4054 = vld [vmem:[#allocation3 + $0x8] sm:$0xff]
    %v4055 = vld [vmem:[#allocation3 + $0x10] sm:$0x1]
    %4059 = vrot.lane.b32.xlu0 %v4053, 104
    %v4060 = vpop.permute.xlu0 %4059
    %4061 = vrot.lane.b32.xlu0 %v4054, 104
    %v4062 = vpop.permute.xlu0 %4061
    %4063 = vrot.lane.b32.xlu0 %v4055, 104
    %v4064 = vpop.permute.xlu0 %4063
    %4065 = vrot.lane.b32.xlu0 %v4053, 72
    %v4066 = vpop.permute.xlu0 %4065
    %4067 = vrot.lane.b32.xlu0 %v4054, 72
    %v4068 = vpop.permute.xlu0 %4067
    %4069 = vrot.lane.b32.xlu0 %v4055, 72
    %v4070 = vpop.permute.xlu0 %4069
    %v4071 = vsel %vm449, %v4060, 0
    %v4073 = vsel %vm449, %v4062, 0
    %v4075 = vsel %vm449, %v4064, 0
    %v4077 = vsel %vm449, %v4066, 0
    %v4079 = vsel %vm449, %v4068, 0
    %v4081 = vsel %vm449, %v4070, 0
    %4083 = vmatprep.subr.mxu0 0.0
    %4084 = vmatpush1.xpose.msra.mxu0 %v4077
    %4085 = vmatprep.subr.mxu0 0.0
    %4086 = vmatpush1.xpose.msra.mxu0 %v4079
    %4087 = vmatprep.subr.mxu0 0.0
    %4088 = vmatpush1.xpose.msra.mxu0 %v4081
    %4089 = vmatprep.subr.mxu0 0.0
    %4090 = vmatpush1.xpose.msra.mxu0 0.0
    %4091 = vmatprep.subr.mxu0 0.0
    %4092 = vmatpush1.xpose.msra.mxu0 0.0
    %4093 = vmatprep.subr.mxu0 0.0
    %4094 = vmatpush1.xpose.msra.mxu0 0.0
    %4095 = vmatprep.subr.mxu0 0.0
    %4096 = vmatpush1.xpose.msra.mxu0 0.0
    %4097 = vmatprep.subr.mxu0 0.0
    %4098 = vmatpush1.xpose.msra.mxu0 0.0
    %4099 = vmatprep.subr.mxu0 0.0
    %4100 = vmatpush1.xpose.msra.mxu0 0.0
    %4101 = vmatprep.subr.mxu0 0.0
    %4102 = vmatpush1.xpose.msra.mxu0 0.0
    %4103 = vmatprep.subr.mxu0 0.0
    %4104 = vmatpush1.xpose.msra.mxu0 0.0
    %4105 = vmatprep.subr.mxu0 0.0
    %4106 = vmatpush1.xpose.msra.mxu0 0.0
    %4107 = vmatprep.subr.mxu0 0.0
    %4108 = vmatpush1.xpose.msra.mxu0 0.0
    %4109 = vmatprep.subr.mxu0 0.0
    %4110 = vmatpush1.xpose.msra.mxu0 0.0
    %4111 = vmatprep.subr.mxu0 0.0
    %4112 = vmatpush1.xpose.msra.mxu0 0.0
    %4113 = vmatprep.subr.mxu0 0.0
    %4114 = vmatpush1.xpose.msra.mxu0 0.0
    %4115 = vmatprep.subr.mxu0 0.0
    %4116 = vmatpush1.xpose.msra.mxu0 0.0
    %4117 = vmatprep.subr.mxu0 0.0
    %4118 = vmatpush1.xpose.msra.mxu0 0.0
    %4119 = vmatprep.subr.mxu0 0.0
    %4120 = vmatpush1.xpose.msra.mxu0 0.0
    %4121 = vmatprep.subr.mxu0 0.0
    %4122 = vmatpush1.xpose.msra.mxu0 0.0
    %4123 = vmatprep.subr.mxu0 0.0
    %4124 = vmatpush1.xpose.msra.mxu0 0.0
    %4125 = vmatprep.subr.mxu0 0.0
    %4126 = vmatpush1.xpose.msra.mxu0 0.0
    %4127 = vmatprep.subr.mxu0 0.0
    %4128 = vmatpush1.xpose.msra.mxu0 0.0
    %4129 = vmatprep.subr.mxu0 0.0
    %4130 = vmatpush1.xpose.msra.mxu0 0.0
    %4131 = vmatprep.subr.mxu0 0.0
    %4132 = vmatpush1.xpose.msra.mxu0 0.0
    %4133 = vmatprep.subr.mxu0 0.0
    %4134 = vmatpush1.xpose.msra.mxu0 0.0
    %4135 = vmatprep.subr.mxu0 0.0
    %4136 = vmatpush1.xpose.msra.mxu0 0.0
    %4137 = vmatprep.subr.mxu0 0.0
    %4138 = vmatpush1.xpose.msra.mxu0 0.0
    %4139 = vmatprep.subr.mxu0 0.0
    %4140 = vmatpush1.xpose.msra.mxu0 0.0
    %4141 = vmatprep.subr.mxu0 0.0
    %4142 = vmatpush1.xpose.msra.mxu0 0.0
    %4143 = vmatprep.subr.mxu0 0.0
    %4144 = vmatpush1.xpose.msra.mxu0 0.0
    %4145 = vmatprep.subr.mxu0 0.0
    %4146 = vmatpush1.xpose.msra.mxu0 0.0
    %4147 = vmatprep.mubr.f32.mxu0 0.0
    %4148 = vmatmul.mubr.f32.gmra.mrb[0].mxu0 %v4071
    %v4149 = vpop.f32.mrb[0].mxu0
    %v4150 = vadd.f32 0.0, %v4149
    %v4151 = vpop.f32.mrb[0].mxu0
    %4152 = vmatprep.mubr.f32.mxu0 0.0
    %4153 = vmatmul.mubr.f32.gmra.mrb[0].mxu0 %v4073
    %v4154 = vpop.f32.mrb[0].mxu0
    %v4155 = vadd.f32 0.0, %v4154
    %v4156 = vpop.f32.mrb[0].mxu0
    %4157 = vmatprep.mubr.f32.mxu0 0.0
    %4158 = vmatmul.mubr.f32.gmra.mrb[0].mxu0 %v4075
    %v4159 = vpop.f32.mrb[0].mxu0
    %v4160 = vadd.f32 0.0, %v4159
    %v4161 = vpop.f32.mrb[0].mxu0
    %4162 = vdwg.mxu0
    %v4163 = vmul.f32 %v4150, 0.35355338
    %v4164 = vmul.f32 %v4155, 0.35355338
    %v4165 = vmul.f32 %v4160, 0.35355338
    %v4166 = vsel %vm545, %v4163, -inf
    %4167 = vmax.xlane.f32.xlu0 %v4166
    %v4168 = vpop.xlane.xlu0 %4167
    %v4169 = vsel %vm545, %v4164, -inf
    %4170 = vmax.xlane.f32.xlu0 %v4169
    %v4171 = vpop.xlane.xlu0 %4170
    %v4172 = vsel %vm552, %v4165, -inf
    %4173 = vmax.xlane.f32.xlu0 %v4172
    %v4174 = vpop.xlane.xlu0 %4173
    %v4175 = vsub.f32 %v4163, %v4168
    %v4176 = vsub.f32 %v4164, %v4171
    %v4177 = vsub.f32 %v4165, %v4174
    %v4178 = vmul.f32 %v4175, 1.442695
    %v4179 = vpow.pop %v4178
    %v4180 = vmul.f32 %v4176, 1.442695
    %v4181 = vpow.pop %v4180
    %v4182 = vmul.f32 %v4177, 1.442695
    %v4183 = vpow.pop %v4182
    %v4184 = vsel %vm545, %v4179, 0.0
    %4185 = vadd.xlane.f32.xlu0 %v4184
    %v4186 = vpop.xlane.xlu0 %4185
    %v4187 = vsel %vm545, %v4181, 0.0
    %4188 = vadd.xlane.f32.xlu0 %v4187
    %v4189 = vpop.xlane.xlu0 %4188
    %v4190 = vsel %vm552, %v4183, 0.0
    %4191 = vadd.xlane.f32.xlu0 %v4190
    %v4192 = vpop.xlane.xlu0 %4191
    %v4193 = vrcp.pop %v4186
    %v4194 = vrcp.pop %v4189
    %v4195 = vrcp.pop %v4192
    %v4196 = vmul.f32 %v4179, %v4193
    %v4197 = vmul.f32 %v4181, %v4194
    %v4198 = vmul.f32 %v4183, %v4195
    %4199 = vrot.lane.b32.xlu0 %v4053, 40
    %v4200 = vpop.permute.xlu0 %4199
    %4201 = vrot.lane.b32.xlu0 %v4054, 40
    %v4202 = vpop.permute.xlu0 %4201
    %4203 = vrot.lane.b32.xlu0 %v4055, 40
    %v4204 = vpop.permute.xlu0 %4203
    %v4208 = vsel %vm545, %v4196, 0
    %v4211 = vsel %vm545, %v4197, 0
    %v4214 = vsel %vm545, %v4198, 0
    %v4216 = vsel %vm597, %v4204, 0
    %4218 = vmatprep.subr.mxu0 0.0
    %4219 = vmatpush1.msra.mxu0 %v4200
    %4220 = vmatprep.subr.mxu0 0.0
    %4221 = vmatpush1.msra.mxu0 %v4202
    %4222 = vmatprep.subr.mxu0 0.0
    %4223 = vmatpush1.msra.mxu0 %v4216
    %4224 = vmatprep.subr.mxu0 0.0
    %4225 = vmatpush1.msra.mxu0 0.0
    %4226 = vmatprep.subr.mxu0 0.0
    %4227 = vmatpush1.msra.mxu0 0.0
    %4228 = vmatprep.subr.mxu0 0.0
    %4229 = vmatpush1.msra.mxu0 0.0
    %4230 = vmatprep.subr.mxu0 0.0
    %4231 = vmatpush1.msra.mxu0 0.0
    %4232 = vmatprep.subr.mxu0 0.0
    %4233 = vmatpush1.msra.mxu0 0.0
    %4234 = vmatprep.subr.mxu0 0.0
    %4235 = vmatpush1.msra.mxu0 0.0
    %4236 = vmatprep.subr.mxu0 0.0
    %4237 = vmatpush1.msra.mxu0 0.0
    %4238 = vmatprep.subr.mxu0 0.0
    %4239 = vmatpush1.msra.mxu0 0.0
    %4240 = vmatprep.subr.mxu0 0.0
    %4241 = vmatpush1.msra.mxu0 0.0
    %4242 = vmatprep.subr.mxu0 0.0
    %4243 = vmatpush1.msra.mxu0 0.0
    %4244 = vmatprep.subr.mxu0 0.0
    %4245 = vmatpush1.msra.mxu0 0.0
    %4246 = vmatprep.subr.mxu0 0.0
    %4247 = vmatpush1.msra.mxu0 0.0
    %4248 = vmatprep.subr.mxu0 0.0
    %4249 = vmatpush1.msra.mxu0 0.0
    %4250 = vmatprep.subr.mxu0 0.0
    %4251 = vmatpush1.msra.mxu0 0.0
    %4252 = vmatprep.subr.mxu0 0.0
    %4253 = vmatpush1.msra.mxu0 0.0
    %4254 = vmatprep.subr.mxu0 0.0
    %4255 = vmatpush1.msra.mxu0 0.0
    %4256 = vmatprep.subr.mxu0 0.0
    %4257 = vmatpush1.msra.mxu0 0.0
    %4258 = vmatprep.subr.mxu0 0.0
    %4259 = vmatpush1.msra.mxu0 0.0
    %4260 = vmatprep.subr.mxu0 0.0
    %4261 = vmatpush1.msra.mxu0 0.0
    %4262 = vmatprep.subr.mxu0 0.0
    %4263 = vmatpush1.msra.mxu0 0.0
    %4264 = vmatprep.subr.mxu0 0.0
    %4265 = vmatpush1.msra.mxu0 0.0
    %4266 = vmatprep.subr.mxu0 0.0
    %4267 = vmatpush1.msra.mxu0 0.0
    %4268 = vmatprep.subr.mxu0 0.0
    %4269 = vmatpush1.msra.mxu0 0.0
    %4270 = vmatprep.subr.mxu0 0.0
    %4271 = vmatpush1.msra.mxu0 0.0
    %4272 = vmatprep.subr.mxu0 0.0
    %4273 = vmatpush1.msra.mxu0 0.0
    %4274 = vmatprep.subr.mxu0 0.0
    %4275 = vmatpush1.msra.mxu0 0.0
    %4276 = vmatprep.subr.mxu0 0.0
    %4277 = vmatpush1.msra.mxu0 0.0
    %4278 = vmatprep.subr.mxu0 0.0
    %4279 = vmatpush1.msra.mxu0 0.0
    %4280 = vmatprep.subr.mxu0 0.0
    %4281 = vmatpush1.msra.mxu0 0.0
    %4282 = vmatprep.mubr.f32.mxu0 0.0
    %4283 = vmatmul.mubr.f32.gmra.mrb[0].mxu0 %v4208
    %v4284 = vpop.f32.mrb[0].mxu0
    %v4285 = vadd.f32 0.0, %v4284
    %v4286 = vpop.f32.mrb[0].mxu0
    %4287 = vmatprep.mubr.f32.mxu0 0.0
    %4288 = vmatmul.mubr.f32.gmra.mrb[0].mxu0 %v4211
    %v4289 = vpop.f32.mrb[0].mxu0
    %v4290 = vadd.f32 0.0, %v4289
    %v4291 = vpop.f32.mrb[0].mxu0
    %4292 = vmatprep.mubr.f32.mxu0 0.0
    %4293 = vmatmul.mubr.f32.gmra.mrb[0].mxu0 %v4214
    %v4294 = vpop.f32.mrb[0].mxu0
    %v4295 = vadd.f32 0.0, %v4294
    %v4296 = vpop.f32.mrb[0].mxu0
    %4297 = vdwg.mxu0
    %4301 = vrot.lane.b32.xlu0 %v4285, 24
    %v4302 = vpop.permute.xlu0 %4301
    %4303 = vrot.lane.b32.xlu0 %v4290, 24
    %v4304 = vpop.permute.xlu0 %4303
    %4305 = vrot.lane.b32.xlu0 %v4295, 24
    %v4306 = vpop.permute.xlu0 %4305
    %4310 = vst.msk [vmem:[#allocation4] sm:$0xff] %vm1465, %v4302
    %4311 = vst.msk [vmem:[#allocation4 + $0x8] sm:$0xff] %vm1465, %v4304
    %4312 = vst.msk [vmem:[#allocation4 + $0x10] sm:$0x1] %vm1468, %v4306
    %v4313 = vld [vmem:[#allocation3 + $0x11] sm:$0xff]
    %v4314 = vld [vmem:[#allocation3 + $0x19] sm:$0xff]
    %v4315 = vld [vmem:[#allocation3 + $0x21] sm:$0x1]
    %4319 = vrot.lane.b32.xlu0 %v4313, 96
    %v4320 = vpop.permute.xlu0 %4319
    %4321 = vrot.lane.b32.xlu0 %v4314, 96
    %v4322 = vpop.permute.xlu0 %4321
    %4323 = vrot.lane.b32.xlu0 %v4315, 96
    %v4324 = vpop.permute.xlu0 %4323
    %v4325 = vsel %vm449, %v4313, 0
    %v4327 = vsel %vm449, %v4314, 0
    %v4329 = vsel %vm449, %v4315, 0
    %v4331 = vsel %vm449, %v4320, 0
    %v4333 = vsel %vm449, %v4322, 0
    %v4335 = vsel %vm449, %v4324, 0
    %4337 = vmatprep.subr.mxu0 0.0
    %4338 = vmatpush1.xpose.msra.mxu0 %v4331
    %4339 = vmatprep.subr.mxu0 0.0
    %4340 = vmatpush1.xpose.msra.mxu0 %v4333
    %4341 = vmatprep.subr.mxu0 0.0
    %4342 = vmatpush1.xpose.msra.mxu0 %v4335
    %4343 = vmatprep.subr.mxu0 0.0
    %4344 = vmatpush1.xpose.msra.mxu0 0.0
    %4345 = vmatprep.subr.mxu0 0.0
    %4346 = vmatpush1.xpose.msra.mxu0 0.0
    %4347 = vmatprep.subr.mxu0 0.0
    %4348 = vmatpush1.xpose.msra.mxu0 0.0
    %4349 = vmatprep.subr.mxu0 0.0
    %4350 = vmatpush1.xpose.msra.mxu0 0.0
    %4351 = vmatprep.subr.mxu0 0.0
    %4352 = vmatpush1.xpose.msra.mxu0 0.0
    %4353 = vmatprep.subr.mxu0 0.0
    %4354 = vmatpush1.xpose.msra.mxu0 0.0
    %4355 = vmatprep.subr.mxu0 0.0
    %4356 = vmatpush1.xpose.msra.mxu0 0.0
    %4357 = vmatprep.subr.mxu0 0.0
    %4358 = vmatpush1.xpose.msra.mxu0 0.0
    %4359 = vmatprep.subr.mxu0 0.0
    %4360 = vmatpush1.xpose.msra.mxu0 0.0
    %4361 = vmatprep.subr.mxu0 0.0
    %4362 = vmatpush1.xpose.msra.mxu0 0.0
    %4363 = vmatprep.subr.mxu0 0.0
    %4364 = vmatpush1.xpose.msra.mxu0 0.0
    %4365 = vmatprep.subr.mxu0 0.0
    %4366 = vmatpush1.xpose.msra.mxu0 0.0
    %4367 = vmatprep.subr.mxu0 0.0
    %4368 = vmatpush1.xpose.msra.mxu0 0.0
    %4369 = vmatprep.subr.mxu0 0.0
    %4370 = vmatpush1.xpose.msra.mxu0 0.0
    %4371 = vmatprep.subr.mxu0 0.0
    %4372 = vmatpush1.xpose.msra.mxu0 0.0
    %4373 = vmatprep.subr.mxu0 0.0
    %4374 = vmatpush1.xpose.msra.mxu0 0.0
    %4375 = vmatprep.subr.mxu0 0.0
    %4376 = vmatpush1.xpose.msra.mxu0 0.0
    %4377 = vmatprep.subr.mxu0 0.0
    %4378 = vmatpush1.xpose.msra.mxu0 0.0
    %4379 = vmatprep.subr.mxu0 0.0
    %4380 = vmatpush1.xpose.msra.mxu0 0.0
    %4381 = vmatprep.subr.mxu0 0.0
    %4382 = vmatpush1.xpose.msra.mxu0 0.0
    %4383 = vmatprep.subr.mxu0 0.0
    %4384 = vmatpush1.xpose.msra.mxu0 0.0
    %4385 = vmatprep.subr.mxu0 0.0
    %4386 = vmatpush1.xpose.msra.mxu0 0.0
    %4387 = vmatprep.subr.mxu0 0.0
    %4388 = vmatpush1.xpose.msra.mxu0 0.0
    %4389 = vmatprep.subr.mxu0 0.0
    %4390 = vmatpush1.xpose.msra.mxu0 0.0
    %4391 = vmatprep.subr.mxu0 0.0
    %4392 = vmatpush1.xpose.msra.mxu0 0.0
    %4393 = vmatprep.subr.mxu0 0.0
    %4394 = vmatpush1.xpose.msra.mxu0 0.0
    %4395 = vmatprep.subr.mxu0 0.0
    %4396 = vmatpush1.xpose.msra.mxu0 0.0
    %4397 = vmatprep.subr.mxu0 0.0
    %4398 = vmatpush1.xpose.msra.mxu0 0.0
    %4399 = vmatprep.subr.mxu0 0.0
    %4400 = vmatpush1.xpose.msra.mxu0 0.0
    %4401 = vmatprep.mubr.f32.mxu0 0.0
    %4402 = vmatmul.mubr.f32.gmra.mrb[0].mxu0 %v4325
    %v4403 = vpop.f32.mrb[0].mxu0
    %v4404 = vadd.f32 0.0, %v4403
    %v4405 = vpop.f32.mrb[0].mxu0
    %4406 = vmatprep.mubr.f32.mxu0 0.0
    %4407 = vmatmul.mubr.f32.gmra.mrb[0].mxu0 %v4327
    %v4408 = vpop.f32.mrb[0].mxu0
    %v4409 = vadd.f32 0.0, %v4408
    %v4410 = vpop.f32.mrb[0].mxu0
    %4411 = vmatprep.mubr.f32.mxu0 0.0
    %4412 = vmatmul.mubr.f32.gmra.mrb[0].mxu0 %v4329
    %v4413 = vpop.f32.mrb[0].mxu0
    %v4414 = vadd.f32 0.0, %v4413
    %v4415 = vpop.f32.mrb[0].mxu0
    %4416 = vdwg.mxu0
    %v4417 = vmul.f32 %v4404, 0.35355338
    %v4418 = vmul.f32 %v4409, 0.35355338
    %v4419 = vmul.f32 %v4414, 0.35355338
    %v4420 = vsel %vm545, %v4417, -inf
    %4421 = vmax.xlane.f32.xlu0 %v4420
    %v4422 = vpop.xlane.xlu0 %4421
    %v4423 = vsel %vm545, %v4418, -inf
    %4424 = vmax.xlane.f32.xlu0 %v4423
    %v4425 = vpop.xlane.xlu0 %4424
    %v4426 = vsel %vm552, %v4419, -inf
    %4427 = vmax.xlane.f32.xlu0 %v4426
    %v4428 = vpop.xlane.xlu0 %4427
    %v4429 = vsub.f32 %v4417, %v4422
    %v4430 = vsub.f32 %v4418, %v4425
    %v4431 = vsub.f32 %v4419, %v4428
    %v4432 = vmul.f32 %v4429, 1.442695
    %v4433 = vpow.pop %v4432
    %v4434 = vmul.f32 %v4430, 1.442695
    %v4435 = vpow.pop %v4434
    %v4436 = vmul.f32 %v4431, 1.442695
    %v4437 = vpow.pop %v4436
    %v4438 = vsel %vm545, %v4433, 0.0
    %4439 = vadd.xlane.f32.xlu0 %v4438
    %v4440 = vpop.xlane.xlu0 %4439
    %v4441 = vsel %vm545, %v4435, 0.0
    %4442 = vadd.xlane.f32.xlu0 %v4441
    %v4443 = vpop.xlane.xlu0 %4442
    %v4444 = vsel %vm552, %v4437, 0.0
    %4445 = vadd.xlane.f32.xlu0 %v4444
    %v4446 = vpop.xlane.xlu0 %4445
    %v4447 = vrcp.pop %v4440
    %v4448 = vrcp.pop %v4443
    %v4449 = vrcp.pop %v4446
    %v4450 = vmul.f32 %v4433, %v4447
    %v4451 = vmul.f32 %v4435, %v4448
    %v4452 = vmul.f32 %v4437, %v4449
    %4453 = vrot.lane.b32.xlu0 %v4313, 64
    %v4454 = vpop.permute.xlu0 %4453
    %4455 = vrot.lane.b32.xlu0 %v4314, 64
    %v4456 = vpop.permute.xlu0 %4455
    %4457 = vrot.lane.b32.xlu0 %v4315, 64
    %v4458 = vpop.permute.xlu0 %4457
    %v4462 = vsel %vm545, %v4450, 0
    %v4465 = vsel %vm545, %v4451, 0
    %v4468 = vsel %vm545, %v4452, 0
    %v4470 = vsel %vm597, %v4458, 0
    %4472 = vmatprep.subr.mxu0 0.0
    %4473 = vmatpush1.msra.mxu0 %v4454
    %4474 = vmatprep.subr.mxu0 0.0
    %4475 = vmatpush1.msra.mxu0 %v4456
    %4476 = vmatprep.subr.mxu0 0.0
    %4477 = vmatpush1.msra.mxu0 %v4470
    %4478 = vmatprep.subr.mxu0 0.0
    %4479 = vmatpush1.msra.mxu0 0.0
    %4480 = vmatprep.subr.mxu0 0.0
    %4481 = vmatpush1.msra.mxu0 0.0
    %4482 = vmatprep.subr.mxu0 0.0
    %4483 = vmatpush1.msra.mxu0 0.0
    %4484 = vmatprep.subr.mxu0 0.0
    %4485 = vmatpush1.msra.mxu0 0.0
    %4486 = vmatprep.subr.mxu0 0.0
    %4487 = vmatpush1.msra.mxu0 0.0
    %4488 = vmatprep.subr.mxu0 0.0
    %4489 = vmatpush1.msra.mxu0 0.0
    %4490 = vmatprep.subr.mxu0 0.0
    %4491 = vmatpush1.msra.mxu0 0.0
    %4492 = vmatprep.subr.mxu0 0.0
    %4493 = vmatpush1.msra.mxu0 0.0
    %4494 = vmatprep.subr.mxu0 0.0
    %4495 = vmatpush1.msra.mxu0 0.0
    %4496 = vmatprep.subr.mxu0 0.0
    %4497 = vmatpush1.msra.mxu0 0.0
    %4498 = vmatprep.subr.mxu0 0.0
    %4499 = vmatpush1.msra.mxu0 0.0
    %4500 = vmatprep.subr.mxu0 0.0
    %4501 = vmatpush1.msra.mxu0 0.0
    %4502 = vmatprep.subr.mxu0 0.0
    %4503 = vmatpush1.msra.mxu0 0.0
    %4504 = vmatprep.subr.mxu0 0.0
    %4505 = vmatpush1.msra.mxu0 0.0
    %4506 = vmatprep.subr.mxu0 0.0
    %4507 = vmatpush1.msra.mxu0 0.0
    %4508 = vmatprep.subr.mxu0 0.0
    %4509 = vmatpush1.msra.mxu0 0.0
    %4510 = vmatprep.subr.mxu0 0.0
    %4511 = vmatpush1.msra.mxu0 0.0
    %4512 = vmatprep.subr.mxu0 0.0
    %4513 = vmatpush1.msra.mxu0 0.0
    %4514 = vmatprep.subr.mxu0 0.0
    %4515 = vmatpush1.msra.mxu0 0.0
    %4516 = vmatprep.subr.mxu0 0.0
    %4517 = vmatpush1.msra.mxu0 0.0
    %4518 = vmatprep.subr.mxu0 0.0
    %4519 = vmatpush1.msra.mxu0 0.0
    %4520 = vmatprep.subr.mxu0 0.0
    %4521 = vmatpush1.msra.mxu0 0.0
    %4522 = vmatprep.subr.mxu0 0.0
    %4523 = vmatpush1.msra.mxu0 0.0
    %4524 = vmatprep.subr.mxu0 0.0
    %4525 = vmatpush1.msra.mxu0 0.0
    %4526 = vmatprep.subr.mxu0 0.0
    %4527 = vmatpush1.msra.mxu0 0.0
    %4528 = vmatprep.subr.mxu0 0.0
    %4529 = vmatpush1.msra.mxu0 0.0
    %4530 = vmatprep.subr.mxu0 0.0
    %4531 = vmatpush1.msra.mxu0 0.0
    %4532 = vmatprep.subr.mxu0 0.0
    %4533 = vmatpush1.msra.mxu0 0.0
    %4534 = vmatprep.subr.mxu0 0.0
    %4535 = vmatpush1.msra.mxu0 0.0
    %4536 = vmatprep.mubr.f32.mxu0 0.0
    %4537 = vmatmul.mubr.f32.gmra.mrb[0].mxu0 %v4462
    %v4538 = vpop.f32.mrb[0].mxu0
    %v4539 = vadd.f32 0.0, %v4538
    %v4540 = vpop.f32.mrb[0].mxu0
    %4541 = vmatprep.mubr.f32.mxu0 0.0
    %4542 = vmatmul.mubr.f32.gmra.mrb[0].mxu0 %v4465
    %v4543 = vpop.f32.mrb[0].mxu0
    %v4544 = vadd.f32 0.0, %v4543
    %v4545 = vpop.f32.mrb[0].mxu0
    %4546 = vmatprep.mubr.f32.mxu0 0.0
    %4547 = vmatmul.mubr.f32.gmra.mrb[0].mxu0 %v4468
    %v4548 = vpop.f32.mrb[0].mxu0
    %v4549 = vadd.f32 0.0, %v4548
    %v4550 = vpop.f32.mrb[0].mxu0
    %4551 = vdwg.mxu0
    %4552 = vst.msk [vmem:[#allocation4 + $0x11] sm:$0xff] %vm449, %v4539
    %4553 = vst.msk [vmem:[#allocation4 + $0x19] sm:$0xff] %vm449, %v4544
    %4554 = vst.msk [vmem:[#allocation4 + $0x21] sm:$0x1] %vm682, %v4549
    %v4555 = vld [vmem:[#allocation3 + $0x11] sm:$0xff]
    %v4556 = vld [vmem:[#allocation3 + $0x19] sm:$0xff]
    %v4557 = vld [vmem:[#allocation3 + $0x21] sm:$0x1]
    %4561 = vrot.lane.b32.xlu0 %v4555, 120
    %v4562 = vpop.permute.xlu0 %4561
    %4563 = vrot.lane.b32.xlu0 %v4556, 120
    %v4564 = vpop.permute.xlu0 %4563
    %4565 = vrot.lane.b32.xlu0 %v4557, 120
    %v4566 = vpop.permute.xlu0 %4565
    %4567 = vrot.lane.b32.xlu0 %v4555, 88
    %v4568 = vpop.permute.xlu0 %4567
    %4569 = vrot.lane.b32.xlu0 %v4556, 88
    %v4570 = vpop.permute.xlu0 %4569
    %4571 = vrot.lane.b32.xlu0 %v4557, 88
    %v4572 = vpop.permute.xlu0 %4571
    %v4573 = vsel %vm449, %v4562, 0
    %v4575 = vsel %vm449, %v4564, 0
    %v4577 = vsel %vm449, %v4566, 0
    %v4579 = vsel %vm449, %v4568, 0
    %v4581 = vsel %vm449, %v4570, 0
    %v4583 = vsel %vm449, %v4572, 0
    %4585 = vmatprep.subr.mxu0 0.0
    %4586 = vmatpush1.xpose.msra.mxu0 %v4579
    %4587 = vmatprep.subr.mxu0 0.0
    %4588 = vmatpush1.xpose.msra.mxu0 %v4581
    %4589 = vmatprep.subr.mxu0 0.0
    %4590 = vmatpush1.xpose.msra.mxu0 %v4583
    %4591 = vmatprep.subr.mxu0 0.0
    %4592 = vmatpush1.xpose.msra.mxu0 0.0
    %4593 = vmatprep.subr.mxu0 0.0
    %4594 = vmatpush1.xpose.msra.mxu0 0.0
    %4595 = vmatprep.subr.mxu0 0.0
    %4596 = vmatpush1.xpose.msra.mxu0 0.0
    %4597 = vmatprep.subr.mxu0 0.0
    %4598 = vmatpush1.xpose.msra.mxu0 0.0
    %4599 = vmatprep.subr.mxu0 0.0
    %4600 = vmatpush1.xpose.msra.mxu0 0.0
    %4601 = vmatprep.subr.mxu0 0.0
    %4602 = vmatpush1.xpose.msra.mxu0 0.0
    %4603 = vmatprep.subr.mxu0 0.0
    %4604 = vmatpush1.xpose.msra.mxu0 0.0
    %4605 = vmatprep.subr.mxu0 0.0
    %4606 = vmatpush1.xpose.msra.mxu0 0.0
    %4607 = vmatprep.subr.mxu0 0.0
    %4608 = vmatpush1.xpose.msra.mxu0 0.0
    %4609 = vmatprep.subr.mxu0 0.0
    %4610 = vmatpush1.xpose.msra.mxu0 0.0
    %4611 = vmatprep.subr.mxu0 0.0
    %4612 = vmatpush1.xpose.msra.mxu0 0.0
    %4613 = vmatprep.subr.mxu0 0.0
    %4614 = vmatpush1.xpose.msra.mxu0 0.0
    %4615 = vmatprep.subr.mxu0 0.0
    %4616 = vmatpush1.xpose.msra.mxu0 0.0
    %4617 = vmatprep.subr.mxu0 0.0
    %4618 = vmatpush1.xpose.msra.mxu0 0.0
    %4619 = vmatprep.subr.mxu0 0.0
    %4620 = vmatpush1.xpose.msra.mxu0 0.0
    %4621 = vmatprep.subr.mxu0 0.0
    %4622 = vmatpush1.xpose.msra.mxu0 0.0
    %4623 = vmatprep.subr.mxu0 0.0
    %4624 = vmatpush1.xpose.msra.mxu0 0.0
    %4625 = vmatprep.subr.mxu0 0.0
    %4626 = vmatpush1.xpose.msra.mxu0 0.0
    %4627 = vmatprep.subr.mxu0 0.0
    %4628 = vmatpush1.xpose.msra.mxu0 0.0
    %4629 = vmatprep.subr.mxu0 0.0
    %4630 = vmatpush1.xpose.msra.mxu0 0.0
    %4631 = vmatprep.subr.mxu0 0.0
    %4632 = vmatpush1.xpose.msra.mxu0 0.0
    %4633 = vmatprep.subr.mxu0 0.0
    %4634 = vmatpush1.xpose.msra.mxu0 0.0
    %4635 = vmatprep.subr.mxu0 0.0
    %4636 = vmatpush1.xpose.msra.mxu0 0.0
    %4637 = vmatprep.subr.mxu0 0.0
    %4638 = vmatpush1.xpose.msra.mxu0 0.0
    %4639 = vmatprep.subr.mxu0 0.0
    %4640 = vmatpush1.xpose.msra.mxu0 0.0
    %4641 = vmatprep.subr.mxu0 0.0
    %4642 = vmatpush1.xpose.msra.mxu0 0.0
    %4643 = vmatprep.subr.mxu0 0.0
    %4644 = vmatpush1.xpose.msra.mxu0 0.0
    %4645 = vmatprep.subr.mxu0 0.0
    %4646 = vmatpush1.xpose.msra.mxu0 0.0
    %4647 = vmatprep.subr.mxu0 0.0
    %4648 = vmatpush1.xpose.msra.mxu0 0.0
    %4649 = vmatprep.mubr.f32.mxu0 0.0
    %4650 = vmatmul.mubr.f32.gmra.mrb[0].mxu0 %v4573
    %v4651 = vpop.f32.mrb[0].mxu0
    %v4652 = vadd.f32 0.0, %v4651
    %v4653 = vpop.f32.mrb[0].mxu0
    %4654 = vmatprep.mubr.f32.mxu0 0.0
    %4655 = vmatmul.mubr.f32.gmra.mrb[0].mxu0 %v4575
    %v4656 = vpop.f32.mrb[0].mxu0
    %v4657 = vadd.f32 0.0, %v4656
    %v4658 = vpop.f32.mrb[0].mxu0
    %4659 = vmatprep.mubr.f32.mxu0 0.0
    %4660 = vmatmul.mubr.f32.gmra.mrb[0].mxu0 %v4577
    %v4661 = vpop.f32.mrb[0].mxu0
    %v4662 = vadd.f32 0.0, %v4661
    %v4663 = vpop.f32.mrb[0].mxu0
    %4664 = vdwg.mxu0
    %v4665 = vmul.f32 %v4652, 0.35355338
    %v4666 = vmul.f32 %v4657, 0.35355338
    %v4667 = vmul.f32 %v4662, 0.35355338
    %v4668 = vsel %vm545, %v4665, -inf
    %4669 = vmax.xlane.f32.xlu0 %v4668
    %v4670 = vpop.xlane.xlu0 %4669
    %v4671 = vsel %vm545, %v4666, -inf
    %4672 = vmax.xlane.f32.xlu0 %v4671
    %v4673 = vpop.xlane.xlu0 %4672
    %v4674 = vsel %vm552, %v4667, -inf
    %4675 = vmax.xlane.f32.xlu0 %v4674
    %v4676 = vpop.xlane.xlu0 %4675
    %v4677 = vsub.f32 %v4665, %v4670
    %v4678 = vsub.f32 %v4666, %v4673
    %v4679 = vsub.f32 %v4667, %v4676
    %v4680 = vmul.f32 %v4677, 1.442695
    %v4681 = vpow.pop %v4680
    %v4682 = vmul.f32 %v4678, 1.442695
    %v4683 = vpow.pop %v4682
    %v4684 = vmul.f32 %v4679, 1.442695
    %v4685 = vpow.pop %v4684
    %v4686 = vsel %vm545, %v4681, 0.0
    %4687 = vadd.xlane.f32.xlu0 %v4686
    %v4688 = vpop.xlane.xlu0 %4687
    %v4689 = vsel %vm545, %v4683, 0.0
    %4690 = vadd.xlane.f32.xlu0 %v4689
    %v4691 = vpop.xlane.xlu0 %4690
    %v4692 = vsel %vm552, %v4685, 0.0
    %4693 = vadd.xlane.f32.xlu0 %v4692
    %v4694 = vpop.xlane.xlu0 %4693
    %v4695 = vrcp.pop %v4688
    %v4696 = vrcp.pop %v4691
    %v4697 = vrcp.pop %v4694
    %v4698 = vmul.f32 %v4681, %v4695
    %v4699 = vmul.f32 %v4683, %v4696
    %v4700 = vmul.f32 %v4685, %v4697
    %4701 = vrot.lane.b32.xlu0 %v4555, 56
    %v4702 = vpop.permute.xlu0 %4701
    %4703 = vrot.lane.b32.xlu0 %v4556, 56
    %v4704 = vpop.permute.xlu0 %4703
    %4705 = vrot.lane.b32.xlu0 %v4557, 56
    %v4706 = vpop.permute.xlu0 %4705
    %v4710 = vsel %vm545, %v4698, 0
    %v4713 = vsel %vm545, %v4699, 0
    %v4716 = vsel %vm545, %v4700, 0
    %v4718 = vsel %vm597, %v4706, 0
    %4720 = vmatprep.subr.mxu0 0.0
    %4721 = vmatpush1.msra.mxu0 %v4702
    %4722 = vmatprep.subr.mxu0 0.0
    %4723 = vmatpush1.msra.mxu0 %v4704
    %4724 = vmatprep.subr.mxu0 0.0
    %4725 = vmatpush1.msra.mxu0 %v4718
    %4726 = vmatprep.subr.mxu0 0.0
    %4727 = vmatpush1.msra.mxu0 0.0
    %4728 = vmatprep.subr.mxu0 0.0
    %4729 = vmatpush1.msra.mxu0 0.0
    %4730 = vmatprep.subr.mxu0 0.0
    %4731 = vmatpush1.msra.mxu0 0.0
    %4732 = vmatprep.subr.mxu0 0.0
    %4733 = vmatpush1.msra.mxu0 0.0
    %4734 = vmatprep.subr.mxu0 0.0
    %4735 = vmatpush1.msra.mxu0 0.0
    %4736 = vmatprep.subr.mxu0 0.0
    %4737 = vmatpush1.msra.mxu0 0.0
    %4738 = vmatprep.subr.mxu0 0.0
    %4739 = vmatpush1.msra.mxu0 0.0
    %4740 = vmatprep.subr.mxu0 0.0
    %4741 = vmatpush1.msra.mxu0 0.0
    %4742 = vmatprep.subr.mxu0 0.0
    %4743 = vmatpush1.msra.mxu0 0.0
    %4744 = vmatprep.subr.mxu0 0.0
    %4745 = vmatpush1.msra.mxu0 0.0
    %4746 = vmatprep.subr.mxu0 0.0
    %4747 = vmatpush1.msra.mxu0 0.0
    %4748 = vmatprep.subr.mxu0 0.0
    %4749 = vmatpush1.msra.mxu0 0.0
    %4750 = vmatprep.subr.mxu0 0.0
    %4751 = vmatpush1.msra.mxu0 0.0
    %4752 = vmatprep.subr.mxu0 0.0
    %4753 = vmatpush1.msra.mxu0 0.0
    %4754 = vmatprep.subr.mxu0 0.0
    %4755 = vmatpush1.msra.mxu0 0.0
    %4756 = vmatprep.subr.mxu0 0.0
    %4757 = vmatpush1.msra.mxu0 0.0
    %4758 = vmatprep.subr.mxu0 0.0
    %4759 = vmatpush1.msra.mxu0 0.0
    %4760 = vmatprep.subr.mxu0 0.0
    %4761 = vmatpush1.msra.mxu0 0.0
    %4762 = vmatprep.subr.mxu0 0.0
    %4763 = vmatpush1.msra.mxu0 0.0
    %4764 = vmatprep.subr.mxu0 0.0
    %4765 = vmatpush1.msra.mxu0 0.0
    %4766 = vmatprep.subr.mxu0 0.0
    %4767 = vmatpush1.msra.mxu0 0.0
    %4768 = vmatprep.subr.mxu0 0.0
    %4769 = vmatpush1.msra.mxu0 0.0
    %4770 = vmatprep.subr.mxu0 0.0
    %4771 = vmatpush1.msra.mxu0 0.0
    %4772 = vmatprep.subr.mxu0 0.0
    %4773 = vmatpush1.msra.mxu0 0.0
    %4774 = vmatprep.subr.mxu0 0.0
    %4775 = vmatpush1.msra.mxu0 0.0
    %4776 = vmatprep.subr.mxu0 0.0
    %4777 = vmatpush1.msra.mxu0 0.0
    %4778 = vmatprep.subr.mxu0 0.0
    %4779 = vmatpush1.msra.mxu0 0.0
    %4780 = vmatprep.subr.mxu0 0.0
    %4781 = vmatpush1.msra.mxu0 0.0
    %4782 = vmatprep.subr.mxu0 0.0
    %4783 = vmatpush1.msra.mxu0 0.0
    %4784 = vmatprep.mubr.f32.mxu0 0.0
    %4785 = vmatmul.mubr.f32.gmra.mrb[0].mxu0 %v4710
    %v4786 = vpop.f32.mrb[0].mxu0
    %v4787 = vadd.f32 0.0, %v4786
    %v4788 = vpop.f32.mrb[0].mxu0
    %4789 = vmatprep.mubr.f32.mxu0 0.0
    %4790 = vmatmul.mubr.f32.gmra.mrb[0].mxu0 %v4713
    %v4791 = vpop.f32.mrb[0].mxu0
    %v4792 = vadd.f32 0.0, %v4791
    %v4793 = vpop.f32.mrb[0].mxu0
    %4794 = vmatprep.mubr.f32.mxu0 0.0
    %4795 = vmatmul.mubr.f32.gmra.mrb[0].mxu0 %v4716
    %v4796 = vpop.f32.mrb[0].mxu0
    %v4797 = vadd.f32 0.0, %v4796
    %v4798 = vpop.f32.mrb[0].mxu0
    %4799 = vdwg.mxu0
    %4803 = vrot.lane.b32.xlu0 %v4787, 8
    %v4804 = vpop.permute.xlu0 %4803
    %4805 = vrot.lane.b32.xlu0 %v4792, 8
    %v4806 = vpop.permute.xlu0 %4805
    %4807 = vrot.lane.b32.xlu0 %v4797, 8
    %v4808 = vpop.permute.xlu0 %4807
    %4812 = vst.msk [vmem:[#allocation4 + $0x11] sm:$0xff] %vm941, %v4804
    %4813 = vst.msk [vmem:[#allocation4 + $0x19] sm:$0xff] %vm941, %v4806
    %4814 = vst.msk [vmem:[#allocation4 + $0x21] sm:$0x1] %vm944, %v4808
    %v4815 = vld [vmem:[#allocation3 + $0x11] sm:$0xff]
    %v4816 = vld [vmem:[#allocation3 + $0x19] sm:$0xff]
    %v4817 = vld [vmem:[#allocation3 + $0x21] sm:$0x1]
    %4821 = vrot.lane.b32.xlu0 %v4815, 112
    %v4822 = vpop.permute.xlu0 %4821
    %4823 = vrot.lane.b32.xlu0 %v4816, 112
    %v4824 = vpop.permute.xlu0 %4823
    %4825 = vrot.lane.b32.xlu0 %v4817, 112
    %v4826 = vpop.permute.xlu0 %4825
    %4827 = vrot.lane.b32.xlu0 %v4815, 80
    %v4828 = vpop.permute.xlu0 %4827
    %4829 = vrot.lane.b32.xlu0 %v4816, 80
    %v4830 = vpop.permute.xlu0 %4829
    %4831 = vrot.lane.b32.xlu0 %v4817, 80
    %v4832 = vpop.permute.xlu0 %4831
    %v4833 = vsel %vm449, %v4822, 0
    %v4835 = vsel %vm449, %v4824, 0
    %v4837 = vsel %vm449, %v4826, 0
    %v4839 = vsel %vm449, %v4828, 0
    %v4841 = vsel %vm449, %v4830, 0
    %v4843 = vsel %vm449, %v4832, 0
    %4845 = vmatprep.subr.mxu0 0.0
    %4846 = vmatpush1.xpose.msra.mxu0 %v4839
    %4847 = vmatprep.subr.mxu0 0.0
    %4848 = vmatpush1.xpose.msra.mxu0 %v4841
    %4849 = vmatprep.subr.mxu0 0.0
    %4850 = vmatpush1.xpose.msra.mxu0 %v4843
    %4851 = vmatprep.subr.mxu0 0.0
    %4852 = vmatpush1.xpose.msra.mxu0 0.0
    %4853 = vmatprep.subr.mxu0 0.0
    %4854 = vmatpush1.xpose.msra.mxu0 0.0
    %4855 = vmatprep.subr.mxu0 0.0
    %4856 = vmatpush1.xpose.msra.mxu0 0.0
    %4857 = vmatprep.subr.mxu0 0.0
    %4858 = vmatpush1.xpose.msra.mxu0 0.0
    %4859 = vmatprep.subr.mxu0 0.0
    %4860 = vmatpush1.xpose.msra.mxu0 0.0
    %4861 = vmatprep.subr.mxu0 0.0
    %4862 = vmatpush1.xpose.msra.mxu0 0.0
    %4863 = vmatprep.subr.mxu0 0.0
    %4864 = vmatpush1.xpose.msra.mxu0 0.0
    %4865 = vmatprep.subr.mxu0 0.0
    %4866 = vmatpush1.xpose.msra.mxu0 0.0
    %4867 = vmatprep.subr.mxu0 0.0
    %4868 = vmatpush1.xpose.msra.mxu0 0.0
    %4869 = vmatprep.subr.mxu0 0.0
    %4870 = vmatpush1.xpose.msra.mxu0 0.0
    %4871 = vmatprep.subr.mxu0 0.0
    %4872 = vmatpush1.xpose.msra.mxu0 0.0
    %4873 = vmatprep.subr.mxu0 0.0
    %4874 = vmatpush1.xpose.msra.mxu0 0.0
    %4875 = vmatprep.subr.mxu0 0.0
    %4876 = vmatpush1.xpose.msra.mxu0 0.0
    %4877 = vmatprep.subr.mxu0 0.0
    %4878 = vmatpush1.xpose.msra.mxu0 0.0
    %4879 = vmatprep.subr.mxu0 0.0
    %4880 = vmatpush1.xpose.msra.mxu0 0.0
    %4881 = vmatprep.subr.mxu0 0.0
    %4882 = vmatpush1.xpose.msra.mxu0 0.0
    %4883 = vmatprep.subr.mxu0 0.0
    %4884 = vmatpush1.xpose.msra.mxu0 0.0
    %4885 = vmatprep.subr.mxu0 0.0
    %4886 = vmatpush1.xpose.msra.mxu0 0.0
    %4887 = vmatprep.subr.mxu0 0.0
    %4888 = vmatpush1.xpose.msra.mxu0 0.0
    %4889 = vmatprep.subr.mxu0 0.0
    %4890 = vmatpush1.xpose.msra.mxu0 0.0
    %4891 = vmatprep.subr.mxu0 0.0
    %4892 = vmatpush1.xpose.msra.mxu0 0.0
    %4893 = vmatprep.subr.mxu0 0.0
    %4894 = vmatpush1.xpose.msra.mxu0 0.0
    %4895 = vmatprep.subr.mxu0 0.0
    %4896 = vmatpush1.xpose.msra.mxu0 0.0
    %4897 = vmatprep.subr.mxu0 0.0
    %4898 = vmatpush1.xpose.msra.mxu0 0.0
    %4899 = vmatprep.subr.mxu0 0.0
    %4900 = vmatpush1.xpose.msra.mxu0 0.0
    %4901 = vmatprep.subr.mxu0 0.0
    %4902 = vmatpush1.xpose.msra.mxu0 0.0
    %4903 = vmatprep.subr.mxu0 0.0
    %4904 = vmatpush1.xpose.msra.mxu0 0.0
    %4905 = vmatprep.subr.mxu0 0.0
    %4906 = vmatpush1.xpose.msra.mxu0 0.0
    %4907 = vmatprep.subr.mxu0 0.0
    %4908 = vmatpush1.xpose.msra.mxu0 0.0
    %4909 = vmatprep.mubr.f32.mxu0 0.0
    %4910 = vmatmul.mubr.f32.gmra.mrb[0].mxu0 %v4833
    %v4911 = vpop.f32.mrb[0].mxu0
    %v4912 = vadd.f32 0.0, %v4911
    %v4913 = vpop.f32.mrb[0].mxu0
    %4914 = vmatprep.mubr.f32.mxu0 0.0
    %4915 = vmatmul.mubr.f32.gmra.mrb[0].mxu0 %v4835
    %v4916 = vpop.f32.mrb[0].mxu0
    %v4917 = vadd.f32 0.0, %v4916
    %v4918 = vpop.f32.mrb[0].mxu0
    %4919 = vmatprep.mubr.f32.mxu0 0.0
    %4920 = vmatmul.mubr.f32.gmra.mrb[0].mxu0 %v4837
    %v4921 = vpop.f32.mrb[0].mxu0
    %v4922 = vadd.f32 0.0, %v4921
    %v4923 = vpop.f32.mrb[0].mxu0
    %4924 = vdwg.mxu0
    %v4925 = vmul.f32 %v4912, 0.35355338
    %v4926 = vmul.f32 %v4917, 0.35355338
    %v4927 = vmul.f32 %v4922, 0.35355338
    %v4928 = vsel %vm545, %v4925, -inf
    %4929 = vmax.xlane.f32.xlu0 %v4928
    %v4930 = vpop.xlane.xlu0 %4929
    %v4931 = vsel %vm545, %v4926, -inf
    %4932 = vmax.xlane.f32.xlu0 %v4931
    %v4933 = vpop.xlane.xlu0 %4932
    %v4934 = vsel %vm552, %v4927, -inf
    %4935 = vmax.xlane.f32.xlu0 %v4934
    %v4936 = vpop.xlane.xlu0 %4935
    %v4937 = vsub.f32 %v4925, %v4930
    %v4938 = vsub.f32 %v4926, %v4933
    %v4939 = vsub.f32 %v4927, %v4936
    %v4940 = vmul.f32 %v4937, 1.442695
    %v4941 = vpow.pop %v4940
    %v4942 = vmul.f32 %v4938, 1.442695
    %v4943 = vpow.pop %v4942
    %v4944 = vmul.f32 %v4939, 1.442695
    %v4945 = vpow.pop %v4944
    %v4946 = vsel %vm545, %v4941, 0.0
    %4947 = vadd.xlane.f32.xlu0 %v4946
    %v4948 = vpop.xlane.xlu0 %4947
    %v4949 = vsel %vm545, %v4943, 0.0
    %4950 = vadd.xlane.f32.xlu0 %v4949
    %v4951 = vpop.xlane.xlu0 %4950
    %v4952 = vsel %vm552, %v4945, 0.0
    %4953 = vadd.xlane.f32.xlu0 %v4952
    %v4954 = vpop.xlane.xlu0 %4953
    %v4955 = vrcp.pop %v4948
    %v4956 = vrcp.pop %v4951
    %v4957 = vrcp.pop %v4954
    %v4958 = vmul.f32 %v4941, %v4955
    %v4959 = vmul.f32 %v4943, %v4956
    %v4960 = vmul.f32 %v4945, %v4957
    %4961 = vrot.lane.b32.xlu0 %v4815, 48
    %v4962 = vpop.permute.xlu0 %4961
    %4963 = vrot.lane.b32.xlu0 %v4816, 48
    %v4964 = vpop.permute.xlu0 %4963
    %4965 = vrot.lane.b32.xlu0 %v4817, 48
    %v4966 = vpop.permute.xlu0 %4965
    %v4970 = vsel %vm545, %v4958, 0
    %v4973 = vsel %vm545, %v4959, 0
    %v4976 = vsel %vm545, %v4960, 0
    %v4978 = vsel %vm597, %v4966, 0
    %4980 = vmatprep.subr.mxu0 0.0
    %4981 = vmatpush1.msra.mxu0 %v4962
    %4982 = vmatprep.subr.mxu0 0.0
    %4983 = vmatpush1.msra.mxu0 %v4964
    %4984 = vmatprep.subr.mxu0 0.0
    %4985 = vmatpush1.msra.mxu0 %v4978
    %4986 = vmatprep.subr.mxu0 0.0
    %4987 = vmatpush1.msra.mxu0 0.0
    %4988 = vmatprep.subr.mxu0 0.0
    %4989 = vmatpush1.msra.mxu0 0.0
    %4990 = vmatprep.subr.mxu0 0.0
    %4991 = vmatpush1.msra.mxu0 0.0
    %4992 = vmatprep.subr.mxu0 0.0
    %4993 = vmatpush1.msra.mxu0 0.0
    %4994 = vmatprep.subr.mxu0 0.0
    %4995 = vmatpush1.msra.mxu0 0.0
    %4996 = vmatprep.subr.mxu0 0.0
    %4997 = vmatpush1.msra.mxu0 0.0
    %4998 = vmatprep.subr.mxu0 0.0
    %4999 = vmatpush1.msra.mxu0 0.0
    %5000 = vmatprep.subr.mxu0 0.0
    %5001 = vmatpush1.msra.mxu0 0.0
    %5002 = vmatprep.subr.mxu0 0.0
    %5003 = vmatpush1.msra.mxu0 0.0
    %5004 = vmatprep.subr.mxu0 0.0
    %5005 = vmatpush1.msra.mxu0 0.0
    %5006 = vmatprep.subr.mxu0 0.0
    %5007 = vmatpush1.msra.mxu0 0.0
    %5008 = vmatprep.subr.mxu0 0.0
    %5009 = vmatpush1.msra.mxu0 0.0
    %5010 = vmatprep.subr.mxu0 0.0
    %5011 = vmatpush1.msra.mxu0 0.0
    %5012 = vmatprep.subr.mxu0 0.0
    %5013 = vmatpush1.msra.mxu0 0.0
    %5014 = vmatprep.subr.mxu0 0.0
    %5015 = vmatpush1.msra.mxu0 0.0
    %5016 = vmatprep.subr.mxu0 0.0
    %5017 = vmatpush1.msra.mxu0 0.0
    %5018 = vmatprep.subr.mxu0 0.0
    %5019 = vmatpush1.msra.mxu0 0.0
    %5020 = vmatprep.subr.mxu0 0.0
    %5021 = vmatpush1.msra.mxu0 0.0
    %5022 = vmatprep.subr.mxu0 0.0
    %5023 = vmatpush1.msra.mxu0 0.0
    %5024 = vmatprep.subr.mxu0 0.0
    %5025 = vmatpush1.msra.mxu0 0.0
    %5026 = vmatprep.subr.mxu0 0.0
    %5027 = vmatpush1.msra.mxu0 0.0
    %5028 = vmatprep.subr.mxu0 0.0
    %5029 = vmatpush1.msra.mxu0 0.0
    %5030 = vmatprep.subr.mxu0 0.0
    %5031 = vmatpush1.msra.mxu0 0.0
    %5032 = vmatprep.subr.mxu0 0.0
    %5033 = vmatpush1.msra.mxu0 0.0
    %5034 = vmatprep.subr.mxu0 0.0
    %5035 = vmatpush1.msra.mxu0 0.0
    %5036 = vmatprep.subr.mxu0 0.0
    %5037 = vmatpush1.msra.mxu0 0.0
    %5038 = vmatprep.subr.mxu0 0.0
    %5039 = vmatpush1.msra.mxu0 0.0
    %5040 = vmatprep.subr.mxu0 0.0
    %5041 = vmatpush1.msra.mxu0 0.0
    %5042 = vmatprep.subr.mxu0 0.0
    %5043 = vmatpush1.msra.mxu0 0.0
    %5044 = vmatprep.mubr.f32.mxu0 0.0
    %5045 = vmatmul.mubr.f32.gmra.mrb[0].mxu0 %v4970
    %v5046 = vpop.f32.mrb[0].mxu0
    %v5047 = vadd.f32 0.0, %v5046
    %v5048 = vpop.f32.mrb[0].mxu0
    %5049 = vmatprep.mubr.f32.mxu0 0.0
    %5050 = vmatmul.mubr.f32.gmra.mrb[0].mxu0 %v4973
    %v5051 = vpop.f32.mrb[0].mxu0
    %v5052 = vadd.f32 0.0, %v5051
    %v5053 = vpop.f32.mrb[0].mxu0
    %5054 = vmatprep.mubr.f32.mxu0 0.0
    %5055 = vmatmul.mubr.f32.gmra.mrb[0].mxu0 %v4976
    %v5056 = vpop.f32.mrb[0].mxu0
    %v5057 = vadd.f32 0.0, %v5056
    %v5058 = vpop.f32.mrb[0].mxu0
    %5059 = vdwg.mxu0
    %5063 = vrot.lane.b32.xlu0 %v5047, 16
    %v5064 = vpop.permute.xlu0 %5063
    %5065 = vrot.lane.b32.xlu0 %v5052, 16
    %v5066 = vpop.permute.xlu0 %5065
    %5067 = vrot.lane.b32.xlu0 %v5057, 16
    %v5068 = vpop.permute.xlu0 %5067
    %5072 = vst.msk [vmem:[#allocation4 + $0x11] sm:$0xff] %vm1203, %v5064
    %5073 = vst.msk [vmem:[#allocation4 + $0x19] sm:$0xff] %vm1203, %v5066
    %5074 = vst.msk [vmem:[#allocation4 + $0x21] sm:$0x1] %vm1206, %v5068
    %v5075 = vld [vmem:[#allocation3 + $0x11] sm:$0xff]
    %v5076 = vld [vmem:[#allocation3 + $0x19] sm:$0xff]
    %v5077 = vld [vmem:[#allocation3 + $0x21] sm:$0x1]
    %5081 = vrot.lane.b32.xlu0 %v5075, 104
    %v5082 = vpop.permute.xlu0 %5081
    %5083 = vrot.lane.b32.xlu0 %v5076, 104
    %v5084 = vpop.permute.xlu0 %5083
    %5085 = vrot.lane.b32.xlu0 %v5077, 104
    %v5086 = vpop.permute.xlu0 %5085
    %5087 = vrot.lane.b32.xlu0 %v5075, 72
    %v5088 = vpop.permute.xlu0 %5087
    %5089 = vrot.lane.b32.xlu0 %v5076, 72
    %v5090 = vpop.permute.xlu0 %5089
    %5091 = vrot.lane.b32.xlu0 %v5077, 72
    %v5092 = vpop.permute.xlu0 %5091
    %v5093 = vsel %vm449, %v5082, 0
    %v5095 = vsel %vm449, %v5084, 0
    %v5097 = vsel %vm449, %v5086, 0
    %v5099 = vsel %vm449, %v5088, 0
    %v5101 = vsel %vm449, %v5090, 0
    %v5103 = vsel %vm449, %v5092, 0
    %5105 = vmatprep.subr.mxu0 0.0
    %5106 = vmatpush1.xpose.msra.mxu0 %v5099
    %5107 = vmatprep.subr.mxu0 0.0
    %5108 = vmatpush1.xpose.msra.mxu0 %v5101
    %5109 = vmatprep.subr.mxu0 0.0
    %5110 = vmatpush1.xpose.msra.mxu0 %v5103
    %5111 = vmatprep.subr.mxu0 0.0
    %5112 = vmatpush1.xpose.msra.mxu0 0.0
    %5113 = vmatprep.subr.mxu0 0.0
    %5114 = vmatpush1.xpose.msra.mxu0 0.0
    %5115 = vmatprep.subr.mxu0 0.0
    %5116 = vmatpush1.xpose.msra.mxu0 0.0
    %5117 = vmatprep.subr.mxu0 0.0
    %5118 = vmatpush1.xpose.msra.mxu0 0.0
    %5119 = vmatprep.subr.mxu0 0.0
    %5120 = vmatpush1.xpose.msra.mxu0 0.0
    %5121 = vmatprep.subr.mxu0 0.0
    %5122 = vmatpush1.xpose.msra.mxu0 0.0
    %5123 = vmatprep.subr.mxu0 0.0
    %5124 = vmatpush1.xpose.msra.mxu0 0.0
    %5125 = vmatprep.subr.mxu0 0.0
    %5126 = vmatpush1.xpose.msra.mxu0 0.0
    %5127 = vmatprep.subr.mxu0 0.0
    %5128 = vmatpush1.xpose.msra.mxu0 0.0
    %5129 = vmatprep.subr.mxu0 0.0
    %5130 = vmatpush1.xpose.msra.mxu0 0.0
    %5131 = vmatprep.subr.mxu0 0.0
    %5132 = vmatpush1.xpose.msra.mxu0 0.0
    %5133 = vmatprep.subr.mxu0 0.0
    %5134 = vmatpush1.xpose.msra.mxu0 0.0
    %5135 = vmatprep.subr.mxu0 0.0
    %5136 = vmatpush1.xpose.msra.mxu0 0.0
    %5137 = vmatprep.subr.mxu0 0.0
    %5138 = vmatpush1.xpose.msra.mxu0 0.0
    %5139 = vmatprep.subr.mxu0 0.0
    %5140 = vmatpush1.xpose.msra.mxu0 0.0
    %5141 = vmatprep.subr.mxu0 0.0
    %5142 = vmatpush1.xpose.msra.mxu0 0.0
    %5143 = vmatprep.subr.mxu0 0.0
    %5144 = vmatpush1.xpose.msra.mxu0 0.0
    %5145 = vmatprep.subr.mxu0 0.0
    %5146 = vmatpush1.xpose.msra.mxu0 0.0
    %5147 = vmatprep.subr.mxu0 0.0
    %5148 = vmatpush1.xpose.msra.mxu0 0.0
    %5149 = vmatprep.subr.mxu0 0.0
    %5150 = vmatpush1.xpose.msra.mxu0 0.0
    %5151 = vmatprep.subr.mxu0 0.0
    %5152 = vmatpush1.xpose.msra.mxu0 0.0
    %5153 = vmatprep.subr.mxu0 0.0
    %5154 = vmatpush1.xpose.msra.mxu0 0.0
    %5155 = vmatprep.subr.mxu0 0.0
    %5156 = vmatpush1.xpose.msra.mxu0 0.0
    %5157 = vmatprep.subr.mxu0 0.0
    %5158 = vmatpush1.xpose.msra.mxu0 0.0
    %5159 = vmatprep.subr.mxu0 0.0
    %5160 = vmatpush1.xpose.msra.mxu0 0.0
    %5161 = vmatprep.subr.mxu0 0.0
    %5162 = vmatpush1.xpose.msra.mxu0 0.0
    %5163 = vmatprep.subr.mxu0 0.0
    %5164 = vmatpush1.xpose.msra.mxu0 0.0
    %5165 = vmatprep.subr.mxu0 0.0
    %5166 = vmatpush1.xpose.msra.mxu0 0.0
    %5167 = vmatprep.subr.mxu0 0.0
    %5168 = vmatpush1.xpose.msra.mxu0 0.0
    %5169 = vmatprep.mubr.f32.mxu0 0.0
    %5170 = vmatmul.mubr.f32.gmra.mrb[0].mxu0 %v5093
    %v5171 = vpop.f32.mrb[0].mxu0
    %v5172 = vadd.f32 0.0, %v5171
    %v5173 = vpop.f32.mrb[0].mxu0
    %5174 = vmatprep.mubr.f32.mxu0 0.0
    %5175 = vmatmul.mubr.f32.gmra.mrb[0].mxu0 %v5095
    %v5176 = vpop.f32.mrb[0].mxu0
    %v5177 = vadd.f32 0.0, %v5176
    %v5178 = vpop.f32.mrb[0].mxu0
    %5179 = vmatprep.mubr.f32.mxu0 0.0
    %5180 = vmatmul.mubr.f32.gmra.mrb[0].mxu0 %v5097
    %v5181 = vpop.f32.mrb[0].mxu0
    %v5182 = vadd.f32 0.0, %v5181
    %v5183 = vpop.f32.mrb[0].mxu0
    %5184 = vdwg.mxu0
    %v5185 = vmul.f32 %v5172, 0.35355338
    %v5186 = vmul.f32 %v5177, 0.35355338
    %v5187 = vmul.f32 %v5182, 0.35355338
    %v5188 = vsel %vm545, %v5185, -inf
    %5189 = vmax.xlane.f32.xlu0 %v5188
    %v5190 = vpop.xlane.xlu0 %5189
    %v5191 = vsel %vm545, %v5186, -inf
    %5192 = vmax.xlane.f32.xlu0 %v5191
    %v5193 = vpop.xlane.xlu0 %5192
    %v5194 = vsel %vm552, %v5187, -inf
    %5195 = vmax.xlane.f32.xlu0 %v5194
    %v5196 = vpop.xlane.xlu0 %5195
    %v5197 = vsub.f32 %v5185, %v5190
    %v5198 = vsub.f32 %v5186, %v5193
    %v5199 = vsub.f32 %v5187, %v5196
    %v5200 = vmul.f32 %v5197, 1.442695
    %v5201 = vpow.pop %v5200
    %v5202 = vmul.f32 %v5198, 1.442695
    %v5203 = vpow.pop %v5202
    %v5204 = vmul.f32 %v5199, 1.442695
    %v5205 = vpow.pop %v5204
    %v5206 = vsel %vm545, %v5201, 0.0
    %5207 = vadd.xlane.f32.xlu0 %v5206
    %v5208 = vpop.xlane.xlu0 %5207
    %v5209 = vsel %vm545, %v5203, 0.0
    %5210 = vadd.xlane.f32.xlu0 %v5209
    %v5211 = vpop.xlane.xlu0 %5210
    %v5212 = vsel %vm552, %v5205, 0.0
    %5213 = vadd.xlane.f32.xlu0 %v5212
    %v5214 = vpop.xlane.xlu0 %5213
    %v5215 = vrcp.pop %v5208
    %v5216 = vrcp.pop %v5211
    %v5217 = vrcp.pop %v5214
    %v5218 = vmul.f32 %v5201, %v5215
    %v5219 = vmul.f32 %v5203, %v5216
    %v5220 = vmul.f32 %v5205, %v5217
    %5221 = vrot.lane.b32.xlu0 %v5075, 40
    %v5222 = vpop.permute.xlu0 %5221
    %5223 = vrot.lane.b32.xlu0 %v5076, 40
    %v5224 = vpop.permute.xlu0 %5223
    %5225 = vrot.lane.b32.xlu0 %v5077, 40
    %v5226 = vpop.permute.xlu0 %5225
    %v5230 = vsel %vm545, %v5218, 0
    %v5233 = vsel %vm545, %v5219, 0
    %v5236 = vsel %vm545, %v5220, 0
    %v5238 = vsel %vm597, %v5226, 0
    %5240 = vmatprep.subr.mxu0 0.0
    %5241 = vmatpush1.msra.mxu0 %v5222
    %5242 = vmatprep.subr.mxu0 0.0
    %5243 = vmatpush1.msra.mxu0 %v5224
    %5244 = vmatprep.subr.mxu0 0.0
    %5245 = vmatpush1.msra.mxu0 %v5238
    %5246 = vmatprep.subr.mxu0 0.0
    %5247 = vmatpush1.msra.mxu0 0.0
    %5248 = vmatprep.subr.mxu0 0.0
    %5249 = vmatpush1.msra.mxu0 0.0
    %5250 = vmatprep.subr.mxu0 0.0
    %5251 = vmatpush1.msra.mxu0 0.0
    %5252 = vmatprep.subr.mxu0 0.0
    %5253 = vmatpush1.msra.mxu0 0.0
    %5254 = vmatprep.subr.mxu0 0.0
    %5255 = vmatpush1.msra.mxu0 0.0
    %5256 = vmatprep.subr.mxu0 0.0
    %5257 = vmatpush1.msra.mxu0 0.0
    %5258 = vmatprep.subr.mxu0 0.0
    %5259 = vmatpush1.msra.mxu0 0.0
    %5260 = vmatprep.subr.mxu0 0.0
    %5261 = vmatpush1.msra.mxu0 0.0
    %5262 = vmatprep.subr.mxu0 0.0
    %5263 = vmatpush1.msra.mxu0 0.0
    %5264 = vmatprep.subr.mxu0 0.0
    %5265 = vmatpush1.msra.mxu0 0.0
    %5266 = vmatprep.subr.mxu0 0.0
    %5267 = vmatpush1.msra.mxu0 0.0
    %5268 = vmatprep.subr.mxu0 0.0
    %5269 = vmatpush1.msra.mxu0 0.0
    %5270 = vmatprep.subr.mxu0 0.0
    %5271 = vmatpush1.msra.mxu0 0.0
    %5272 = vmatprep.subr.mxu0 0.0
    %5273 = vmatpush1.msra.mxu0 0.0
    %5274 = vmatprep.subr.mxu0 0.0
    %5275 = vmatpush1.msra.mxu0 0.0
    %5276 = vmatprep.subr.mxu0 0.0
    %5277 = vmatpush1.msra.mxu0 0.0
    %5278 = vmatprep.subr.mxu0 0.0
    %5279 = vmatpush1.msra.mxu0 0.0
    %5280 = vmatprep.subr.mxu0 0.0
    %5281 = vmatpush1.msra.mxu0 0.0
    %5282 = vmatprep.subr.mxu0 0.0
    %5283 = vmatpush1.msra.mxu0 0.0
    %5284 = vmatprep.subr.mxu0 0.0
    %5285 = vmatpush1.msra.mxu0 0.0
    %5286 = vmatprep.subr.mxu0 0.0
    %5287 = vmatpush1.msra.mxu0 0.0
    %5288 = vmatprep.subr.mxu0 0.0
    %5289 = vmatpush1.msra.mxu0 0.0
    %5290 = vmatprep.subr.mxu0 0.0
    %5291 = vmatpush1.msra.mxu0 0.0
    %5292 = vmatprep.subr.mxu0 0.0
    %5293 = vmatpush1.msra.mxu0 0.0
    %5294 = vmatprep.subr.mxu0 0.0
    %5295 = vmatpush1.msra.mxu0 0.0
    %5296 = vmatprep.subr.mxu0 0.0
    %5297 = vmatpush1.msra.mxu0 0.0
    %5298 = vmatprep.subr.mxu0 0.0
    %5299 = vmatpush1.msra.mxu0 0.0
    %5300 = vmatprep.subr.mxu0 0.0
    %5301 = vmatpush1.msra.mxu0 0.0
    %5302 = vmatprep.subr.mxu0 0.0
    %5303 = vmatpush1.msra.mxu0 0.0
    %5304 = vmatprep.mubr.f32.mxu0 0.0
    %5305 = vmatmul.mubr.f32.gmra.mrb[0].mxu0 %v5230
    %v5306 = vpop.f32.mrb[0].mxu0
    %v5307 = vadd.f32 0.0, %v5306
    %v5308 = vpop.f32.mrb[0].mxu0
    %5309 = vmatprep.mubr.f32.mxu0 0.0
    %5310 = vmatmul.mubr.f32.gmra.mrb[0].mxu0 %v5233
    %v5311 = vpop.f32.mrb[0].mxu0
    %v5312 = vadd.f32 0.0, %v5311
    %v5313 = vpop.f32.mrb[0].mxu0
    %5314 = vmatprep.mubr.f32.mxu0 0.0
    %5315 = vmatmul.mubr.f32.gmra.mrb[0].mxu0 %v5236
    %v5316 = vpop.f32.mrb[0].mxu0
    %v5317 = vadd.f32 0.0, %v5316
    %v5318 = vpop.f32.mrb[0].mxu0
    %5319 = vdwg.mxu0
    %5323 = vrot.lane.b32.xlu0 %v5307, 24
    %v5324 = vpop.permute.xlu0 %5323
    %5325 = vrot.lane.b32.xlu0 %v5312, 24
    %v5326 = vpop.permute.xlu0 %5325
    %5327 = vrot.lane.b32.xlu0 %v5317, 24
    %v5328 = vpop.permute.xlu0 %5327
    %5332 = vst.msk [vmem:[#allocation4 + $0x11] sm:$0xff] %vm1465, %v5324
    %5333 = vst.msk [vmem:[#allocation4 + $0x19] sm:$0xff] %vm1465, %v5326
    %5334 = vst.msk [vmem:[#allocation4 + $0x21] sm:$0x1] %vm1468, %v5328
    %v5335 = vld [vmem:[#allocation4] sm:$0xff]
    %v5336 = vld [vmem:[#allocation4 + $0x8] sm:$0xff]
    %v5337 = vld [vmem:[#allocation4 + $0x10] sm:$0xff]
    %v5338 = vld [vmem:[#allocation4 + $0x18] sm:$0xff]
    %v5339 = vld [vmem:[#allocation4 + $0x20] sm:$0x3]
    %s5340 = scalar_lea.vmem %s9, 32
    %v5341 = vld [vmem:[%s5340] sm:$0xff]
    %v5342 = vld [vmem:[%s5340 + $0x8] sm:$0xff]
    %v5343 = vld [vmem:[%s5340 + $0x10] sm:$0xff]
    %v5344 = vld [vmem:[%s5340 + $0x18] sm:$0xff]
    %s5345 = scalar_lea.vmem %s10, 1
    %v5346 = vld [vmem:[%s5345] sm:$0x1]
    %v5348 = vlaneseq
    %v5349 = vshrl.u32 %v5348, 7
    %v5350 = vsub.s32 0, %v5349
    %v5351 = vrot.slane %v5346, %v5350
    %v5354 = vsel %vm210, %v5335, 0
    %v5357 = vsel %vm210, %v5336, 0
    %v5360 = vsel %vm210, %v5337, 0
    %v5363 = vsel %vm210, %v5338, 0
    %v5366 = vsel %vm210, %v5339, 0
    %5368 = vmatprep.subr.mxu0 0.0
    %5369 = vmatpush1.msra.mxu0 %v5341
    %5370 = vmatprep.subr.mxu0 0.0
    %5371 = vmatpush1.msra.mxu0 %v5342
    %5372 = vmatprep.subr.mxu0 0.0
    %5373 = vmatpush1.msra.mxu0 %v5343
    %5374 = vmatprep.subr.mxu0 0.0
    %5375 = vmatpush1.msra.mxu0 %v5344
    %5376 = vmatprep.subr.mxu0 0.0
    %5377 = vmatpush1.msra.mxu0 0.0
    %5378 = vmatprep.subr.mxu0 0.0
    %5379 = vmatpush1.msra.mxu0 0.0
    %5380 = vmatprep.subr.mxu0 0.0
    %5381 = vmatpush1.msra.mxu0 0.0
    %5382 = vmatprep.subr.mxu0 0.0
    %5383 = vmatpush1.msra.mxu0 0.0
    %5384 = vmatprep.subr.mxu0 0.0
    %5385 = vmatpush1.msra.mxu0 0.0
    %5386 = vmatprep.subr.mxu0 0.0
    %5387 = vmatpush1.msra.mxu0 0.0
    %5388 = vmatprep.subr.mxu0 0.0
    %5389 = vmatpush1.msra.mxu0 0.0
    %5390 = vmatprep.subr.mxu0 0.0
    %5391 = vmatpush1.msra.mxu0 0.0
    %5392 = vmatprep.subr.mxu0 0.0
    %5393 = vmatpush1.msra.mxu0 0.0
    %5394 = vmatprep.subr.mxu0 0.0
    %5395 = vmatpush1.msra.mxu0 0.0
    %5396 = vmatprep.subr.mxu0 0.0
    %5397 = vmatpush1.msra.mxu0 0.0
    %5398 = vmatprep.subr.mxu0 0.0
    %5399 = vmatpush1.msra.mxu0 0.0
    %5400 = vmatprep.subr.mxu0 0.0
    %5401 = vmatpush1.msra.mxu0 0.0
    %5402 = vmatprep.subr.mxu0 0.0
    %5403 = vmatpush1.msra.mxu0 0.0
    %5404 = vmatprep.subr.mxu0 0.0
    %5405 = vmatpush1.msra.mxu0 0.0
    %5406 = vmatprep.subr.mxu0 0.0
    %5407 = vmatpush1.msra.mxu0 0.0
    %5408 = vmatprep.subr.mxu0 0.0
    %5409 = vmatpush1.msra.mxu0 0.0
    %5410 = vmatprep.subr.mxu0 0.0
    %5411 = vmatpush1.msra.mxu0 0.0
    %5412 = vmatprep.subr.mxu0 0.0
    %5413 = vmatpush1.msra.mxu0 0.0
    %5414 = vmatprep.subr.mxu0 0.0
    %5415 = vmatpush1.msra.mxu0 0.0
    %5416 = vmatprep.subr.mxu0 0.0
    %5417 = vmatpush1.msra.mxu0 0.0
    %5418 = vmatprep.subr.mxu0 0.0
    %5419 = vmatpush1.msra.mxu0 0.0
    %5420 = vmatprep.subr.mxu0 0.0
    %5421 = vmatpush1.msra.mxu0 0.0
    %5422 = vmatprep.subr.mxu0 0.0
    %5423 = vmatpush1.msra.mxu0 0.0
    %5424 = vmatprep.subr.mxu0 0.0
    %5425 = vmatpush1.msra.mxu0 0.0
    %5426 = vmatprep.subr.mxu0 0.0
    %5427 = vmatpush1.msra.mxu0 0.0
    %5428 = vmatprep.subr.mxu0 0.0
    %5429 = vmatpush1.msra.mxu0 0.0
    %5430 = vmatprep.subr.mxu0 0.0
    %5431 = vmatpush1.msra.mxu0 0.0
    %5432 = vmatprep.mubr.f32.mxu0 0.0
    %5433 = vmatmul.mubr.f32.gmra.mrb[0].mxu0 %v5354
    %v5434 = vpop.f32.mrb[0].mxu0
    %v5435 = vadd.f32 %v5351, %v5434
    %v5436 = vpop.f32.mrb[0].mxu0
    %5437 = vmatprep.mubr.f32.mxu0 0.0
    %5438 = vmatmul.mubr.f32.gmra.mrb[0].mxu0 %v5357
    %v5439 = vpop.f32.mrb[0].mxu0
    %v5440 = vadd.f32 %v5351, %v5439
    %v5441 = vpop.f32.mrb[0].mxu0
    %5442 = vmatprep.mubr.f32.mxu0 0.0
    %5443 = vmatmul.mubr.f32.gmra.mrb[0].mxu0 %v5360
    %v5444 = vpop.f32.mrb[0].mxu0
    %v5445 = vadd.f32 %v5351, %v5444
    %v5446 = vpop.f32.mrb[0].mxu0
    %5447 = vmatprep.mubr.f32.mxu0 0.0
    %5448 = vmatmul.mubr.f32.gmra.mrb[0].mxu0 %v5363
    %v5449 = vpop.f32.mrb[0].mxu0
    %v5450 = vadd.f32 %v5351, %v5449
    %v5451 = vpop.f32.mrb[0].mxu0
    %5452 = vmatprep.mubr.f32.mxu0 0.0
    %5453 = vmatmul.mubr.f32.gmra.mrb[0].mxu0 %v5366
    %v5454 = vpop.f32.mrb[0].mxu0
    %v5455 = vadd.f32 %v5351, %v5454
    %v5456 = vpop.f32.mrb[0].mxu0
    %5457 = vdwg.mxu0
    %v5458 = vadd.f32 %v3072, %v5435
    %v5459 = vadd.f32 %v3073, %v5440
    %v5460 = vadd.f32 %v3074, %v5445
    %v5461 = vadd.f32 %v3075, %v5450
    %v5462 = vadd.f32 %v3076, %v5455
    %s5463 = scalar_lea.vmem %s11, 1
    %v5464 = vld [vmem:[%s5463] sm:$0x1]
    %s5465 = scalar_lea.vmem %s12, 1
    %v5466 = vld [vmem:[%s5465] sm:$0x1]
    %v5467 = vsel %vm210, %v5458, 0.0
    %5468 = vadd.xlane.f32.xlu0 %v5467
    %v5469 = vpop.xlane.xlu0 %5468
    %v5470 = vsel %vm210, %v5459, 0.0
    %5471 = vadd.xlane.f32.xlu0 %v5470
    %v5472 = vpop.xlane.xlu0 %5471
    %v5473 = vsel %vm210, %v5460, 0.0
    %5474 = vadd.xlane.f32.xlu0 %v5473
    %v5475 = vpop.xlane.xlu0 %5474
    %v5476 = vsel %vm210, %v5461, 0.0
    %5477 = vadd.xlane.f32.xlu0 %v5476
    %v5478 = vpop.xlane.xlu0 %5477
    %v5479 = vsel %vm237, %v5462, 0.0
    %5480 = vadd.xlane.f32.xlu0 %v5479
    %v5481 = vpop.xlane.xlu0 %5480
    %v5482 = vmul.f32 %v5469, %v241
    %v5483 = vmul.f32 %v5472, %v241
    %v5484 = vmul.f32 %v5475, %v241
    %v5485 = vmul.f32 %v5478, %v241
    %v5486 = vmul.f32 %v5481, %v241
    %v5487 = vsub.f32 %v5458, %v5482
    %v5488 = vsub.f32 %v5459, %v5483
    %v5489 = vsub.f32 %v5460, %v5484
    %v5490 = vsub.f32 %v5461, %v5485
    %v5491 = vsub.f32 %v5462, %v5486
    %v5492 = vmul.f32 %v5487, %v5487
    %v5493 = vmul.f32 %v5488, %v5488
    %v5494 = vmul.f32 %v5489, %v5489
    %v5495 = vmul.f32 %v5490, %v5490
    %v5496 = vmul.f32 %v5491, %v5491
    %v5497 = vsel %vm210, %v5492, 0.0
    %5498 = vadd.xlane.f32.xlu0 %v5497
    %v5499 = vpop.xlane.xlu0 %5498
    %v5500 = vsel %vm210, %v5493, 0.0
    %5501 = vadd.xlane.f32.xlu0 %v5500
    %v5502 = vpop.xlane.xlu0 %5501
    %v5503 = vsel %vm210, %v5494, 0.0
    %5504 = vadd.xlane.f32.xlu0 %v5503
    %v5505 = vpop.xlane.xlu0 %5504
    %v5506 = vsel %vm210, %v5495, 0.0
    %5507 = vadd.xlane.f32.xlu0 %v5506
    %v5508 = vpop.xlane.xlu0 %5507
    %v5509 = vsel %vm237, %v5496, 0.0
    %5510 = vadd.xlane.f32.xlu0 %v5509
    %v5511 = vpop.xlane.xlu0 %5510
    %v5512 = vmul.f32 %v5499, %v241
    %v5513 = vmul.f32 %v5502, %v241
    %v5514 = vmul.f32 %v5505, %v241
    %v5515 = vmul.f32 %v5508, %v241
    %v5516 = vmul.f32 %v5511, %v241
    %v5517 = vadd.f32 %v5512, 1e-05
    %v5518 = vadd.f32 %v5513, 1e-05
    %v5519 = vadd.f32 %v5514, 1e-05
    %v5520 = vadd.f32 %v5515, 1e-05
    %v5521 = vadd.f32 %v5516, 1e-05
    %v5522 = vrsqrt.pop %v5517
    %v5523 = vrsqrt.pop %v5518
    %v5524 = vrsqrt.pop %v5519
    %v5525 = vrsqrt.pop %v5520
    %v5526 = vrsqrt.pop %v5521
    %v5527 = vmul.f32 %v5487, %v5522
    %v5528 = vmul.f32 %v5488, %v5523
    %v5529 = vmul.f32 %v5489, %v5524
    %v5530 = vmul.f32 %v5490, %v5525
    %v5531 = vmul.f32 %v5491, %v5526
    %v5533 = vlaneseq
    %v5534 = vshrl.u32 %v5533, 7
    %v5535 = vsub.s32 0, %v5534
    %v5536 = vrot.slane %v5464, %v5535
    %v5538 = vmul.f32 %v5527, %v5536
    %v5539 = vmul.f32 %v5528, %v5536
    %v5540 = vmul.f32 %v5529, %v5536
    %v5541 = vmul.f32 %v5530, %v5536
    %v5542 = vmul.f32 %v5531, %v5536
    %v5544 = vlaneseq
    %v5545 = vshrl.u32 %v5544, 7
    %v5546 = vsub.s32 0, %v5545
    %v5547 = vrot.slane %v5466, %v5546
    %v5549 = vadd.f32 %v5538, %v5547
    %v5550 = vadd.f32 %v5539, %v5547
    %v5551 = vadd.f32 %v5540, %v5547
    %v5552 = vadd.f32 %v5541, %v5547
    %v5553 = vadd.f32 %v5542, %v5547
    %s5554 = scalar_lea.vmem %s13, 32
    %v5555 = vld [vmem:[%s5554] sm:$0xff]
    %v5556 = vld [vmem:[%s5554 + $0x8] sm:$0xff]
    %v5557 = vld [vmem:[%s5554 + $0x10] sm:$0xff]
    %v5558 = vld [vmem:[%s5554 + $0x18] sm:$0xff]
    %s5559 = scalar_lea.vmem %s14, 1
    %v5560 = vld [vmem:[%s5559] sm:$0x1]
    %v5562 = vlaneseq
    %v5563 = vshrl.u32 %v5562, 7
    %v5564 = vsub.s32 0, %v5563
    %v5565 = vrot.slane %v5560, %v5564
    %v5568 = vsel %vm210, %v5549, 0
    %v5571 = vsel %vm210, %v5550, 0
    %v5574 = vsel %vm210, %v5551, 0
    %v5577 = vsel %vm210, %v5552, 0
    %v5580 = vsel %vm210, %v5553, 0
    %5582 = vmatprep.subr.mxu0 0.0
    %5583 = vmatpush1.msra.mxu0 %v5555
    %5584 = vmatprep.subr.mxu0 0.0
    %5585 = vmatpush1.msra.mxu0 %v5556
    %5586 = vmatprep.subr.mxu0 0.0
    %5587 = vmatpush1.msra.mxu0 %v5557
    %5588 = vmatprep.subr.mxu0 0.0
    %5589 = vmatpush1.msra.mxu0 %v5558
    %5590 = vmatprep.subr.mxu0 0.0
    %5591 = vmatpush1.msra.mxu0 0.0
    %5592 = vmatprep.subr.mxu0 0.0
    %5593 = vmatpush1.msra.mxu0 0.0
    %5594 = vmatprep.subr.mxu0 0.0
    %5595 = vmatpush1.msra.mxu0 0.0
    %5596 = vmatprep.subr.mxu0 0.0
    %5597 = vmatpush1.msra.mxu0 0.0
    %5598 = vmatprep.subr.mxu0 0.0
    %5599 = vmatpush1.msra.mxu0 0.0
    %5600 = vmatprep.subr.mxu0 0.0
    %5601 = vmatpush1.msra.mxu0 0.0
    %5602 = vmatprep.subr.mxu0 0.0
    %5603 = vmatpush1.msra.mxu0 0.0
    %5604 = vmatprep.subr.mxu0 0.0
    %5605 = vmatpush1.msra.mxu0 0.0
    %5606 = vmatprep.subr.mxu0 0.0
    %5607 = vmatpush1.msra.mxu0 0.0
    %5608 = vmatprep.subr.mxu0 0.0
    %5609 = vmatpush1.msra.mxu0 0.0
    %5610 = vmatprep.subr.mxu0 0.0
    %5611 = vmatpush1.msra.mxu0 0.0
    %5612 = vmatprep.subr.mxu0 0.0
    %5613 = vmatpush1.msra.mxu0 0.0
    %5614 = vmatprep.subr.mxu0 0.0
    %5615 = vmatpush1.msra.mxu0 0.0
    %5616 = vmatprep.subr.mxu0 0.0
    %5617 = vmatpush1.msra.mxu0 0.0
    %5618 = vmatprep.subr.mxu0 0.0
    %5619 = vmatpush1.msra.mxu0 0.0
    %5620 = vmatprep.subr.mxu0 0.0
    %5621 = vmatpush1.msra.mxu0 0.0
    %5622 = vmatprep.subr.mxu0 0.0
    %5623 = vmatpush1.msra.mxu0 0.0
    %5624 = vmatprep.subr.mxu0 0.0
    %5625 = vmatpush1.msra.mxu0 0.0
    %5626 = vmatprep.subr.mxu0 0.0
    %5627 = vmatpush1.msra.mxu0 0.0
    %5628 = vmatprep.subr.mxu0 0.0
    %5629 = vmatpush1.msra.mxu0 0.0
    %5630 = vmatprep.subr.mxu0 0.0
    %5631 = vmatpush1.msra.mxu0 0.0
    %5632 = vmatprep.subr.mxu0 0.0
    %5633 = vmatpush1.msra.mxu0 0.0
    %5634 = vmatprep.subr.mxu0 0.0
    %5635 = vmatpush1.msra.mxu0 0.0
    %5636 = vmatprep.subr.mxu0 0.0
    %5637 = vmatpush1.msra.mxu0 0.0
    %5638 = vmatprep.subr.mxu0 0.0
    %5639 = vmatpush1.msra.mxu0 0.0
    %5640 = vmatprep.subr.mxu0 0.0
    %5641 = vmatpush1.msra.mxu0 0.0
    %5642 = vmatprep.subr.mxu0 0.0
    %5643 = vmatpush1.msra.mxu0 0.0
    %5644 = vmatprep.subr.mxu0 0.0
    %5645 = vmatpush1.msra.mxu0 0.0
    %5646 = vmatprep.mubr.f32.mxu0 0.0
    %5647 = vmatmul.mubr.f32.gmra.mrb[0].mxu0 %v5568
    %v5648 = vpop.f32.mrb[0].mxu0
    %v5649 = vadd.f32 %v5565, %v5648
    %v5650 = vpop.f32.mrb[0].mxu0
    %5651 = vmatprep.mubr.f32.mxu0 0.0
    %5652 = vmatmul.mubr.f32.gmra.mrb[0].mxu0 %v5571
    %v5653 = vpop.f32.mrb[0].mxu0
    %v5654 = vadd.f32 %v5565, %v5653
    %v5655 = vpop.f32.mrb[0].mxu0
    %5656 = vmatprep.mubr.f32.mxu0 0.0
    %5657 = vmatmul.mubr.f32.gmra.mrb[0].mxu0 %v5574
    %v5658 = vpop.f32.mrb[0].mxu0
    %v5659 = vadd.f32 %v5565, %v5658
    %v5660 = vpop.f32.mrb[0].mxu0
    %5661 = vmatprep.mubr.f32.mxu0 0.0
    %5662 = vmatmul.mubr.f32.gmra.mrb[0].mxu0 %v5577
    %v5663 = vpop.f32.mrb[0].mxu0
    %v5664 = vadd.f32 %v5565, %v5663
    %v5665 = vpop.f32.mrb[0].mxu0
    %5666 = vmatprep.mubr.f32.mxu0 0.0
    %5667 = vmatmul.mubr.f32.gmra.mrb[0].mxu0 %v5580
    %v5668 = vpop.f32.mrb[0].mxu0
    %v5669 = vadd.f32 %v5565, %v5668
    %v5670 = vpop.f32.mrb[0].mxu0
    %5671 = vdwg.mxu0
    %v5672 = vmul.f32 %v5649, 0.70710677
    %v5673 = vmul.f32 %v5654, 0.70710677
    %v5674 = vmul.f32 %v5659, 0.70710677
    %v5675 = vmul.f32 %v5664, 0.70710677
    %v5676 = vmul.f32 %v5669, 0.70710677
    %vm5677 = vcmp.ge.f32.partialorder %v5672, 0.0
    %vm5678 = vcmp.ge.f32.partialorder %v5673, 0.0
    %vm5679 = vcmp.ge.f32.partialorder %v5674, 0.0
    %vm5680 = vcmp.ge.f32.partialorder %v5675, 0.0
    %vm5681 = vcmp.ge.f32.partialorder %v5676, 0.0
    %v5682 = vsel %vm5677, 1.0, -1.0
    %v5683 = vsel %vm5678, 1.0, -1.0
    %v5684 = vsel %vm5679, 1.0, -1.0
    %v5685 = vsel %vm5680, 1.0, -1.0
    %v5686 = vsel %vm5681, 1.0, -1.0
    %v5687 = vand.u32 2147483647, %v5672
    %v5688 = vand.u32 2147483647, %v5673
    %v5689 = vand.u32 2147483647, %v5674
    %v5690 = vand.u32 2147483647, %v5675
    %v5691 = vand.u32 2147483647, %v5676
    %v5692 = vmul.f32 %v5687, 0.3275911
    %v5693 = vmul.f32 %v5688, 0.3275911
    %v5694 = vmul.f32 %v5689, 0.3275911
    %v5695 = vmul.f32 %v5690, 0.3275911
    %v5696 = vmul.f32 %v5691, 0.3275911
    %v5697 = vadd.f32 %v5692, 1.0
    %v5698 = vadd.f32 %v5693, 1.0
    %v5699 = vadd.f32 %v5694, 1.0
    %v5700 = vadd.f32 %v5695, 1.0
    %v5701 = vadd.f32 %v5696, 1.0
    %v5702 = vrcp.pop %v5697
    %v5703 = vrcp.pop %v5698
    %v5704 = vrcp.pop %v5699
    %v5705 = vrcp.pop %v5700
    %v5706 = vrcp.pop %v5701
    %v5707 = vmul.f32 %v5702, 1.0614054
    %v5708 = vmul.f32 %v5703, 1.0614054
    %v5709 = vmul.f32 %v5704, 1.0614054
    %v5710 = vmul.f32 %v5705, 1.0614054
    %v5711 = vmul.f32 %v5706, 1.0614054
    %v5712 = vadd.f32 %v5707, -1.4531521
    %v5713 = vadd.f32 %v5708, -1.4531521
    %v5714 = vadd.f32 %v5709, -1.4531521
    %v5715 = vadd.f32 %v5710, -1.4531521
    %v5716 = vadd.f32 %v5711, -1.4531521
    %v5717 = vmul.f32 %v5712, %v5702
    %v5718 = vmul.f32 %v5713, %v5703
    %v5719 = vmul.f32 %v5714, %v5704
    %v5720 = vmul.f32 %v5715, %v5705
    %v5721 = vmul.f32 %v5716, %v5706
    %v5722 = vadd.f32 %v5717, 1.4214138
    %v5723 = vadd.f32 %v5718, 1.4214138
    %v5724 = vadd.f32 %v5719, 1.4214138
    %v5725 = vadd.f32 %v5720, 1.4214138
    %v5726 = vadd.f32 %v5721, 1.4214138
    %v5727 = vmul.f32 %v5722, %v5702
    %v5728 = vmul.f32 %v5723, %v5703
    %v5729 = vmul.f32 %v5724, %v5704
    %v5730 = vmul.f32 %v5725, %v5705
    %v5731 = vmul.f32 %v5726, %v5706
    %v5732 = vadd.f32 %v5727, -0.28449672
    %v5733 = vadd.f32 %v5728, -0.28449672
    %v5734 = vadd.f32 %v5729, -0.28449672
    %v5735 = vadd.f32 %v5730, -0.28449672
    %v5736 = vadd.f32 %v5731, -0.28449672
    %v5737 = vmul.f32 %v5732, %v5702
    %v5738 = vmul.f32 %v5733, %v5703
    %v5739 = vmul.f32 %v5734, %v5704
    %v5740 = vmul.f32 %v5735, %v5705
    %v5741 = vmul.f32 %v5736, %v5706
    %v5742 = vadd.f32 %v5737, 0.2548296
    %v5743 = vadd.f32 %v5738, 0.2548296
    %v5744 = vadd.f32 %v5739, 0.2548296
    %v5745 = vadd.f32 %v5740, 0.2548296
    %v5746 = vadd.f32 %v5741, 0.2548296
    %v5747 = vmul.f32 %v5742, %v5702
    %v5748 = vmul.f32 %v5743, %v5703
    %v5749 = vmul.f32 %v5744, %v5704
    %v5750 = vmul.f32 %v5745, %v5705
    %v5751 = vmul.f32 %v5746, %v5706
    %v5752 = vsub.f32 0.0, %v5687
    %v5753 = vsub.f32 0.0, %v5688
    %v5754 = vsub.f32 0.0, %v5689
    %v5755 = vsub.f32 0.0, %v5690
    %v5756 = vsub.f32 0.0, %v5691
    %v5757 = vmul.f32 %v5752, %v5687
    %v5758 = vmul.f32 %v5753, %v5688
    %v5759 = vmul.f32 %v5754, %v5689
    %v5760 = vmul.f32 %v5755, %v5690
    %v5761 = vmul.f32 %v5756, %v5691
    %v5762 = vmul.f32 %v5757, 1.442695
    %v5763 = vpow.pop %v5762
    %v5764 = vmul.f32 %v5758, 1.442695
    %v5765 = vpow.pop %v5764
    %v5766 = vmul.f32 %v5759, 1.442695
    %v5767 = vpow.pop %v5766
    %v5768 = vmul.f32 %v5760, 1.442695
    %v5769 = vpow.pop %v5768
    %v5770 = vmul.f32 %v5761, 1.442695
    %v5771 = vpow.pop %v5770
    %v5772 = vmul.f32 %v5747, %v5763
    %v5773 = vmul.f32 %v5748, %v5765
    %v5774 = vmul.f32 %v5749, %v5767
    %v5775 = vmul.f32 %v5750, %v5769
    %v5776 = vmul.f32 %v5751, %v5771
    %v5777 = vsub.f32 1.0, %v5772
    %v5778 = vsub.f32 1.0, %v5773
    %v5779 = vsub.f32 1.0, %v5774
    %v5780 = vsub.f32 1.0, %v5775
    %v5781 = vsub.f32 1.0, %v5776
    %v5782 = vmul.f32 %v5682, %v5777
    %v5783 = vmul.f32 %v5683, %v5778
    %v5784 = vmul.f32 %v5684, %v5779
    %v5785 = vmul.f32 %v5685, %v5780
    %v5786 = vmul.f32 %v5686, %v5781
    %v5787 = vmul.f32 %v5649, 0.5
    %v5788 = vmul.f32 %v5654, 0.5
    %v5789 = vmul.f32 %v5659, 0.5
    %v5790 = vmul.f32 %v5664, 0.5
    %v5791 = vmul.f32 %v5669, 0.5
    %v5792 = vadd.f32 %v5782, 1.0
    %v5793 = vadd.f32 %v5783, 1.0
    %v5794 = vadd.f32 %v5784, 1.0
    %v5795 = vadd.f32 %v5785, 1.0
    %v5796 = vadd.f32 %v5786, 1.0
    %v5797 = vmul.f32 %v5787, %v5792
    %v5798 = vmul.f32 %v5788, %v5793
    %v5799 = vmul.f32 %v5789, %v5794
    %v5800 = vmul.f32 %v5790, %v5795
    %v5801 = vmul.f32 %v5791, %v5796
    %s5802 = scalar_lea.vmem %s15, 48
    %v5803 = vld [vmem:[%s5802] sm:$0xff]
    %v5804 = vld [vmem:[%s5802 + $0x8] sm:$0xff]
    %v5805 = vld [vmem:[%s5802 + $0x10] sm:$0xff]
    %v5806 = vld [vmem:[%s5802 + $0x18] sm:$0xff]
    %v5807 = vld [vmem:[%s5802 + $0x20] sm:$0xff]
    %v5808 = vld [vmem:[%s5802 + $0x28] sm:$0xff]
    %s5809 = scalar_lea.vmem %s16, 1
    %v5810 = vld [vmem:[%s5809] sm:$0x1]
    %v5812 = vlaneseq
    %v5813 = vshrl.u32 %v5812, 7
    %v5814 = vsub.s32 0, %v5813
    %v5815 = vrot.slane %v5810, %v5814
    %v5818 = vsel %vm2966, %v5797, 0
    %v5821 = vsel %vm2966, %v5798, 0
    %v5824 = vsel %vm2966, %v5799, 0
    %v5827 = vsel %vm2966, %v5800, 0
    %v5830 = vsel %vm2966, %v5801, 0
    %5832 = vmatprep.subr.mxu0 0.0
    %5833 = vmatpush1.msra.mxu0 %v5803
    %5834 = vmatprep.subr.mxu0 0.0
    %5835 = vmatpush1.msra.mxu0 %v5804
    %5836 = vmatprep.subr.mxu0 0.0
    %5837 = vmatpush1.msra.mxu0 %v5805
    %5838 = vmatprep.subr.mxu0 0.0
    %5839 = vmatpush1.msra.mxu0 %v5806
    %5840 = vmatprep.subr.mxu0 0.0
    %5841 = vmatpush1.msra.mxu0 %v5807
    %5842 = vmatprep.subr.mxu0 0.0
    %5843 = vmatpush1.msra.mxu0 %v5808
    %5844 = vmatprep.subr.mxu0 0.0
    %5845 = vmatpush1.msra.mxu0 0.0
    %5846 = vmatprep.subr.mxu0 0.0
    %5847 = vmatpush1.msra.mxu0 0.0
    %5848 = vmatprep.subr.mxu0 0.0
    %5849 = vmatpush1.msra.mxu0 0.0
    %5850 = vmatprep.subr.mxu0 0.0
    %5851 = vmatpush1.msra.mxu0 0.0
    %5852 = vmatprep.subr.mxu0 0.0
    %5853 = vmatpush1.msra.mxu0 0.0
    %5854 = vmatprep.subr.mxu0 0.0
    %5855 = vmatpush1.msra.mxu0 0.0
    %5856 = vmatprep.subr.mxu0 0.0
    %5857 = vmatpush1.msra.mxu0 0.0
    %5858 = vmatprep.subr.mxu0 0.0
    %5859 = vmatpush1.msra.mxu0 0.0
    %5860 = vmatprep.subr.mxu0 0.0
    %5861 = vmatpush1.msra.mxu0 0.0
    %5862 = vmatprep.subr.mxu0 0.0
    %5863 = vmatpush1.msra.mxu0 0.0
    %5864 = vmatprep.subr.mxu0 0.0
    %5865 = vmatpush1.msra.mxu0 0.0
    %5866 = vmatprep.subr.mxu0 0.0
    %5867 = vmatpush1.msra.mxu0 0.0
    %5868 = vmatprep.subr.mxu0 0.0
    %5869 = vmatpush1.msra.mxu0 0.0
    %5870 = vmatprep.subr.mxu0 0.0
    %5871 = vmatpush1.msra.mxu0 0.0
    %5872 = vmatprep.subr.mxu0 0.0
    %5873 = vmatpush1.msra.mxu0 0.0
    %5874 = vmatprep.subr.mxu0 0.0
    %5875 = vmatpush1.msra.mxu0 0.0
    %5876 = vmatprep.subr.mxu0 0.0
    %5877 = vmatpush1.msra.mxu0 0.0
    %5878 = vmatprep.subr.mxu0 0.0
    %5879 = vmatpush1.msra.mxu0 0.0
    %5880 = vmatprep.subr.mxu0 0.0
    %5881 = vmatpush1.msra.mxu0 0.0
    %5882 = vmatprep.subr.mxu0 0.0
    %5883 = vmatpush1.msra.mxu0 0.0
    %5884 = vmatprep.subr.mxu0 0.0
    %5885 = vmatpush1.msra.mxu0 0.0
    %5886 = vmatprep.subr.mxu0 0.0
    %5887 = vmatpush1.msra.mxu0 0.0
    %5888 = vmatprep.subr.mxu0 0.0
    %5889 = vmatpush1.msra.mxu0 0.0
    %5890 = vmatprep.subr.mxu0 0.0
    %5891 = vmatpush1.msra.mxu0 0.0
    %5892 = vmatprep.subr.mxu0 0.0
    %5893 = vmatpush1.msra.mxu0 0.0
    %5894 = vmatprep.subr.mxu0 0.0
    %5895 = vmatpush1.msra.mxu0 0.0
    %5896 = vmatprep.mubr.f32.mxu0 0.0
    %5897 = vmatmul.mubr.f32.gmra.mrb[0].mxu0 %v5818
    %v5898 = vpop.f32.mrb[0].mxu0
    %v5899 = vadd.f32 %v5815, %v5898
    %v5900 = vpop.f32.mrb[0].mxu0
    %5901 = vmatprep.mubr.f32.mxu0 0.0
    %5902 = vmatmul.mubr.f32.gmra.mrb[0].mxu0 %v5821
    %v5903 = vpop.f32.mrb[0].mxu0
    %v5904 = vadd.f32 %v5815, %v5903
    %v5905 = vpop.f32.mrb[0].mxu0
    %5906 = vmatprep.mubr.f32.mxu0 0.0
    %5907 = vmatmul.mubr.f32.gmra.mrb[0].mxu0 %v5824
    %v5908 = vpop.f32.mrb[0].mxu0
    %v5909 = vadd.f32 %v5815, %v5908
    %v5910 = vpop.f32.mrb[0].mxu0
    %5911 = vmatprep.mubr.f32.mxu0 0.0
    %5912 = vmatmul.mubr.f32.gmra.mrb[0].mxu0 %v5827
    %v5913 = vpop.f32.mrb[0].mxu0
    %v5914 = vadd.f32 %v5815, %v5913
    %v5915 = vpop.f32.mrb[0].mxu0
    %5916 = vmatprep.mubr.f32.mxu0 0.0
    %5917 = vmatmul.mubr.f32.gmra.mrb[0].mxu0 %v5830
    %v5918 = vpop.f32.mrb[0].mxu0
    %v5919 = vadd.f32 %v5815, %v5918
    %v5920 = vpop.f32.mrb[0].mxu0
    %5921 = vdwg.mxu0
    %v5922 = vadd.f32 %v5458, %v5899
    %v5923 = vadd.f32 %v5459, %v5904
    %v5924 = vadd.f32 %v5460, %v5909
    %v5925 = vadd.f32 %v5461, %v5914
    %v5926 = vadd.f32 %v5462, %v5919
    %5927 = vst.msk [vmem:[#allocation2] sm:$0xff] %vm210, %v5922
    %5928 = vst.msk [vmem:[#allocation2 + $0x8] sm:$0xff] %vm210, %v5923
    %5929 = vst.msk [vmem:[#allocation2 + $0x10] sm:$0xff] %vm210, %v5924
    %5930 = vst.msk [vmem:[#allocation2 + $0x18] sm:$0xff] %vm210, %v5925
    %5931 = vst.msk [vmem:[#allocation2 + $0x20] sm:$0x3] %vm237, %v5926
    %v5932 = vld [vmem:[#allocation2] sm:$0x1]
    %5933 = vst.msk [vmem:[#allocation5] sm:$0x1] %vm206, %v5932
    %v5934 = vld [vmem:[#allocation2 + $0x11] sm:$0x1]
    %5935 = vst.msk [vmem:[#allocation5 + $0x1] sm:$0x1] %vm206, %v5934
    %v5936 = vld [vmem:[#allocation5] sm:$0x3]
    %v5937 = vld [vmem:[%s17] sm:$0x1]
    %v5938 = vld [vmem:[%s18] sm:$0x1]
    %v5939 = vsel %vm237, %v5936, 0.0
    %5940 = vadd.xlane.f32.xlu0 %v5939
    %v5941 = vpop.xlane.xlu0 %5940
    %v5942 = vmul.f32 %v5941, %v241
    %v5943 = vsub.f32 %v5936, %v5942
    %v5944 = vmul.f32 %v5943, %v5943
    %v5945 = vsel %vm237, %v5944, 0.0
    %5946 = vadd.xlane.f32.xlu0 %v5945
    %v5947 = vpop.xlane.xlu0 %5946
    %v5948 = vmul.f32 %v5947, %v241
    %v5949 = vadd.f32 %v5948, 1e-05
    %v5950 = vrsqrt.pop %v5949
    %v5951 = vmul.f32 %v5943, %v5950
    %v5953 = vlaneseq
    %v5954 = vshrl.u32 %v5953, 7
    %v5955 = vsub.s32 0, %v5954
    %v5956 = vrot.slane %v5937, %v5955
    %v5958 = vmul.f32 %v5951, %v5956
    %v5960 = vlaneseq
    %v5961 = vshrl.u32 %v5960, 7
    %v5962 = vsub.s32 0, %v5961
    %v5963 = vrot.slane %v5938, %v5962
    %v5965 = vadd.f32 %v5958, %v5963
    %v5966 = vld [vmem:[%s19] sm:$0xff]
    %v5967 = vld [vmem:[%s19 + $0x8] sm:$0xff]
    %v5968 = vld [vmem:[%s19 + $0x10] sm:$0xff]
    %v5969 = vld [vmem:[%s19 + $0x18] sm:$0xff]
    %v5970 = vld [vmem:[%s20] sm:$0x1]
    %v5972 = vlaneseq
    %v5973 = vshrl.u32 %v5972, 7
    %v5974 = vsub.s32 0, %v5973
    %v5975 = vrot.slane %v5970, %v5974
    %v5978 = vsel %vm210, %v5965, 0
    %5980 = vmatprep.subr.mxu0 0.0
    %5981 = vmatpush1.msra.mxu0 %v5966
    %5982 = vmatprep.subr.mxu0 0.0
    %5983 = vmatpush1.msra.mxu0 %v5967
    %5984 = vmatprep.subr.mxu0 0.0
    %5985 = vmatpush1.msra.mxu0 %v5968
    %5986 = vmatprep.subr.mxu0 0.0
    %5987 = vmatpush1.msra.mxu0 %v5969
    %5988 = vmatprep.subr.mxu0 0.0
    %5989 = vmatpush1.msra.mxu0 0.0
    %5990 = vmatprep.subr.mxu0 0.0
    %5991 = vmatpush1.msra.mxu0 0.0
    %5992 = vmatprep.subr.mxu0 0.0
    %5993 = vmatpush1.msra.mxu0 0.0
    %5994 = vmatprep.subr.mxu0 0.0
    %5995 = vmatpush1.msra.mxu0 0.0
    %5996 = vmatprep.subr.mxu0 0.0
    %5997 = vmatpush1.msra.mxu0 0.0
    %5998 = vmatprep.subr.mxu0 0.0
    %5999 = vmatpush1.msra.mxu0 0.0
    %6000 = vmatprep.subr.mxu0 0.0
    %6001 = vmatpush1.msra.mxu0 0.0
    %6002 = vmatprep.subr.mxu0 0.0
    %6003 = vmatpush1.msra.mxu0 0.0
    %6004 = vmatprep.subr.mxu0 0.0
    %6005 = vmatpush1.msra.mxu0 0.0
    %6006 = vmatprep.subr.mxu0 0.0
    %6007 = vmatpush1.msra.mxu0 0.0
    %6008 = vmatprep.subr.mxu0 0.0
    %6009 = vmatpush1.msra.mxu0 0.0
    %6010 = vmatprep.subr.mxu0 0.0
    %6011 = vmatpush1.msra.mxu0 0.0
    %6012 = vmatprep.subr.mxu0 0.0
    %6013 = vmatpush1.msra.mxu0 0.0
    %6014 = vmatprep.subr.mxu0 0.0
    %6015 = vmatpush1.msra.mxu0 0.0
    %6016 = vmatprep.subr.mxu0 0.0
    %6017 = vmatpush1.msra.mxu0 0.0
    %6018 = vmatprep.subr.mxu0 0.0
    %6019 = vmatpush1.msra.mxu0 0.0
    %6020 = vmatprep.subr.mxu0 0.0
    %6021 = vmatpush1.msra.mxu0 0.0
    %6022 = vmatprep.subr.mxu0 0.0
    %6023 = vmatpush1.msra.mxu0 0.0
    %6024 = vmatprep.subr.mxu0 0.0
    %6025 = vmatpush1.msra.mxu0 0.0
    %6026 = vmatprep.subr.mxu0 0.0
    %6027 = vmatpush1.msra.mxu0 0.0
    %6028 = vmatprep.subr.mxu0 0.0
    %6029 = vmatpush1.msra.mxu0 0.0
    %6030 = vmatprep.subr.mxu0 0.0
    %6031 = vmatpush1.msra.mxu0 0.0
    %6032 = vmatprep.subr.mxu0 0.0
    %6033 = vmatpush1.msra.mxu0 0.0
    %6034 = vmatprep.subr.mxu0 0.0
    %6035 = vmatpush1.msra.mxu0 0.0
    %6036 = vmatprep.subr.mxu0 0.0
    %6037 = vmatpush1.msra.mxu0 0.0
    %6038 = vmatprep.subr.mxu0 0.0
    %6039 = vmatpush1.msra.mxu0 0.0
    %6040 = vmatprep.subr.mxu0 0.0
    %6041 = vmatpush1.msra.mxu0 0.0
    %6042 = vmatprep.subr.mxu0 0.0
    %6043 = vmatpush1.msra.mxu0 0.0
    %6044 = vmatprep.mubr.f32.mxu0 0.0
    %6045 = vmatmul.mubr.f32.gmra.mrb[0].mxu0 %v5978
    %v6046 = vpop.f32.mrb[0].mxu0
    %v6047 = vadd.f32 %v5975, %v6046
    %v6048 = vpop.f32.mrb[0].mxu0
    %6049 = vdwg.mxu0
    %vm6050 = vcmask 74752
    %6051 = vst.msk [vmem:[#allocation6] sm:$0x3] %vm6050, %v6047
    // Predicated region
    $region86: #{vision_transformer_forward.1} parent=1 // pred_check
      _
    $region87: #{vision_transformer_forward.1} parent=1 // pred_check_branch
      %6053 = sbr.rel (0) target = $region89
    $region88: #{vision_transformer_forward.1} parent=1 // pred_region
      %s6055 = ssub.s32 32, 32
      %6056 = vsyncadd [#allocation7], %s6055
      %s6058 = sshll.u32 [#allocation6], 4
      %s6059 = int_to_ptr.vmem [resolvable:$true] %s6058
      %6061 = dma.vmem_to_hbm [thread:$0]  %s6059, 32, %s21, [#allocation7]
    $region89: #{vision_transformer_forward.1} parent=1 // pred_fallthru
      _
    // Predicated region
    $region90: #{vision_transformer_forward.1} parent=1 // pred_check
      _
    $region91: #{vision_transformer_forward.1} parent=1 // pred_check_branch
      %6063 = sbr.rel (0) target = $region93
    $region92: #{vision_transformer_forward.1} parent=1 // pred_region
      %6064 = dma.done [#allocation7], 32
    $region93: #{vision_transformer_forward.1} parent=1 // pred_fallthru
      _
    %6065 = vsyncpa [#allocation7], 1

</llo_original>
